<compile_context>
chip_gen: v6e
topology: v6e:2x2x1
jax: 0.10.0
libtpu: 0.0.40
codegen_flags: <defaults>
</compile_context>

<pallas_src>
import functools
import math

import jax
import jax.numpy as jnp
from jax.experimental import pallas as pl
from jax.experimental.pallas import tpu as pltpu

# ----------------------------- model config ---------------------------------
D_INPUT = 40        # acoustic feature dim (padded_input: N x Ti x D_INPUT)
D_IN_PAD = 128      # lane-padded input feature dim
D_MODEL = 32
DP = 128            # lane-padded model dim
N_HEAD = 4
D_K = D_MODEL // N_HEAD
D_V = D_MODEL // N_HEAD
D_FF = 64
N_LAYERS_ENC = 1
N_LAYERS_DEC = 1
VOCAB = 30
VP = 128            # lane-padded vocab dim
SOS_ID = 1
EOS_ID = 2
LN_EPS = 1e-5
NEG_INF = -1e9


# ----------------------- in-kernel compute helpers --------------------------
def _ln(x, g, b):
    """LayerNorm over the true D_MODEL lanes of a (rows, DP) padded tile.

    Padded lanes of x are exactly zero, so sums over all DP lanes equal sums over
    the true D_MODEL lanes; gamma/beta are zero on padded lanes so the output
    stays zero there.
    """
    inv_d = 1.0 / D_MODEL
    mean = jnp.sum(x, axis=-1, keepdims=True) * inv_d
    var = jnp.maximum(jnp.sum(x * x, axis=-1, keepdims=True) * inv_d - mean * mean, 0.0)
    y = (x - mean) * jax.lax.rsqrt(var + LN_EPS)
    return y * g + b


def _sdpa(q, k, v, bias):
    """Scaled dot-product attention, heads sliced from fused projections.

    q: (Tq, H*dk), k: (Tk, H*dk), v: (Tk, H*dv), bias broadcastable to (Tq, Tk).
    Returns (Tq, H*dv).
    """
    scale = 1.0 / math.sqrt(D_K)
    heads = []
    for h in range(N_HEAD):
        qh = q[:, h * D_K:(h + 1) * D_K]
        kh = k[:, h * D_K:(h + 1) * D_K]
        vh = v[:, h * D_V:(h + 1) * D_V]
        s = jax.lax.dot_general(qh, kh, (((1,), (1,)), ((), ())),
                                preferred_element_type=jnp.float32)
        s = s * scale + bias
        s = s - jnp.max(s, axis=-1, keepdims=True)
        p = jnp.exp(s)
        p = p * pl.reciprocal(jnp.sum(p, axis=-1, keepdims=True), approx=True)
        heads.append(jnp.dot(p, vh, preferred_element_type=jnp.float32))
    return jnp.concatenate(heads, axis=-1)


def _mha_post(x_res, q, k, v, bias, wo, bo, g, b):
    """Post-norm MHA tail: LN(W_o(attn) + residual)."""
    ctx = _sdpa(q, k, v, bias)
    out = jnp.dot(ctx, wo, preferred_element_type=jnp.float32) + bo
    return _ln(out + x_res, g, b)


def _ffn_post(x, w1, b1, w2, b2, g, b):
    """Post-norm FFN: LN(W2(relu(W1 x)) + x)."""
    h = jnp.maximum(jnp.dot(x, w1, preferred_element_type=jnp.float32) + b1, 0.0)
    o = jnp.dot(h, w2, preferred_element_type=jnp.float32) + b2
    return _ln(o + x, g, b)


# ----------------------------- Pallas kernels -------------------------------
def _enc_prep_kernel(x_ref, pe_ref, w_ref, b_ref, g_ref, be_ref, o_ref):
    """Fused: linear_in + LayerNorm + positional encoding add."""
    y = jnp.dot(x_ref[...], w_ref[...], preferred_element_type=jnp.float32) + b_ref[...]
    y = _ln(y, g_ref[...], be_ref[...])
    o_ref[...] = (y + pe_ref[...]).astype(o_ref.dtype)


def _enc_layer_kernel(len_ref, x_ref,
                      wqkv_ref, bqkv_ref, wo_ref, bo_ref, g1_ref, be1_ref,
                      w1_ref, b1_ref, w2_ref, b2_ref, g2_ref, be2_ref,
                      o_ref):
    """One encoder layer for one batch element: MHA + FFN fully fused."""
    b = pl.program_id(0)
    L = len_ref[b]                                  # valid input length (SMEM scalar)
    Ti = x_ref.shape[0]
    x = x_ref[...]                                  # (Ti, DP)

    # masks built in-kernel (no HBM mask tensors)
    kpos = jax.lax.broadcasted_iota(jnp.int32, (1, Ti), 1)
    bias = jnp.where(kpos >= L, NEG_INF, 0.0)       # key-padding additive bias (1, Ti)
    qpos = jax.lax.broadcasted_iota(jnp.int32, (Ti, 1), 0)
    npm = jnp.where(qpos < L, 1.0, 0.0)             # non-pad mask (Ti, 1)

    hq = N_HEAD * D_K
    qkv = jnp.dot(x, wqkv_ref[...], preferred_element_type=jnp.float32) + bqkv_ref[...]
    x = _mha_post(x, qkv[:, :hq], qkv[:, hq:2 * hq], qkv[:, 2 * hq:],
                  bias, wo_ref[...], bo_ref[...], g1_ref[...], be1_ref[...]) * npm
    x = _ffn_post(x, w1_ref[...], b1_ref[...], w2_ref[...], b2_ref[...],
                  g2_ref[...], be2_ref[...]) * npm
    o_ref[...] = x.astype(o_ref.dtype)


def _dec_layer_kernel(len_ref, x_ref, enc_ref,
                      s_wqkv_ref, s_bqkv_ref, s_wo_ref, s_bo_ref, s_g_ref, s_be_ref,
                      c_wq_ref, c_bq_ref, c_wkv_ref, c_bkv_ref, c_wo_ref, c_bo_ref,
                      c_g_ref, c_be_ref,
                      f_w1_ref, f_b1_ref, f_w2_ref, f_b2_ref, f_g_ref, f_be_ref,
                      o_ref):
    """One decoder layer for one batch element: causal self-MHA + cross-MHA + FFN."""
    b = pl.program_id(0)
    L = len_ref[b]                                  # encoder valid length
    T = x_ref.shape[0]
    Ti = enc_ref.shape[0]
    x = x_ref[...]                                  # (T, DP)
    enc = enc_ref[...]                              # (Ti, DP)

    qpos = jax.lax.broadcasted_iota(jnp.int32, (T, T), 0)
    kpos = jax.lax.broadcasted_iota(jnp.int32, (T, T), 1)
    causal = jnp.where(kpos > qpos, NEG_INF, 0.0)   # (T, T)
    ek = jax.lax.broadcasted_iota(jnp.int32, (1, Ti), 1)
    cross = jnp.where(ek >= L, NEG_INF, 0.0)        # (1, Ti)

    hq = N_HEAD * D_K
    # masked self attention (fused QKV)
    qkv = jnp.dot(x, s_wqkv_ref[...], preferred_element_type=jnp.float32) + s_bqkv_ref[...]
    x = _mha_post(x, qkv[:, :hq], qkv[:, hq:2 * hq], qkv[:, 2 * hq:],
                  causal, s_wo_ref[...], s_bo_ref[...], s_g_ref[...], s_be_ref[...])
    # cross attention (fused KV on encoder output)
    q = jnp.dot(x, c_wq_ref[...], preferred_element_type=jnp.float32) + c_bq_ref[...]
    kv = jnp.dot(enc, c_wkv_ref[...], preferred_element_type=jnp.float32) + c_bkv_ref[...]
    x = _mha_post(x, q, kv[:, :hq], kv[:, hq:], cross,
                  c_wo_ref[...], c_bo_ref[...], c_g_ref[...], c_be_ref[...])
    # position-wise FFN
    x = _ffn_post(x, f_w1_ref[...], f_b1_ref[...], f_w2_ref[...], f_b2_ref[...],
                  f_g_ref[...], f_be_ref[...])
    o_ref[...] = x.astype(o_ref.dtype)


def _proj_kernel(x_ref, w_ref, b_ref, o_ref):
    o_ref[...] = (jnp.dot(x_ref[...], w_ref[...], preferred_element_type=jnp.float32)
                  + b_ref[...]).astype(o_ref.dtype)


# ----------------------------- call wrappers ---------------------------------
def _const_spec(w):
    """Whole-array VMEM block with a constant index map (grid- and prefetch-agnostic)."""
    nd = w.ndim
    return pl.BlockSpec(w.shape, lambda *args, _nd=nd: (0,) * _nd)


def enc_prep(x2, pe2, p):
    M = x2.shape[0]
    return pl.pallas_call(
        _enc_prep_kernel,
        out_shape=jax.ShapeDtypeStruct((M, DP), jnp.float32),
    )(x2, pe2, p["linear_in_w"], p["linear_in_b"], p["ln_in_g"], p["ln_in_b"])


def enc_layer(x3, lengths, layer):
    N, Ti, _ = x3.shape
    s, f = layer["slf"], layer["ffn"]
    weights = (s["wqkv"], s["bqkv"], s["wo"], s["bo"], s["ln_g"], s["ln_b"],
               f["w1"], f["b1"], f["w2"], f["b2"], f["ln_g"], f["ln_b"])
    grid_spec = pltpu.PrefetchScalarGridSpec(
        num_scalar_prefetch=1,
        grid=(N,),
        in_specs=[pl.BlockSpec((None, Ti, DP), lambda b, lens: (b, 0, 0))]
                 + [_const_spec(w) for w in weights],
        out_specs=pl.BlockSpec((None, Ti, DP), lambda b, lens: (b, 0, 0)),
    )
    return pl.pallas_call(
        _enc_layer_kernel,
        grid_spec=grid_spec,
        out_shape=jax.ShapeDtypeStruct((N, Ti, DP), jnp.float32),
        compiler_params=pltpu.CompilerParams(dimension_semantics=("parallel",)),
    )(lengths, x3, *weights)


def dec_layer(x3, enc3, lengths, layer):
    N, T, _ = x3.shape
    Ti = enc3.shape[1]
    s, c, f = layer["slf"], layer["enc"], layer["ffn"]
    weights = (s["wqkv"], s["bqkv"], s["wo"], s["bo"], s["ln_g"], s["ln_b"],
               c["wq"], c["bq"], c["wkv"], c["bkv"], c["wo"], c["bo"], c["ln_g"], c["ln_b"],
               f["w1"], f["b1"], f["w2"], f["b2"], f["ln_g"], f["ln_b"])
    grid_spec = pltpu.PrefetchScalarGridSpec(
        num_scalar_prefetch=1,
        grid=(N,),
        in_specs=[pl.BlockSpec((None, T, DP), lambda b, lens: (b, 0, 0)),
                  pl.BlockSpec((None, Ti, DP), lambda b, lens: (b, 0, 0))]
                 + [_const_spec(w) for w in weights],
        out_specs=pl.BlockSpec((None, T, DP), lambda b, lens: (b, 0, 0)),
    )
    return pl.pallas_call(
        _dec_layer_kernel,
        grid_spec=grid_spec,
        out_shape=jax.ShapeDtypeStruct((N, T, DP), jnp.float32),
        compiler_params=pltpu.CompilerParams(dimension_semantics=("parallel",)),
    )(lengths, x3, enc3, *weights)


# --------------------------- forward (jitted) --------------------------------
def positional_encoding(T, d_model):
    pos = jnp.arange(T, dtype=jnp.float32)[:, None]
    i = jnp.arange(d_model)[None, :]
    angle = pos / jnp.power(10000.0, (2 * (i // 2)).astype(jnp.float32) / d_model)
    return jnp.where(i % 2 == 0, jnp.sin(angle), jnp.cos(angle)).astype(jnp.float32)


def encoder_forward(p, padded_input, input_lengths):
    N, Ti, Din = padded_input.shape
    x2 = jnp.pad(padded_input.astype(jnp.float32),
                 ((0, 0), (0, 0), (0, D_IN_PAD - Din))).reshape(N * Ti, D_IN_PAD)
    pe = jnp.pad(positional_encoding(Ti, D_MODEL), ((0, 0), (0, DP - D_MODEL)))
    pe2 = jnp.tile(pe, (N, 1))
    x = enc_prep(x2, pe2, p).reshape(N, Ti, DP)
    lens = input_lengths.astype(jnp.int32)
    for layer in p["layers"]:
        x = enc_layer(x, lens, layer)
    return x                                                    # (N, Ti, DP)


def decoder_forward(p, padded_target, enc_out, input_lengths):
    N, To = padded_target.shape
    ys_in = jnp.concatenate(
        [jnp.full((N, 1), SOS_ID, padded_target.dtype), padded_target], axis=1)
    ys_out = jnp.concatenate(
        [padded_target, jnp.full((N, 1), EOS_ID, padded_target.dtype)], axis=1)   # gold
    T = To + 1
    pe = jnp.pad(positional_encoding(T, D_MODEL), ((0, 0), (0, DP - D_MODEL)))
    x = p["emb"][ys_in] + pe[None]          # embedding gather + PE (XLA glue, lane-padded)
    lens = input_lengths.astype(jnp.int32)
    for layer in p["layers"]:
        x = dec_layer(x, enc_out, lens, layer)
    logits = pl.pallas_call(
        _proj_kernel,
        out_shape=jax.ShapeDtypeStruct((N * T, VP), jnp.float32),
    )(x.reshape(N * T, DP), p["prj_w"], p["prj_b"])
    pred = logits[:, :VOCAB].reshape(N, T, VOCAB)
    return pred, ys_out


def transformer_forward(params, padded_input, input_lengths, padded_target):
    enc_out = encoder_forward(params["encoder"], padded_input, input_lengths)
    pred, gold = decoder_forward(params["decoder"], padded_target, enc_out, input_lengths)
    return pred, gold


transformer_forward_jit = jax.jit(transformer_forward)

# TODO(synk): recognize() (beam-search decode) is host-side control flow; not implemented.


# ----------------------------- parameter init --------------------------------
def xavier_uniform(key, shape):
    limit = math.sqrt(6.0 / (shape[0] + shape[1]))
    return jax.random.uniform(key, shape, jnp.float32, -limit, limit)


def pad2(x, rows, cols):
    return jnp.pad(x, ((0, rows - x.shape[0]), (0, cols - x.shape[1])))


def row_vec(x, cols):
    return jnp.pad(x.reshape(1, -1), ((0, 0), (0, cols - x.shape[0])))


def init_self_mha(key):
    ks = jax.random.split(key, 4)
    wq = xavier_uniform(ks[0], (D_MODEL, N_HEAD * D_K))
    wk = xavier_uniform(ks[1], (D_MODEL, N_HEAD * D_K))
    wv = xavier_uniform(ks[2], (D_MODEL, N_HEAD * D_V))
    wo = xavier_uniform(ks[3], (N_HEAD * D_V, D_MODEL))
    nqkv = 2 * N_HEAD * D_K + N_HEAD * D_V
    return dict(
        wqkv=pad2(jnp.concatenate([wq, wk, wv], axis=1), DP, nqkv),
        bqkv=jnp.zeros((1, nqkv), jnp.float32),
        wo=pad2(wo, N_HEAD * D_V, DP),
        bo=jnp.zeros((1, DP), jnp.float32),
        ln_g=row_vec(jnp.ones((D_MODEL,), jnp.float32), DP),
        ln_b=jnp.zeros((1, DP), jnp.float32),
    )


def init_cross_mha(key):
    ks = jax.random.split(key, 4)
    wq = xavier_uniform(ks[0], (D_MODEL, N_HEAD * D_K))
    wk = xavier_uniform(ks[1], (D_MODEL, N_HEAD * D_K))
    wv = xavier_uniform(ks[2], (D_MODEL, N_HEAD * D_V))
    wo = xavier_uniform(ks[3], (N_HEAD * D_V, D_MODEL))
    nkv = N_HEAD * (D_K + D_V)
    return dict(
        wq=pad2(wq, DP, N_HEAD * D_K),
        bq=jnp.zeros((1, N_HEAD * D_K), jnp.float32),
        wkv=pad2(jnp.concatenate([wk, wv], axis=1), DP, nkv),
        bkv=jnp.zeros((1, nkv), jnp.float32),
        wo=pad2(wo, N_HEAD * D_V, DP),
        bo=jnp.zeros((1, DP), jnp.float32),
        ln_g=row_vec(jnp.ones((D_MODEL,), jnp.float32), DP),
        ln_b=jnp.zeros((1, DP), jnp.float32),
    )


def init_ffn(key):
    k1, k2 = jax.random.split(key)
    return dict(
        w1=pad2(xavier_uniform(k1, (D_MODEL, D_FF)), DP, D_FF),
        b1=jnp.zeros((1, D_FF), jnp.float32),
        w2=pad2(xavier_uniform(k2, (D_FF, D_MODEL)), D_FF, DP),
        b2=jnp.zeros((1, DP), jnp.float32),
        ln_g=row_vec(jnp.ones((D_MODEL,), jnp.float32), DP),
        ln_b=jnp.zeros((1, DP), jnp.float32),
    )


def init_params(key):
    k_enc, k_dec = jax.random.split(key)

    # encoder
    ke = jax.random.split(k_enc, 1 + 2 * N_LAYERS_ENC)
    enc_layers = []
    for li in range(N_LAYERS_ENC):
        enc_layers.append(dict(slf=init_self_mha(ke[1 + 2 * li]),
                               ffn=init_ffn(ke[2 + 2 * li])))
    encoder = dict(
        linear_in_w=pad2(xavier_uniform(ke[0], (D_INPUT, D_MODEL)), D_IN_PAD, DP),
        linear_in_b=jnp.zeros((1, DP), jnp.float32),
        ln_in_g=row_vec(jnp.ones((D_MODEL,), jnp.float32), DP),
        ln_in_b=jnp.zeros((1, DP), jnp.float32),
        layers=enc_layers,
    )

    # decoder
    kd = jax.random.split(k_dec, 2 + 3 * N_LAYERS_DEC)
    dec_layers = []
    for li in range(N_LAYERS_DEC):
        dec_layers.append(dict(slf=init_self_mha(kd[2 + 3 * li]),
                               enc=init_cross_mha(kd[3 + 3 * li]),
                               ffn=init_ffn(kd[4 + 3 * li])))
    decoder = dict(
        emb=pad2(xavier_uniform(kd[0], (VOCAB, D_MODEL)), VOCAB, DP),
        prj_w=pad2(xavier_uniform(kd[1], (D_MODEL, VOCAB)), DP, VP),
        prj_b=jnp.zeros((1, VP), jnp.float32),   # reference projection is bias-free
        layers=dec_layers,
    )
    return dict(encoder=encoder, decoder=decoder)


# ----------------------------------- main ------------------------------------
if __name__ == "__main__":
    key = jax.random.PRNGKey(0)
    k_params, k_in, k_tgt = jax.random.split(key, 3)

    params = init_params(k_params)

    N, Ti, To = 2, 16, 8
    padded_input = jax.random.normal(k_in, (N, Ti, D_INPUT), jnp.float32)
    input_lengths = jnp.array([16, 12], jnp.int32)
    padded_target = jax.random.randint(k_tgt, (N, To), 3, VOCAB, jnp.int32)

    pred, gold = transformer_forward_jit(params, padded_input, input_lengths, padded_target)
    jax.block_until_ready(pred)
    jax.block_until_ready(gold)

    assert pred.shape == (N, To + 1, VOCAB)
    assert gold.shape == (N, To + 1)
    assert bool(jnp.all(jnp.isfinite(pred)))
    print("KERNEL_OK")
</pallas_src>

<mosaic_0001>
module attributes {stable_mosaic.version = 11 : i64} {
  func.func @_enc_prep_kernel(%arg0: memref<32x128xf32, #tpu.memory_space<vmem>>, %arg1: memref<32x128xf32, #tpu.memory_space<vmem>>, %arg2: memref<128x128xf32, #tpu.memory_space<vmem>>, %arg3: memref<1x128xf32, #tpu.memory_space<vmem>>, %arg4: memref<1x128xf32, #tpu.memory_space<vmem>>, %arg5: memref<1x128xf32, #tpu.memory_space<vmem>>, %arg6: memref<32x128xf32, #tpu.memory_space<vmem>>) attributes {dimension_semantics = [], scalar_prefetch = 0 : i64, scratch_operands = 0 : i64, tpu.core_type = #tpu.core_type<tc>} {
    %c0 = arith.constant 0 : index
    %c0_0 = arith.constant 0 : index
    %0 = vector.load %arg0[%c0, %c0_0] : memref<32x128xf32, #tpu.memory_space<vmem>>, vector<32x128xf32>
    %c0_1 = arith.constant 0 : index
    %c0_2 = arith.constant 0 : index
    %1 = vector.load %arg2[%c0_1, %c0_2] : memref<128x128xf32, #tpu.memory_space<vmem>>, vector<128x128xf32>
    %cst = arith.constant dense<0.000000e+00> : vector<32x128xf32>
    %2 = tpu.matmul %0, %1, %cst {dimension_numbers = #tpu.dot_dimension_numbers<[1], [0], [0], [1], [0, 0, 1, 1], [], []>} : vector<32x128xf32>, vector<128x128xf32>, vector<32x128xf32> -> vector<32x128xf32>
    %c0_3 = arith.constant 0 : index
    %c0_4 = arith.constant 0 : index
    %3 = vector.load %arg3[%c0_3, %c0_4] : memref<1x128xf32, #tpu.memory_space<vmem>>, vector<1x128xf32>
    %4 = vector.broadcast %3 : vector<1x128xf32> to vector<32x128xf32>
    %5 = arith.addf %2, %4 : vector<32x128xf32>
    %c0_5 = arith.constant 0 : index
    %c0_6 = arith.constant 0 : index
    %6 = vector.load %arg4[%c0_5, %c0_6] : memref<1x128xf32, #tpu.memory_space<vmem>>, vector<1x128xf32>
    %c0_7 = arith.constant 0 : index
    %c0_8 = arith.constant 0 : index
    %7 = vector.load %arg5[%c0_7, %c0_8] : memref<1x128xf32, #tpu.memory_space<vmem>>, vector<1x128xf32>
    %cst_9 = arith.constant dense<0.000000e+00> : vector<32xf32>
    %8 = vector.multi_reduction <add>, %5, %cst_9 [1] : vector<32x128xf32> to vector<32xf32>
    %9 = vector.shape_cast %8 : vector<32xf32> to vector<32x1xf32>
    %cst_10 = arith.constant 3.125000e-02 : f32
    %10 = vector.broadcast %cst_10 : f32 to vector<32x1xf32>
    %11 = arith.mulf %9, %10 : vector<32x1xf32>
    %12 = arith.mulf %5, %5 : vector<32x128xf32>
    %cst_11 = arith.constant dense<0.000000e+00> : vector<32xf32>
    %13 = vector.multi_reduction <add>, %12, %cst_11 [1] : vector<32x128xf32> to vector<32xf32>
    %14 = vector.shape_cast %13 : vector<32xf32> to vector<32x1xf32>
    %cst_12 = arith.constant 3.125000e-02 : f32
    %15 = vector.broadcast %cst_12 : f32 to vector<32x1xf32>
    %16 = arith.mulf %14, %15 : vector<32x1xf32>
    %17 = arith.mulf %11, %11 : vector<32x1xf32>
    %18 = arith.subf %16, %17 : vector<32x1xf32>
    %cst_13 = arith.constant 0.000000e+00 : f32
    %19 = vector.broadcast %cst_13 : f32 to vector<32x1xf32>
    %20 = arith.maximumf %18, %19 : vector<32x1xf32>
    %21 = vector.broadcast %11 : vector<32x1xf32> to vector<32x128xf32>
    %22 = arith.subf %5, %21 : vector<32x128xf32>
    %cst_14 = arith.constant 9.99999974E-6 : f32
    %23 = vector.broadcast %cst_14 : f32 to vector<32x1xf32>
    %24 = arith.addf %20, %23 : vector<32x1xf32>
    %25 = math.rsqrt %24 : vector<32x1xf32>
    %26 = vector.broadcast %25 : vector<32x1xf32> to vector<32x128xf32>
    %27 = arith.mulf %22, %26 : vector<32x128xf32>
    %28 = vector.broadcast %6 : vector<1x128xf32> to vector<32x128xf32>
    %29 = arith.mulf %27, %28 : vector<32x128xf32>
    %30 = vector.broadcast %7 : vector<1x128xf32> to vector<32x128xf32>
    %31 = arith.addf %29, %30 : vector<32x128xf32>
    %c0_15 = arith.constant 0 : index
    %c0_16 = arith.constant 0 : index
    %32 = vector.load %arg1[%c0_15, %c0_16] : memref<32x128xf32, #tpu.memory_space<vmem>>, vector<32x128xf32>
    %33 = arith.addf %31, %32 : vector<32x128xf32>
    %c0_17 = arith.constant 0 : index
    %c0_18 = arith.constant 0 : index
    %34 = vector.load %arg6[%c0_17, %c0_18] : memref<32x128xf32, #tpu.memory_space<vmem>>, vector<32x128xf32>
    tpu.vector_store %arg6[%c0_17, %c0_18], %33 {strides = array<i32>} : memref<32x128xf32, #tpu.memory_space<vmem>>, vector<32x128xf32>,
    return
  }
}

module attributes {stable_mosaic.version = 11 : i64} {
  func.func @_enc_layer_kernel(%arg0: i32, %arg1: memref<2xi32, #tpu.memory_space<smem>>, %arg2: memref<1x16x128xf32, #tpu.memory_space<vmem>>, %arg3: memref<128x96xf32, #tpu.memory_space<vmem>>, %arg4: memref<1x96xf32, #tpu.memory_space<vmem>>, %arg5: memref<32x128xf32, #tpu.memory_space<vmem>>, %arg6: memref<1x128xf32, #tpu.memory_space<vmem>>, %arg7: memref<1x128xf32, #tpu.memory_space<vmem>>, %arg8: memref<1x128xf32, #tpu.memory_space<vmem>>, %arg9: memref<128x64xf32, #tpu.memory_space<vmem>>, %arg10: memref<1x64xf32, #tpu.memory_space<vmem>>, %arg11: memref<64x128xf32, #tpu.memory_space<vmem>>, %arg12: memref<1x128xf32, #tpu.memory_space<vmem>>, %arg13: memref<1x128xf32, #tpu.memory_space<vmem>>, %arg14: memref<1x128xf32, #tpu.memory_space<vmem>>, %arg15: memref<1x16x128xf32, #tpu.memory_space<vmem>>) attributes {dimension_semantics = [#tpu.dimension_semantics<parallel>], iteration_bounds = array<i64: 2>, scalar_prefetch = 1 : i64, scratch_operands = 0 : i64, tpu.core_type = #tpu.core_type<tc>, window_params = [{transform_indices = @transform_0, window_bounds = array<i64: 1, 16, 128>}, {pipeline_mode = #tpu.pipeline_mode<synchronous>, transform_indices = @transform_1, window_bounds = array<i64: 128, 96>}, {pipeline_mode = #tpu.pipeline_mode<synchronous>, transform_indices = @transform_2, window_bounds = array<i64: 1, 96>}, {pipeline_mode = #tpu.pipeline_mode<synchronous>, transform_indices = @transform_3, window_bounds = array<i64: 32, 128>}, {pipeline_mode = #tpu.pipeline_mode<synchronous>, transform_indices = @transform_4, window_bounds = array<i64: 1, 128>}, {pipeline_mode = #tpu.pipeline_mode<synchronous>, transform_indices = @transform_5, window_bounds = array<i64: 1, 128>}, {pipeline_mode = #tpu.pipeline_mode<synchronous>, transform_indices = @transform_6, window_bounds = array<i64: 1, 128>}, {pipeline_mode = #tpu.pipeline_mode<synchronous>, transform_indices = @transform_7, window_bounds = array<i64: 128, 64>}, {pipeline_mode = #tpu.pipeline_mode<synchronous>, transform_indices = @transform_8, window_bounds = array<i64: 1, 64>}, {pipeline_mode = #tpu.pipeline_mode<synchronous>, transform_indices = @transform_9, window_bounds = array<i64: 64, 128>}, {pipeline_mode = #tpu.pipeline_mode<synchronous>, transform_indices = @transform_10, window_bounds = array<i64: 1, 128>}, {pipeline_mode = #tpu.pipeline_mode<synchronous>, transform_indices = @transform_11, window_bounds = array<i64: 1, 128>}, {pipeline_mode = #tpu.pipeline_mode<synchronous>, transform_indices = @transform_12, window_bounds = array<i64: 1, 128>}, {transform_indices = @transform_13, window_bounds = array<i64: 1, 16, 128>}]} {
    %0 = arith.index_cast %arg0 : i32 to index
    %1 = memref.load %arg1[%0] : memref<2xi32, #tpu.memory_space<smem>>
    %c0 = arith.constant 0 : index
    %c0_0 = arith.constant 0 : index
    %c0_1 = arith.constant 0 : index
    %2 = vector.load %arg2[%c0, %c0_0, %c0_1] : memref<1x16x128xf32, #tpu.memory_space<vmem>>, vector<1x16x128xf32>
    %3 = vector.shape_cast %2 : vector<1x16x128xf32> to vector<16x128xf32>
    %4 = tpu.iota {dimensions = array<i32: 1>} : vector<1x16xi32>
    %5 = vector.broadcast %1 : i32 to vector<1x16xi32>
    %6 = arith.cmpi sge, %4, %5 : vector<1x16xi32>
    %cst = arith.constant -1.000000e+09 : f32
    %cst_2 = arith.constant 0.000000e+00 : f32
    %7 = vector.broadcast %cst : f32 to vector<1x16xf32>
    %8 = vector.broadcast %cst_2 : f32 to vector<1x16xf32>
    %9 = arith.select %6, %7, %8 : vector<1x16xi1>, vector<1x16xf32>
    %10 = tpu.iota {dimensions = array<i32: 0>} : vector<16x1xi32>
    %11 = vector.broadcast %1 : i32 to vector<16x1xi32>
    %12 = arith.cmpi slt, %10, %11 : vector<16x1xi32>
    %cst_3 = arith.constant 1.000000e+00 : f32
    %cst_4 = arith.constant 0.000000e+00 : f32
    %13 = vector.broadcast %cst_3 : f32 to vector<16x1xf32>
    %14 = vector.broadcast %cst_4 : f32 to vector<16x1xf32>
    %15 = arith.select %12, %13, %14 : vector<16x1xi1>, vector<16x1xf32>
    %c0_5 = arith.constant 0 : index
    %c0_6 = arith.constant 0 : index
    %16 = vector.load %arg3[%c0_5, %c0_6] : memref<128x96xf32, #tpu.memory_space<vmem>>, vector<128x96xf32>
    %cst_7 = arith.constant dense<0.000000e+00> : vector<16x96xf32>
    %17 = tpu.matmul %3, %16, %cst_7 {dimension_numbers = #tpu.dot_dimension_numbers<[1], [0], [0], [1], [0, 0, 1, 1], [], []>} : vector<16x128xf32>, vector<128x96xf32>, vector<16x96xf32> -> vector<16x96xf32>
    %c0_8 = arith.constant 0 : index
    %c0_9 = arith.constant 0 : index
    %18 = vector.load %arg4[%c0_8, %c0_9] : memref<1x96xf32, #tpu.memory_space<vmem>>, vector<1x96xf32>
    %19 = vector.broadcast %18 : vector<1x96xf32> to vector<16x96xf32>
    %20 = arith.addf %17, %19 : vector<16x96xf32>
    %21 = vector.extract_strided_slice %20 {offsets = [0, 0], sizes = [16, 32], strides = [1, 1]} : vector<16x96xf32> to vector<16x32xf32>
    %22 = vector.extract_strided_slice %20 {offsets = [0, 32], sizes = [16, 32], strides = [1, 1]} : vector<16x96xf32> to vector<16x32xf32>
    %23 = vector.extract_strided_slice %20 {offsets = [0, 64], sizes = [16, 32], strides = [1, 1]} : vector<16x96xf32> to vector<16x32xf32>
    %c0_10 = arith.constant 0 : index
    %c0_11 = arith.constant 0 : index
    %24 = vector.load %arg5[%c0_10, %c0_11] : memref<32x128xf32, #tpu.memory_space<vmem>>, vector<32x128xf32>
    %c0_12 = arith.constant 0 : index
    %c0_13 = arith.constant 0 : index
    %25 = vector.load %arg6[%c0_12, %c0_13] : memref<1x128xf32, #tpu.memory_space<vmem>>, vector<1x128xf32>
    %c0_14 = arith.constant 0 : index
    %c0_15 = arith.constant 0 : index
    %26 = vector.load %arg7[%c0_14, %c0_15] : memref<1x128xf32, #tpu.memory_space<vmem>>, vector<1x128xf32>
    %c0_16 = arith.constant 0 : index
    %c0_17 = arith.constant 0 : index
    %27 = vector.load %arg8[%c0_16, %c0_17] : memref<1x128xf32, #tpu.memory_space<vmem>>, vector<1x128xf32>
    %28 = vector.extract_strided_slice %21 {offsets = [0, 0], sizes = [16, 8], strides = [1, 1]} : vector<16x32xf32> to vector<16x8xf32>
    %29 = vector.extract_strided_slice %22 {offsets = [0, 0], sizes = [16, 8], strides = [1, 1]} : vector<16x32xf32> to vector<16x8xf32>
    %30 = vector.extract_strided_slice %23 {offsets = [0, 0], sizes = [16, 8], strides = [1, 1]} : vector<16x32xf32> to vector<16x8xf32>
    %cst_18 = arith.constant dense<0.000000e+00> : vector<16x16xf32>
    %31 = tpu.matmul %28, %29, %cst_18 {dimension_numbers = #tpu.dot_dimension_numbers<[1], [1], [0], [0], [0, 0, 1, 0], [], []>} : vector<16x8xf32>, vector<16x8xf32>, vector<16x16xf32> -> vector<16x16xf32>
    %cst_19 = arith.constant 0.353553385 : f32
    %32 = vector.broadcast %cst_19 : f32 to vector<16x16xf32>
    %33 = arith.mulf %31, %32 : vector<16x16xf32>
    %34 = vector.broadcast %9 : vector<1x16xf32> to vector<16x16xf32>
    %35 = arith.addf %33, %34 : vector<16x16xf32>
    %cst_20 = arith.constant dense<0xFF800000> : vector<16xf32>
    %36 = vector.multi_reduction <maximumf>, %35, %cst_20 [1] : vector<16x16xf32> to vector<16xf32>
    %37 = vector.shape_cast %36 : vector<16xf32> to vector<16x1xf32>
    %38 = vector.broadcast %37 : vector<16x1xf32> to vector<16x16xf32>
    %39 = arith.subf %35, %38 : vector<16x16xf32>
    %40 = math.exp %39 : vector<16x16xf32>
    %cst_21 = arith.constant dense<0.000000e+00> : vector<16xf32>
    %41 = vector.multi_reduction <add>, %40, %cst_21 [1] : vector<16x16xf32> to vector<16xf32>
    %42 = vector.shape_cast %41 : vector<16xf32> to vector<16x1xf32>
    %43 = tpu.reciprocal %42 {approx = true} : vector<16x1xf32> -> vector<16x1xf32>
    %44 = vector.broadcast %43 : vector<16x1xf32> to vector<16x16xf32>
    %45 = arith.mulf %40, %44 : vector<16x16xf32>
    %cst_22 = arith.constant dense<0.000000e+00> : vector<16x8xf32>
    %46 = tpu.matmul %45, %30, %cst_22 {dimension_numbers = #tpu.dot_dimension_numbers<[1], [0], [0], [1], [0, 0, 1, 1], [], []>} : vector<16x16xf32>, vector<16x8xf32>, vector<16x8xf32> -> vector<16x8xf32>
    %47 = vector.extract_strided_slice %21 {offsets = [0, 8], sizes = [16, 8], strides = [1, 1]} : vector<16x32xf32> to vector<16x8xf32>
    %48 = vector.extract_strided_slice %22 {offsets = [0, 8], sizes = [16, 8], strides = [1, 1]} : vector<16x32xf32> to vector<16x8xf32>
    %49 = vector.extract_strided_slice %23 {offsets = [0, 8], sizes = [16, 8], strides = [1, 1]} : vector<16x32xf32> to vector<16x8xf32>
    %cst_23 = arith.constant dense<0.000000e+00> : vector<16x16xf32>
    %50 = tpu.matmul %47, %48, %cst_23 {dimension_numbers = #tpu.dot_dimension_numbers<[1], [1], [0], [0], [0, 0, 1, 0], [], []>} : vector<16x8xf32>, vector<16x8xf32>, vector<16x16xf32> -> vector<16x16xf32>
    %cst_24 = arith.constant 0.353553385 : f32
    %51 = vector.broadcast %cst_24 : f32 to vector<16x16xf32>
    %52 = arith.mulf %50, %51 : vector<16x16xf32>
    %53 = vector.broadcast %9 : vector<1x16xf32> to vector<16x16xf32>
    %54 = arith.addf %52, %53 : vector<16x16xf32>
    %cst_25 = arith.constant dense<0xFF800000> : vector<16xf32>
    %55 = vector.multi_reduction <maximumf>, %54, %cst_25 [1] : vector<16x16xf32> to vector<16xf32>
    %56 = vector.shape_cast %55 : vector<16xf32> to vector<16x1xf32>
    %57 = vector.broadcast %56 : vector<16x1xf32> to vector<16x16xf32>
    %58 = arith.subf %54, %57 : vector<16x16xf32>
    %59 = math.exp %58 : vector<16x16xf32>
    %cst_26 = arith.constant dense<0.000000e+00> : vector<16xf32>
    %60 = vector.multi_reduction <add>, %59, %cst_26 [1] : vector<16x16xf32> to vector<16xf32>
    %61 = vector.shape_cast %60 : vector<16xf32> to vector<16x1xf32>
    %62 = tpu.reciprocal %61 {approx = true} : vector<16x1xf32> -> vector<16x1xf32>
    %63 = vector.broadcast %62 : vector<16x1xf32> to vector<16x16xf32>
    %64 = arith.mulf %59, %63 : vector<16x16xf32>
    %cst_27 = arith.constant dense<0.000000e+00> : vector<16x8xf32>
    %65 = tpu.matmul %64, %49, %cst_27 {dimension_numbers = #tpu.dot_dimension_numbers<[1], [0], [0], [1], [0, 0, 1, 1], [], []>} : vector<16x16xf32>, vector<16x8xf32>, vector<16x8xf32> -> vector<16x8xf32>
    %66 = vector.extract_strided_slice %21 {offsets = [0, 16], sizes = [16, 8], strides = [1, 1]} : vector<16x32xf32> to vector<16x8xf32>
    %67 = vector.extract_strided_slice %22 {offsets = [0, 16], sizes = [16, 8], strides = [1, 1]} : vector<16x32xf32> to vector<16x8xf32>
    %68 = vector.extract_strided_slice %23 {offsets = [0, 16], sizes = [16, 8], strides = [1, 1]} : vector<16x32xf32> to vector<16x8xf32>
    %cst_28 = arith.constant dense<0.000000e+00> : vector<16x16xf32>
    %69 = tpu.matmul %66, %67, %cst_28 {dimension_numbers = #tpu.dot_dimension_numbers<[1], [1], [0], [0], [0, 0, 1, 0], [], []>} : vector<16x8xf32>, vector<16x8xf32>, vector<16x16xf32> -> vector<16x16xf32>
    %cst_29 = arith.constant 0.353553385 : f32
    %70 = vector.broadcast %cst_29 : f32 to vector<16x16xf32>
    %71 = arith.mulf %69, %70 : vector<16x16xf32>
    %72 = vector.broadcast %9 : vector<1x16xf32> to vector<16x16xf32>
    %73 = arith.addf %71, %72 : vector<16x16xf32>
    %cst_30 = arith.constant dense<0xFF800000> : vector<16xf32>
    %74 = vector.multi_reduction <maximumf>, %73, %cst_30 [1] : vector<16x16xf32> to vector<16xf32>
    %75 = vector.shape_cast %74 : vector<16xf32> to vector<16x1xf32>
    %76 = vector.broadcast %75 : vector<16x1xf32> to vector<16x16xf32>
    %77 = arith.subf %73, %76 : vector<16x16xf32>
    %78 = math.exp %77 : vector<16x16xf32>
    %cst_31 = arith.constant dense<0.000000e+00> : vector<16xf32>
    %79 = vector.multi_reduction <add>, %78, %cst_31 [1] : vector<16x16xf32> to vector<16xf32>
    %80 = vector.shape_cast %79 : vector<16xf32> to vector<16x1xf32>
    %81 = tpu.reciprocal %80 {approx = true} : vector<16x1xf32> -> vector<16x1xf32>
    %82 = vector.broadcast %81 : vector<16x1xf32> to vector<16x16xf32>
    %83 = arith.mulf %78, %82 : vector<16x16xf32>
    %cst_32 = arith.constant dense<0.000000e+00> : vector<16x8xf32>
    %84 = tpu.matmul %83, %68, %cst_32 {dimension_numbers = #tpu.dot_dimension_numbers<[1], [0], [0], [1], [0, 0, 1, 1], [], []>} : vector<16x16xf32>, vector<16x8xf32>, vector<16x8xf32> -> vector<16x8xf32>
    %85 = vector.extract_strided_slice %21 {offsets = [0, 24], sizes = [16, 8], strides = [1, 1]} : vector<16x32xf32> to vector<16x8xf32>
    %86 = vector.extract_strided_slice %22 {offsets = [0, 24], sizes = [16, 8], strides = [1, 1]} : vector<16x32xf32> to vector<16x8xf32>
    %87 = vector.extract_strided_slice %23 {offsets = [0, 24], sizes = [16, 8], strides = [1, 1]} : vector<16x32xf32> to vector<16x8xf32>
    %cst_33 = arith.constant dense<0.000000e+00> : vector<16x16xf32>
    %88 = tpu.matmul %85, %86, %cst_33 {dimension_numbers = #tpu.dot_dimension_numbers<[1], [1], [0], [0], [0, 0, 1, 0], [], []>} : vector<16x8xf32>, vector<16x8xf32>, vector<16x16xf32> -> vector<16x16xf32>
    %cst_34 = arith.constant 0.353553385 : f32
    %89 = vector.broadcast %cst_34 : f32 to vector<16x16xf32>
    %90 = arith.mulf %88, %89 : vector<16x16xf32>
    %91 = vector.broadcast %9 : vector<1x16xf32> to vector<16x16xf32>
    %92 = arith.addf %90, %91 : vector<16x16xf32>
    %cst_35 = arith.constant dense<0xFF800000> : vector<16xf32>
    %93 = vector.multi_reduction <maximumf>, %92, %cst_35 [1] : vector<16x16xf32> to vector<16xf32>
    %94 = vector.shape_cast %93 : vector<16xf32> to vector<16x1xf32>
    %95 = vector.broadcast %94 : vector<16x1xf32> to vector<16x16xf32>
    %96 = arith.subf %92, %95 : vector<16x16xf32>
    %97 = math.exp %96 : vector<16x16xf32>
    %cst_36 = arith.constant dense<0.000000e+00> : vector<16xf32>
    %98 = vector.multi_reduction <add>, %97, %cst_36 [1] : vector<16x16xf32> to vector<16xf32>
    %99 = vector.shape_cast %98 : vector<16xf32> to vector<16x1xf32>
    %100 = tpu.reciprocal %99 {approx = true} : vector<16x1xf32> -> vector<16x1xf32>
    %101 = vector.broadcast %100 : vector<16x1xf32> to vector<16x16xf32>
    %102 = arith.mulf %97, %101 : vector<16x16xf32>
    %cst_37 = arith.constant dense<0.000000e+00> : vector<16x8xf32>
    %103 = tpu.matmul %102, %87, %cst_37 {dimension_numbers = #tpu.dot_dimension_numbers<[1], [0], [0], [1], [0, 0, 1, 1], [], []>} : vector<16x16xf32>, vector<16x8xf32>, vector<16x8xf32> -> vector<16x8xf32>
    %104 = tpu.concatenate %46, %65, %84, %103 in 1 : vector<16x8xf32>, vector<16x8xf32>, vector<16x8xf32>, vector<16x8xf32> -> vector<16x32xf32>
    %cst_38 = arith.constant dense<0.000000e+00> : vector<16x128xf32>
    %105 = tpu.matmul %104, %24, %cst_38 {dimension_numbers = #tpu.dot_dimension_numbers<[1], [0], [0], [1], [0, 0, 1, 1], [], []>} : vector<16x32xf32>, vector<32x128xf32>, vector<16x128xf32> -> vector<16x128xf32>
    %106 = vector.broadcast %25 : vector<1x128xf32> to vector<16x128xf32>
    %107 = arith.addf %105, %106 : vector<16x128xf32>
    %108 = arith.addf %107, %3 : vector<16x128xf32>
    %cst_39 = arith.constant dense<0.000000e+00> : vector<16xf32>
    %109 = vector.multi_reduction <add>, %108, %cst_39 [1] : vector<16x128xf32> to vector<16xf32>
    %110 = vector.shape_cast %109 : vector<16xf32> to vector<16x1xf32>
    %cst_40 = arith.constant 3.125000e-02 : f32
    %111 = vector.broadcast %cst_40 : f32 to vector<16x1xf32>
    %112 = arith.mulf %110, %111 : vector<16x1xf32>
    %113 = arith.mulf %108, %108 : vector<16x128xf32>
    %cst_41 = arith.constant dense<0.000000e+00> : vector<16xf32>
    %114 = vector.multi_reduction <add>, %113, %cst_41 [1] : vector<16x128xf32> to vector<16xf32>
    %115 = vector.shape_cast %114 : vector<16xf32> to vector<16x1xf32>
    %cst_42 = arith.constant 3.125000e-02 : f32
    %116 = vector.broadcast %cst_42 : f32 to vector<16x1xf32>
    %117 = arith.mulf %115, %116 : vector<16x1xf32>
    %118 = arith.mulf %112, %112 : vector<16x1xf32>
    %119 = arith.subf %117, %118 : vector<16x1xf32>
    %cst_43 = arith.constant 0.000000e+00 : f32
    %120 = vector.broadcast %cst_43 : f32 to vector<16x1xf32>
    %121 = arith.maximumf %119, %120 : vector<16x1xf32>
    %122 = vector.broadcast %112 : vector<16x1xf32> to vector<16x128xf32>
    %123 = arith.subf %108, %122 : vector<16x128xf32>
    %cst_44 = arith.constant 9.99999974E-6 : f32
    %124 = vector.broadcast %cst_44 : f32 to vector<16x1xf32>
    %125 = arith.addf %121, %124 : vector<16x1xf32>
    %126 = math.rsqrt %125 : vector<16x1xf32>
    %127 = vector.broadcast %126 : vector<16x1xf32> to vector<16x128xf32>
    %128 = arith.mulf %123, %127 : vector<16x128xf32>
    %129 = vector.broadcast %26 : vector<1x128xf32> to vector<16x128xf32>
    %130 = arith.mulf %128, %129 : vector<16x128xf32>
    %131 = vector.broadcast %27 : vector<1x128xf32> to vector<16x128xf32>
    %132 = arith.addf %130, %131 : vector<16x128xf32>
    %133 = vector.broadcast %15 : vector<16x1xf32> to vector<16x128xf32>
    %134 = arith.mulf %132, %133 : vector<16x128xf32>
    %c0_45 = arith.constant 0 : index
    %c0_46 = arith.constant 0 : index
    %135 = vector.load %arg9[%c0_45, %c0_46] : memref<128x64xf32, #tpu.memory_space<vmem>>, vector<128x64xf32>
    %c0_47 = arith.constant 0 : index
    %c0_48 = arith.constant 0 : index
    %136 = vector.load %arg10[%c0_47, %c0_48] : memref<1x64xf32, #tpu.memory_space<vmem>>, vector<1x64xf32>
    %c0_49 = arith.constant 0 : index
    %c0_50 = arith.constant 0 : index
    %137 = vector.load %arg11[%c0_49, %c0_50] : memref<64x128xf32, #tpu.memory_space<vmem>>, vector<64x128xf32>
    %c0_51 = arith.constant 0 : index
    %c0_52 = arith.constant 0 : index
    %138 = vector.load %arg12[%c0_51, %c0_52] : memref<1x128xf32, #tpu.memory_space<vmem>>, vector<1x128xf32>
    %c0_53 = arith.constant 0 : index
    %c0_54 = arith.constant 0 : index
    %139 = vector.load %arg13[%c0_53, %c0_54] : memref<1x128xf32, #tpu.memory_space<vmem>>, vector<1x128xf32>
    %c0_55 = arith.constant 0 : index
    %c0_56 = arith.constant 0 : index
    %140 = vector.load %arg14[%c0_55, %c0_56] : memref<1x128xf32, #tpu.memory_space<vmem>>, vector<1x128xf32>
    %cst_57 = arith.constant dense<0.000000e+00> : vector<16x64xf32>
    %141 = tpu.matmul %134, %135, %cst_57 {dimension_numbers = #tpu.dot_dimension_numbers<[1], [0], [0], [1], [0, 0, 1, 1], [], []>} : vector<16x128xf32>, vector<128x64xf32>, vector<16x64xf32> -> vector<16x64xf32>
    %142 = vector.broadcast %136 : vector<1x64xf32> to vector<16x64xf32>
    %143 = arith.addf %141, %142 : vector<16x64xf32>
    %cst_58 = arith.constant 0.000000e+00 : f32
    %144 = vector.broadcast %cst_58 : f32 to vector<16x64xf32>
    %145 = arith.maximumf %143, %144 : vector<16x64xf32>
    %cst_59 = arith.constant dense<0.000000e+00> : vector<16x128xf32>
    %146 = tpu.matmul %145, %137, %cst_59 {dimension_numbers = #tpu.dot_dimension_numbers<[1], [0], [0], [1], [0, 0, 1, 1], [], []>} : vector<16x64xf32>, vector<64x128xf32>, vector<16x128xf32> -> vector<16x128xf32>
    %147 = vector.broadcast %138 : vector<1x128xf32> to vector<16x128xf32>
    %148 = arith.addf %146, %147 : vector<16x128xf32>
    %149 = arith.addf %148, %134 : vector<16x128xf32>
    %cst_60 = arith.constant dense<0.000000e+00> : vector<16xf32>
    %150 = vector.multi_reduction <add>, %149, %cst_60 [1] : vector<16x128xf32> to vector<16xf32>
    %151 = vector.shape_cast %150 : vector<16xf32> to vector<16x1xf32>
    %cst_61 = arith.constant 3.125000e-02 : f32
    %152 = vector.broadcast %cst_61 : f32 to vector<16x1xf32>
    %153 = arith.mulf %151, %152 : vector<16x1xf32>
    %154 = arith.mulf %149, %149 : vector<16x128xf32>
    %cst_62 = arith.constant dense<0.000000e+00> : vector<16xf32>
    %155 = vector.multi_reduction <add>, %154, %cst_62 [1] : vector<16x128xf32> to vector<16xf32>
    %156 = vector.shape_cast %155 : vector<16xf32> to vector<16x1xf32>
    %cst_63 = arith.constant 3.125000e-02 : f32
    %157 = vector.broadcast %cst_63 : f32 to vector<16x1xf32>
    %158 = arith.mulf %156, %157 : vector<16x1xf32>
    %159 = arith.mulf %153, %153 : vector<16x1xf32>
    %160 = arith.subf %158, %159 : vector<16x1xf32>
    %cst_64 = arith.constant 0.000000e+00 : f32
    %161 = vector.broadcast %cst_64 : f32 to vector<16x1xf32>
    %162 = arith.maximumf %160, %161 : vector<16x1xf32>
    %163 = vector.broadcast %153 : vector<16x1xf32> to vector<16x128xf32>
    %164 = arith.subf %149, %163 : vector<16x128xf32>
    %cst_65 = arith.constant 9.99999974E-6 : f32
    %165 = vector.broadcast %cst_65 : f32 to vector<16x1xf32>
    %166 = arith.addf %162, %165 : vector<16x1xf32>
    %167 = math.rsqrt %166 : vector<16x1xf32>
    %168 = vector.broadcast %167 : vector<16x1xf32> to vector<16x128xf32>
    %169 = arith.mulf %164, %168 : vector<16x128xf32>
    %170 = vector.broadcast %139 : vector<1x128xf32> to vector<16x128xf32>
    %171 = arith.mulf %169, %170 : vector<16x128xf32>
    %172 = vector.broadcast %140 : vector<1x128xf32> to vector<16x128xf32>
    %173 = arith.addf %171, %172 : vector<16x128xf32>
    %174 = vector.broadcast %15 : vector<16x1xf32> to vector<16x128xf32>
    %175 = arith.mulf %173, %174 : vector<16x128xf32>
    %c0_66 = arith.constant 0 : index
    %c0_67 = arith.constant 0 : index
    %c0_68 = arith.constant 0 : index
    %176 = vector.load %arg15[%c0_66, %c0_67, %c0_68] : memref<1x16x128xf32, #tpu.memory_space<vmem>>, vector<1x16x128xf32>
    %177 = vector.shape_cast %176 : vector<1x16x128xf32> to vector<16x128xf32>
    %178 = vector.shape_cast %175 : vector<16x128xf32> to vector<1x16x128xf32>
    tpu.vector_store %arg15[%c0_66, %c0_67, %c0_68], %178 {strides = array<i32>} : memref<1x16x128xf32, #tpu.memory_space<vmem>>, vector<1x16x128xf32>,
    return
  }
  func.func @transform_0(%arg0: i32, %arg1: memref<2xi32, #tpu.memory_space<smem>>) -> (i32, i32, i32) {
    %c0_i32 = arith.constant 0 : i32
    %c0_i32_0 = arith.constant 0 : i32
    %c0_i32_1 = arith.constant 0 : i32
    return %arg0, %c0_i32, %c0_i32_0 : i32, i32, i32
  }
  func.func @transform_1(%arg0: i32, %arg1: memref<2xi32, #tpu.memory_space<smem>>) -> (i32, i32) {
    %c0_i32 = arith.constant 0 : i32
    %c0_i32_0 = arith.constant 0 : i32
    %c0_i32_1 = arith.constant 0 : i32
    return %c0_i32, %c0_i32_0 : i32, i32
  }
  func.func @transform_2(%arg0: i32, %arg1: memref<2xi32, #tpu.memory_space<smem>>) -> (i32, i32) {
    %c0_i32 = arith.constant 0 : i32
    %c0_i32_0 = arith.constant 0 : i32
    %c0_i32_1 = arith.constant 0 : i32
    return %c0_i32, %c0_i32_0 : i32, i32
  }
  func.func @transform_3(%arg0: i32, %arg1: memref<2xi32, #tpu.memory_space<smem>>) -> (i32, i32) {
    %c0_i32 = arith.constant 0 : i32
    %c0_i32_0 = arith.constant 0 : i32
    %c0_i32_1 = arith.constant 0 : i32
    return %c0_i32, %c0_i32_0 : i32, i32
  }
  func.func @transform_4(%arg0: i32, %arg1: memref<2xi32, #tpu.memory_space<smem>>) -> (i32, i32) {
    %c0_i32 = arith.constant 0 : i32
    %c0_i32_0 = arith.constant 0 : i32
    %c0_i32_1 = arith.constant 0 : i32
    return %c0_i32, %c0_i32_0 : i32, i32
  }
  func.func @transform_5(%arg0: i32, %arg1: memref<2xi32, #tpu.memory_space<smem>>) -> (i32, i32) {
    %c0_i32 = arith.constant 0 : i32
    %c0_i32_0 = arith.constant 0 : i32
    %c0_i32_1 = arith.constant 0 : i32
    return %c0_i32, %c0_i32_0 : i32, i32
  }
  func.func @transform_6(%arg0: i32, %arg1: memref<2xi32, #tpu.memory_space<smem>>) -> (i32, i32) {
    %c0_i32 = arith.constant 0 : i32
    %c0_i32_0 = arith.constant 0 : i32
    %c0_i32_1 = arith.constant 0 : i32
    return %c0_i32, %c0_i32_0 : i32, i32
  }
  func.func @transform_7(%arg0: i32, %arg1: memref<2xi32, #tpu.memory_space<smem>>) -> (i32, i32) {
    %c0_i32 = arith.constant 0 : i32
    %c0_i32_0 = arith.constant 0 : i32
    %c0_i32_1 = arith.constant 0 : i32
    return %c0_i32, %c0_i32_0 : i32, i32
  }
  func.func @transform_8(%arg0: i32, %arg1: memref<2xi32, #tpu.memory_space<smem>>) -> (i32, i32) {
    %c0_i32 = arith.constant 0 : i32
    %c0_i32_0 = arith.constant 0 : i32
    %c0_i32_1 = arith.constant 0 : i32
    return %c0_i32, %c0_i32_0 : i32, i32
  }
  func.func @transform_9(%arg0: i32, %arg1: memref<2xi32, #tpu.memory_space<smem>>) -> (i32, i32) {
    %c0_i32 = arith.constant 0 : i32
    %c0_i32_0 = arith.constant 0 : i32
    %c0_i32_1 = arith.constant 0 : i32
    return %c0_i32, %c0_i32_0 : i32, i32
  }
  func.func @transform_10(%arg0: i32, %arg1: memref<2xi32, #tpu.memory_space<smem>>) -> (i32, i32) {
    %c0_i32 = arith.constant 0 : i32
    %c0_i32_0 = arith.constant 0 : i32
    %c0_i32_1 = arith.constant 0 : i32
    return %c0_i32, %c0_i32_0 : i32, i32
  }
  func.func @transform_11(%arg0: i32, %arg1: memref<2xi32, #tpu.memory_space<smem>>) -> (i32, i32) {
    %c0_i32 = arith.constant 0 : i32
    %c0_i32_0 = arith.constant 0 : i32
    %c0_i32_1 = arith.constant 0 : i32
    return %c0_i32, %c0_i32_0 : i32, i32
  }
  func.func @transform_12(%arg0: i32, %arg1: memref<2xi32, #tpu.memory_space<smem>>) -> (i32, i32) {
    %c0_i32 = arith.constant 0 : i32
    %c0_i32_0 = arith.constant 0 : i32
    %c0_i32_1 = arith.constant 0 : i32
    return %c0_i32, %c0_i32_0 : i32, i32
  }
  func.func @transform_13(%arg0: i32, %arg1: memref<2xi32, #tpu.memory_space<smem>>) -> (i32, i32, i32) {
    %c0_i32 = arith.constant 0 : i32
    %c0_i32_0 = arith.constant 0 : i32
    %c0_i32_1 = arith.constant 0 : i32
    return %arg0, %c0_i32, %c0_i32_0 : i32, i32, i32
  }
}

module attributes {stable_mosaic.version = 11 : i64} {
  func.func @_proj_kernel(%arg0: memref<18x128xf32, #tpu.memory_space<vmem>>, %arg1: memref<128x128xf32, #tpu.memory_space<vmem>>, %arg2: memref<1x128xf32, #tpu.memory_space<vmem>>, %arg3: memref<18x128xf32, #tpu.memory_space<vmem>>) attributes {dimension_semantics = [], scalar_prefetch = 0 : i64, scratch_operands = 0 : i64, tpu.core_type = #tpu.core_type<tc>} {
    %c0 = arith.constant 0 : index
    %c0_0 = arith.constant 0 : index
    %0 = vector.load %arg0[%c0, %c0_0] : memref<18x128xf32, #tpu.memory_space<vmem>>, vector<18x128xf32>
    %c0_1 = arith.constant 0 : index
    %c0_2 = arith.constant 0 : index
    %1 = vector.load %arg1[%c0_1, %c0_2] : memref<128x128xf32, #tpu.memory_space<vmem>>, vector<128x128xf32>
    %cst = arith.constant dense<0.000000e+00> : vector<18x128xf32>
    %2 = tpu.matmul %0, %1, %cst {dimension_numbers = #tpu.dot_dimension_numbers<[1], [0], [0], [1], [0, 0, 1, 1], [], []>} : vector<18x128xf32>, vector<128x128xf32>, vector<18x128xf32> -> vector<18x128xf32>
    %c0_3 = arith.constant 0 : index
    %c0_4 = arith.constant 0 : index
    %3 = vector.load %arg2[%c0_3, %c0_4] : memref<1x128xf32, #tpu.memory_space<vmem>>, vector<1x128xf32>
    %4 = vector.broadcast %3 : vector<1x128xf32> to vector<18x128xf32>
    %5 = arith.addf %2, %4 : vector<18x128xf32>
    %c0_5 = arith.constant 0 : index
    %c0_6 = arith.constant 0 : index
    %6 = vector.load %arg3[%c0_5, %c0_6] : memref<18x128xf32, #tpu.memory_space<vmem>>, vector<18x128xf32>
    tpu.vector_store %arg3[%c0_5, %c0_6], %5 {strides = array<i32>} : memref<18x128xf32, #tpu.memory_space<vmem>>, vector<18x128xf32>,
    return
  }
}

module attributes {stable_mosaic.version = 11 : i64} {
  func.func @_dec_layer_kernel(%arg0: i32, %arg1: memref<2xi32, #tpu.memory_space<smem>>, %arg2: memref<1x9x128xf32, #tpu.memory_space<vmem>>, %arg3: memref<1x16x128xf32, #tpu.memory_space<vmem>>, %arg4: memref<128x96xf32, #tpu.memory_space<vmem>>, %arg5: memref<1x96xf32, #tpu.memory_space<vmem>>, %arg6: memref<32x128xf32, #tpu.memory_space<vmem>>, %arg7: memref<1x128xf32, #tpu.memory_space<vmem>>, %arg8: memref<1x128xf32, #tpu.memory_space<vmem>>, %arg9: memref<1x128xf32, #tpu.memory_space<vmem>>, %arg10: memref<128x32xf32, #tpu.memory_space<vmem>>, %arg11: memref<1x32xf32, #tpu.memory_space<vmem>>, %arg12: memref<128x64xf32, #tpu.memory_space<vmem>>, %arg13: memref<1x64xf32, #tpu.memory_space<vmem>>, %arg14: memref<32x128xf32, #tpu.memory_space<vmem>>, %arg15: memref<1x128xf32, #tpu.memory_space<vmem>>, %arg16: memref<1x128xf32, #tpu.memory_space<vmem>>, %arg17: memref<1x128xf32, #tpu.memory_space<vmem>>, %arg18: memref<128x64xf32, #tpu.memory_space<vmem>>, %arg19: memref<1x64xf32, #tpu.memory_space<vmem>>, %arg20: memref<64x128xf32, #tpu.memory_space<vmem>>, %arg21: memref<1x128xf32, #tpu.memory_space<vmem>>, %arg22: memref<1x128xf32, #tpu.memory_space<vmem>>, %arg23: memref<1x128xf32, #tpu.memory_space<vmem>>, %arg24: memref<1x9x128xf32, #tpu.memory_space<vmem>>) attributes {dimension_semantics = [#tpu.dimension_semantics<parallel>], iteration_bounds = array<i64: 2>, scalar_prefetch = 1 : i64, scratch_operands = 0 : i64, tpu.core_type = #tpu.core_type<tc>, window_params = [{transform_indices = @transform_0, window_bounds = array<i64: 1, 9, 128>}, {transform_indices = @transform_1, window_bounds = array<i64: 1, 16, 128>}, {pipeline_mode = #tpu.pipeline_mode<synchronous>, transform_indices = @transform_2, window_bounds = array<i64: 128, 96>}, {pipeline_mode = #tpu.pipeline_mode<synchronous>, transform_indices = @transform_3, window_bounds = array<i64: 1, 96>}, {pipeline_mode = #tpu.pipeline_mode<synchronous>, transform_indices = @transform_4, window_bounds = array<i64: 32, 128>}, {pipeline_mode = #tpu.pipeline_mode<synchronous>, transform_indices = @transform_5, window_bounds = array<i64: 1, 128>}, {pipeline_mode = #tpu.pipeline_mode<synchronous>, transform_indices = @transform_6, window_bounds = array<i64: 1, 128>}, {pipeline_mode = #tpu.pipeline_mode<synchronous>, transform_indices = @transform_7, window_bounds = array<i64: 1, 128>}, {pipeline_mode = #tpu.pipeline_mode<synchronous>, transform_indices = @transform_8, window_bounds = array<i64: 128, 32>}, {pipeline_mode = #tpu.pipeline_mode<synchronous>, transform_indices = @transform_9, window_bounds = array<i64: 1, 32>}, {pipeline_mode = #tpu.pipeline_mode<synchronous>, transform_indices = @transform_10, window_bounds = array<i64: 128, 64>}, {pipeline_mode = #tpu.pipeline_mode<synchronous>, transform_indices = @transform_11, window_bounds = array<i64: 1, 64>}, {pipeline_mode = #tpu.pipeline_mode<synchronous>, transform_indices = @transform_12, window_bounds = array<i64: 32, 128>}, {pipeline_mode = #tpu.pipeline_mode<synchronous>, transform_indices = @transform_13, window_bounds = array<i64: 1, 128>}, {pipeline_mode = #tpu.pipeline_mode<synchronous>, transform_indices = @transform_14, window_bounds = array<i64: 1, 128>}, {pipeline_mode = #tpu.pipeline_mode<synchronous>, transform_indices = @transform_15, window_bounds = array<i64: 1, 128>}, {pipeline_mode = #tpu.pipeline_mode<synchronous>, transform_indices = @transform_16, window_bounds = array<i64: 128, 64>}, {pipeline_mode = #tpu.pipeline_mode<synchronous>, transform_indices = @transform_17, window_bounds = array<i64: 1, 64>}, {pipeline_mode = #tpu.pipeline_mode<synchronous>, transform_indices = @transform_18, window_bounds = array<i64: 64, 128>}, {pipeline_mode = #tpu.pipeline_mode<synchronous>, transform_indices = @transform_19, window_bounds = array<i64: 1, 128>}, {pipeline_mode = #tpu.pipeline_mode<synchronous>, transform_indices = @transform_20, window_bounds = array<i64: 1, 128>}, {pipeline_mode = #tpu.pipeline_mode<synchronous>, transform_indices = @transform_21, window_bounds = array<i64: 1, 128>}, {transform_indices = @transform_22, window_bounds = array<i64: 1, 9, 128>}]} {
    %0 = arith.index_cast %arg0 : i32 to index
    %1 = memref.load %arg1[%0] : memref<2xi32, #tpu.memory_space<smem>>
    %c0 = arith.constant 0 : index
    %c0_0 = arith.constant 0 : index
    %c0_1 = arith.constant 0 : index
    %2 = vector.load %arg2[%c0, %c0_0, %c0_1] : memref<1x9x128xf32, #tpu.memory_space<vmem>>, vector<1x9x128xf32>
    %3 = vector.shape_cast %2 : vector<1x9x128xf32> to vector<9x128xf32>
    %c0_2 = arith.constant 0 : index
    %c0_3 = arith.constant 0 : index
    %c0_4 = arith.constant 0 : index
    %4 = vector.load %arg3[%c0_2, %c0_3, %c0_4] : memref<1x16x128xf32, #tpu.memory_space<vmem>>, vector<1x16x128xf32>
    %5 = vector.shape_cast %4 : vector<1x16x128xf32> to vector<16x128xf32>
    %6 = tpu.iota {dimensions = array<i32: 0>} : vector<9x9xi32>
    %7 = tpu.iota {dimensions = array<i32: 1>} : vector<9x9xi32>
    %8 = arith.cmpi sgt, %7, %6 : vector<9x9xi32>
    %cst = arith.constant -1.000000e+09 : f32
    %cst_5 = arith.constant 0.000000e+00 : f32
    %9 = vector.broadcast %cst : f32 to vector<9x9xf32>
    %10 = vector.broadcast %cst_5 : f32 to vector<9x9xf32>
    %11 = arith.select %8, %9, %10 : vector<9x9xi1>, vector<9x9xf32>
    %12 = tpu.iota {dimensions = array<i32: 1>} : vector<1x16xi32>
    %13 = vector.broadcast %1 : i32 to vector<1x16xi32>
    %14 = arith.cmpi sge, %12, %13 : vector<1x16xi32>
    %cst_6 = arith.constant -1.000000e+09 : f32
    %cst_7 = arith.constant 0.000000e+00 : f32
    %15 = vector.broadcast %cst_6 : f32 to vector<1x16xf32>
    %16 = vector.broadcast %cst_7 : f32 to vector<1x16xf32>
    %17 = arith.select %14, %15, %16 : vector<1x16xi1>, vector<1x16xf32>
    %c0_8 = arith.constant 0 : index
    %c0_9 = arith.constant 0 : index
    %18 = vector.load %arg4[%c0_8, %c0_9] : memref<128x96xf32, #tpu.memory_space<vmem>>, vector<128x96xf32>
    %cst_10 = arith.constant dense<0.000000e+00> : vector<9x96xf32>
    %19 = tpu.matmul %3, %18, %cst_10 {dimension_numbers = #tpu.dot_dimension_numbers<[1], [0], [0], [1], [0, 0, 1, 1], [], []>} : vector<9x128xf32>, vector<128x96xf32>, vector<9x96xf32> -> vector<9x96xf32>
    %c0_11 = arith.constant 0 : index
    %c0_12 = arith.constant 0 : index
    %20 = vector.load %arg5[%c0_11, %c0_12] : memref<1x96xf32, #tpu.memory_space<vmem>>, vector<1x96xf32>
    %21 = vector.broadcast %20 : vector<1x96xf32> to vector<9x96xf32>
    %22 = arith.addf %19, %21 : vector<9x96xf32>
    %23 = vector.extract_strided_slice %22 {offsets = [0, 0], sizes = [9, 32], strides = [1, 1]} : vector<9x96xf32> to vector<9x32xf32>
    %24 = vector.extract_strided_slice %22 {offsets = [0, 32], sizes = [9, 32], strides = [1, 1]} : vector<9x96xf32> to vector<9x32xf32>
    %25 = vector.extract_strided_slice %22 {offsets = [0, 64], sizes = [9, 32], strides = [1, 1]} : vector<9x96xf32> to vector<9x32xf32>
    %c0_13 = arith.constant 0 : index
    %c0_14 = arith.constant 0 : index
    %26 = vector.load %arg6[%c0_13, %c0_14] : memref<32x128xf32, #tpu.memory_space<vmem>>, vector<32x128xf32>
    %c0_15 = arith.constant 0 : index
    %c0_16 = arith.constant 0 : index
    %27 = vector.load %arg7[%c0_15, %c0_16] : memref<1x128xf32, #tpu.memory_space<vmem>>, vector<1x128xf32>
    %c0_17 = arith.constant 0 : index
    %c0_18 = arith.constant 0 : index
    %28 = vector.load %arg8[%c0_17, %c0_18] : memref<1x128xf32, #tpu.memory_space<vmem>>, vector<1x128xf32>
    %c0_19 = arith.constant 0 : index
    %c0_20 = arith.constant 0 : index
    %29 = vector.load %arg9[%c0_19, %c0_20] : memref<1x128xf32, #tpu.memory_space<vmem>>, vector<1x128xf32>
    %30 = vector.extract_strided_slice %23 {offsets = [0, 0], sizes = [9, 8], strides = [1, 1]} : vector<9x32xf32> to vector<9x8xf32>
    %31 = vector.extract_strided_slice %24 {offsets = [0, 0], sizes = [9, 8], strides = [1, 1]} : vector<9x32xf32> to vector<9x8xf32>
    %32 = vector.extract_strided_slice %25 {offsets = [0, 0], sizes = [9, 8], strides = [1, 1]} : vector<9x32xf32> to vector<9x8xf32>
    %cst_21 = arith.constant dense<0.000000e+00> : vector<9x9xf32>
    %33 = tpu.matmul %30, %31, %cst_21 {dimension_numbers = #tpu.dot_dimension_numbers<[1], [1], [0], [0], [0, 0, 1, 0], [], []>} : vector<9x8xf32>, vector<9x8xf32>, vector<9x9xf32> -> vector<9x9xf32>
    %cst_22 = arith.constant 0.353553385 : f32
    %34 = vector.broadcast %cst_22 : f32 to vector<9x9xf32>
    %35 = arith.mulf %33, %34 : vector<9x9xf32>
    %36 = arith.addf %35, %11 : vector<9x9xf32>
    %cst_23 = arith.constant dense<0xFF800000> : vector<9xf32>
    %37 = vector.multi_reduction <maximumf>, %36, %cst_23 [1] : vector<9x9xf32> to vector<9xf32>
    %38 = vector.shape_cast %37 : vector<9xf32> to vector<9x1xf32>
    %39 = vector.broadcast %38 : vector<9x1xf32> to vector<9x9xf32>
    %40 = arith.subf %36, %39 : vector<9x9xf32>
    %41 = math.exp %40 : vector<9x9xf32>
    %cst_24 = arith.constant dense<0.000000e+00> : vector<9xf32>
    %42 = vector.multi_reduction <add>, %41, %cst_24 [1] : vector<9x9xf32> to vector<9xf32>
    %43 = vector.shape_cast %42 : vector<9xf32> to vector<9x1xf32>
    %44 = tpu.reciprocal %43 {approx = true} : vector<9x1xf32> -> vector<9x1xf32>
    %45 = vector.broadcast %44 : vector<9x1xf32> to vector<9x9xf32>
    %46 = arith.mulf %41, %45 : vector<9x9xf32>
    %cst_25 = arith.constant dense<0.000000e+00> : vector<9x8xf32>
    %47 = tpu.matmul %46, %32, %cst_25 {dimension_numbers = #tpu.dot_dimension_numbers<[1], [0], [0], [1], [0, 0, 1, 1], [], []>} : vector<9x9xf32>, vector<9x8xf32>, vector<9x8xf32> -> vector<9x8xf32>
    %48 = vector.extract_strided_slice %23 {offsets = [0, 8], sizes = [9, 8], strides = [1, 1]} : vector<9x32xf32> to vector<9x8xf32>
    %49 = vector.extract_strided_slice %24 {offsets = [0, 8], sizes = [9, 8], strides = [1, 1]} : vector<9x32xf32> to vector<9x8xf32>
    %50 = vector.extract_strided_slice %25 {offsets = [0, 8], sizes = [9, 8], strides = [1, 1]} : vector<9x32xf32> to vector<9x8xf32>
    %cst_26 = arith.constant dense<0.000000e+00> : vector<9x9xf32>
    %51 = tpu.matmul %48, %49, %cst_26 {dimension_numbers = #tpu.dot_dimension_numbers<[1], [1], [0], [0], [0, 0, 1, 0], [], []>} : vector<9x8xf32>, vector<9x8xf32>, vector<9x9xf32> -> vector<9x9xf32>
    %cst_27 = arith.constant 0.353553385 : f32
    %52 = vector.broadcast %cst_27 : f32 to vector<9x9xf32>
    %53 = arith.mulf %51, %52 : vector<9x9xf32>
    %54 = arith.addf %53, %11 : vector<9x9xf32>
    %cst_28 = arith.constant dense<0xFF800000> : vector<9xf32>
    %55 = vector.multi_reduction <maximumf>, %54, %cst_28 [1] : vector<9x9xf32> to vector<9xf32>
    %56 = vector.shape_cast %55 : vector<9xf32> to vector<9x1xf32>
    %57 = vector.broadcast %56 : vector<9x1xf32> to vector<9x9xf32>
    %58 = arith.subf %54, %57 : vector<9x9xf32>
    %59 = math.exp %58 : vector<9x9xf32>
    %cst_29 = arith.constant dense<0.000000e+00> : vector<9xf32>
    %60 = vector.multi_reduction <add>, %59, %cst_29 [1] : vector<9x9xf32> to vector<9xf32>
    %61 = vector.shape_cast %60 : vector<9xf32> to vector<9x1xf32>
    %62 = tpu.reciprocal %61 {approx = true} : vector<9x1xf32> -> vector<9x1xf32>
    %63 = vector.broadcast %62 : vector<9x1xf32> to vector<9x9xf32>
    %64 = arith.mulf %59, %63 : vector<9x9xf32>
    %cst_30 = arith.constant dense<0.000000e+00> : vector<9x8xf32>
    %65 = tpu.matmul %64, %50, %cst_30 {dimension_numbers = #tpu.dot_dimension_numbers<[1], [0], [0], [1], [0, 0, 1, 1], [], []>} : vector<9x9xf32>, vector<9x8xf32>, vector<9x8xf32> -> vector<9x8xf32>
    %66 = vector.extract_strided_slice %23 {offsets = [0, 16], sizes = [9, 8], strides = [1, 1]} : vector<9x32xf32> to vector<9x8xf32>
    %67 = vector.extract_strided_slice %24 {offsets = [0, 16], sizes = [9, 8], strides = [1, 1]} : vector<9x32xf32> to vector<9x8xf32>
    %68 = vector.extract_strided_slice %25 {offsets = [0, 16], sizes = [9, 8], strides = [1, 1]} : vector<9x32xf32> to vector<9x8xf32>
    %cst_31 = arith.constant dense<0.000000e+00> : vector<9x9xf32>
    %69 = tpu.matmul %66, %67, %cst_31 {dimension_numbers = #tpu.dot_dimension_numbers<[1], [1], [0], [0], [0, 0, 1, 0], [], []>} : vector<9x8xf32>, vector<9x8xf32>, vector<9x9xf32> -> vector<9x9xf32>
    %cst_32 = arith.constant 0.353553385 : f32
    %70 = vector.broadcast %cst_32 : f32 to vector<9x9xf32>
    %71 = arith.mulf %69, %70 : vector<9x9xf32>
    %72 = arith.addf %71, %11 : vector<9x9xf32>
    %cst_33 = arith.constant dense<0xFF800000> : vector<9xf32>
    %73 = vector.multi_reduction <maximumf>, %72, %cst_33 [1] : vector<9x9xf32> to vector<9xf32>
    %74 = vector.shape_cast %73 : vector<9xf32> to vector<9x1xf32>
    %75 = vector.broadcast %74 : vector<9x1xf32> to vector<9x9xf32>
    %76 = arith.subf %72, %75 : vector<9x9xf32>
    %77 = math.exp %76 : vector<9x9xf32>
    %cst_34 = arith.constant dense<0.000000e+00> : vector<9xf32>
    %78 = vector.multi_reduction <add>, %77, %cst_34 [1] : vector<9x9xf32> to vector<9xf32>
    %79 = vector.shape_cast %78 : vector<9xf32> to vector<9x1xf32>
    %80 = tpu.reciprocal %79 {approx = true} : vector<9x1xf32> -> vector<9x1xf32>
    %81 = vector.broadcast %80 : vector<9x1xf32> to vector<9x9xf32>
    %82 = arith.mulf %77, %81 : vector<9x9xf32>
    %cst_35 = arith.constant dense<0.000000e+00> : vector<9x8xf32>
    %83 = tpu.matmul %82, %68, %cst_35 {dimension_numbers = #tpu.dot_dimension_numbers<[1], [0], [0], [1], [0, 0, 1, 1], [], []>} : vector<9x9xf32>, vector<9x8xf32>, vector<9x8xf32> -> vector<9x8xf32>
    %84 = vector.extract_strided_slice %23 {offsets = [0, 24], sizes = [9, 8], strides = [1, 1]} : vector<9x32xf32> to vector<9x8xf32>
    %85 = vector.extract_strided_slice %24 {offsets = [0, 24], sizes = [9, 8], strides = [1, 1]} : vector<9x32xf32> to vector<9x8xf32>
    %86 = vector.extract_strided_slice %25 {offsets = [0, 24], sizes = [9, 8], strides = [1, 1]} : vector<9x32xf32> to vector<9x8xf32>
    %cst_36 = arith.constant dense<0.000000e+00> : vector<9x9xf32>
    %87 = tpu.matmul %84, %85, %cst_36 {dimension_numbers = #tpu.dot_dimension_numbers<[1], [1], [0], [0], [0, 0, 1, 0], [], []>} : vector<9x8xf32>, vector<9x8xf32>, vector<9x9xf32> -> vector<9x9xf32>
    %cst_37 = arith.constant 0.353553385 : f32
    %88 = vector.broadcast %cst_37 : f32 to vector<9x9xf32>
    %89 = arith.mulf %87, %88 : vector<9x9xf32>
    %90 = arith.addf %89, %11 : vector<9x9xf32>
    %cst_38 = arith.constant dense<0xFF800000> : vector<9xf32>
    %91 = vector.multi_reduction <maximumf>, %90, %cst_38 [1] : vector<9x9xf32> to vector<9xf32>
    %92 = vector.shape_cast %91 : vector<9xf32> to vector<9x1xf32>
    %93 = vector.broadcast %92 : vector<9x1xf32> to vector<9x9xf32>
    %94 = arith.subf %90, %93 : vector<9x9xf32>
    %95 = math.exp %94 : vector<9x9xf32>
    %cst_39 = arith.constant dense<0.000000e+00> : vector<9xf32>
    %96 = vector.multi_reduction <add>, %95, %cst_39 [1] : vector<9x9xf32> to vector<9xf32>
    %97 = vector.shape_cast %96 : vector<9xf32> to vector<9x1xf32>
    %98 = tpu.reciprocal %97 {approx = true} : vector<9x1xf32> -> vector<9x1xf32>
    %99 = vector.broadcast %98 : vector<9x1xf32> to vector<9x9xf32>
    %100 = arith.mulf %95, %99 : vector<9x9xf32>
    %cst_40 = arith.constant dense<0.000000e+00> : vector<9x8xf32>
    %101 = tpu.matmul %100, %86, %cst_40 {dimension_numbers = #tpu.dot_dimension_numbers<[1], [0], [0], [1], [0, 0, 1, 1], [], []>} : vector<9x9xf32>, vector<9x8xf32>, vector<9x8xf32> -> vector<9x8xf32>
    %102 = tpu.concatenate %47, %65, %83, %101 in 1 : vector<9x8xf32>, vector<9x8xf32>, vector<9x8xf32>, vector<9x8xf32> -> vector<9x32xf32>
    %cst_41 = arith.constant dense<0.000000e+00> : vector<9x128xf32>
    %103 = tpu.matmul %102, %26, %cst_41 {dimension_numbers = #tpu.dot_dimension_numbers<[1], [0], [0], [1], [0, 0, 1, 1], [], []>} : vector<9x32xf32>, vector<32x128xf32>, vector<9x128xf32> -> vector<9x128xf32>
    %104 = vector.broadcast %27 : vector<1x128xf32> to vector<9x128xf32>
    %105 = arith.addf %103, %104 : vector<9x128xf32>
    %106 = arith.addf %105, %3 : vector<9x128xf32>
    %cst_42 = arith.constant dense<0.000000e+00> : vector<9xf32>
    %107 = vector.multi_reduction <add>, %106, %cst_42 [1] : vector<9x128xf32> to vector<9xf32>
    %108 = vector.shape_cast %107 : vector<9xf32> to vector<9x1xf32>
    %cst_43 = arith.constant 3.125000e-02 : f32
    %109 = vector.broadcast %cst_43 : f32 to vector<9x1xf32>
    %110 = arith.mulf %108, %109 : vector<9x1xf32>
    %111 = arith.mulf %106, %106 : vector<9x128xf32>
    %cst_44 = arith.constant dense<0.000000e+00> : vector<9xf32>
    %112 = vector.multi_reduction <add>, %111, %cst_44 [1] : vector<9x128xf32> to vector<9xf32>
    %113 = vector.shape_cast %112 : vector<9xf32> to vector<9x1xf32>
    %cst_45 = arith.constant 3.125000e-02 : f32
    %114 = vector.broadcast %cst_45 : f32 to vector<9x1xf32>
    %115 = arith.mulf %113, %114 : vector<9x1xf32>
    %116 = arith.mulf %110, %110 : vector<9x1xf32>
    %117 = arith.subf %115, %116 : vector<9x1xf32>
    %cst_46 = arith.constant 0.000000e+00 : f32
    %118 = vector.broadcast %cst_46 : f32 to vector<9x1xf32>
    %119 = arith.maximumf %117, %118 : vector<9x1xf32>
    %120 = vector.broadcast %110 : vector<9x1xf32> to vector<9x128xf32>
    %121 = arith.subf %106, %120 : vector<9x128xf32>
    %cst_47 = arith.constant 9.99999974E-6 : f32
    %122 = vector.broadcast %cst_47 : f32 to vector<9x1xf32>
    %123 = arith.addf %119, %122 : vector<9x1xf32>
    %124 = math.rsqrt %123 : vector<9x1xf32>
    %125 = vector.broadcast %124 : vector<9x1xf32> to vector<9x128xf32>
    %126 = arith.mulf %121, %125 : vector<9x128xf32>
    %127 = vector.broadcast %28 : vector<1x128xf32> to vector<9x128xf32>
    %128 = arith.mulf %126, %127 : vector<9x128xf32>
    %129 = vector.broadcast %29 : vector<1x128xf32> to vector<9x128xf32>
    %130 = arith.addf %128, %129 : vector<9x128xf32>
    %c0_48 = arith.constant 0 : index
    %c0_49 = arith.constant 0 : index
    %131 = vector.load %arg10[%c0_48, %c0_49] : memref<128x32xf32, #tpu.memory_space<vmem>>, vector<128x32xf32>
    %cst_50 = arith.constant dense<0.000000e+00> : vector<9x32xf32>
    %132 = tpu.matmul %130, %131, %cst_50 {dimension_numbers = #tpu.dot_dimension_numbers<[1], [0], [0], [1], [0, 0, 1, 1], [], []>} : vector<9x128xf32>, vector<128x32xf32>, vector<9x32xf32> -> vector<9x32xf32>
    %c0_51 = arith.constant 0 : index
    %c0_52 = arith.constant 0 : index
    %133 = vector.load %arg11[%c0_51, %c0_52] : memref<1x32xf32, #tpu.memory_space<vmem>>, vector<1x32xf32>
    %134 = vector.broadcast %133 : vector<1x32xf32> to vector<9x32xf32>
    %135 = arith.addf %132, %134 : vector<9x32xf32>
    %c0_53 = arith.constant 0 : index
    %c0_54 = arith.constant 0 : index
    %136 = vector.load %arg12[%c0_53, %c0_54] : memref<128x64xf32, #tpu.memory_space<vmem>>, vector<128x64xf32>
    %cst_55 = arith.constant dense<0.000000e+00> : vector<16x64xf32>
    %137 = tpu.matmul %5, %136, %cst_55 {dimension_numbers = #tpu.dot_dimension_numbers<[1], [0], [0], [1], [0, 0, 1, 1], [], []>} : vector<16x128xf32>, vector<128x64xf32>, vector<16x64xf32> -> vector<16x64xf32>
    %c0_56 = arith.constant 0 : index
    %c0_57 = arith.constant 0 : index
    %138 = vector.load %arg13[%c0_56, %c0_57] : memref<1x64xf32, #tpu.memory_space<vmem>>, vector<1x64xf32>
    %139 = vector.broadcast %138 : vector<1x64xf32> to vector<16x64xf32>
    %140 = arith.addf %137, %139 : vector<16x64xf32>
    %141 = vector.extract_strided_slice %140 {offsets = [0, 0], sizes = [16, 32], strides = [1, 1]} : vector<16x64xf32> to vector<16x32xf32>
    %142 = vector.extract_strided_slice %140 {offsets = [0, 32], sizes = [16, 32], strides = [1, 1]} : vector<16x64xf32> to vector<16x32xf32>
    %c0_58 = arith.constant 0 : index
    %c0_59 = arith.constant 0 : index
    %143 = vector.load %arg14[%c0_58, %c0_59] : memref<32x128xf32, #tpu.memory_space<vmem>>, vector<32x128xf32>
    %c0_60 = arith.constant 0 : index
    %c0_61 = arith.constant 0 : index
    %144 = vector.load %arg15[%c0_60, %c0_61] : memref<1x128xf32, #tpu.memory_space<vmem>>, vector<1x128xf32>
    %c0_62 = arith.constant 0 : index
    %c0_63 = arith.constant 0 : index
    %145 = vector.load %arg16[%c0_62, %c0_63] : memref<1x128xf32, #tpu.memory_space<vmem>>, vector<1x128xf32>
    %c0_64 = arith.constant 0 : index
    %c0_65 = arith.constant 0 : index
    %146 = vector.load %arg17[%c0_64, %c0_65] : memref<1x128xf32, #tpu.memory_space<vmem>>, vector<1x128xf32>
    %147 = vector.extract_strided_slice %135 {offsets = [0, 0], sizes = [9, 8], strides = [1, 1]} : vector<9x32xf32> to vector<9x8xf32>
    %148 = vector.extract_strided_slice %141 {offsets = [0, 0], sizes = [16, 8], strides = [1, 1]} : vector<16x32xf32> to vector<16x8xf32>
    %149 = vector.extract_strided_slice %142 {offsets = [0, 0], sizes = [16, 8], strides = [1, 1]} : vector<16x32xf32> to vector<16x8xf32>
    %cst_66 = arith.constant dense<0.000000e+00> : vector<9x16xf32>
    %150 = tpu.matmul %147, %148, %cst_66 {dimension_numbers = #tpu.dot_dimension_numbers<[1], [1], [0], [0], [0, 0, 1, 0], [], []>} : vector<9x8xf32>, vector<16x8xf32>, vector<9x16xf32> -> vector<9x16xf32>
    %cst_67 = arith.constant 0.353553385 : f32
    %151 = vector.broadcast %cst_67 : f32 to vector<9x16xf32>
    %152 = arith.mulf %150, %151 : vector<9x16xf32>
    %153 = vector.broadcast %17 : vector<1x16xf32> to vector<9x16xf32>
    %154 = arith.addf %152, %153 : vector<9x16xf32>
    %cst_68 = arith.constant dense<0xFF800000> : vector<9xf32>
    %155 = vector.multi_reduction <maximumf>, %154, %cst_68 [1] : vector<9x16xf32> to vector<9xf32>
    %156 = vector.shape_cast %155 : vector<9xf32> to vector<9x1xf32>
    %157 = vector.broadcast %156 : vector<9x1xf32> to vector<9x16xf32>
    %158 = arith.subf %154, %157 : vector<9x16xf32>
    %159 = math.exp %158 : vector<9x16xf32>
    %cst_69 = arith.constant dense<0.000000e+00> : vector<9xf32>
    %160 = vector.multi_reduction <add>, %159, %cst_69 [1] : vector<9x16xf32> to vector<9xf32>
    %161 = vector.shape_cast %160 : vector<9xf32> to vector<9x1xf32>
    %162 = tpu.reciprocal %161 {approx = true} : vector<9x1xf32> -> vector<9x1xf32>
    %163 = vector.broadcast %162 : vector<9x1xf32> to vector<9x16xf32>
    %164 = arith.mulf %159, %163 : vector<9x16xf32>
    %cst_70 = arith.constant dense<0.000000e+00> : vector<9x8xf32>
    %165 = tpu.matmul %164, %149, %cst_70 {dimension_numbers = #tpu.dot_dimension_numbers<[1], [0], [0], [1], [0, 0, 1, 1], [], []>} : vector<9x16xf32>, vector<16x8xf32>, vector<9x8xf32> -> vector<9x8xf32>
    %166 = vector.extract_strided_slice %135 {offsets = [0, 8], sizes = [9, 8], strides = [1, 1]} : vector<9x32xf32> to vector<9x8xf32>
    %167 = vector.extract_strided_slice %141 {offsets = [0, 8], sizes = [16, 8], strides = [1, 1]} : vector<16x32xf32> to vector<16x8xf32>
    %168 = vector.extract_strided_slice %142 {offsets = [0, 8], sizes = [16, 8], strides = [1, 1]} : vector<16x32xf32> to vector<16x8xf32>
    %cst_71 = arith.constant dense<0.000000e+00> : vector<9x16xf32>
    %169 = tpu.matmul %166, %167, %cst_71 {dimension_numbers = #tpu.dot_dimension_numbers<[1], [1], [0], [0], [0, 0, 1, 0], [], []>} : vector<9x8xf32>, vector<16x8xf32>, vector<9x16xf32> -> vector<9x16xf32>
    %cst_72 = arith.constant 0.353553385 : f32
    %170 = vector.broadcast %cst_72 : f32 to vector<9x16xf32>
    %171 = arith.mulf %169, %170 : vector<9x16xf32>
    %172 = vector.broadcast %17 : vector<1x16xf32> to vector<9x16xf32>
    %173 = arith.addf %171, %172 : vector<9x16xf32>
    %cst_73 = arith.constant dense<0xFF800000> : vector<9xf32>
    %174 = vector.multi_reduction <maximumf>, %173, %cst_73 [1] : vector<9x16xf32> to vector<9xf32>
    %175 = vector.shape_cast %174 : vector<9xf32> to vector<9x1xf32>
    %176 = vector.broadcast %175 : vector<9x1xf32> to vector<9x16xf32>
    %177 = arith.subf %173, %176 : vector<9x16xf32>
    %178 = math.exp %177 : vector<9x16xf32>
    %cst_74 = arith.constant dense<0.000000e+00> : vector<9xf32>
    %179 = vector.multi_reduction <add>, %178, %cst_74 [1] : vector<9x16xf32> to vector<9xf32>
    %180 = vector.shape_cast %179 : vector<9xf32> to vector<9x1xf32>
    %181 = tpu.reciprocal %180 {approx = true} : vector<9x1xf32> -> vector<9x1xf32>
    %182 = vector.broadcast %181 : vector<9x1xf32> to vector<9x16xf32>
    %183 = arith.mulf %178, %182 : vector<9x16xf32>
    %cst_75 = arith.constant dense<0.000000e+00> : vector<9x8xf32>
    %184 = tpu.matmul %183, %168, %cst_75 {dimension_numbers = #tpu.dot_dimension_numbers<[1], [0], [0], [1], [0, 0, 1, 1], [], []>} : vector<9x16xf32>, vector<16x8xf32>, vector<9x8xf32> -> vector<9x8xf32>
    %185 = vector.extract_strided_slice %135 {offsets = [0, 16], sizes = [9, 8], strides = [1, 1]} : vector<9x32xf32> to vector<9x8xf32>
    %186 = vector.extract_strided_slice %141 {offsets = [0, 16], sizes = [16, 8], strides = [1, 1]} : vector<16x32xf32> to vector<16x8xf32>
    %187 = vector.extract_strided_slice %142 {offsets = [0, 16], sizes = [16, 8], strides = [1, 1]} : vector<16x32xf32> to vector<16x8xf32>
    %cst_76 = arith.constant dense<0.000000e+00> : vector<9x16xf32>
    %188 = tpu.matmul %185, %186, %cst_76 {dimension_numbers = #tpu.dot_dimension_numbers<[1], [1], [0], [0], [0, 0, 1, 0], [], []>} : vector<9x8xf32>, vector<16x8xf32>, vector<9x16xf32> -> vector<9x16xf32>
    %cst_77 = arith.constant 0.353553385 : f32
    %189 = vector.broadcast %cst_77 : f32 to vector<9x16xf32>
    %190 = arith.mulf %188, %189 : vector<9x16xf32>
    %191 = vector.broadcast %17 : vector<1x16xf32> to vector<9x16xf32>
    %192 = arith.addf %190, %191 : vector<9x16xf32>
    %cst_78 = arith.constant dense<0xFF800000> : vector<9xf32>
    %193 = vector.multi_reduction <maximumf>, %192, %cst_78 [1] : vector<9x16xf32> to vector<9xf32>
    %194 = vector.shape_cast %193 : vector<9xf32> to vector<9x1xf32>
    %195 = vector.broadcast %194 : vector<9x1xf32> to vector<9x16xf32>
    %196 = arith.subf %192, %195 : vector<9x16xf32>
    %197 = math.exp %196 : vector<9x16xf32>
    %cst_79 = arith.constant dense<0.000000e+00> : vector<9xf32>
    %198 = vector.multi_reduction <add>, %197, %cst_79 [1] : vector<9x16xf32> to vector<9xf32>
    %199 = vector.shape_cast %198 : vector<9xf32> to vector<9x1xf32>
    %200 = tpu.reciprocal %199 {approx = true} : vector<9x1xf32> -> vector<9x1xf32>
    %201 = vector.broadcast %200 : vector<9x1xf32> to vector<9x16xf32>
    %202 = arith.mulf %197, %201 : vector<9x16xf32>
    %cst_80 = arith.constant dense<0.000000e+00> : vector<9x8xf32>
    %203 = tpu.matmul %202, %187, %cst_80 {dimension_numbers = #tpu.dot_dimension_numbers<[1], [0], [0], [1], [0, 0, 1, 1], [], []>} : vector<9x16xf32>, vector<16x8xf32>, vector<9x8xf32> -> vector<9x8xf32>
    %204 = vector.extract_strided_slice %135 {offsets = [0, 24], sizes = [9, 8], strides = [1, 1]} : vector<9x32xf32> to vector<9x8xf32>
    %205 = vector.extract_strided_slice %141 {offsets = [0, 24], sizes = [16, 8], strides = [1, 1]} : vector<16x32xf32> to vector<16x8xf32>
    %206 = vector.extract_strided_slice %142 {offsets = [0, 24], sizes = [16, 8], strides = [1, 1]} : vector<16x32xf32> to vector<16x8xf32>
    %cst_81 = arith.constant dense<0.000000e+00> : vector<9x16xf32>
    %207 = tpu.matmul %204, %205, %cst_81 {dimension_numbers = #tpu.dot_dimension_numbers<[1], [1], [0], [0], [0, 0, 1, 0], [], []>} : vector<9x8xf32>, vector<16x8xf32>, vector<9x16xf32> -> vector<9x16xf32>
    %cst_82 = arith.constant 0.353553385 : f32
    %208 = vector.broadcast %cst_82 : f32 to vector<9x16xf32>
    %209 = arith.mulf %207, %208 : vector<9x16xf32>
    %210 = vector.broadcast %17 : vector<1x16xf32> to vector<9x16xf32>
    %211 = arith.addf %209, %210 : vector<9x16xf32>
    %cst_83 = arith.constant dense<0xFF800000> : vector<9xf32>
    %212 = vector.multi_reduction <maximumf>, %211, %cst_83 [1] : vector<9x16xf32> to vector<9xf32>
    %213 = vector.shape_cast %212 : vector<9xf32> to vector<9x1xf32>
    %214 = vector.broadcast %213 : vector<9x1xf32> to vector<9x16xf32>
    %215 = arith.subf %211, %214 : vector<9x16xf32>
    %216 = math.exp %215 : vector<9x16xf32>
    %cst_84 = arith.constant dense<0.000000e+00> : vector<9xf32>
    %217 = vector.multi_reduction <add>, %216, %cst_84 [1] : vector<9x16xf32> to vector<9xf32>
    %218 = vector.shape_cast %217 : vector<9xf32> to vector<9x1xf32>
    %219 = tpu.reciprocal %218 {approx = true} : vector<9x1xf32> -> vector<9x1xf32>
    %220 = vector.broadcast %219 : vector<9x1xf32> to vector<9x16xf32>
    %221 = arith.mulf %216, %220 : vector<9x16xf32>
    %cst_85 = arith.constant dense<0.000000e+00> : vector<9x8xf32>
    %222 = tpu.matmul %221, %206, %cst_85 {dimension_numbers = #tpu.dot_dimension_numbers<[1], [0], [0], [1], [0, 0, 1, 1], [], []>} : vector<9x16xf32>, vector<16x8xf32>, vector<9x8xf32> -> vector<9x8xf32>
    %223 = tpu.concatenate %165, %184, %203, %222 in 1 : vector<9x8xf32>, vector<9x8xf32>, vector<9x8xf32>, vector<9x8xf32> -> vector<9x32xf32>
    %cst_86 = arith.constant dense<0.000000e+00> : vector<9x128xf32>
    %224 = tpu.matmul %223, %143, %cst_86 {dimension_numbers = #tpu.dot_dimension_numbers<[1], [0], [0], [1], [0, 0, 1, 1], [], []>} : vector<9x32xf32>, vector<32x128xf32>, vector<9x128xf32> -> vector<9x128xf32>
    %225 = vector.broadcast %144 : vector<1x128xf32> to vector<9x128xf32>
    %226 = arith.addf %224, %225 : vector<9x128xf32>
    %227 = arith.addf %226, %130 : vector<9x128xf32>
    %cst_87 = arith.constant dense<0.000000e+00> : vector<9xf32>
    %228 = vector.multi_reduction <add>, %227, %cst_87 [1] : vector<9x128xf32> to vector<9xf32>
    %229 = vector.shape_cast %228 : vector<9xf32> to vector<9x1xf32>
    %cst_88 = arith.constant 3.125000e-02 : f32
    %230 = vector.broadcast %cst_88 : f32 to vector<9x1xf32>
    %231 = arith.mulf %229, %230 : vector<9x1xf32>
    %232 = arith.mulf %227, %227 : vector<9x128xf32>
    %cst_89 = arith.constant dense<0.000000e+00> : vector<9xf32>
    %233 = vector.multi_reduction <add>, %232, %cst_89 [1] : vector<9x128xf32> to vector<9xf32>
    %234 = vector.shape_cast %233 : vector<9xf32> to vector<9x1xf32>
    %cst_90 = arith.constant 3.125000e-02 : f32
    %235 = vector.broadcast %cst_90 : f32 to vector<9x1xf32>
    %236 = arith.mulf %234, %235 : vector<9x1xf32>
    %237 = arith.mulf %231, %231 : vector<9x1xf32>
    %238 = arith.subf %236, %237 : vector<9x1xf32>
    %cst_91 = arith.constant 0.000000e+00 : f32
    %239 = vector.broadcast %cst_91 : f32 to vector<9x1xf32>
    %240 = arith.maximumf %238, %239 : vector<9x1xf32>
    %241 = vector.broadcast %231 : vector<9x1xf32> to vector<9x128xf32>
    %242 = arith.subf %227, %241 : vector<9x128xf32>
    %cst_92 = arith.constant 9.99999974E-6 : f32
    %243 = vector.broadcast %cst_92 : f32 to vector<9x1xf32>
    %244 = arith.addf %240, %243 : vector<9x1xf32>
    %245 = math.rsqrt %244 : vector<9x1xf32>
    %246 = vector.broadcast %245 : vector<9x1xf32> to vector<9x128xf32>
    %247 = arith.mulf %242, %246 : vector<9x128xf32>
    %248 = vector.broadcast %145 : vector<1x128xf32> to vector<9x128xf32>
    %249 = arith.mulf %247, %248 : vector<9x128xf32>
    %250 = vector.broadcast %146 : vector<1x128xf32> to vector<9x128xf32>
    %251 = arith.addf %249, %250 : vector<9x128xf32>
    %c0_93 = arith.constant 0 : index
    %c0_94 = arith.constant 0 : index
    %252 = vector.load %arg18[%c0_93, %c0_94] : memref<128x64xf32, #tpu.memory_space<vmem>>, vector<128x64xf32>
    %c0_95 = arith.constant 0 : index
    %c0_96 = arith.constant 0 : index
    %253 = vector.load %arg19[%c0_95, %c0_96] : memref<1x64xf32, #tpu.memory_space<vmem>>, vector<1x64xf32>
    %c0_97 = arith.constant 0 : index
    %c0_98 = arith.constant 0 : index
    %254 = vector.load %arg20[%c0_97, %c0_98] : memref<64x128xf32, #tpu.memory_space<vmem>>, vector<64x128xf32>
    %c0_99 = arith.constant 0 : index
    %c0_100 = arith.constant 0 : index
    %255 = vector.load %arg21[%c0_99, %c0_100] : memref<1x128xf32, #tpu.memory_space<vmem>>, vector<1x128xf32>
    %c0_101 = arith.constant 0 : index
    %c0_102 = arith.constant 0 : index
    %256 = vector.load %arg22[%c0_101, %c0_102] : memref<1x128xf32, #tpu.memory_space<vmem>>, vector<1x128xf32>
    %c0_103 = arith.constant 0 : index
    %c0_104 = arith.constant 0 : index
    %257 = vector.load %arg23[%c0_103, %c0_104] : memref<1x128xf32, #tpu.memory_space<vmem>>, vector<1x128xf32>
    %cst_105 = arith.constant dense<0.000000e+00> : vector<9x64xf32>
    %258 = tpu.matmul %251, %252, %cst_105 {dimension_numbers = #tpu.dot_dimension_numbers<[1], [0], [0], [1], [0, 0, 1, 1], [], []>} : vector<9x128xf32>, vector<128x64xf32>, vector<9x64xf32> -> vector<9x64xf32>
    %259 = vector.broadcast %253 : vector<1x64xf32> to vector<9x64xf32>
    %260 = arith.addf %258, %259 : vector<9x64xf32>
    %cst_106 = arith.constant 0.000000e+00 : f32
    %261 = vector.broadcast %cst_106 : f32 to vector<9x64xf32>
    %262 = arith.maximumf %260, %261 : vector<9x64xf32>
    %cst_107 = arith.constant dense<0.000000e+00> : vector<9x128xf32>
    %263 = tpu.matmul %262, %254, %cst_107 {dimension_numbers = #tpu.dot_dimension_numbers<[1], [0], [0], [1], [0, 0, 1, 1], [], []>} : vector<9x64xf32>, vector<64x128xf32>, vector<9x128xf32> -> vector<9x128xf32>
    %264 = vector.broadcast %255 : vector<1x128xf32> to vector<9x128xf32>
    %265 = arith.addf %263, %264 : vector<9x128xf32>
    %266 = arith.addf %265, %251 : vector<9x128xf32>
    %cst_108 = arith.constant dense<0.000000e+00> : vector<9xf32>
    %267 = vector.multi_reduction <add>, %266, %cst_108 [1] : vector<9x128xf32> to vector<9xf32>
    %268 = vector.shape_cast %267 : vector<9xf32> to vector<9x1xf32>
    %cst_109 = arith.constant 3.125000e-02 : f32
    %269 = vector.broadcast %cst_109 : f32 to vector<9x1xf32>
    %270 = arith.mulf %268, %269 : vector<9x1xf32>
    %271 = arith.mulf %266, %266 : vector<9x128xf32>
    %cst_110 = arith.constant dense<0.000000e+00> : vector<9xf32>
    %272 = vector.multi_reduction <add>, %271, %cst_110 [1] : vector<9x128xf32> to vector<9xf32>
    %273 = vector.shape_cast %272 : vector<9xf32> to vector<9x1xf32>
    %cst_111 = arith.constant 3.125000e-02 : f32
    %274 = vector.broadcast %cst_111 : f32 to vector<9x1xf32>
    %275 = arith.mulf %273, %274 : vector<9x1xf32>
    %276 = arith.mulf %270, %270 : vector<9x1xf32>
    %277 = arith.subf %275, %276 : vector<9x1xf32>
    %cst_112 = arith.constant 0.000000e+00 : f32
    %278 = vector.broadcast %cst_112 : f32 to vector<9x1xf32>
    %279 = arith.maximumf %277, %278 : vector<9x1xf32>
    %280 = vector.broadcast %270 : vector<9x1xf32> to vector<9x128xf32>
    %281 = arith.subf %266, %280 : vector<9x128xf32>
    %cst_113 = arith.constant 9.99999974E-6 : f32
    %282 = vector.broadcast %cst_113 : f32 to vector<9x1xf32>
    %283 = arith.addf %279, %282 : vector<9x1xf32>
    %284 = math.rsqrt %283 : vector<9x1xf32>
    %285 = vector.broadcast %284 : vector<9x1xf32> to vector<9x128xf32>
    %286 = arith.mulf %281, %285 : vector<9x128xf32>
    %287 = vector.broadcast %256 : vector<1x128xf32> to vector<9x128xf32>
    %288 = arith.mulf %286, %287 : vector<9x128xf32>
    %289 = vector.broadcast %257 : vector<1x128xf32> to vector<9x128xf32>
    %290 = arith.addf %288, %289 : vector<9x128xf32>
    %c0_114 = arith.constant 0 : index
    %c0_115 = arith.constant 0 : index
    %c0_116 = arith.constant 0 : index
    %291 = vector.load %arg24[%c0_114, %c0_115, %c0_116] : memref<1x9x128xf32, #tpu.memory_space<vmem>>, vector<1x9x128xf32>
    %292 = vector.shape_cast %291 : vector<1x9x128xf32> to vector<9x128xf32>
    %293 = vector.shape_cast %290 : vector<9x128xf32> to vector<1x9x128xf32>
    tpu.vector_store %arg24[%c0_114, %c0_115, %c0_116], %293 {strides = array<i32>} : memref<1x9x128xf32, #tpu.memory_space<vmem>>, vector<1x9x128xf32>,
    return
  }
  func.func @transform_0(%arg0: i32, %arg1: memref<2xi32, #tpu.memory_space<smem>>) -> (i32, i32, i32) {
    %c0_i32 = arith.constant 0 : i32
    %c0_i32_0 = arith.constant 0 : i32
    %c0_i32_1 = arith.constant 0 : i32
    return %arg0, %c0_i32, %c0_i32_0 : i32, i32, i32
  }
  func.func @transform_1(%arg0: i32, %arg1: memref<2xi32, #tpu.memory_space<smem>>) -> (i32, i32, i32) {
    %c0_i32 = arith.constant 0 : i32
    %c0_i32_0 = arith.constant 0 : i32
    %c0_i32_1 = arith.constant 0 : i32
    return %arg0, %c0_i32, %c0_i32_0 : i32, i32, i32
  }
  func.func @transform_2(%arg0: i32, %arg1: memref<2xi32, #tpu.memory_space<smem>>) -> (i32, i32) {
    %c0_i32 = arith.constant 0 : i32
    %c0_i32_0 = arith.constant 0 : i32
    %c0_i32_1 = arith.constant 0 : i32
    return %c0_i32, %c0_i32_0 : i32, i32
  }
  func.func @transform_3(%arg0: i32, %arg1: memref<2xi32, #tpu.memory_space<smem>>) -> (i32, i32) {
    %c0_i32 = arith.constant 0 : i32
    %c0_i32_0 = arith.constant 0 : i32
    %c0_i32_1 = arith.constant 0 : i32
    return %c0_i32, %c0_i32_0 : i32, i32
  }
  func.func @transform_4(%arg0: i32, %arg1: memref<2xi32, #tpu.memory_space<smem>>) -> (i32, i32) {
    %c0_i32 = arith.constant 0 : i32
    %c0_i32_0 = arith.constant 0 : i32
    %c0_i32_1 = arith.constant 0 : i32
    return %c0_i32, %c0_i32_0 : i32, i32
  }
  func.func @transform_5(%arg0: i32, %arg1: memref<2xi32, #tpu.memory_space<smem>>) -> (i32, i32) {
    %c0_i32 = arith.constant 0 : i32
    %c0_i32_0 = arith.constant 0 : i32
    %c0_i32_1 = arith.constant 0 : i32
    return %c0_i32, %c0_i32_0 : i32, i32
  }
  func.func @transform_6(%arg0: i32, %arg1: memref<2xi32, #tpu.memory_space<smem>>) -> (i32, i32) {
    %c0_i32 = arith.constant 0 : i32
    %c0_i32_0 = arith.constant 0 : i32
    %c0_i32_1 = arith.constant 0 : i32
    return %c0_i32, %c0_i32_0 : i32, i32
  }
  func.func @transform_7(%arg0: i32, %arg1: memref<2xi32, #tpu.memory_space<smem>>) -> (i32, i32) {
    %c0_i32 = arith.constant 0 : i32
    %c0_i32_0 = arith.constant 0 : i32
    %c0_i32_1 = arith.constant 0 : i32
    return %c0_i32, %c0_i32_0 : i32, i32
  }
  func.func @transform_8(%arg0: i32, %arg1: memref<2xi32, #tpu.memory_space<smem>>) -> (i32, i32) {
    %c0_i32 = arith.constant 0 : i32
    %c0_i32_0 = arith.constant 0 : i32
    %c0_i32_1 = arith.constant 0 : i32
    return %c0_i32, %c0_i32_0 : i32, i32
  }
  func.func @transform_9(%arg0: i32, %arg1: memref<2xi32, #tpu.memory_space<smem>>) -> (i32, i32) {
    %c0_i32 = arith.constant 0 : i32
    %c0_i32_0 = arith.constant 0 : i32
    %c0_i32_1 = arith.constant 0 : i32
    return %c0_i32, %c0_i32_0 : i32, i32
  }
  func.func @transform_10(%arg0: i32, %arg1: memref<2xi32, #tpu.memory_space<smem>>) -> (i32, i32) {
    %c0_i32 = arith.constant 0 : i32
    %c0_i32_0 = arith.constant 0 : i32
    %c0_i32_1 = arith.constant 0 : i32
    return %c0_i32, %c0_i32_0 : i32, i32
  }
  func.func @transform_11(%arg0: i32, %arg1: memref<2xi32, #tpu.memory_space<smem>>) -> (i32, i32) {
    %c0_i32 = arith.constant 0 : i32
    %c0_i32_0 = arith.constant 0 : i32
    %c0_i32_1 = arith.constant 0 : i32
    return %c0_i32, %c0_i32_0 : i32, i32
  }
  func.func @transform_12(%arg0: i32, %arg1: memref<2xi32, #tpu.memory_space<smem>>) -> (i32, i32) {
    %c0_i32 = arith.constant 0 : i32
    %c0_i32_0 = arith.constant 0 : i32
    %c0_i32_1 = arith.constant 0 : i32
    return %c0_i32, %c0_i32_0 : i32, i32
  }
  func.func @transform_13(%arg0: i32, %arg1: memref<2xi32, #tpu.memory_space<smem>>) -> (i32, i32) {
    %c0_i32 = arith.constant 0 : i32
    %c0_i32_0 = arith.constant 0 : i32
    %c0_i32_1 = arith.constant 0 : i32
    return %c0_i32, %c0_i32_0 : i32, i32
  }
  func.func @transform_14(%arg0: i32, %arg1: memref<2xi32, #tpu.memory_space<smem>>) -> (i32, i32) {
    %c0_i32 = arith.constant 0 : i32
    %c0_i32_0 = arith.constant 0 : i32
    %c0_i32_1 = arith.constant 0 : i32
    return %c0_i32, %c0_i32_0 : i32, i32
  }
  func.func @transform_15(%arg0: i32, %arg1: memref<2xi32, #tpu.memory_space<smem>>) -> (i32, i32) {
    %c0_i32 = arith.constant 0 : i32
    %c0_i32_0 = arith.constant 0 : i32
    %c0_i32_1 = arith.constant 0 : i32
    return %c0_i32, %c0_i32_0 : i32, i32
  }
  func.func @transform_16(%arg0: i32, %arg1: memref<2xi32, #tpu.memory_space<smem>>) -> (i32, i32) {
    %c0_i32 = arith.constant 0 : i32
    %c0_i32_0 = arith.constant 0 : i32
    %c0_i32_1 = arith.constant 0 : i32
    return %c0_i32, %c0_i32_0 : i32, i32
  }
  func.func @transform_17(%arg0: i32, %arg1: memref<2xi32, #tpu.memory_space<smem>>) -> (i32, i32) {
    %c0_i32 = arith.constant 0 : i32
    %c0_i32_0 = arith.constant 0 : i32
    %c0_i32_1 = arith.constant 0 : i32
    return %c0_i32, %c0_i32_0 : i32, i32
  }
  func.func @transform_18(%arg0: i32, %arg1: memref<2xi32, #tpu.memory_space<smem>>) -> (i32, i32) {
    %c0_i32 = arith.constant 0 : i32
    %c0_i32_0 = arith.constant 0 : i32
    %c0_i32_1 = arith.constant 0 : i32
    return %c0_i32, %c0_i32_0 : i32, i32
  }
  func.func @transform_19(%arg0: i32, %arg1: memref<2xi32, #tpu.memory_space<smem>>) -> (i32, i32) {
    %c0_i32 = arith.constant 0 : i32
    %c0_i32_0 = arith.constant 0 : i32
    %c0_i32_1 = arith.constant 0 : i32
    return %c0_i32, %c0_i32_0 : i32, i32
  }
  func.func @transform_20(%arg0: i32, %arg1: memref<2xi32, #tpu.memory_space<smem>>) -> (i32, i32) {
    %c0_i32 = arith.constant 0 : i32
    %c0_i32_0 = arith.constant 0 : i32
    %c0_i32_1 = arith.constant 0 : i32
    return %c0_i32, %c0_i32_0 : i32, i32
  }
  func.func @transform_21(%arg0: i32, %arg1: memref<2xi32, #tpu.memory_space<smem>>) -> (i32, i32) {
    %c0_i32 = arith.constant 0 : i32
    %c0_i32_0 = arith.constant 0 : i32
    %c0_i32_1 = arith.constant 0 : i32
    return %c0_i32, %c0_i32_0 : i32, i32
  }
  func.func @transform_22(%arg0: i32, %arg1: memref<2xi32, #tpu.memory_space<smem>>) -> (i32, i32, i32) {
    %c0_i32 = arith.constant 0 : i32
    %c0_i32_0 = arith.constant 0 : i32
    %c0_i32_1 = arith.constant 0 : i32
    return %arg0, %c0_i32, %c0_i32_0 : i32, i32, i32
  }
}

</mosaic_0001>

<llo_original>
// kernel: transformer_forward.7
$region0: #{transformer_forward.7}
  #allocation0 [shape = 'u32[]', space=smem, size = 0x4, offset = 0x4, fixed_abs, tag = 'smem constant byte address 0x4 - core index']
  #allocation1 [shape = 'u32[144,128]{1,0:T(1,128)}', space=vmem, size = 0x12000, scoped, tag = 'internal scratch']
  %s0 = inlined_call_operand.vmem [shape: f32[18,128], index: 0, kind: input, shape index: {}]
  %s1 = inlined_call_operand.vmem [shape: f32[128,128], index: 1, kind: input, shape index: {}]
  %s2 = inlined_call_operand.vmem [shape: f32[1,128], index: 2, kind: input, shape index: {}]
  %s3 = inlined_call_operand.vmem [shape: f32[18,128], index: 3, kind: output, shape index: {}]
  %s4 = sld [smem:[#allocation0]]
  $region22: #{transformer_forward.7} parent=0
    _
  %s6 = ssub.s32 1, %s4
  %s7 = scalar_select 0, %s6, %s4
  // Predicated region
  $region2: #{transformer_forward.7} parent=0 // pred_check
    _
  $region3: #{transformer_forward.7} parent=0 // pred_check_branch
    %9 = sbr.rel (0) target = $region5
  $region4: #{transformer_forward.7} parent=0 // pred_region
    _
  $region5: #{transformer_forward.7} parent=0 // pred_fallthru
    _
  // Predicated region
  $region6: #{transformer_forward.7} parent=0 // pred_check
    _
  $region7: #{transformer_forward.7} parent=0 // pred_check_branch
    %11 = sbr.rel (0) target = $region9
  $region8: #{transformer_forward.7} parent=0 // pred_region
    _
  $region9: #{transformer_forward.7} parent=0 // pred_fallthru
    _
  // Predicated region
  $region10: #{transformer_forward.7} parent=0 // pred_check
    _
  $region11: #{transformer_forward.7} parent=0 // pred_check_branch
    %13 = sbr.rel (0) target = $region13
  $region12: #{transformer_forward.7} parent=0 // pred_region
    _
  $region13: #{transformer_forward.7} parent=0 // pred_fallthru
    _
  %v14 = vld [vmem:[%s0] sm:$0xff]
  %v15 = vld [vmem:[%s0 + $0x8] sm:$0xff]
  %v16 = vld [vmem:[%s0 + $0x10] sm:$0x3]
  %v17 = vld [vmem:[%s1] sm:$0xff]
  %v18 = vld [vmem:[%s1 + $0x8] sm:$0xff]
  %v19 = vld [vmem:[%s1 + $0x10] sm:$0xff]
  %v20 = vld [vmem:[%s1 + $0x18] sm:$0xff]
  %v21 = vld [vmem:[%s1 + $0x20] sm:$0xff]
  %v22 = vld [vmem:[%s1 + $0x28] sm:$0xff]
  %v23 = vld [vmem:[%s1 + $0x30] sm:$0xff]
  %v24 = vld [vmem:[%s1 + $0x38] sm:$0xff]
  %v25 = vld [vmem:[%s1 + $0x40] sm:$0xff]
  %v26 = vld [vmem:[%s1 + $0x48] sm:$0xff]
  %v27 = vld [vmem:[%s1 + $0x50] sm:$0xff]
  %v28 = vld [vmem:[%s1 + $0x58] sm:$0xff]
  %v29 = vld [vmem:[%s1 + $0x60] sm:$0xff]
  %v30 = vld [vmem:[%s1 + $0x68] sm:$0xff]
  %v31 = vld [vmem:[%s1 + $0x70] sm:$0xff]
  %v32 = vld [vmem:[%s1 + $0x78] sm:$0xff]
  %v33 = vld [vmem:[%s2] sm:$0x1]
  %v35 = vlaneseq
  %v36 = vshrl.u32 %v35, 7
  %v37 = vsub.s32 0, %v36
  %v38 = vrot.slane %v33, %v37
  %40 = vmatprep.subr.mxu0 0.0
  %41 = vmatpush1.msra.mxu0 %v32
  %42 = vmatprep.subr.mxu0 0.0
  %43 = vmatpush1.msra.mxu0 %v31
  %44 = vmatprep.subr.mxu0 0.0
  %45 = vmatpush1.msra.mxu0 %v30
  %46 = vmatprep.subr.mxu0 0.0
  %47 = vmatpush1.msra.mxu0 %v29
  %48 = vmatprep.subr.mxu0 0.0
  %49 = vmatpush1.msra.mxu0 %v28
  %50 = vmatprep.subr.mxu0 0.0
  %51 = vmatpush1.msra.mxu0 %v27
  %52 = vmatprep.subr.mxu0 0.0
  %53 = vmatpush1.msra.mxu0 %v26
  %54 = vmatprep.subr.mxu0 0.0
  %55 = vmatpush1.msra.mxu0 %v25
  %56 = vmatprep.subr.mxu0 0.0
  %57 = vmatpush1.msra.mxu0 %v24
  %58 = vmatprep.subr.mxu0 0.0
  %59 = vmatpush1.msra.mxu0 %v23
  %60 = vmatprep.subr.mxu0 0.0
  %61 = vmatpush1.msra.mxu0 %v22
  %62 = vmatprep.subr.mxu0 0.0
  %63 = vmatpush1.msra.mxu0 %v21
  %64 = vmatprep.subr.mxu0 0.0
  %65 = vmatpush1.msra.mxu0 %v20
  %66 = vmatprep.subr.mxu0 0.0
  %67 = vmatpush1.msra.mxu0 %v19
  %68 = vmatprep.subr.mxu0 0.0
  %69 = vmatpush1.msra.mxu0 %v18
  %70 = vmatprep.subr.mxu0 0.0
  %71 = vmatpush1.msra.mxu0 %v17
  %72 = vmatprep.subr.mxu0 0.0
  %73 = vmatpush2.msra.mxu0 0.0
  %74 = vmatprep.subr.mxu0 0.0
  %75 = vmatpush2.msra.mxu0 0.0
  %76 = vmatprep.subr.mxu0 0.0
  %77 = vmatpush2.msra.mxu0 0.0
  %78 = vmatprep.subr.mxu0 0.0
  %79 = vmatpush2.msra.mxu0 0.0
  %80 = vmatprep.subr.mxu0 0.0
  %81 = vmatpush2.msra.mxu0 0.0
  %82 = vmatprep.subr.mxu0 0.0
  %83 = vmatpush2.msra.mxu0 0.0
  %84 = vmatprep.subr.mxu0 0.0
  %85 = vmatpush2.msra.mxu0 0.0
  %86 = vmatprep.subr.mxu0 0.0
  %87 = vmatpush2.msra.mxu0 0.0
  %88 = vmatprep.subr.mxu0 0.0
  %89 = vmatpush2.msra.mxu0 0.0
  %90 = vmatprep.subr.mxu0 0.0
  %91 = vmatpush2.msra.mxu0 0.0
  %92 = vmatprep.subr.mxu0 0.0
  %93 = vmatpush2.msra.mxu0 0.0
  %94 = vmatprep.subr.mxu0 0.0
  %95 = vmatpush2.msra.mxu0 0.0
  %96 = vmatprep.subr.mxu0 0.0
  %97 = vmatpush2.msra.mxu0 0.0
  %98 = vmatprep.subr.mxu0 0.0
  %99 = vmatpush2.msra.mxu0 0.0
  %100 = vmatprep.subr.mxu0 0.0
  %101 = vmatpush2.msra.mxu0 0.0
  %102 = vmatprep.subr.mxu0 0.0
  %103 = vmatpush2.msra.mxu0 0.0
  %104 = vmatprep.mubr.f32.mxu0 0.0
  %105 = vmatmul.mubr.f32.gmra.mxu0 %v14
  %v106 = vpop.f32.mrf.mxu0
  %v107 = vadd.f32 %v38, %v106
  %v108 = vpop.f32.mrf.mxu0
  %109 = vmatprep.mubr.f32.mxu0 0.0
  %110 = vmatmul.mubr.f32.gmra.mxu0 %v15
  %v111 = vpop.f32.mrf.mxu0
  %v112 = vadd.f32 %v38, %v111
  %v113 = vpop.f32.mrf.mxu0
  %114 = vmatprep.mubr.f32.mxu0 0.0
  %115 = vmatmul.mubr.f32.gmra.mxu0 %v16
  %v116 = vpop.f32.mrf.mxu0
  %v117 = vadd.f32 %v38, %v116
  %v118 = vpop.f32.mrf.mxu0
  %119 = vdwg.mxu0
  %120 = vst [vmem:[%s3] sm:$0xff] %v107
  %121 = vst [vmem:[%s3 + $0x8] sm:$0xff] %v112
  %122 = vst [vmem:[%s3 + $0x10] sm:$0x3] %v117
  // Predicated region
  $region14: #{transformer_forward.7} parent=0 // pred_check
    _
  $region15: #{transformer_forward.7} parent=0 // pred_check_branch
    %124 = sbr.rel (0) target = $region17
  $region16: #{transformer_forward.7} parent=0 // pred_region
    _
  $region17: #{transformer_forward.7} parent=0 // pred_fallthru
    _
  // Predicated region
  $region18: #{transformer_forward.7} parent=0 // pred_check
    _
  $region19: #{transformer_forward.7} parent=0 // pred_check_branch
    %126 = sbr.rel (0) target = $region21
  $region20: #{transformer_forward.7} parent=0 // pred_region
    _
  $region21: #{transformer_forward.7} parent=0 // pred_fallthru
    _

// kernel: transformer_forward.4
$region0: #{transformer_forward.4}
  #allocation0 [shape = 'u32[]', space=smem, size = 0x4, offset = 0x4, fixed_abs, tag = 'smem constant byte address 0x4 - core index']
  #allocation1 [shape = 'u32[144,128]{1,0:T(1,128)}', space=vmem, size = 0x12000, scoped, tag = 'internal scratch']
  %s0 = inlined_call_operand.vmem [shape: f32[32,128], index: 0, kind: input, shape index: {}]
  %s1 = inlined_call_operand.vmem [shape: f32[32,128], index: 1, kind: input, shape index: {}]
  %s2 = inlined_call_operand.vmem [shape: f32[128,128], index: 2, kind: input, shape index: {}]
  %s3 = inlined_call_operand.vmem [shape: f32[1,128], index: 3, kind: input, shape index: {}]
  %s4 = inlined_call_operand.vmem [shape: f32[1,128], index: 4, kind: input, shape index: {}]
  %s5 = inlined_call_operand.vmem [shape: f32[1,128], index: 5, kind: input, shape index: {}]
  %s6 = inlined_call_operand.vmem [shape: f32[32,128], index: 6, kind: output, shape index: {}]
  %s7 = sld [smem:[#allocation0]]
  $region34: #{transformer_forward.4} parent=0
    _
  %s9 = ssub.s32 1, %s7
  %s10 = scalar_select 0, %s9, %s7
  // Predicated region
  $region2: #{transformer_forward.4} parent=0 // pred_check
    _
  $region3: #{transformer_forward.4} parent=0 // pred_check_branch
    %12 = sbr.rel (0) target = $region5
  $region4: #{transformer_forward.4} parent=0 // pred_region
    _
  $region5: #{transformer_forward.4} parent=0 // pred_fallthru
    _
  // Predicated region
  $region6: #{transformer_forward.4} parent=0 // pred_check
    _
  $region7: #{transformer_forward.4} parent=0 // pred_check_branch
    %14 = sbr.rel (0) target = $region9
  $region8: #{transformer_forward.4} parent=0 // pred_region
    _
  $region9: #{transformer_forward.4} parent=0 // pred_fallthru
    _
  // Predicated region
  $region10: #{transformer_forward.4} parent=0 // pred_check
    _
  $region11: #{transformer_forward.4} parent=0 // pred_check_branch
    %16 = sbr.rel (0) target = $region13
  $region12: #{transformer_forward.4} parent=0 // pred_region
    _
  $region13: #{transformer_forward.4} parent=0 // pred_fallthru
    _
  // Predicated region
  $region14: #{transformer_forward.4} parent=0 // pred_check
    _
  $region15: #{transformer_forward.4} parent=0 // pred_check_branch
    %18 = sbr.rel (0) target = $region17
  $region16: #{transformer_forward.4} parent=0 // pred_region
    _
  $region17: #{transformer_forward.4} parent=0 // pred_fallthru
    _
  // Predicated region
  $region18: #{transformer_forward.4} parent=0 // pred_check
    _
  $region19: #{transformer_forward.4} parent=0 // pred_check_branch
    %20 = sbr.rel (0) target = $region21
  $region20: #{transformer_forward.4} parent=0 // pred_region
    _
  $region21: #{transformer_forward.4} parent=0 // pred_fallthru
    _
  // Predicated region
  $region22: #{transformer_forward.4} parent=0 // pred_check
    _
  $region23: #{transformer_forward.4} parent=0 // pred_check_branch
    %22 = sbr.rel (0) target = $region25
  $region24: #{transformer_forward.4} parent=0 // pred_region
    _
  $region25: #{transformer_forward.4} parent=0 // pred_fallthru
    _
  %v23 = vld [vmem:[%s0] sm:$0xff]
  %v24 = vld [vmem:[%s0 + $0x8] sm:$0xff]
  %v25 = vld [vmem:[%s0 + $0x10] sm:$0xff]
  %v26 = vld [vmem:[%s0 + $0x18] sm:$0xff]
  %v27 = vld [vmem:[%s2] sm:$0xff]
  %v28 = vld [vmem:[%s2 + $0x8] sm:$0xff]
  %v29 = vld [vmem:[%s2 + $0x10] sm:$0xff]
  %v30 = vld [vmem:[%s2 + $0x18] sm:$0xff]
  %v31 = vld [vmem:[%s2 + $0x20] sm:$0xff]
  %v32 = vld [vmem:[%s2 + $0x28] sm:$0xff]
  %v33 = vld [vmem:[%s2 + $0x30] sm:$0xff]
  %v34 = vld [vmem:[%s2 + $0x38] sm:$0xff]
  %v35 = vld [vmem:[%s2 + $0x40] sm:$0xff]
  %v36 = vld [vmem:[%s2 + $0x48] sm:$0xff]
  %v37 = vld [vmem:[%s2 + $0x50] sm:$0xff]
  %v38 = vld [vmem:[%s2 + $0x58] sm:$0xff]
  %v39 = vld [vmem:[%s2 + $0x60] sm:$0xff]
  %v40 = vld [vmem:[%s2 + $0x68] sm:$0xff]
  %v41 = vld [vmem:[%s2 + $0x70] sm:$0xff]
  %v42 = vld [vmem:[%s2 + $0x78] sm:$0xff]
  %v43 = vld [vmem:[%s3] sm:$0x1]
  %v45 = vlaneseq
  %v46 = vshrl.u32 %v45, 7
  %v47 = vsub.s32 0, %v46
  %v48 = vrot.slane %v43, %v47
  %50 = vmatprep.subr.mxu0 0.0
  %51 = vmatpush1.msra.mxu0 %v42
  %52 = vmatprep.subr.mxu0 0.0
  %53 = vmatpush1.msra.mxu0 %v41
  %54 = vmatprep.subr.mxu0 0.0
  %55 = vmatpush1.msra.mxu0 %v40
  %56 = vmatprep.subr.mxu0 0.0
  %57 = vmatpush1.msra.mxu0 %v39
  %58 = vmatprep.subr.mxu0 0.0
  %59 = vmatpush1.msra.mxu0 %v38
  %60 = vmatprep.subr.mxu0 0.0
  %61 = vmatpush1.msra.mxu0 %v37
  %62 = vmatprep.subr.mxu0 0.0
  %63 = vmatpush1.msra.mxu0 %v36
  %64 = vmatprep.subr.mxu0 0.0
  %65 = vmatpush1.msra.mxu0 %v35
  %66 = vmatprep.subr.mxu0 0.0
  %67 = vmatpush1.msra.mxu0 %v34
  %68 = vmatprep.subr.mxu0 0.0
  %69 = vmatpush1.msra.mxu0 %v33
  %70 = vmatprep.subr.mxu0 0.0
  %71 = vmatpush1.msra.mxu0 %v32
  %72 = vmatprep.subr.mxu0 0.0
  %73 = vmatpush1.msra.mxu0 %v31
  %74 = vmatprep.subr.mxu0 0.0
  %75 = vmatpush1.msra.mxu0 %v30
  %76 = vmatprep.subr.mxu0 0.0
  %77 = vmatpush1.msra.mxu0 %v29
  %78 = vmatprep.subr.mxu0 0.0
  %79 = vmatpush1.msra.mxu0 %v28
  %80 = vmatprep.subr.mxu0 0.0
  %81 = vmatpush1.msra.mxu0 %v27
  %82 = vmatprep.subr.mxu0 0.0
  %83 = vmatpush2.msra.mxu0 0.0
  %84 = vmatprep.subr.mxu0 0.0
  %85 = vmatpush2.msra.mxu0 0.0
  %86 = vmatprep.subr.mxu0 0.0
  %87 = vmatpush2.msra.mxu0 0.0
  %88 = vmatprep.subr.mxu0 0.0
  %89 = vmatpush2.msra.mxu0 0.0
  %90 = vmatprep.subr.mxu0 0.0
  %91 = vmatpush2.msra.mxu0 0.0
  %92 = vmatprep.subr.mxu0 0.0
  %93 = vmatpush2.msra.mxu0 0.0
  %94 = vmatprep.subr.mxu0 0.0
  %95 = vmatpush2.msra.mxu0 0.0
  %96 = vmatprep.subr.mxu0 0.0
  %97 = vmatpush2.msra.mxu0 0.0
  %98 = vmatprep.subr.mxu0 0.0
  %99 = vmatpush2.msra.mxu0 0.0
  %100 = vmatprep.subr.mxu0 0.0
  %101 = vmatpush2.msra.mxu0 0.0
  %102 = vmatprep.subr.mxu0 0.0
  %103 = vmatpush2.msra.mxu0 0.0
  %104 = vmatprep.subr.mxu0 0.0
  %105 = vmatpush2.msra.mxu0 0.0
  %106 = vmatprep.subr.mxu0 0.0
  %107 = vmatpush2.msra.mxu0 0.0
  %108 = vmatprep.subr.mxu0 0.0
  %109 = vmatpush2.msra.mxu0 0.0
  %110 = vmatprep.subr.mxu0 0.0
  %111 = vmatpush2.msra.mxu0 0.0
  %112 = vmatprep.subr.mxu0 0.0
  %113 = vmatpush2.msra.mxu0 0.0
  %114 = vmatprep.mubr.f32.mxu0 0.0
  %115 = vmatmul.mubr.f32.gmra.mxu0 %v23
  %v116 = vpop.f32.mrf.mxu0
  %v117 = vadd.f32 %v48, %v116
  %v118 = vpop.f32.mrf.mxu0
  %119 = vmatprep.mubr.f32.mxu0 0.0
  %120 = vmatmul.mubr.f32.gmra.mxu0 %v24
  %v121 = vpop.f32.mrf.mxu0
  %v122 = vadd.f32 %v48, %v121
  %v123 = vpop.f32.mrf.mxu0
  %124 = vmatprep.mubr.f32.mxu0 0.0
  %125 = vmatmul.mubr.f32.gmra.mxu0 %v25
  %v126 = vpop.f32.mrf.mxu0
  %v127 = vadd.f32 %v48, %v126
  %v128 = vpop.f32.mrf.mxu0
  %129 = vmatprep.mubr.f32.mxu0 0.0
  %130 = vmatmul.mubr.f32.gmra.mxu0 %v26
  %v131 = vpop.f32.mrf.mxu0
  %v132 = vadd.f32 %v48, %v131
  %v133 = vpop.f32.mrf.mxu0
  %134 = vdwg.mxu0
  %v135 = vld [vmem:[%s4] sm:$0x1]
  %v136 = vld [vmem:[%s5] sm:$0x1]
  %137 = vadd.xlane.f32.xlu0 %v117
  %v138 = vpop.xlane.xlu0 %137
  %139 = vadd.xlane.f32.xlu0 %v122
  %v140 = vpop.xlane.xlu0 %139
  %141 = vadd.xlane.f32.xlu0 %v127
  %v142 = vpop.xlane.xlu0 %141
  %143 = vadd.xlane.f32.xlu0 %v132
  %v144 = vpop.xlane.xlu0 %143
  %v145 = vmul.f32 %v138, 0.03125
  %v146 = vmul.f32 %v140, 0.03125
  %v147 = vmul.f32 %v142, 0.03125
  %v148 = vmul.f32 %v144, 0.03125
  %v149 = vmul.f32 %v117, %v117
  %v150 = vmul.f32 %v122, %v122
  %v151 = vmul.f32 %v127, %v127
  %v152 = vmul.f32 %v132, %v132
  %153 = vadd.xlane.f32.xlu0 %v149
  %v154 = vpop.xlane.xlu0 %153
  %155 = vadd.xlane.f32.xlu0 %v150
  %v156 = vpop.xlane.xlu0 %155
  %157 = vadd.xlane.f32.xlu0 %v151
  %v158 = vpop.xlane.xlu0 %157
  %159 = vadd.xlane.f32.xlu0 %v152
  %v160 = vpop.xlane.xlu0 %159
  %v161 = vmul.f32 %v154, 0.03125
  %v162 = vmul.f32 %v156, 0.03125
  %v163 = vmul.f32 %v158, 0.03125
  %v164 = vmul.f32 %v160, 0.03125
  %v165 = vmul.f32 %v145, %v145
  %v166 = vmul.f32 %v146, %v146
  %v167 = vmul.f32 %v147, %v147
  %v168 = vmul.f32 %v148, %v148
  %v169 = vsub.f32 %v161, %v165
  %v170 = vsub.f32 %v162, %v166
  %v171 = vsub.f32 %v163, %v167
  %v172 = vsub.f32 %v164, %v168
  %v173 = vmax.f32 %v169, 0.0
  %v174 = vmax.f32 %v170, 0.0
  %v175 = vmax.f32 %v171, 0.0
  %v176 = vmax.f32 %v172, 0.0
  %v177 = vsub.f32 %v117, %v145
  %v178 = vsub.f32 %v122, %v146
  %v179 = vsub.f32 %v127, %v147
  %v180 = vsub.f32 %v132, %v148
  %v181 = vadd.f32 %v173, 1e-05
  %v182 = vadd.f32 %v174, 1e-05
  %v183 = vadd.f32 %v175, 1e-05
  %v184 = vadd.f32 %v176, 1e-05
  %v185 = vrsqrt.pop %v181
  %v186 = vrsqrt.pop %v182
  %v187 = vrsqrt.pop %v183
  %v188 = vrsqrt.pop %v184
  %v189 = vmul.f32 %v177, %v185
  %v190 = vmul.f32 %v178, %v186
  %v191 = vmul.f32 %v179, %v187
  %v192 = vmul.f32 %v180, %v188
  %v194 = vlaneseq
  %v195 = vshrl.u32 %v194, 7
  %v196 = vsub.s32 0, %v195
  %v197 = vrot.slane %v135, %v196
  %v199 = vmul.f32 %v189, %v197
  %v200 = vmul.f32 %v190, %v197
  %v201 = vmul.f32 %v191, %v197
  %v202 = vmul.f32 %v192, %v197
  %v204 = vlaneseq
  %v205 = vshrl.u32 %v204, 7
  %v206 = vsub.s32 0, %v205
  %v207 = vrot.slane %v136, %v206
  %v209 = vadd.f32 %v199, %v207
  %v210 = vadd.f32 %v200, %v207
  %v211 = vadd.f32 %v201, %v207
  %v212 = vadd.f32 %v202, %v207
  %v213 = vld [vmem:[%s1] sm:$0xff]
  %v214 = vld [vmem:[%s1 + $0x8] sm:$0xff]
  %v215 = vld [vmem:[%s1 + $0x10] sm:$0xff]
  %v216 = vld [vmem:[%s1 + $0x18] sm:$0xff]
  %v217 = vadd.f32 %v209, %v213
  %v218 = vadd.f32 %v210, %v214
  %v219 = vadd.f32 %v211, %v215
  %v220 = vadd.f32 %v212, %v216
  %221 = vst [vmem:[%s6] sm:$0xff] %v217
  %222 = vst [vmem:[%s6 + $0x8] sm:$0xff] %v218
  %223 = vst [vmem:[%s6 + $0x10] sm:$0xff] %v219
  %224 = vst [vmem:[%s6 + $0x18] sm:$0xff] %v220
  // Predicated region
  $region26: #{transformer_forward.4} parent=0 // pred_check
    _
  $region27: #{transformer_forward.4} parent=0 // pred_check_branch
    %226 = sbr.rel (0) target = $region29
  $region28: #{transformer_forward.4} parent=0 // pred_region
    _
  $region29: #{transformer_forward.4} parent=0 // pred_fallthru
    _
  // Predicated region
  $region30: #{transformer_forward.4} parent=0 // pred_check
    _
  $region31: #{transformer_forward.4} parent=0 // pred_check_branch
    %228 = sbr.rel (0) target = $region33
  $region32: #{transformer_forward.4} parent=0 // pred_region
    _
  $region33: #{transformer_forward.4} parent=0 // pred_fallthru
    _

// kernel: transformer_forward.5
$region0: #{transformer_forward.5}
  #allocation0 [shape = 'u32[]', space=smem, size = 0x4, offset = 0x4, fixed_abs, tag = 'smem constant byte address 0x4 - core index']
  #allocation1 [shape = 'u32[144,128]{1,0:T(1,128)}', space=vmem, size = 0x12000, scoped, tag = 'internal scratch']
  #allocation2 [shape = 's32[1]{0}', space=sflag, size = 0x4, scoped, tag = 'scoped memory for transformer_forward.5']
  #allocation3 [shape = 'u8[512]{0}', space=smem, size = 0x200, scoped, tag = 'prefetched SMEM operand 0']
  %s0 = inlined_call_operand.vmem [shape: s32[2], index: 0, kind: input, shape index: {}]
  %s1 = inlined_call_operand.vmem [shape: f32[2,16,128], index: 1, kind: input, shape index: {}]
  %s2 = inlined_call_operand.vmem [shape: f32[128,96], index: 2, kind: input, shape index: {}]
  %s3 = inlined_call_operand.vmem [shape: f32[1,96], index: 3, kind: input, shape index: {}]
  %s4 = inlined_call_operand.vmem [shape: f32[32,128], index: 4, kind: input, shape index: {}]
  %s5 = inlined_call_operand.vmem [shape: f32[1,128], index: 5, kind: input, shape index: {}]
  %s6 = inlined_call_operand.vmem [shape: f32[1,128], index: 6, kind: input, shape index: {}]
  %s7 = inlined_call_operand.vmem [shape: f32[1,128], index: 7, kind: input, shape index: {}]
  %s8 = inlined_call_operand.vmem [shape: f32[128,64], index: 8, kind: input, shape index: {}]
  %s9 = inlined_call_operand.vmem [shape: f32[1,64], index: 9, kind: input, shape index: {}]
  %s10 = inlined_call_operand.vmem [shape: f32[64,128], index: 10, kind: input, shape index: {}]
  %s11 = inlined_call_operand.vmem [shape: f32[1,128], index: 11, kind: input, shape index: {}]
  %s12 = inlined_call_operand.vmem [shape: f32[1,128], index: 12, kind: input, shape index: {}]
  %s13 = inlined_call_operand.vmem [shape: f32[1,128], index: 13, kind: input, shape index: {}]
  %s14 = inlined_call_operand.vmem [shape: f32[2,16,128], index: 14, kind: output, shape index: {}]
  %s15 = sld [smem:[#allocation0]]
  $region85: #{transformer_forward.5} parent=0
    _
  %s17 = ssub.s32 1, %s15
  %s18 = scalar_select 0, %s17, %s15
  %s19 = sshll.u32 %s0, 4
  %s20 = int_to_ptr.vmem [resolvable:$true] %s19
  %22 = dma.vmem_to_smem %s20, 16, [#allocation3], [#allocation2]
  %23 = dma.done [#allocation2], 16
  %24 = sfence
  loop: start=0, step=1, limit=4
  $region2: #{transformer_forward.5} parent=0 // loop_pre_header
    _
  $region3: #{transformer_forward.5} parent=0 // loop_header
    %s26 = sphi 0, %s30
    %p27 = scmp.ge.s32.totalorder %s26, 4
    %s36 = sphi 0, %s38
    %s39 = sphi 0, %s36
    %s40 = sphi 0, %s39
    %s56 = sphi 0, %s40
    %s60 = sphi 0, %s60
    %s62 = sphi 0, %s60
    %s63 = sphi 0, %s62
    %s77 = sphi 0, %s63
    %s81 = sphi 0, %s81
    %s83 = sphi 0, %s81
    %s84 = sphi 0, %s83
    %s98 = sphi 0, %s84
    %s102 = sphi 0, %s102
    %s104 = sphi 0, %s102
    %s105 = sphi 0, %s104
    %s119 = sphi 0, %s105
    %s123 = sphi 0, %s123
    %s125 = sphi 0, %s123
    %s126 = sphi 0, %s125
    %s140 = sphi 0, %s126
    %s144 = sphi 0, %s144
    %s146 = sphi 0, %s144
    %s147 = sphi 0, %s146
    %s161 = sphi 0, %s147
    %s165 = sphi 0, %s165
    %s167 = sphi 0, %s165
    %s168 = sphi 0, %s167
    %s182 = sphi 0, %s168
    %s186 = sphi 0, %s186
    %s188 = sphi 0, %s186
    %s189 = sphi 0, %s188
    %s203 = sphi 0, %s189
    %s207 = sphi 0, %s207
    %s209 = sphi 0, %s207
    %s210 = sphi 0, %s209
    %s224 = sphi 0, %s210
    %s228 = sphi 0, %s228
    %s230 = sphi 0, %s228
    %s231 = sphi 0, %s230
    %s245 = sphi 0, %s231
    %s249 = sphi 0, %s249
    %s251 = sphi 0, %s249
    %s252 = sphi 0, %s251
    %s266 = sphi 0, %s252
    %s270 = sphi 0, %s270
    %s272 = sphi 0, %s270
    %s273 = sphi 0, %s272
    %s287 = sphi 0, %s273
    %s291 = sphi 0, %s291
    %s293 = sphi 0, %s291
    %s294 = sphi 0, %s293
    %s308 = sphi 0, %s294
    %s314 = sphi 0, %s316
    %s317 = sphi 0, %s314
    %s318 = sphi 0, %s317
    %s334 = sphi 0, %s318
  $region4: #{transformer_forward.5} parent=0 // loop_header_branch
    %29 = sbr.rel (%p27) target = $region8
  $region5: #{transformer_forward.5} parent=0 // loop_body
    %s31 = ssub.s32 %s26, 1
    %s32 = ssub.s32 %s26, 2
    %s33 = sadd.s32 %s26, 1
    %s34 = ssub.s32 %s26, %s33
    %p35 = scmp.eq.s32.totalorder %s34, 0
    %s37 = sadd.s32 %s36, 1
    %s38 = scalar_select %p35, %s36, %s37
    %p41 = pneg %p35
    %p42 = scmp.eq.s32.totalorder %s26, 1
    %p43 = por %p41, %p42
    %p44 = scmp.ne.s32.totalorder %s36, %s39
    %p45 = scmp.eq.s32.totalorder %s26, 0
    %p46 = por %p44, %p45
    %p47 = scmp.ne.s32.totalorder %s36, %s39
    %p48 = scmp.eq.s32.totalorder %s31, 1
    %p49 = por %p47, %p48
    %p50 = scmp.ne.s32.totalorder %s39, %s40
    %p51 = scmp.eq.s32.totalorder %s31, 0
    %p52 = por %p50, %p51
    %p53 = scmp.ne.s32.totalorder %s39, %s40
    %p54 = scmp.eq.s32.totalorder %s32, 1
    %p55 = por %p53, %p54
    %p57 = scmp.ne.s32.totalorder %s40, %s56
    %p58 = scmp.eq.s32.totalorder %s32, 0
    %p59 = por %p57, %p58
    %s61 = sadd.s32 %s60, 1
    %p64 = scmp.eq.s32.totalorder %s26, 1
    %p65 = scmp.ne.s32.totalorder %s60, %s62
    %p66 = scmp.eq.s32.totalorder %s26, 0
    %p67 = por %p65, %p66
    %p68 = scmp.ne.s32.totalorder %s60, %s62
    %p69 = scmp.eq.s32.totalorder %s31, 1
    %p70 = por %p68, %p69
    %p71 = scmp.ne.s32.totalorder %s62, %s63
    %p72 = scmp.eq.s32.totalorder %s31, 0
    %p73 = por %p71, %p72
    %p74 = scmp.ne.s32.totalorder %s62, %s63
    %p75 = scmp.eq.s32.totalorder %s32, 1
    %p76 = por %p74, %p75
    %p78 = scmp.ne.s32.totalorder %s63, %s77
    %p79 = scmp.eq.s32.totalorder %s32, 0
    %p80 = por %p78, %p79
    %s82 = sadd.s32 %s81, 1
    %p85 = scmp.eq.s32.totalorder %s26, 1
    %p86 = scmp.ne.s32.totalorder %s81, %s83
    %p87 = scmp.eq.s32.totalorder %s26, 0
    %p88 = por %p86, %p87
    %p89 = scmp.ne.s32.totalorder %s81, %s83
    %p90 = scmp.eq.s32.totalorder %s31, 1
    %p91 = por %p89, %p90
    %p92 = scmp.ne.s32.totalorder %s83, %s84
    %p93 = scmp.eq.s32.totalorder %s31, 0
    %p94 = por %p92, %p93
    %p95 = scmp.ne.s32.totalorder %s83, %s84
    %p96 = scmp.eq.s32.totalorder %s32, 1
    %p97 = por %p95, %p96
    %p99 = scmp.ne.s32.totalorder %s84, %s98
    %p100 = scmp.eq.s32.totalorder %s32, 0
    %p101 = por %p99, %p100
    %s103 = sadd.s32 %s102, 1
    %p106 = scmp.eq.s32.totalorder %s26, 1
    %p107 = scmp.ne.s32.totalorder %s102, %s104
    %p108 = scmp.eq.s32.totalorder %s26, 0
    %p109 = por %p107, %p108
    %p110 = scmp.ne.s32.totalorder %s102, %s104
    %p111 = scmp.eq.s32.totalorder %s31, 1
    %p112 = por %p110, %p111
    %p113 = scmp.ne.s32.totalorder %s104, %s105
    %p114 = scmp.eq.s32.totalorder %s31, 0
    %p115 = por %p113, %p114
    %p116 = scmp.ne.s32.totalorder %s104, %s105
    %p117 = scmp.eq.s32.totalorder %s32, 1
    %p118 = por %p116, %p117
    %p120 = scmp.ne.s32.totalorder %s105, %s119
    %p121 = scmp.eq.s32.totalorder %s32, 0
    %p122 = por %p120, %p121
    %s124 = sadd.s32 %s123, 1
    %p127 = scmp.eq.s32.totalorder %s26, 1
    %p128 = scmp.ne.s32.totalorder %s123, %s125
    %p129 = scmp.eq.s32.totalorder %s26, 0
    %p130 = por %p128, %p129
    %p131 = scmp.ne.s32.totalorder %s123, %s125
    %p132 = scmp.eq.s32.totalorder %s31, 1
    %p133 = por %p131, %p132
    %p134 = scmp.ne.s32.totalorder %s125, %s126
    %p135 = scmp.eq.s32.totalorder %s31, 0
    %p136 = por %p134, %p135
    %p137 = scmp.ne.s32.totalorder %s125, %s126
    %p138 = scmp.eq.s32.totalorder %s32, 1
    %p139 = por %p137, %p138
    %p141 = scmp.ne.s32.totalorder %s126, %s140
    %p142 = scmp.eq.s32.totalorder %s32, 0
    %p143 = por %p141, %p142
    %s145 = sadd.s32 %s144, 1
    %p148 = scmp.eq.s32.totalorder %s26, 1
    %p149 = scmp.ne.s32.totalorder %s144, %s146
    %p150 = scmp.eq.s32.totalorder %s26, 0
    %p151 = por %p149, %p150
    %p152 = scmp.ne.s32.totalorder %s144, %s146
    %p153 = scmp.eq.s32.totalorder %s31, 1
    %p154 = por %p152, %p153
    %p155 = scmp.ne.s32.totalorder %s146, %s147
    %p156 = scmp.eq.s32.totalorder %s31, 0
    %p157 = por %p155, %p156
    %p158 = scmp.ne.s32.totalorder %s146, %s147
    %p159 = scmp.eq.s32.totalorder %s32, 1
    %p160 = por %p158, %p159
    %p162 = scmp.ne.s32.totalorder %s147, %s161
    %p163 = scmp.eq.s32.totalorder %s32, 0
    %p164 = por %p162, %p163
    %s166 = sadd.s32 %s165, 1
    %p169 = scmp.eq.s32.totalorder %s26, 1
    %p170 = scmp.ne.s32.totalorder %s165, %s167
    %p171 = scmp.eq.s32.totalorder %s26, 0
    %p172 = por %p170, %p171
    %p173 = scmp.ne.s32.totalorder %s165, %s167
    %p174 = scmp.eq.s32.totalorder %s31, 1
    %p175 = por %p173, %p174
    %p176 = scmp.ne.s32.totalorder %s167, %s168
    %p177 = scmp.eq.s32.totalorder %s31, 0
    %p178 = por %p176, %p177
    %p179 = scmp.ne.s32.totalorder %s167, %s168
    %p180 = scmp.eq.s32.totalorder %s32, 1
    %p181 = por %p179, %p180
    %p183 = scmp.ne.s32.totalorder %s168, %s182
    %p184 = scmp.eq.s32.totalorder %s32, 0
    %p185 = por %p183, %p184
    %s187 = sadd.s32 %s186, 1
    %p190 = scmp.eq.s32.totalorder %s26, 1
    %p191 = scmp.ne.s32.totalorder %s186, %s188
    %p192 = scmp.eq.s32.totalorder %s26, 0
    %p193 = por %p191, %p192
    %p194 = scmp.ne.s32.totalorder %s186, %s188
    %p195 = scmp.eq.s32.totalorder %s31, 1
    %p196 = por %p194, %p195
    %p197 = scmp.ne.s32.totalorder %s188, %s189
    %p198 = scmp.eq.s32.totalorder %s31, 0
    %p199 = por %p197, %p198
    %p200 = scmp.ne.s32.totalorder %s188, %s189
    %p201 = scmp.eq.s32.totalorder %s32, 1
    %p202 = por %p200, %p201
    %p204 = scmp.ne.s32.totalorder %s189, %s203
    %p205 = scmp.eq.s32.totalorder %s32, 0
    %p206 = por %p204, %p205
    %s208 = sadd.s32 %s207, 1
    %p211 = scmp.eq.s32.totalorder %s26, 1
    %p212 = scmp.ne.s32.totalorder %s207, %s209
    %p213 = scmp.eq.s32.totalorder %s26, 0
    %p214 = por %p212, %p213
    %p215 = scmp.ne.s32.totalorder %s207, %s209
    %p216 = scmp.eq.s32.totalorder %s31, 1
    %p217 = por %p215, %p216
    %p218 = scmp.ne.s32.totalorder %s209, %s210
    %p219 = scmp.eq.s32.totalorder %s31, 0
    %p220 = por %p218, %p219
    %p221 = scmp.ne.s32.totalorder %s209, %s210
    %p222 = scmp.eq.s32.totalorder %s32, 1
    %p223 = por %p221, %p222
    %p225 = scmp.ne.s32.totalorder %s210, %s224
    %p226 = scmp.eq.s32.totalorder %s32, 0
    %p227 = por %p225, %p226
    %s229 = sadd.s32 %s228, 1
    %p232 = scmp.eq.s32.totalorder %s26, 1
    %p233 = scmp.ne.s32.totalorder %s228, %s230
    %p234 = scmp.eq.s32.totalorder %s26, 0
    %p235 = por %p233, %p234
    %p236 = scmp.ne.s32.totalorder %s228, %s230
    %p237 = scmp.eq.s32.totalorder %s31, 1
    %p238 = por %p236, %p237
    %p239 = scmp.ne.s32.totalorder %s230, %s231
    %p240 = scmp.eq.s32.totalorder %s31, 0
    %p241 = por %p239, %p240
    %p242 = scmp.ne.s32.totalorder %s230, %s231
    %p243 = scmp.eq.s32.totalorder %s32, 1
    %p244 = por %p242, %p243
    %p246 = scmp.ne.s32.totalorder %s231, %s245
    %p247 = scmp.eq.s32.totalorder %s32, 0
    %p248 = por %p246, %p247
    %s250 = sadd.s32 %s249, 1
    %p253 = scmp.eq.s32.totalorder %s26, 1
    %p254 = scmp.ne.s32.totalorder %s249, %s251
    %p255 = scmp.eq.s32.totalorder %s26, 0
    %p256 = por %p254, %p255
    %p257 = scmp.ne.s32.totalorder %s249, %s251
    %p258 = scmp.eq.s32.totalorder %s31, 1
    %p259 = por %p257, %p258
    %p260 = scmp.ne.s32.totalorder %s251, %s252
    %p261 = scmp.eq.s32.totalorder %s31, 0
    %p262 = por %p260, %p261
    %p263 = scmp.ne.s32.totalorder %s251, %s252
    %p264 = scmp.eq.s32.totalorder %s32, 1
    %p265 = por %p263, %p264
    %p267 = scmp.ne.s32.totalorder %s252, %s266
    %p268 = scmp.eq.s32.totalorder %s32, 0
    %p269 = por %p267, %p268
    %s271 = sadd.s32 %s270, 1
    %p274 = scmp.eq.s32.totalorder %s26, 1
    %p275 = scmp.ne.s32.totalorder %s270, %s272
    %p276 = scmp.eq.s32.totalorder %s26, 0
    %p277 = por %p275, %p276
    %p278 = scmp.ne.s32.totalorder %s270, %s272
    %p279 = scmp.eq.s32.totalorder %s31, 1
    %p280 = por %p278, %p279
    %p281 = scmp.ne.s32.totalorder %s272, %s273
    %p282 = scmp.eq.s32.totalorder %s31, 0
    %p283 = por %p281, %p282
    %p284 = scmp.ne.s32.totalorder %s272, %s273
    %p285 = scmp.eq.s32.totalorder %s32, 1
    %p286 = por %p284, %p285
    %p288 = scmp.ne.s32.totalorder %s273, %s287
    %p289 = scmp.eq.s32.totalorder %s32, 0
    %p290 = por %p288, %p289
    %s292 = sadd.s32 %s291, 1
    %p295 = scmp.eq.s32.totalorder %s26, 1
    %p296 = scmp.ne.s32.totalorder %s291, %s293
    %p297 = scmp.eq.s32.totalorder %s26, 0
    %p298 = por %p296, %p297
    %p299 = scmp.ne.s32.totalorder %s291, %s293
    %p300 = scmp.eq.s32.totalorder %s31, 1
    %p301 = por %p299, %p300
    %p302 = scmp.ne.s32.totalorder %s293, %s294
    %p303 = scmp.eq.s32.totalorder %s31, 0
    %p304 = por %p302, %p303
    %p305 = scmp.ne.s32.totalorder %s293, %s294
    %p306 = scmp.eq.s32.totalorder %s32, 1
    %p307 = por %p305, %p306
    %p309 = scmp.ne.s32.totalorder %s294, %s308
    %p310 = scmp.eq.s32.totalorder %s32, 0
    %p311 = por %p309, %p310
    %s312 = ssub.s32 %s26, %s33
    %p313 = scmp.eq.s32.totalorder %s312, 0
    %s315 = sadd.s32 %s314, 1
    %s316 = scalar_select %p313, %s314, %s315
    %p319 = pneg %p313
    %p320 = scmp.eq.s32.totalorder %s26, 1
    %p321 = por %p319, %p320
    %p322 = scmp.ne.s32.totalorder %s314, %s317
    %p323 = scmp.eq.s32.totalorder %s26, 0
    %p324 = por %p322, %p323
    %p325 = scmp.ne.s32.totalorder %s314, %s317
    %p326 = scmp.eq.s32.totalorder %s31, 1
    %p327 = por %p325, %p326
    %p328 = scmp.ne.s32.totalorder %s317, %s318
    %p329 = scmp.eq.s32.totalorder %s31, 0
    %p330 = por %p328, %p329
    %p331 = scmp.ne.s32.totalorder %s317, %s318
    %p332 = scmp.eq.s32.totalorder %s32, 1
    %p333 = por %p331, %p332
    %p335 = scmp.ne.s32.totalorder %s318, %s334
    %p336 = scmp.eq.s32.totalorder %s32, 0
    %p337 = por %p335, %p336
    %p338 = scmp.le.s32.totalorder 1, %s26
    %p339 = scmp.lt.s32.totalorder %s26, 3
    %p340 = pnand %p338, %p339
    %p341 = pneg %p340
    // Predicated region
    $region9: #{transformer_forward.5} parent=5 // pred_check
      _
    $region10: #{transformer_forward.5} parent=5 // pred_check_branch
      %343 = sbr.rel (%p340) target = $region12
    $region11: #{transformer_forward.5} parent=5 // pred_region
      %s344 = ssub.s32 %s26, 1
      // Predicated region
      $region13: #{transformer_forward.5} parent=11 // pred_check
        %p345 = pneg %p73
      $region14: #{transformer_forward.5} parent=11 // pred_check_branch
        %347 = sbr.rel (%p345) target = $region16
      $region15: #{transformer_forward.5} parent=11 // pred_region
        _
      $region16: #{transformer_forward.5} parent=11 // pred_fallthru
        _
      // Predicated region
      $region17: #{transformer_forward.5} parent=11 // pred_check
        %p348 = pneg %p94
      $region18: #{transformer_forward.5} parent=11 // pred_check_branch
        %350 = sbr.rel (%p348) target = $region20
      $region19: #{transformer_forward.5} parent=11 // pred_region
        _
      $region20: #{transformer_forward.5} parent=11 // pred_fallthru
        _
      // Predicated region
      $region21: #{transformer_forward.5} parent=11 // pred_check
        %p351 = pneg %p115
      $region22: #{transformer_forward.5} parent=11 // pred_check_branch
        %353 = sbr.rel (%p351) target = $region24
      $region23: #{transformer_forward.5} parent=11 // pred_region
        _
      $region24: #{transformer_forward.5} parent=11 // pred_fallthru
        _
      // Predicated region
      $region25: #{transformer_forward.5} parent=11 // pred_check
        %p354 = pneg %p136
      $region26: #{transformer_forward.5} parent=11 // pred_check_branch
        %356 = sbr.rel (%p354) target = $region28
      $region27: #{transformer_forward.5} parent=11 // pred_region
        _
      $region28: #{transformer_forward.5} parent=11 // pred_fallthru
        _
      // Predicated region
      $region29: #{transformer_forward.5} parent=11 // pred_check
        %p357 = pneg %p157
      $region30: #{transformer_forward.5} parent=11 // pred_check_branch
        %359 = sbr.rel (%p357) target = $region32
      $region31: #{transformer_forward.5} parent=11 // pred_region
        _
      $region32: #{transformer_forward.5} parent=11 // pred_fallthru
        _
      // Predicated region
      $region33: #{transformer_forward.5} parent=11 // pred_check
        %p360 = pneg %p178
      $region34: #{transformer_forward.5} parent=11 // pred_check_branch
        %362 = sbr.rel (%p360) target = $region36
      $region35: #{transformer_forward.5} parent=11 // pred_region
        _
      $region36: #{transformer_forward.5} parent=11 // pred_fallthru
        _
      // Predicated region
      $region37: #{transformer_forward.5} parent=11 // pred_check
        %p363 = pneg %p199
      $region38: #{transformer_forward.5} parent=11 // pred_check_branch
        %365 = sbr.rel (%p363) target = $region40
      $region39: #{transformer_forward.5} parent=11 // pred_region
        _
      $region40: #{transformer_forward.5} parent=11 // pred_fallthru
        _
      // Predicated region
      $region41: #{transformer_forward.5} parent=11 // pred_check
        %p366 = pneg %p220
      $region42: #{transformer_forward.5} parent=11 // pred_check_branch
        %368 = sbr.rel (%p366) target = $region44
      $region43: #{transformer_forward.5} parent=11 // pred_region
        _
      $region44: #{transformer_forward.5} parent=11 // pred_fallthru
        _
      // Predicated region
      $region45: #{transformer_forward.5} parent=11 // pred_check
        %p369 = pneg %p241
      $region46: #{transformer_forward.5} parent=11 // pred_check_branch
        %371 = sbr.rel (%p369) target = $region48
      $region47: #{transformer_forward.5} parent=11 // pred_region
        _
      $region48: #{transformer_forward.5} parent=11 // pred_fallthru
        _
      // Predicated region
      $region49: #{transformer_forward.5} parent=11 // pred_check
        %p372 = pneg %p262
      $region50: #{transformer_forward.5} parent=11 // pred_check_branch
        %374 = sbr.rel (%p372) target = $region52
      $region51: #{transformer_forward.5} parent=11 // pred_region
        _
      $region52: #{transformer_forward.5} parent=11 // pred_fallthru
        _
      // Predicated region
      $region53: #{transformer_forward.5} parent=11 // pred_check
        %p375 = pneg %p283
      $region54: #{transformer_forward.5} parent=11 // pred_check_branch
        %377 = sbr.rel (%p375) target = $region56
      $region55: #{transformer_forward.5} parent=11 // pred_region
        _
      $region56: #{transformer_forward.5} parent=11 // pred_fallthru
        _
      // Predicated region
      $region57: #{transformer_forward.5} parent=11 // pred_check
        %p378 = pneg %p304
      $region58: #{transformer_forward.5} parent=11 // pred_check_branch
        %380 = sbr.rel (%p378) target = $region60
      $region59: #{transformer_forward.5} parent=11 // pred_region
        _
      $region60: #{transformer_forward.5} parent=11 // pred_fallthru
        _
    $region12: #{transformer_forward.5} parent=5 // pred_fallthru
      _
    %p381 = scmp.lt.s32.totalorder %s26, 2
    // Predicated region
    $region61: #{transformer_forward.5} parent=5 // pred_check
      %p382 = pneg %p381
    $region62: #{transformer_forward.5} parent=5 // pred_check_branch
      %384 = sbr.rel (%p382) target = $region64
    $region63: #{transformer_forward.5} parent=5 // pred_region
      // Predicated region
      $region65: #{transformer_forward.5} parent=63 // pred_check
        %p385 = pneg %p46
      $region66: #{transformer_forward.5} parent=63 // pred_check_branch
        %387 = sbr.rel (%p385) target = $region68
      $region67: #{transformer_forward.5} parent=63 // pred_region
        %p388 = scmp.lt.s32.totalorder %s26, 1
        %s389 = scalar_select %p388, %s26, 1
        %s390 = smul.addr %s389, 2
        %s391 = smul.addr %s390, 8
        %s392 = scalar_lea.vmem %s1, %s391
      $region68: #{transformer_forward.5} parent=63 // pred_fallthru
        _
    $region64: #{transformer_forward.5} parent=5 // pred_fallthru
      _
    %p393 = scmp.le.s32.totalorder 1, %s26
    %p394 = scmp.lt.s32.totalorder %s26, 3
    %p395 = pnand %p393, %p394
    %p396 = pneg %p395
    // Predicated region
    $region69: #{transformer_forward.5} parent=5 // pred_check
      _
    $region70: #{transformer_forward.5} parent=5 // pred_check_branch
      %398 = sbr.rel (%p395) target = $region72
    $region71: #{transformer_forward.5} parent=5 // pred_region
      %s399 = ssub.s32 %s26, 1
      %p400 = scmp.lt.s32.totalorder %s31, 1
      %s401 = scalar_select %p400, %s31, 1
      %s402 = smul.addr %s401, 2
      %s403 = smul.addr %s402, 8
      %s404 = scalar_lea.vmem %s1, %s403
      %p405 = pneg %p52
      %p406 = pneg %p49
      %p407 = pneg %p73
      %p408 = pneg %p70
      %p409 = pneg %p94
      %p410 = pneg %p91
      %p411 = pneg %p115
      %p412 = pneg %p112
      %p413 = pneg %p136
      %p414 = pneg %p133
      %p415 = pneg %p157
      %p416 = pneg %p154
      %p417 = pneg %p178
      %p418 = pneg %p175
      %p419 = pneg %p199
      %p420 = pneg %p196
      %p421 = pneg %p220
      %p422 = pneg %p217
      %p423 = pneg %p241
      %p424 = pneg %p238
      %p425 = pneg %p262
      %p426 = pneg %p259
      %p427 = pneg %p283
      %p428 = pneg %p280
      %p429 = pneg %p304
      %p430 = pneg %p301
      %p431 = pneg %p330
      %p432 = pneg %p327
      %p433 = scmp.lt.s32.totalorder %s31, 1
      %s434 = scalar_select %p433, %s31, 1
      %s435 = smul.addr %s434, 2
      %s436 = smul.addr %s435, 8
      %s437 = scalar_lea.vmem %s14, %s436
      %p438 = scmp.lt.s32.totalorder %s31, 1
      %s439 = scalar_select %p438, %s31, 1
      %s440 = smul.addr %s439, 2
      %s441 = smul.addr %s440, 8
      %s442 = scalar_lea.vmem %s1, %s441
      %p443 = scmp.lt.s32.totalorder %s31, 1
      %s444 = scalar_select %p443, %s31, 1
      %s445 = smul.addr %s444, 2
      %s446 = smul.addr %s445, 8
      %s447 = scalar_lea.vmem %s14, %s446
      %s448 = sld [smem:[#allocation3 + %s31]]
      %v449 = vld [vmem:[%s442] sm:$0xff]
      %v450 = vld [vmem:[%s442 + $0x8] sm:$0xff]
      %v451 = vlaneseq
      %v452 = vand.u32 %v451, 127
      %v453 = vstv %s448
      %vm454 = vcmp.ge.s32.totalorder %v452, %v453
      %v455 = vsel %vm454, -1e+09, 0.0
      %v456 = vlaneseq
      %v457 = vshrl.u32 %v456, 7
      %v458 = vadd.s32 %v457, 8
      %vm459 = vcmp.lt.s32.totalorder %v457, %v453
      %vm460 = vcmp.lt.s32.totalorder %v458, %v453
      %v461 = vsel %vm459, 1.0, 0.0
      %v462 = vsel %vm460, 1.0, 0.0
      %v463 = vld [vmem:[%s2] sm:$0xff]
      %v464 = vld [vmem:[%s2 + $0x8] sm:$0xff]
      %v465 = vld [vmem:[%s2 + $0x10] sm:$0xff]
      %v466 = vld [vmem:[%s2 + $0x18] sm:$0xff]
      %v467 = vld [vmem:[%s2 + $0x20] sm:$0xff]
      %v468 = vld [vmem:[%s2 + $0x28] sm:$0xff]
      %v469 = vld [vmem:[%s2 + $0x30] sm:$0xff]
      %v470 = vld [vmem:[%s2 + $0x38] sm:$0xff]
      %v471 = vld [vmem:[%s2 + $0x40] sm:$0xff]
      %v472 = vld [vmem:[%s2 + $0x48] sm:$0xff]
      %v473 = vld [vmem:[%s2 + $0x50] sm:$0xff]
      %v474 = vld [vmem:[%s2 + $0x58] sm:$0xff]
      %v475 = vld [vmem:[%s2 + $0x60] sm:$0xff]
      %v476 = vld [vmem:[%s2 + $0x68] sm:$0xff]
      %v477 = vld [vmem:[%s2 + $0x70] sm:$0xff]
      %v478 = vld [vmem:[%s2 + $0x78] sm:$0xff]
      %v479 = vld [vmem:[%s3] sm:$0x1]
      %v481 = vlaneseq
      %v482 = vshrl.u32 %v481, 7
      %v483 = vsub.s32 0, %v482
      %v484 = vrot.slane %v479, %v483
      %486 = vmatprep.subr.mxu0 0.0
      %487 = vmatpush1.msra.mxu0 %v478
      %488 = vmatprep.subr.mxu0 0.0
      %489 = vmatpush1.msra.mxu0 %v477
      %490 = vmatprep.subr.mxu0 0.0
      %491 = vmatpush1.msra.mxu0 %v476
      %492 = vmatprep.subr.mxu0 0.0
      %493 = vmatpush1.msra.mxu0 %v475
      %494 = vmatprep.subr.mxu0 0.0
      %495 = vmatpush1.msra.mxu0 %v474
      %496 = vmatprep.subr.mxu0 0.0
      %497 = vmatpush1.msra.mxu0 %v473
      %498 = vmatprep.subr.mxu0 0.0
      %499 = vmatpush1.msra.mxu0 %v472
      %500 = vmatprep.subr.mxu0 0.0
      %501 = vmatpush1.msra.mxu0 %v471
      %502 = vmatprep.subr.mxu0 0.0
      %503 = vmatpush1.msra.mxu0 %v470
      %504 = vmatprep.subr.mxu0 0.0
      %505 = vmatpush1.msra.mxu0 %v469
      %506 = vmatprep.subr.mxu0 0.0
      %507 = vmatpush1.msra.mxu0 %v468
      %508 = vmatprep.subr.mxu0 0.0
      %509 = vmatpush1.msra.mxu0 %v467
      %510 = vmatprep.subr.mxu0 0.0
      %511 = vmatpush1.msra.mxu0 %v466
      %512 = vmatprep.subr.mxu0 0.0
      %513 = vmatpush1.msra.mxu0 %v465
      %514 = vmatprep.subr.mxu0 0.0
      %515 = vmatpush1.msra.mxu0 %v464
      %516 = vmatprep.subr.mxu0 0.0
      %517 = vmatpush1.msra.mxu0 %v463
      %518 = vmatprep.subr.mxu0 0.0
      %519 = vmatpush2.msra.mxu0 0.0
      %520 = vmatprep.subr.mxu0 0.0
      %521 = vmatpush2.msra.mxu0 0.0
      %522 = vmatprep.subr.mxu0 0.0
      %523 = vmatpush2.msra.mxu0 0.0
      %524 = vmatprep.subr.mxu0 0.0
      %525 = vmatpush2.msra.mxu0 0.0
      %526 = vmatprep.subr.mxu0 0.0
      %527 = vmatpush2.msra.mxu0 0.0
      %528 = vmatprep.subr.mxu0 0.0
      %529 = vmatpush2.msra.mxu0 0.0
      %530 = vmatprep.subr.mxu0 0.0
      %531 = vmatpush2.msra.mxu0 0.0
      %532 = vmatprep.subr.mxu0 0.0
      %533 = vmatpush2.msra.mxu0 0.0
      %534 = vmatprep.subr.mxu0 0.0
      %535 = vmatpush2.msra.mxu0 0.0
      %536 = vmatprep.subr.mxu0 0.0
      %537 = vmatpush2.msra.mxu0 0.0
      %538 = vmatprep.subr.mxu0 0.0
      %539 = vmatpush2.msra.mxu0 0.0
      %540 = vmatprep.subr.mxu0 0.0
      %541 = vmatpush2.msra.mxu0 0.0
      %542 = vmatprep.subr.mxu0 0.0
      %543 = vmatpush2.msra.mxu0 0.0
      %544 = vmatprep.subr.mxu0 0.0
      %545 = vmatpush2.msra.mxu0 0.0
      %546 = vmatprep.subr.mxu0 0.0
      %547 = vmatpush2.msra.mxu0 0.0
      %548 = vmatprep.subr.mxu0 0.0
      %549 = vmatpush2.msra.mxu0 0.0
      %550 = vmatprep.mubr.f32.mxu0 0.0
      %551 = vmatmul.mubr.f32.gmra.mxu0 %v449
      %v552 = vpop.f32.mrf.mxu0
      %v553 = vadd.f32 %v484, %v552
      %v554 = vpop.f32.mrf.mxu0
      %555 = vmatprep.mubr.f32.mxu0 0.0
      %556 = vmatmul.mubr.f32.gmra.mxu0 %v450
      %v557 = vpop.f32.mrf.mxu0
      %v558 = vadd.f32 %v484, %v557
      %v559 = vpop.f32.mrf.mxu0
      %560 = vdwg.mxu0
      %v561 = vld [vmem:[%s4] sm:$0xff]
      %v562 = vld [vmem:[%s4 + $0x8] sm:$0xff]
      %v563 = vld [vmem:[%s4 + $0x10] sm:$0xff]
      %v564 = vld [vmem:[%s4 + $0x18] sm:$0xff]
      %v565 = vld [vmem:[%s5] sm:$0x1]
      %v566 = vld [vmem:[%s6] sm:$0x1]
      %v567 = vld [vmem:[%s7] sm:$0x1]
      %570 = vrot.lane.b32.xlu0 %v553, 96
      %v571 = vpop.permute.xlu0 %570
      %572 = vrot.lane.b32.xlu0 %v558, 96
      %v573 = vpop.permute.xlu0 %572
      %vm574 = vcmask 64512
      %v575 = vsel %vm574, %v553, 0
      %v577 = vsel %vm574, %v558, 0
      %v579 = vsel %vm574, %v571, 0
      %v581 = vsel %vm574, %v573, 0
      %583 = vmatprep.subr.mxu0 0.0
      %584 = vmatpush1.xpose.msra.mxu0 0.0
      %585 = vmatprep.subr.mxu0 0.0
      %586 = vmatpush1.xpose.msra.mxu0 0.0
      %587 = vmatprep.subr.mxu0 0.0
      %588 = vmatpush1.xpose.msra.mxu0 0.0
      %589 = vmatprep.subr.mxu0 0.0
      %590 = vmatpush1.xpose.msra.mxu0 0.0
      %591 = vmatprep.subr.mxu0 0.0
      %592 = vmatpush1.xpose.msra.mxu0 0.0
      %593 = vmatprep.subr.mxu0 0.0
      %594 = vmatpush1.xpose.msra.mxu0 0.0
      %595 = vmatprep.subr.mxu0 0.0
      %596 = vmatpush1.xpose.msra.mxu0 0.0
      %597 = vmatprep.subr.mxu0 0.0
      %598 = vmatpush1.xpose.msra.mxu0 0.0
      %599 = vmatprep.subr.mxu0 0.0
      %600 = vmatpush1.xpose.msra.mxu0 0.0
      %601 = vmatprep.subr.mxu0 0.0
      %602 = vmatpush1.xpose.msra.mxu0 0.0
      %603 = vmatprep.subr.mxu0 0.0
      %604 = vmatpush1.xpose.msra.mxu0 0.0
      %605 = vmatprep.subr.mxu0 0.0
      %606 = vmatpush1.xpose.msra.mxu0 0.0
      %607 = vmatprep.subr.mxu0 0.0
      %608 = vmatpush1.xpose.msra.mxu0 0.0
      %609 = vmatprep.subr.mxu0 0.0
      %610 = vmatpush1.xpose.msra.mxu0 0.0
      %611 = vmatprep.subr.mxu0 0.0
      %612 = vmatpush1.xpose.msra.mxu0 %v581
      %613 = vmatprep.subr.mxu0 0.0
      %614 = vmatpush1.xpose.msra.mxu0 %v579
      %615 = vmatprep.subr.mxu0 0.0
      %616 = vmatpush2.xpose.msra.mxu0 0.0
      %617 = vmatprep.subr.mxu0 0.0
      %618 = vmatpush2.xpose.msra.mxu0 0.0
      %619 = vmatprep.subr.mxu0 0.0
      %620 = vmatpush2.xpose.msra.mxu0 0.0
      %621 = vmatprep.subr.mxu0 0.0
      %622 = vmatpush2.xpose.msra.mxu0 0.0
      %623 = vmatprep.subr.mxu0 0.0
      %624 = vmatpush2.xpose.msra.mxu0 0.0
      %625 = vmatprep.subr.mxu0 0.0
      %626 = vmatpush2.xpose.msra.mxu0 0.0
      %627 = vmatprep.subr.mxu0 0.0
      %628 = vmatpush2.xpose.msra.mxu0 0.0
      %629 = vmatprep.subr.mxu0 0.0
      %630 = vmatpush2.xpose.msra.mxu0 0.0
      %631 = vmatprep.subr.mxu0 0.0
      %632 = vmatpush2.xpose.msra.mxu0 0.0
      %633 = vmatprep.subr.mxu0 0.0
      %634 = vmatpush2.xpose.msra.mxu0 0.0
      %635 = vmatprep.subr.mxu0 0.0
      %636 = vmatpush2.xpose.msra.mxu0 0.0
      %637 = vmatprep.subr.mxu0 0.0
      %638 = vmatpush2.xpose.msra.mxu0 0.0
      %639 = vmatprep.subr.mxu0 0.0
      %640 = vmatpush2.xpose.msra.mxu0 0.0
      %641 = vmatprep.subr.mxu0 0.0
      %642 = vmatpush2.xpose.msra.mxu0 0.0
      %643 = vmatprep.subr.mxu0 0.0
      %644 = vmatpush2.xpose.msra.mxu0 0.0
      %645 = vmatprep.subr.mxu0 0.0
      %646 = vmatpush2.xpose.msra.mxu0 0.0
      %647 = vmatprep.mubr.f32.mxu0 0.0
      %648 = vmatmul.mubr.f32.gmra.mxu0 %v575
      %v649 = vpop.f32.mrf.mxu0
      %v650 = vadd.f32 0.0, %v649
      %v651 = vpop.f32.mrf.mxu0
      %652 = vmatprep.mubr.f32.mxu0 0.0
      %653 = vmatmul.mubr.f32.gmra.mxu0 %v577
      %v654 = vpop.f32.mrf.mxu0
      %v655 = vadd.f32 0.0, %v654
      %v656 = vpop.f32.mrf.mxu0
      %657 = vdwg.mxu0
      %v658 = vmul.f32 %v650, 0.35355338
      %v659 = vmul.f32 %v655, 0.35355338
      %v660 = vadd.f32 %v658, %v455
      %v661 = vadd.f32 %v659, %v455
      %vm662 = vcmask 130048
      %v663 = vsel %vm662, %v660, -inf
      %664 = vmax.xlane.f32.xlu0 %v663
      %v665 = vpop.xlane.xlu0 %664
      %v666 = vsel %vm662, %v661, -inf
      %667 = vmax.xlane.f32.xlu0 %v666
      %v668 = vpop.xlane.xlu0 %667
      %v669 = vsub.f32 %v660, %v665
      %v670 = vsub.f32 %v661, %v668
      %v671 = vmul.f32 %v669, 1.442695
      %v672 = vpow.pop %v671
      %v673 = vmul.f32 %v670, 1.442695
      %v674 = vpow.pop %v673
      %v675 = vsel %vm662, %v672, 0.0
      %676 = vadd.xlane.f32.xlu0 %v675
      %v677 = vpop.xlane.xlu0 %676
      %v678 = vsel %vm662, %v674, 0.0
      %679 = vadd.xlane.f32.xlu0 %v678
      %v680 = vpop.xlane.xlu0 %679
      %v681 = vrcp.pop %v677
      %v682 = vrcp.pop %v680
      %v683 = vmul.f32 %v672, %v681
      %v684 = vmul.f32 %v674, %v682
      %685 = vrot.lane.b32.xlu0 %v553, 64
      %v686 = vpop.permute.xlu0 %685
      %687 = vrot.lane.b32.xlu0 %v558, 64
      %v688 = vpop.permute.xlu0 %687
      %v692 = vsel %vm662, %v683, 0
      %v695 = vsel %vm662, %v684, 0
      %697 = vmatprep.subr.mxu0 0.0
      %698 = vmatpush1.msra.mxu0 0.0
      %699 = vmatprep.subr.mxu0 0.0
      %700 = vmatpush1.msra.mxu0 0.0
      %701 = vmatprep.subr.mxu0 0.0
      %702 = vmatpush1.msra.mxu0 0.0
      %703 = vmatprep.subr.mxu0 0.0
      %704 = vmatpush1.msra.mxu0 0.0
      %705 = vmatprep.subr.mxu0 0.0
      %706 = vmatpush1.msra.mxu0 0.0
      %707 = vmatprep.subr.mxu0 0.0
      %708 = vmatpush1.msra.mxu0 0.0
      %709 = vmatprep.subr.mxu0 0.0
      %710 = vmatpush1.msra.mxu0 0.0
      %711 = vmatprep.subr.mxu0 0.0
      %712 = vmatpush1.msra.mxu0 0.0
      %713 = vmatprep.subr.mxu0 0.0
      %714 = vmatpush1.msra.mxu0 0.0
      %715 = vmatprep.subr.mxu0 0.0
      %716 = vmatpush1.msra.mxu0 0.0
      %717 = vmatprep.subr.mxu0 0.0
      %718 = vmatpush1.msra.mxu0 0.0
      %719 = vmatprep.subr.mxu0 0.0
      %720 = vmatpush1.msra.mxu0 0.0
      %721 = vmatprep.subr.mxu0 0.0
      %722 = vmatpush1.msra.mxu0 0.0
      %723 = vmatprep.subr.mxu0 0.0
      %724 = vmatpush1.msra.mxu0 0.0
      %725 = vmatprep.subr.mxu0 0.0
      %726 = vmatpush1.msra.mxu0 %v688
      %727 = vmatprep.subr.mxu0 0.0
      %728 = vmatpush1.msra.mxu0 %v686
      %729 = vmatprep.subr.mxu0 0.0
      %730 = vmatpush2.msra.mxu0 0.0
      %731 = vmatprep.subr.mxu0 0.0
      %732 = vmatpush2.msra.mxu0 0.0
      %733 = vmatprep.subr.mxu0 0.0
      %734 = vmatpush2.msra.mxu0 0.0
      %735 = vmatprep.subr.mxu0 0.0
      %736 = vmatpush2.msra.mxu0 0.0
      %737 = vmatprep.subr.mxu0 0.0
      %738 = vmatpush2.msra.mxu0 0.0
      %739 = vmatprep.subr.mxu0 0.0
      %740 = vmatpush2.msra.mxu0 0.0
      %741 = vmatprep.subr.mxu0 0.0
      %742 = vmatpush2.msra.mxu0 0.0
      %743 = vmatprep.subr.mxu0 0.0
      %744 = vmatpush2.msra.mxu0 0.0
      %745 = vmatprep.subr.mxu0 0.0
      %746 = vmatpush2.msra.mxu0 0.0
      %747 = vmatprep.subr.mxu0 0.0
      %748 = vmatpush2.msra.mxu0 0.0
      %749 = vmatprep.subr.mxu0 0.0
      %750 = vmatpush2.msra.mxu0 0.0
      %751 = vmatprep.subr.mxu0 0.0
      %752 = vmatpush2.msra.mxu0 0.0
      %753 = vmatprep.subr.mxu0 0.0
      %754 = vmatpush2.msra.mxu0 0.0
      %755 = vmatprep.subr.mxu0 0.0
      %756 = vmatpush2.msra.mxu0 0.0
      %757 = vmatprep.subr.mxu0 0.0
      %758 = vmatpush2.msra.mxu0 0.0
      %759 = vmatprep.subr.mxu0 0.0
      %760 = vmatpush2.msra.mxu0 0.0
      %761 = vmatprep.mubr.f32.mxu0 0.0
      %762 = vmatmul.mubr.f32.gmra.mxu0 %v692
      %v763 = vpop.f32.mrf.mxu0
      %v764 = vadd.f32 0.0, %v763
      %v765 = vpop.f32.mrf.mxu0
      %766 = vmatprep.mubr.f32.mxu0 0.0
      %767 = vmatmul.mubr.f32.gmra.mxu0 %v695
      %v768 = vpop.f32.mrf.mxu0
      %v769 = vadd.f32 0.0, %v768
      %v770 = vpop.f32.mrf.mxu0
      %771 = vdwg.mxu0
      %772 = vrot.lane.b32.xlu0 %v553, 120
      %v773 = vpop.permute.xlu0 %772
      %774 = vrot.lane.b32.xlu0 %v558, 120
      %v775 = vpop.permute.xlu0 %774
      %776 = vrot.lane.b32.xlu0 %v553, 88
      %v777 = vpop.permute.xlu0 %776
      %778 = vrot.lane.b32.xlu0 %v558, 88
      %v779 = vpop.permute.xlu0 %778
      %v780 = vsel %vm574, %v773, 0
      %v782 = vsel %vm574, %v775, 0
      %v784 = vsel %vm574, %v777, 0
      %v786 = vsel %vm574, %v779, 0
      %788 = vmatprep.subr.mxu0 0.0
      %789 = vmatpush1.xpose.msra.mxu0 0.0
      %790 = vmatprep.subr.mxu0 0.0
      %791 = vmatpush1.xpose.msra.mxu0 0.0
      %792 = vmatprep.subr.mxu0 0.0
      %793 = vmatpush1.xpose.msra.mxu0 0.0
      %794 = vmatprep.subr.mxu0 0.0
      %795 = vmatpush1.xpose.msra.mxu0 0.0
      %796 = vmatprep.subr.mxu0 0.0
      %797 = vmatpush1.xpose.msra.mxu0 0.0
      %798 = vmatprep.subr.mxu0 0.0
      %799 = vmatpush1.xpose.msra.mxu0 0.0
      %800 = vmatprep.subr.mxu0 0.0
      %801 = vmatpush1.xpose.msra.mxu0 0.0
      %802 = vmatprep.subr.mxu0 0.0
      %803 = vmatpush1.xpose.msra.mxu0 0.0
      %804 = vmatprep.subr.mxu0 0.0
      %805 = vmatpush1.xpose.msra.mxu0 0.0
      %806 = vmatprep.subr.mxu0 0.0
      %807 = vmatpush1.xpose.msra.mxu0 0.0
      %808 = vmatprep.subr.mxu0 0.0
      %809 = vmatpush1.xpose.msra.mxu0 0.0
      %810 = vmatprep.subr.mxu0 0.0
      %811 = vmatpush1.xpose.msra.mxu0 0.0
      %812 = vmatprep.subr.mxu0 0.0
      %813 = vmatpush1.xpose.msra.mxu0 0.0
      %814 = vmatprep.subr.mxu0 0.0
      %815 = vmatpush1.xpose.msra.mxu0 0.0
      %816 = vmatprep.subr.mxu0 0.0
      %817 = vmatpush1.xpose.msra.mxu0 %v786
      %818 = vmatprep.subr.mxu0 0.0
      %819 = vmatpush1.xpose.msra.mxu0 %v784
      %820 = vmatprep.subr.mxu0 0.0
      %821 = vmatpush2.xpose.msra.mxu0 0.0
      %822 = vmatprep.subr.mxu0 0.0
      %823 = vmatpush2.xpose.msra.mxu0 0.0
      %824 = vmatprep.subr.mxu0 0.0
      %825 = vmatpush2.xpose.msra.mxu0 0.0
      %826 = vmatprep.subr.mxu0 0.0
      %827 = vmatpush2.xpose.msra.mxu0 0.0
      %828 = vmatprep.subr.mxu0 0.0
      %829 = vmatpush2.xpose.msra.mxu0 0.0
      %830 = vmatprep.subr.mxu0 0.0
      %831 = vmatpush2.xpose.msra.mxu0 0.0
      %832 = vmatprep.subr.mxu0 0.0
      %833 = vmatpush2.xpose.msra.mxu0 0.0
      %834 = vmatprep.subr.mxu0 0.0
      %835 = vmatpush2.xpose.msra.mxu0 0.0
      %836 = vmatprep.subr.mxu0 0.0
      %837 = vmatpush2.xpose.msra.mxu0 0.0
      %838 = vmatprep.subr.mxu0 0.0
      %839 = vmatpush2.xpose.msra.mxu0 0.0
      %840 = vmatprep.subr.mxu0 0.0
      %841 = vmatpush2.xpose.msra.mxu0 0.0
      %842 = vmatprep.subr.mxu0 0.0
      %843 = vmatpush2.xpose.msra.mxu0 0.0
      %844 = vmatprep.subr.mxu0 0.0
      %845 = vmatpush2.xpose.msra.mxu0 0.0
      %846 = vmatprep.subr.mxu0 0.0
      %847 = vmatpush2.xpose.msra.mxu0 0.0
      %848 = vmatprep.subr.mxu0 0.0
      %849 = vmatpush2.xpose.msra.mxu0 0.0
      %850 = vmatprep.subr.mxu0 0.0
      %851 = vmatpush2.xpose.msra.mxu0 0.0
      %852 = vmatprep.mubr.f32.mxu0 0.0
      %853 = vmatmul.mubr.f32.gmra.mxu0 %v780
      %v854 = vpop.f32.mrf.mxu0
      %v855 = vadd.f32 0.0, %v854
      %v856 = vpop.f32.mrf.mxu0
      %857 = vmatprep.mubr.f32.mxu0 0.0
      %858 = vmatmul.mubr.f32.gmra.mxu0 %v782
      %v859 = vpop.f32.mrf.mxu0
      %v860 = vadd.f32 0.0, %v859
      %v861 = vpop.f32.mrf.mxu0
      %862 = vdwg.mxu0
      %v863 = vmul.f32 %v855, 0.35355338
      %v864 = vmul.f32 %v860, 0.35355338
      %v865 = vadd.f32 %v863, %v455
      %v866 = vadd.f32 %v864, %v455
      %v867 = vsel %vm662, %v865, -inf
      %868 = vmax.xlane.f32.xlu0 %v867
      %v869 = vpop.xlane.xlu0 %868
      %v870 = vsel %vm662, %v866, -inf
      %871 = vmax.xlane.f32.xlu0 %v870
      %v872 = vpop.xlane.xlu0 %871
      %v873 = vsub.f32 %v865, %v869
      %v874 = vsub.f32 %v866, %v872
      %v875 = vmul.f32 %v873, 1.442695
      %v876 = vpow.pop %v875
      %v877 = vmul.f32 %v874, 1.442695
      %v878 = vpow.pop %v877
      %v879 = vsel %vm662, %v876, 0.0
      %880 = vadd.xlane.f32.xlu0 %v879
      %v881 = vpop.xlane.xlu0 %880
      %v882 = vsel %vm662, %v878, 0.0
      %883 = vadd.xlane.f32.xlu0 %v882
      %v884 = vpop.xlane.xlu0 %883
      %v885 = vrcp.pop %v881
      %v886 = vrcp.pop %v884
      %v887 = vmul.f32 %v876, %v885
      %v888 = vmul.f32 %v878, %v886
      %889 = vrot.lane.b32.xlu0 %v553, 56
      %v890 = vpop.permute.xlu0 %889
      %891 = vrot.lane.b32.xlu0 %v558, 56
      %v892 = vpop.permute.xlu0 %891
      %v896 = vsel %vm662, %v887, 0
      %v899 = vsel %vm662, %v888, 0
      %901 = vmatprep.subr.mxu0 0.0
      %902 = vmatpush1.msra.mxu0 0.0
      %903 = vmatprep.subr.mxu0 0.0
      %904 = vmatpush1.msra.mxu0 0.0
      %905 = vmatprep.subr.mxu0 0.0
      %906 = vmatpush1.msra.mxu0 0.0
      %907 = vmatprep.subr.mxu0 0.0
      %908 = vmatpush1.msra.mxu0 0.0
      %909 = vmatprep.subr.mxu0 0.0
      %910 = vmatpush1.msra.mxu0 0.0
      %911 = vmatprep.subr.mxu0 0.0
      %912 = vmatpush1.msra.mxu0 0.0
      %913 = vmatprep.subr.mxu0 0.0
      %914 = vmatpush1.msra.mxu0 0.0
      %915 = vmatprep.subr.mxu0 0.0
      %916 = vmatpush1.msra.mxu0 0.0
      %917 = vmatprep.subr.mxu0 0.0
      %918 = vmatpush1.msra.mxu0 0.0
      %919 = vmatprep.subr.mxu0 0.0
      %920 = vmatpush1.msra.mxu0 0.0
      %921 = vmatprep.subr.mxu0 0.0
      %922 = vmatpush1.msra.mxu0 0.0
      %923 = vmatprep.subr.mxu0 0.0
      %924 = vmatpush1.msra.mxu0 0.0
      %925 = vmatprep.subr.mxu0 0.0
      %926 = vmatpush1.msra.mxu0 0.0
      %927 = vmatprep.subr.mxu0 0.0
      %928 = vmatpush1.msra.mxu0 0.0
      %929 = vmatprep.subr.mxu0 0.0
      %930 = vmatpush1.msra.mxu0 %v892
      %931 = vmatprep.subr.mxu0 0.0
      %932 = vmatpush1.msra.mxu0 %v890
      %933 = vmatprep.subr.mxu0 0.0
      %934 = vmatpush2.msra.mxu0 0.0
      %935 = vmatprep.subr.mxu0 0.0
      %936 = vmatpush2.msra.mxu0 0.0
      %937 = vmatprep.subr.mxu0 0.0
      %938 = vmatpush2.msra.mxu0 0.0
      %939 = vmatprep.subr.mxu0 0.0
      %940 = vmatpush2.msra.mxu0 0.0
      %941 = vmatprep.subr.mxu0 0.0
      %942 = vmatpush2.msra.mxu0 0.0
      %943 = vmatprep.subr.mxu0 0.0
      %944 = vmatpush2.msra.mxu0 0.0
      %945 = vmatprep.subr.mxu0 0.0
      %946 = vmatpush2.msra.mxu0 0.0
      %947 = vmatprep.subr.mxu0 0.0
      %948 = vmatpush2.msra.mxu0 0.0
      %949 = vmatprep.subr.mxu0 0.0
      %950 = vmatpush2.msra.mxu0 0.0
      %951 = vmatprep.subr.mxu0 0.0
      %952 = vmatpush2.msra.mxu0 0.0
      %953 = vmatprep.subr.mxu0 0.0
      %954 = vmatpush2.msra.mxu0 0.0
      %955 = vmatprep.subr.mxu0 0.0
      %956 = vmatpush2.msra.mxu0 0.0
      %957 = vmatprep.subr.mxu0 0.0
      %958 = vmatpush2.msra.mxu0 0.0
      %959 = vmatprep.subr.mxu0 0.0
      %960 = vmatpush2.msra.mxu0 0.0
      %961 = vmatprep.subr.mxu0 0.0
      %962 = vmatpush2.msra.mxu0 0.0
      %963 = vmatprep.subr.mxu0 0.0
      %964 = vmatpush2.msra.mxu0 0.0
      %965 = vmatprep.mubr.f32.mxu0 0.0
      %966 = vmatmul.mubr.f32.gmra.mxu0 %v896
      %v967 = vpop.f32.mrf.mxu0
      %v968 = vadd.f32 0.0, %v967
      %v969 = vpop.f32.mrf.mxu0
      %970 = vmatprep.mubr.f32.mxu0 0.0
      %971 = vmatmul.mubr.f32.gmra.mxu0 %v899
      %v972 = vpop.f32.mrf.mxu0
      %v973 = vadd.f32 0.0, %v972
      %v974 = vpop.f32.mrf.mxu0
      %975 = vdwg.mxu0
      %976 = vrot.lane.b32.xlu0 %v553, 112
      %v977 = vpop.permute.xlu0 %976
      %978 = vrot.lane.b32.xlu0 %v558, 112
      %v979 = vpop.permute.xlu0 %978
      %980 = vrot.lane.b32.xlu0 %v553, 80
      %v981 = vpop.permute.xlu0 %980
      %982 = vrot.lane.b32.xlu0 %v558, 80
      %v983 = vpop.permute.xlu0 %982
      %v984 = vsel %vm574, %v977, 0
      %v986 = vsel %vm574, %v979, 0
      %v988 = vsel %vm574, %v981, 0
      %v990 = vsel %vm574, %v983, 0
      %992 = vmatprep.subr.mxu0 0.0
      %993 = vmatpush1.xpose.msra.mxu0 0.0
      %994 = vmatprep.subr.mxu0 0.0
      %995 = vmatpush1.xpose.msra.mxu0 0.0
      %996 = vmatprep.subr.mxu0 0.0
      %997 = vmatpush1.xpose.msra.mxu0 0.0
      %998 = vmatprep.subr.mxu0 0.0
      %999 = vmatpush1.xpose.msra.mxu0 0.0
      %1000 = vmatprep.subr.mxu0 0.0
      %1001 = vmatpush1.xpose.msra.mxu0 0.0
      %1002 = vmatprep.subr.mxu0 0.0
      %1003 = vmatpush1.xpose.msra.mxu0 0.0
      %1004 = vmatprep.subr.mxu0 0.0
      %1005 = vmatpush1.xpose.msra.mxu0 0.0
      %1006 = vmatprep.subr.mxu0 0.0
      %1007 = vmatpush1.xpose.msra.mxu0 0.0
      %1008 = vmatprep.subr.mxu0 0.0
      %1009 = vmatpush1.xpose.msra.mxu0 0.0
      %1010 = vmatprep.subr.mxu0 0.0
      %1011 = vmatpush1.xpose.msra.mxu0 0.0
      %1012 = vmatprep.subr.mxu0 0.0
      %1013 = vmatpush1.xpose.msra.mxu0 0.0
      %1014 = vmatprep.subr.mxu0 0.0
      %1015 = vmatpush1.xpose.msra.mxu0 0.0
      %1016 = vmatprep.subr.mxu0 0.0
      %1017 = vmatpush1.xpose.msra.mxu0 0.0
      %1018 = vmatprep.subr.mxu0 0.0
      %1019 = vmatpush1.xpose.msra.mxu0 0.0
      %1020 = vmatprep.subr.mxu0 0.0
      %1021 = vmatpush1.xpose.msra.mxu0 %v990
      %1022 = vmatprep.subr.mxu0 0.0
      %1023 = vmatpush1.xpose.msra.mxu0 %v988
      %1024 = vmatprep.subr.mxu0 0.0
      %1025 = vmatpush2.xpose.msra.mxu0 0.0
      %1026 = vmatprep.subr.mxu0 0.0
      %1027 = vmatpush2.xpose.msra.mxu0 0.0
      %1028 = vmatprep.subr.mxu0 0.0
      %1029 = vmatpush2.xpose.msra.mxu0 0.0
      %1030 = vmatprep.subr.mxu0 0.0
      %1031 = vmatpush2.xpose.msra.mxu0 0.0
      %1032 = vmatprep.subr.mxu0 0.0
      %1033 = vmatpush2.xpose.msra.mxu0 0.0
      %1034 = vmatprep.subr.mxu0 0.0
      %1035 = vmatpush2.xpose.msra.mxu0 0.0
      %1036 = vmatprep.subr.mxu0 0.0
      %1037 = vmatpush2.xpose.msra.mxu0 0.0
      %1038 = vmatprep.subr.mxu0 0.0
      %1039 = vmatpush2.xpose.msra.mxu0 0.0
      %1040 = vmatprep.subr.mxu0 0.0
      %1041 = vmatpush2.xpose.msra.mxu0 0.0
      %1042 = vmatprep.subr.mxu0 0.0
      %1043 = vmatpush2.xpose.msra.mxu0 0.0
      %1044 = vmatprep.subr.mxu0 0.0
      %1045 = vmatpush2.xpose.msra.mxu0 0.0
      %1046 = vmatprep.subr.mxu0 0.0
      %1047 = vmatpush2.xpose.msra.mxu0 0.0
      %1048 = vmatprep.subr.mxu0 0.0
      %1049 = vmatpush2.xpose.msra.mxu0 0.0
      %1050 = vmatprep.subr.mxu0 0.0
      %1051 = vmatpush2.xpose.msra.mxu0 0.0
      %1052 = vmatprep.subr.mxu0 0.0
      %1053 = vmatpush2.xpose.msra.mxu0 0.0
      %1054 = vmatprep.subr.mxu0 0.0
      %1055 = vmatpush2.xpose.msra.mxu0 0.0
      %1056 = vmatprep.mubr.f32.mxu0 0.0
      %1057 = vmatmul.mubr.f32.gmra.mxu0 %v984
      %v1058 = vpop.f32.mrf.mxu0
      %v1059 = vadd.f32 0.0, %v1058
      %v1060 = vpop.f32.mrf.mxu0
      %1061 = vmatprep.mubr.f32.mxu0 0.0
      %1062 = vmatmul.mubr.f32.gmra.mxu0 %v986
      %v1063 = vpop.f32.mrf.mxu0
      %v1064 = vadd.f32 0.0, %v1063
      %v1065 = vpop.f32.mrf.mxu0
      %1066 = vdwg.mxu0
      %v1067 = vmul.f32 %v1059, 0.35355338
      %v1068 = vmul.f32 %v1064, 0.35355338
      %v1069 = vadd.f32 %v1067, %v455
      %v1070 = vadd.f32 %v1068, %v455
      %v1071 = vsel %vm662, %v1069, -inf
      %1072 = vmax.xlane.f32.xlu0 %v1071
      %v1073 = vpop.xlane.xlu0 %1072
      %v1074 = vsel %vm662, %v1070, -inf
      %1075 = vmax.xlane.f32.xlu0 %v1074
      %v1076 = vpop.xlane.xlu0 %1075
      %v1077 = vsub.f32 %v1069, %v1073
      %v1078 = vsub.f32 %v1070, %v1076
      %v1079 = vmul.f32 %v1077, 1.442695
      %v1080 = vpow.pop %v1079
      %v1081 = vmul.f32 %v1078, 1.442695
      %v1082 = vpow.pop %v1081
      %v1083 = vsel %vm662, %v1080, 0.0
      %1084 = vadd.xlane.f32.xlu0 %v1083
      %v1085 = vpop.xlane.xlu0 %1084
      %v1086 = vsel %vm662, %v1082, 0.0
      %1087 = vadd.xlane.f32.xlu0 %v1086
      %v1088 = vpop.xlane.xlu0 %1087
      %v1089 = vrcp.pop %v1085
      %v1090 = vrcp.pop %v1088
      %v1091 = vmul.f32 %v1080, %v1089
      %v1092 = vmul.f32 %v1082, %v1090
      %1093 = vrot.lane.b32.xlu0 %v553, 48
      %v1094 = vpop.permute.xlu0 %1093
      %1095 = vrot.lane.b32.xlu0 %v558, 48
      %v1096 = vpop.permute.xlu0 %1095
      %v1100 = vsel %vm662, %v1091, 0
      %v1103 = vsel %vm662, %v1092, 0
      %1105 = vmatprep.subr.mxu0 0.0
      %1106 = vmatpush1.msra.mxu0 0.0
      %1107 = vmatprep.subr.mxu0 0.0
      %1108 = vmatpush1.msra.mxu0 0.0
      %1109 = vmatprep.subr.mxu0 0.0
      %1110 = vmatpush1.msra.mxu0 0.0
      %1111 = vmatprep.subr.mxu0 0.0
      %1112 = vmatpush1.msra.mxu0 0.0
      %1113 = vmatprep.subr.mxu0 0.0
      %1114 = vmatpush1.msra.mxu0 0.0
      %1115 = vmatprep.subr.mxu0 0.0
      %1116 = vmatpush1.msra.mxu0 0.0
      %1117 = vmatprep.subr.mxu0 0.0
      %1118 = vmatpush1.msra.mxu0 0.0
      %1119 = vmatprep.subr.mxu0 0.0
      %1120 = vmatpush1.msra.mxu0 0.0
      %1121 = vmatprep.subr.mxu0 0.0
      %1122 = vmatpush1.msra.mxu0 0.0
      %1123 = vmatprep.subr.mxu0 0.0
      %1124 = vmatpush1.msra.mxu0 0.0
      %1125 = vmatprep.subr.mxu0 0.0
      %1126 = vmatpush1.msra.mxu0 0.0
      %1127 = vmatprep.subr.mxu0 0.0
      %1128 = vmatpush1.msra.mxu0 0.0
      %1129 = vmatprep.subr.mxu0 0.0
      %1130 = vmatpush1.msra.mxu0 0.0
      %1131 = vmatprep.subr.mxu0 0.0
      %1132 = vmatpush1.msra.mxu0 0.0
      %1133 = vmatprep.subr.mxu0 0.0
      %1134 = vmatpush1.msra.mxu0 %v1096
      %1135 = vmatprep.subr.mxu0 0.0
      %1136 = vmatpush1.msra.mxu0 %v1094
      %1137 = vmatprep.subr.mxu0 0.0
      %1138 = vmatpush2.msra.mxu0 0.0
      %1139 = vmatprep.subr.mxu0 0.0
      %1140 = vmatpush2.msra.mxu0 0.0
      %1141 = vmatprep.subr.mxu0 0.0
      %1142 = vmatpush2.msra.mxu0 0.0
      %1143 = vmatprep.subr.mxu0 0.0
      %1144 = vmatpush2.msra.mxu0 0.0
      %1145 = vmatprep.subr.mxu0 0.0
      %1146 = vmatpush2.msra.mxu0 0.0
      %1147 = vmatprep.subr.mxu0 0.0
      %1148 = vmatpush2.msra.mxu0 0.0
      %1149 = vmatprep.subr.mxu0 0.0
      %1150 = vmatpush2.msra.mxu0 0.0
      %1151 = vmatprep.subr.mxu0 0.0
      %1152 = vmatpush2.msra.mxu0 0.0
      %1153 = vmatprep.subr.mxu0 0.0
      %1154 = vmatpush2.msra.mxu0 0.0
      %1155 = vmatprep.subr.mxu0 0.0
      %1156 = vmatpush2.msra.mxu0 0.0
      %1157 = vmatprep.subr.mxu0 0.0
      %1158 = vmatpush2.msra.mxu0 0.0
      %1159 = vmatprep.subr.mxu0 0.0
      %1160 = vmatpush2.msra.mxu0 0.0
      %1161 = vmatprep.subr.mxu0 0.0
      %1162 = vmatpush2.msra.mxu0 0.0
      %1163 = vmatprep.subr.mxu0 0.0
      %1164 = vmatpush2.msra.mxu0 0.0
      %1165 = vmatprep.subr.mxu0 0.0
      %1166 = vmatpush2.msra.mxu0 0.0
      %1167 = vmatprep.subr.mxu0 0.0
      %1168 = vmatpush2.msra.mxu0 0.0
      %1169 = vmatprep.mubr.f32.mxu0 0.0
      %1170 = vmatmul.mubr.f32.gmra.mxu0 %v1100
      %v1171 = vpop.f32.mrf.mxu0
      %v1172 = vadd.f32 0.0, %v1171
      %v1173 = vpop.f32.mrf.mxu0
      %1174 = vmatprep.mubr.f32.mxu0 0.0
      %1175 = vmatmul.mubr.f32.gmra.mxu0 %v1103
      %v1176 = vpop.f32.mrf.mxu0
      %v1177 = vadd.f32 0.0, %v1176
      %v1178 = vpop.f32.mrf.mxu0
      %1179 = vdwg.mxu0
      %1180 = vrot.lane.b32.xlu0 %v553, 104
      %v1181 = vpop.permute.xlu0 %1180
      %1182 = vrot.lane.b32.xlu0 %v558, 104
      %v1183 = vpop.permute.xlu0 %1182
      %1184 = vrot.lane.b32.xlu0 %v553, 72
      %v1185 = vpop.permute.xlu0 %1184
      %1186 = vrot.lane.b32.xlu0 %v558, 72
      %v1187 = vpop.permute.xlu0 %1186
      %v1188 = vsel %vm574, %v1181, 0
      %v1190 = vsel %vm574, %v1183, 0
      %v1192 = vsel %vm574, %v1185, 0
      %v1194 = vsel %vm574, %v1187, 0
      %1196 = vmatprep.subr.mxu0 0.0
      %1197 = vmatpush1.xpose.msra.mxu0 0.0
      %1198 = vmatprep.subr.mxu0 0.0
      %1199 = vmatpush1.xpose.msra.mxu0 0.0
      %1200 = vmatprep.subr.mxu0 0.0
      %1201 = vmatpush1.xpose.msra.mxu0 0.0
      %1202 = vmatprep.subr.mxu0 0.0
      %1203 = vmatpush1.xpose.msra.mxu0 0.0
      %1204 = vmatprep.subr.mxu0 0.0
      %1205 = vmatpush1.xpose.msra.mxu0 0.0
      %1206 = vmatprep.subr.mxu0 0.0
      %1207 = vmatpush1.xpose.msra.mxu0 0.0
      %1208 = vmatprep.subr.mxu0 0.0
      %1209 = vmatpush1.xpose.msra.mxu0 0.0
      %1210 = vmatprep.subr.mxu0 0.0
      %1211 = vmatpush1.xpose.msra.mxu0 0.0
      %1212 = vmatprep.subr.mxu0 0.0
      %1213 = vmatpush1.xpose.msra.mxu0 0.0
      %1214 = vmatprep.subr.mxu0 0.0
      %1215 = vmatpush1.xpose.msra.mxu0 0.0
      %1216 = vmatprep.subr.mxu0 0.0
      %1217 = vmatpush1.xpose.msra.mxu0 0.0
      %1218 = vmatprep.subr.mxu0 0.0
      %1219 = vmatpush1.xpose.msra.mxu0 0.0
      %1220 = vmatprep.subr.mxu0 0.0
      %1221 = vmatpush1.xpose.msra.mxu0 0.0
      %1222 = vmatprep.subr.mxu0 0.0
      %1223 = vmatpush1.xpose.msra.mxu0 0.0
      %1224 = vmatprep.subr.mxu0 0.0
      %1225 = vmatpush1.xpose.msra.mxu0 %v1194
      %1226 = vmatprep.subr.mxu0 0.0
      %1227 = vmatpush1.xpose.msra.mxu0 %v1192
      %1228 = vmatprep.subr.mxu0 0.0
      %1229 = vmatpush2.xpose.msra.mxu0 0.0
      %1230 = vmatprep.subr.mxu0 0.0
      %1231 = vmatpush2.xpose.msra.mxu0 0.0
      %1232 = vmatprep.subr.mxu0 0.0
      %1233 = vmatpush2.xpose.msra.mxu0 0.0
      %1234 = vmatprep.subr.mxu0 0.0
      %1235 = vmatpush2.xpose.msra.mxu0 0.0
      %1236 = vmatprep.subr.mxu0 0.0
      %1237 = vmatpush2.xpose.msra.mxu0 0.0
      %1238 = vmatprep.subr.mxu0 0.0
      %1239 = vmatpush2.xpose.msra.mxu0 0.0
      %1240 = vmatprep.subr.mxu0 0.0
      %1241 = vmatpush2.xpose.msra.mxu0 0.0
      %1242 = vmatprep.subr.mxu0 0.0
      %1243 = vmatpush2.xpose.msra.mxu0 0.0
      %1244 = vmatprep.subr.mxu0 0.0
      %1245 = vmatpush2.xpose.msra.mxu0 0.0
      %1246 = vmatprep.subr.mxu0 0.0
      %1247 = vmatpush2.xpose.msra.mxu0 0.0
      %1248 = vmatprep.subr.mxu0 0.0
      %1249 = vmatpush2.xpose.msra.mxu0 0.0
      %1250 = vmatprep.subr.mxu0 0.0
      %1251 = vmatpush2.xpose.msra.mxu0 0.0
      %1252 = vmatprep.subr.mxu0 0.0
      %1253 = vmatpush2.xpose.msra.mxu0 0.0
      %1254 = vmatprep.subr.mxu0 0.0
      %1255 = vmatpush2.xpose.msra.mxu0 0.0
      %1256 = vmatprep.subr.mxu0 0.0
      %1257 = vmatpush2.xpose.msra.mxu0 0.0
      %1258 = vmatprep.subr.mxu0 0.0
      %1259 = vmatpush2.xpose.msra.mxu0 0.0
      %1260 = vmatprep.mubr.f32.mxu0 0.0
      %1261 = vmatmul.mubr.f32.gmra.mxu0 %v1188
      %v1262 = vpop.f32.mrf.mxu0
      %v1263 = vadd.f32 0.0, %v1262
      %v1264 = vpop.f32.mrf.mxu0
      %1265 = vmatprep.mubr.f32.mxu0 0.0
      %1266 = vmatmul.mubr.f32.gmra.mxu0 %v1190
      %v1267 = vpop.f32.mrf.mxu0
      %v1268 = vadd.f32 0.0, %v1267
      %v1269 = vpop.f32.mrf.mxu0
      %1270 = vdwg.mxu0
      %v1271 = vmul.f32 %v1263, 0.35355338
      %v1272 = vmul.f32 %v1268, 0.35355338
      %v1273 = vadd.f32 %v1271, %v455
      %v1274 = vadd.f32 %v1272, %v455
      %v1275 = vsel %vm662, %v1273, -inf
      %1276 = vmax.xlane.f32.xlu0 %v1275
      %v1277 = vpop.xlane.xlu0 %1276
      %v1278 = vsel %vm662, %v1274, -inf
      %1279 = vmax.xlane.f32.xlu0 %v1278
      %v1280 = vpop.xlane.xlu0 %1279
      %v1281 = vsub.f32 %v1273, %v1277
      %v1282 = vsub.f32 %v1274, %v1280
      %v1283 = vmul.f32 %v1281, 1.442695
      %v1284 = vpow.pop %v1283
      %v1285 = vmul.f32 %v1282, 1.442695
      %v1286 = vpow.pop %v1285
      %v1287 = vsel %vm662, %v1284, 0.0
      %1288 = vadd.xlane.f32.xlu0 %v1287
      %v1289 = vpop.xlane.xlu0 %1288
      %v1290 = vsel %vm662, %v1286, 0.0
      %1291 = vadd.xlane.f32.xlu0 %v1290
      %v1292 = vpop.xlane.xlu0 %1291
      %v1293 = vrcp.pop %v1289
      %v1294 = vrcp.pop %v1292
      %v1295 = vmul.f32 %v1284, %v1293
      %v1296 = vmul.f32 %v1286, %v1294
      %1297 = vrot.lane.b32.xlu0 %v553, 40
      %v1298 = vpop.permute.xlu0 %1297
      %1299 = vrot.lane.b32.xlu0 %v558, 40
      %v1300 = vpop.permute.xlu0 %1299
      %v1304 = vsel %vm662, %v1295, 0
      %v1307 = vsel %vm662, %v1296, 0
      %1309 = vmatprep.subr.mxu0 0.0
      %1310 = vmatpush1.msra.mxu0 0.0
      %1311 = vmatprep.subr.mxu0 0.0
      %1312 = vmatpush1.msra.mxu0 0.0
      %1313 = vmatprep.subr.mxu0 0.0
      %1314 = vmatpush1.msra.mxu0 0.0
      %1315 = vmatprep.subr.mxu0 0.0
      %1316 = vmatpush1.msra.mxu0 0.0
      %1317 = vmatprep.subr.mxu0 0.0
      %1318 = vmatpush1.msra.mxu0 0.0
      %1319 = vmatprep.subr.mxu0 0.0
      %1320 = vmatpush1.msra.mxu0 0.0
      %1321 = vmatprep.subr.mxu0 0.0
      %1322 = vmatpush1.msra.mxu0 0.0
      %1323 = vmatprep.subr.mxu0 0.0
      %1324 = vmatpush1.msra.mxu0 0.0
      %1325 = vmatprep.subr.mxu0 0.0
      %1326 = vmatpush1.msra.mxu0 0.0
      %1327 = vmatprep.subr.mxu0 0.0
      %1328 = vmatpush1.msra.mxu0 0.0
      %1329 = vmatprep.subr.mxu0 0.0
      %1330 = vmatpush1.msra.mxu0 0.0
      %1331 = vmatprep.subr.mxu0 0.0
      %1332 = vmatpush1.msra.mxu0 0.0
      %1333 = vmatprep.subr.mxu0 0.0
      %1334 = vmatpush1.msra.mxu0 0.0
      %1335 = vmatprep.subr.mxu0 0.0
      %1336 = vmatpush1.msra.mxu0 0.0
      %1337 = vmatprep.subr.mxu0 0.0
      %1338 = vmatpush1.msra.mxu0 %v1300
      %1339 = vmatprep.subr.mxu0 0.0
      %1340 = vmatpush1.msra.mxu0 %v1298
      %1341 = vmatprep.subr.mxu0 0.0
      %1342 = vmatpush2.msra.mxu0 0.0
      %1343 = vmatprep.subr.mxu0 0.0
      %1344 = vmatpush2.msra.mxu0 0.0
      %1345 = vmatprep.subr.mxu0 0.0
      %1346 = vmatpush2.msra.mxu0 0.0
      %1347 = vmatprep.subr.mxu0 0.0
      %1348 = vmatpush2.msra.mxu0 0.0
      %1349 = vmatprep.subr.mxu0 0.0
      %1350 = vmatpush2.msra.mxu0 0.0
      %1351 = vmatprep.subr.mxu0 0.0
      %1352 = vmatpush2.msra.mxu0 0.0
      %1353 = vmatprep.subr.mxu0 0.0
      %1354 = vmatpush2.msra.mxu0 0.0
      %1355 = vmatprep.subr.mxu0 0.0
      %1356 = vmatpush2.msra.mxu0 0.0
      %1357 = vmatprep.subr.mxu0 0.0
      %1358 = vmatpush2.msra.mxu0 0.0
      %1359 = vmatprep.subr.mxu0 0.0
      %1360 = vmatpush2.msra.mxu0 0.0
      %1361 = vmatprep.subr.mxu0 0.0
      %1362 = vmatpush2.msra.mxu0 0.0
      %1363 = vmatprep.subr.mxu0 0.0
      %1364 = vmatpush2.msra.mxu0 0.0
      %1365 = vmatprep.subr.mxu0 0.0
      %1366 = vmatpush2.msra.mxu0 0.0
      %1367 = vmatprep.subr.mxu0 0.0
      %1368 = vmatpush2.msra.mxu0 0.0
      %1369 = vmatprep.subr.mxu0 0.0
      %1370 = vmatpush2.msra.mxu0 0.0
      %1371 = vmatprep.subr.mxu0 0.0
      %1372 = vmatpush2.msra.mxu0 0.0
      %1373 = vmatprep.mubr.f32.mxu0 0.0
      %1374 = vmatmul.mubr.f32.gmra.mxu0 %v1304
      %v1375 = vpop.f32.mrf.mxu0
      %v1376 = vadd.f32 0.0, %v1375
      %v1377 = vpop.f32.mrf.mxu0
      %1378 = vmatprep.mubr.f32.mxu0 0.0
      %1379 = vmatmul.mubr.f32.gmra.mxu0 %v1307
      %v1380 = vpop.f32.mrf.mxu0
      %v1381 = vadd.f32 0.0, %v1380
      %v1382 = vpop.f32.mrf.mxu0
      %1383 = vdwg.mxu0
      %1386 = vrot.lane.b32.xlu0 %v968, 8
      %v1387 = vpop.permute.xlu0 %1386
      %1388 = vrot.lane.b32.xlu0 %v973, 8
      %v1389 = vpop.permute.xlu0 %1388
      %1394 = vrot.lane.b32.xlu0 %v1172, 16
      %v1395 = vpop.permute.xlu0 %1394
      %1396 = vrot.lane.b32.xlu0 %v1177, 16
      %v1397 = vpop.permute.xlu0 %1396
      %1402 = vrot.lane.b32.xlu0 %v1376, 24
      %v1403 = vpop.permute.xlu0 %1402
      %1404 = vrot.lane.b32.xlu0 %v1381, 24
      %v1405 = vpop.permute.xlu0 %1404
      %v1408 = vsel %vm574, %v764, %v1387
      %v1409 = vsel %vm574, %v769, %v1389
      %v1410 = vsel %vm662, %v1408, %v1395
      %v1411 = vsel %vm662, %v1409, %v1397
      %vm1412 = vcmask 195584
      %v1413 = vsel %vm1412, %v1410, %v1403
      %v1414 = vsel %vm1412, %v1411, %v1405
      %v1416 = vlaneseq
      %v1417 = vshrl.u32 %v1416, 7
      %v1418 = vsub.s32 0, %v1417
      %v1419 = vrot.slane %v565, %v1418
      %vm1421 = vcmask 261120
      %v1423 = vsel %vm1421, %v1413, 0
      %v1426 = vsel %vm1421, %v1414, 0
      %1428 = vmatprep.subr.mxu0 0.0
      %1429 = vmatpush1.msra.mxu0 0.0
      %1430 = vmatprep.subr.mxu0 0.0
      %1431 = vmatpush1.msra.mxu0 0.0
      %1432 = vmatprep.subr.mxu0 0.0
      %1433 = vmatpush1.msra.mxu0 0.0
      %1434 = vmatprep.subr.mxu0 0.0
      %1435 = vmatpush1.msra.mxu0 0.0
      %1436 = vmatprep.subr.mxu0 0.0
      %1437 = vmatpush1.msra.mxu0 0.0
      %1438 = vmatprep.subr.mxu0 0.0
      %1439 = vmatpush1.msra.mxu0 0.0
      %1440 = vmatprep.subr.mxu0 0.0
      %1441 = vmatpush1.msra.mxu0 0.0
      %1442 = vmatprep.subr.mxu0 0.0
      %1443 = vmatpush1.msra.mxu0 0.0
      %1444 = vmatprep.subr.mxu0 0.0
      %1445 = vmatpush1.msra.mxu0 0.0
      %1446 = vmatprep.subr.mxu0 0.0
      %1447 = vmatpush1.msra.mxu0 0.0
      %1448 = vmatprep.subr.mxu0 0.0
      %1449 = vmatpush1.msra.mxu0 0.0
      %1450 = vmatprep.subr.mxu0 0.0
      %1451 = vmatpush1.msra.mxu0 0.0
      %1452 = vmatprep.subr.mxu0 0.0
      %1453 = vmatpush1.msra.mxu0 %v564
      %1454 = vmatprep.subr.mxu0 0.0
      %1455 = vmatpush1.msra.mxu0 %v563
      %1456 = vmatprep.subr.mxu0 0.0
      %1457 = vmatpush1.msra.mxu0 %v562
      %1458 = vmatprep.subr.mxu0 0.0
      %1459 = vmatpush1.msra.mxu0 %v561
      %1460 = vmatprep.subr.mxu0 0.0
      %1461 = vmatpush2.msra.mxu0 0.0
      %1462 = vmatprep.subr.mxu0 0.0
      %1463 = vmatpush2.msra.mxu0 0.0
      %1464 = vmatprep.subr.mxu0 0.0
      %1465 = vmatpush2.msra.mxu0 0.0
      %1466 = vmatprep.subr.mxu0 0.0
      %1467 = vmatpush2.msra.mxu0 0.0
      %1468 = vmatprep.subr.mxu0 0.0
      %1469 = vmatpush2.msra.mxu0 0.0
      %1470 = vmatprep.subr.mxu0 0.0
      %1471 = vmatpush2.msra.mxu0 0.0
      %1472 = vmatprep.subr.mxu0 0.0
      %1473 = vmatpush2.msra.mxu0 0.0
      %1474 = vmatprep.subr.mxu0 0.0
      %1475 = vmatpush2.msra.mxu0 0.0
      %1476 = vmatprep.subr.mxu0 0.0
      %1477 = vmatpush2.msra.mxu0 0.0
      %1478 = vmatprep.subr.mxu0 0.0
      %1479 = vmatpush2.msra.mxu0 0.0
      %1480 = vmatprep.subr.mxu0 0.0
      %1481 = vmatpush2.msra.mxu0 0.0
      %1482 = vmatprep.subr.mxu0 0.0
      %1483 = vmatpush2.msra.mxu0 0.0
      %1484 = vmatprep.subr.mxu0 0.0
      %1485 = vmatpush2.msra.mxu0 0.0
      %1486 = vmatprep.subr.mxu0 0.0
      %1487 = vmatpush2.msra.mxu0 0.0
      %1488 = vmatprep.subr.mxu0 0.0
      %1489 = vmatpush2.msra.mxu0 0.0
      %1490 = vmatprep.subr.mxu0 0.0
      %1491 = vmatpush2.msra.mxu0 0.0
      %1492 = vmatprep.mubr.f32.mxu0 0.0
      %1493 = vmatmul.mubr.f32.gmra.mxu0 %v1423
      %v1494 = vpop.f32.mrf.mxu0
      %v1495 = vadd.f32 %v1419, %v1494
      %v1496 = vpop.f32.mrf.mxu0
      %1497 = vmatprep.mubr.f32.mxu0 0.0
      %1498 = vmatmul.mubr.f32.gmra.mxu0 %v1426
      %v1499 = vpop.f32.mrf.mxu0
      %v1500 = vadd.f32 %v1419, %v1499
      %v1501 = vpop.f32.mrf.mxu0
      %1502 = vdwg.mxu0
      %v1503 = vadd.f32 %v1495, %v449
      %v1504 = vadd.f32 %v1500, %v450
      %1505 = vadd.xlane.f32.xlu0 %v1503
      %v1506 = vpop.xlane.xlu0 %1505
      %1507 = vadd.xlane.f32.xlu0 %v1504
      %v1508 = vpop.xlane.xlu0 %1507
      %v1509 = vmul.f32 %v1506, 0.03125
      %v1510 = vmul.f32 %v1508, 0.03125
      %v1511 = vmul.f32 %v1503, %v1503
      %v1512 = vmul.f32 %v1504, %v1504
      %1513 = vadd.xlane.f32.xlu0 %v1511
      %v1514 = vpop.xlane.xlu0 %1513
      %1515 = vadd.xlane.f32.xlu0 %v1512
      %v1516 = vpop.xlane.xlu0 %1515
      %v1517 = vmul.f32 %v1514, 0.03125
      %v1518 = vmul.f32 %v1516, 0.03125
      %v1519 = vmul.f32 %v1509, %v1509
      %v1520 = vmul.f32 %v1510, %v1510
      %v1521 = vsub.f32 %v1517, %v1519
      %v1522 = vsub.f32 %v1518, %v1520
      %v1523 = vmax.f32 %v1521, 0.0
      %v1524 = vmax.f32 %v1522, 0.0
      %v1525 = vsub.f32 %v1503, %v1509
      %v1526 = vsub.f32 %v1504, %v1510
      %v1527 = vadd.f32 %v1523, 1e-05
      %v1528 = vadd.f32 %v1524, 1e-05
      %v1529 = vrsqrt.pop %v1527
      %v1530 = vrsqrt.pop %v1528
      %v1531 = vmul.f32 %v1525, %v1529
      %v1532 = vmul.f32 %v1526, %v1530
      %v1534 = vlaneseq
      %v1535 = vshrl.u32 %v1534, 7
      %v1536 = vsub.s32 0, %v1535
      %v1537 = vrot.slane %v566, %v1536
      %v1539 = vmul.f32 %v1531, %v1537
      %v1540 = vmul.f32 %v1532, %v1537
      %v1542 = vlaneseq
      %v1543 = vshrl.u32 %v1542, 7
      %v1544 = vsub.s32 0, %v1543
      %v1545 = vrot.slane %v567, %v1544
      %v1547 = vadd.f32 %v1539, %v1545
      %v1548 = vadd.f32 %v1540, %v1545
      %v1549 = vmul.f32 %v1547, %v461
      %v1550 = vmul.f32 %v1548, %v462
      %v1551 = vld [vmem:[%s8] sm:$0xff]
      %v1552 = vld [vmem:[%s8 + $0x8] sm:$0xff]
      %v1553 = vld [vmem:[%s8 + $0x10] sm:$0xff]
      %v1554 = vld [vmem:[%s8 + $0x18] sm:$0xff]
      %v1555 = vld [vmem:[%s8 + $0x20] sm:$0xff]
      %v1556 = vld [vmem:[%s8 + $0x28] sm:$0xff]
      %v1557 = vld [vmem:[%s8 + $0x30] sm:$0xff]
      %v1558 = vld [vmem:[%s8 + $0x38] sm:$0xff]
      %v1559 = vld [vmem:[%s8 + $0x40] sm:$0xff]
      %v1560 = vld [vmem:[%s8 + $0x48] sm:$0xff]
      %v1561 = vld [vmem:[%s8 + $0x50] sm:$0xff]
      %v1562 = vld [vmem:[%s8 + $0x58] sm:$0xff]
      %v1563 = vld [vmem:[%s8 + $0x60] sm:$0xff]
      %v1564 = vld [vmem:[%s8 + $0x68] sm:$0xff]
      %v1565 = vld [vmem:[%s8 + $0x70] sm:$0xff]
      %v1566 = vld [vmem:[%s8 + $0x78] sm:$0xff]
      %v1567 = vld [vmem:[%s9] sm:$0x1]
      %v1568 = vld [vmem:[%s10] sm:$0xff]
      %v1569 = vld [vmem:[%s10 + $0x8] sm:$0xff]
      %v1570 = vld [vmem:[%s10 + $0x10] sm:$0xff]
      %v1571 = vld [vmem:[%s10 + $0x18] sm:$0xff]
      %v1572 = vld [vmem:[%s10 + $0x20] sm:$0xff]
      %v1573 = vld [vmem:[%s10 + $0x28] sm:$0xff]
      %v1574 = vld [vmem:[%s10 + $0x30] sm:$0xff]
      %v1575 = vld [vmem:[%s10 + $0x38] sm:$0xff]
      %v1576 = vld [vmem:[%s11] sm:$0x1]
      %v1577 = vld [vmem:[%s12] sm:$0x1]
      %v1578 = vld [vmem:[%s13] sm:$0x1]
      %v1580 = vlaneseq
      %v1581 = vshrl.u32 %v1580, 7
      %v1582 = vsub.s32 0, %v1581
      %v1583 = vrot.slane %v1567, %v1582
      %1585 = vmatprep.subr.mxu0 0.0
      %1586 = vmatpush1.msra.mxu0 %v1566
      %1587 = vmatprep.subr.mxu0 0.0
      %1588 = vmatpush1.msra.mxu0 %v1565
      %1589 = vmatprep.subr.mxu0 0.0
      %1590 = vmatpush1.msra.mxu0 %v1564
      %1591 = vmatprep.subr.mxu0 0.0
      %1592 = vmatpush1.msra.mxu0 %v1563
      %1593 = vmatprep.subr.mxu0 0.0
      %1594 = vmatpush1.msra.mxu0 %v1562
      %1595 = vmatprep.subr.mxu0 0.0
      %1596 = vmatpush1.msra.mxu0 %v1561
      %1597 = vmatprep.subr.mxu0 0.0
      %1598 = vmatpush1.msra.mxu0 %v1560
      %1599 = vmatprep.subr.mxu0 0.0
      %1600 = vmatpush1.msra.mxu0 %v1559
      %1601 = vmatprep.subr.mxu0 0.0
      %1602 = vmatpush1.msra.mxu0 %v1558
      %1603 = vmatprep.subr.mxu0 0.0
      %1604 = vmatpush1.msra.mxu0 %v1557
      %1605 = vmatprep.subr.mxu0 0.0
      %1606 = vmatpush1.msra.mxu0 %v1556
      %1607 = vmatprep.subr.mxu0 0.0
      %1608 = vmatpush1.msra.mxu0 %v1555
      %1609 = vmatprep.subr.mxu0 0.0
      %1610 = vmatpush1.msra.mxu0 %v1554
      %1611 = vmatprep.subr.mxu0 0.0
      %1612 = vmatpush1.msra.mxu0 %v1553
      %1613 = vmatprep.subr.mxu0 0.0
      %1614 = vmatpush1.msra.mxu0 %v1552
      %1615 = vmatprep.subr.mxu0 0.0
      %1616 = vmatpush1.msra.mxu0 %v1551
      %1617 = vmatprep.subr.mxu0 0.0
      %1618 = vmatpush2.msra.mxu0 0.0
      %1619 = vmatprep.subr.mxu0 0.0
      %1620 = vmatpush2.msra.mxu0 0.0
      %1621 = vmatprep.subr.mxu0 0.0
      %1622 = vmatpush2.msra.mxu0 0.0
      %1623 = vmatprep.subr.mxu0 0.0
      %1624 = vmatpush2.msra.mxu0 0.0
      %1625 = vmatprep.subr.mxu0 0.0
      %1626 = vmatpush2.msra.mxu0 0.0
      %1627 = vmatprep.subr.mxu0 0.0
      %1628 = vmatpush2.msra.mxu0 0.0
      %1629 = vmatprep.subr.mxu0 0.0
      %1630 = vmatpush2.msra.mxu0 0.0
      %1631 = vmatprep.subr.mxu0 0.0
      %1632 = vmatpush2.msra.mxu0 0.0
      %1633 = vmatprep.subr.mxu0 0.0
      %1634 = vmatpush2.msra.mxu0 0.0
      %1635 = vmatprep.subr.mxu0 0.0
      %1636 = vmatpush2.msra.mxu0 0.0
      %1637 = vmatprep.subr.mxu0 0.0
      %1638 = vmatpush2.msra.mxu0 0.0
      %1639 = vmatprep.subr.mxu0 0.0
      %1640 = vmatpush2.msra.mxu0 0.0
      %1641 = vmatprep.subr.mxu0 0.0
      %1642 = vmatpush2.msra.mxu0 0.0
      %1643 = vmatprep.subr.mxu0 0.0
      %1644 = vmatpush2.msra.mxu0 0.0
      %1645 = vmatprep.subr.mxu0 0.0
      %1646 = vmatpush2.msra.mxu0 0.0
      %1647 = vmatprep.subr.mxu0 0.0
      %1648 = vmatpush2.msra.mxu0 0.0
      %1649 = vmatprep.mubr.f32.mxu0 0.0
      %1650 = vmatmul.mubr.f32.gmra.mxu0 %v1549
      %v1651 = vpop.f32.mrf.mxu0
      %v1652 = vadd.f32 %v1583, %v1651
      %v1653 = vpop.f32.mrf.mxu0
      %1654 = vmatprep.mubr.f32.mxu0 0.0
      %1655 = vmatmul.mubr.f32.gmra.mxu0 %v1550
      %v1656 = vpop.f32.mrf.mxu0
      %v1657 = vadd.f32 %v1583, %v1656
      %v1658 = vpop.f32.mrf.mxu0
      %1659 = vdwg.mxu0
      %v1660 = vmax.f32 %v1652, 0.0
      %v1661 = vmax.f32 %v1657, 0.0
      %v1663 = vlaneseq
      %v1664 = vshrl.u32 %v1663, 7
      %v1665 = vsub.s32 0, %v1664
      %v1666 = vrot.slane %v1576, %v1665
      %vm1668 = vcmask 523264
      %v1670 = vsel %vm1668, %v1660, 0
      %v1673 = vsel %vm1668, %v1661, 0
      %1675 = vmatprep.subr.mxu0 0.0
      %1676 = vmatpush1.msra.mxu0 0.0
      %1677 = vmatprep.subr.mxu0 0.0
      %1678 = vmatpush1.msra.mxu0 0.0
      %1679 = vmatprep.subr.mxu0 0.0
      %1680 = vmatpush1.msra.mxu0 0.0
      %1681 = vmatprep.subr.mxu0 0.0
      %1682 = vmatpush1.msra.mxu0 0.0
      %1683 = vmatprep.subr.mxu0 0.0
      %1684 = vmatpush1.msra.mxu0 0.0
      %1685 = vmatprep.subr.mxu0 0.0
      %1686 = vmatpush1.msra.mxu0 0.0
      %1687 = vmatprep.subr.mxu0 0.0
      %1688 = vmatpush1.msra.mxu0 0.0
      %1689 = vmatprep.subr.mxu0 0.0
      %1690 = vmatpush1.msra.mxu0 0.0
      %1691 = vmatprep.subr.mxu0 0.0
      %1692 = vmatpush1.msra.mxu0 %v1575
      %1693 = vmatprep.subr.mxu0 0.0
      %1694 = vmatpush1.msra.mxu0 %v1574
      %1695 = vmatprep.subr.mxu0 0.0
      %1696 = vmatpush1.msra.mxu0 %v1573
      %1697 = vmatprep.subr.mxu0 0.0
      %1698 = vmatpush1.msra.mxu0 %v1572
      %1699 = vmatprep.subr.mxu0 0.0
      %1700 = vmatpush1.msra.mxu0 %v1571
      %1701 = vmatprep.subr.mxu0 0.0
      %1702 = vmatpush1.msra.mxu0 %v1570
      %1703 = vmatprep.subr.mxu0 0.0
      %1704 = vmatpush1.msra.mxu0 %v1569
      %1705 = vmatprep.subr.mxu0 0.0
      %1706 = vmatpush1.msra.mxu0 %v1568
      %1707 = vmatprep.subr.mxu0 0.0
      %1708 = vmatpush2.msra.mxu0 0.0
      %1709 = vmatprep.subr.mxu0 0.0
      %1710 = vmatpush2.msra.mxu0 0.0
      %1711 = vmatprep.subr.mxu0 0.0
      %1712 = vmatpush2.msra.mxu0 0.0
      %1713 = vmatprep.subr.mxu0 0.0
      %1714 = vmatpush2.msra.mxu0 0.0
      %1715 = vmatprep.subr.mxu0 0.0
      %1716 = vmatpush2.msra.mxu0 0.0
      %1717 = vmatprep.subr.mxu0 0.0
      %1718 = vmatpush2.msra.mxu0 0.0
      %1719 = vmatprep.subr.mxu0 0.0
      %1720 = vmatpush2.msra.mxu0 0.0
      %1721 = vmatprep.subr.mxu0 0.0
      %1722 = vmatpush2.msra.mxu0 0.0
      %1723 = vmatprep.subr.mxu0 0.0
      %1724 = vmatpush2.msra.mxu0 0.0
      %1725 = vmatprep.subr.mxu0 0.0
      %1726 = vmatpush2.msra.mxu0 0.0
      %1727 = vmatprep.subr.mxu0 0.0
      %1728 = vmatpush2.msra.mxu0 0.0
      %1729 = vmatprep.subr.mxu0 0.0
      %1730 = vmatpush2.msra.mxu0 0.0
      %1731 = vmatprep.subr.mxu0 0.0
      %1732 = vmatpush2.msra.mxu0 0.0
      %1733 = vmatprep.subr.mxu0 0.0
      %1734 = vmatpush2.msra.mxu0 0.0
      %1735 = vmatprep.subr.mxu0 0.0
      %1736 = vmatpush2.msra.mxu0 0.0
      %1737 = vmatprep.subr.mxu0 0.0
      %1738 = vmatpush2.msra.mxu0 0.0
      %1739 = vmatprep.mubr.f32.mxu0 0.0
      %1740 = vmatmul.mubr.f32.gmra.mxu0 %v1670
      %v1741 = vpop.f32.mrf.mxu0
      %v1742 = vadd.f32 %v1666, %v1741
      %v1743 = vpop.f32.mrf.mxu0
      %1744 = vmatprep.mubr.f32.mxu0 0.0
      %1745 = vmatmul.mubr.f32.gmra.mxu0 %v1673
      %v1746 = vpop.f32.mrf.mxu0
      %v1747 = vadd.f32 %v1666, %v1746
      %v1748 = vpop.f32.mrf.mxu0
      %1749 = vdwg.mxu0
      %v1750 = vadd.f32 %v1742, %v1549
      %v1751 = vadd.f32 %v1747, %v1550
      %1752 = vadd.xlane.f32.xlu0 %v1750
      %v1753 = vpop.xlane.xlu0 %1752
      %1754 = vadd.xlane.f32.xlu0 %v1751
      %v1755 = vpop.xlane.xlu0 %1754
      %v1756 = vmul.f32 %v1753, 0.03125
      %v1757 = vmul.f32 %v1755, 0.03125
      %v1758 = vmul.f32 %v1750, %v1750
      %v1759 = vmul.f32 %v1751, %v1751
      %1760 = vadd.xlane.f32.xlu0 %v1758
      %v1761 = vpop.xlane.xlu0 %1760
      %1762 = vadd.xlane.f32.xlu0 %v1759
      %v1763 = vpop.xlane.xlu0 %1762
      %v1764 = vmul.f32 %v1761, 0.03125
      %v1765 = vmul.f32 %v1763, 0.03125
      %v1766 = vmul.f32 %v1756, %v1756
      %v1767 = vmul.f32 %v1757, %v1757
      %v1768 = vsub.f32 %v1764, %v1766
      %v1769 = vsub.f32 %v1765, %v1767
      %v1770 = vmax.f32 %v1768, 0.0
      %v1771 = vmax.f32 %v1769, 0.0
      %v1772 = vsub.f32 %v1750, %v1756
      %v1773 = vsub.f32 %v1751, %v1757
      %v1774 = vadd.f32 %v1770, 1e-05
      %v1775 = vadd.f32 %v1771, 1e-05
      %v1776 = vrsqrt.pop %v1774
      %v1777 = vrsqrt.pop %v1775
      %v1778 = vmul.f32 %v1772, %v1776
      %v1779 = vmul.f32 %v1773, %v1777
      %v1781 = vlaneseq
      %v1782 = vshrl.u32 %v1781, 7
      %v1783 = vsub.s32 0, %v1782
      %v1784 = vrot.slane %v1577, %v1783
      %v1786 = vmul.f32 %v1778, %v1784
      %v1787 = vmul.f32 %v1779, %v1784
      %v1789 = vlaneseq
      %v1790 = vshrl.u32 %v1789, 7
      %v1791 = vsub.s32 0, %v1790
      %v1792 = vrot.slane %v1578, %v1791
      %v1794 = vadd.f32 %v1786, %v1792
      %v1795 = vadd.f32 %v1787, %v1792
      %v1796 = vmul.f32 %v1794, %v461
      %v1797 = vmul.f32 %v1795, %v462
      %1798 = vst [vmem:[%s447] sm:$0xff] %v1796
      %1799 = vst [vmem:[%s447 + $0x8] sm:$0xff] %v1797
      %p1800 = scmp.lt.s32.totalorder %s31, 1
      %s1801 = scalar_select %p1800, %s31, 1
      %s1802 = smul.addr %s1801, 2
      %s1803 = smul.addr %s1802, 8
      %s1804 = scalar_lea.vmem %s14, %s1803
      // Predicated region
      $region73: #{transformer_forward.5} parent=71 // pred_check
        %p1805 = pneg %p327
      $region74: #{transformer_forward.5} parent=71 // pred_check_branch
        %1807 = sbr.rel (%p1805) target = $region76
      $region75: #{transformer_forward.5} parent=71 // pred_region
        _
      $region76: #{transformer_forward.5} parent=71 // pred_fallthru
        _
    $region72: #{transformer_forward.5} parent=5 // pred_fallthru
      _
    %p1808 = scmp.le.s32.totalorder 2, %s26
    // Predicated region
    $region77: #{transformer_forward.5} parent=5 // pred_check
      %p1809 = pneg %p1808
    $region78: #{transformer_forward.5} parent=5 // pred_check_branch
      %1811 = sbr.rel (%p1809) target = $region80
    $region79: #{transformer_forward.5} parent=5 // pred_region
      %s1812 = ssub.s32 %s26, 2
      // Predicated region
      $region81: #{transformer_forward.5} parent=79 // pred_check
        %p1813 = pneg %p333
      $region82: #{transformer_forward.5} parent=79 // pred_check_branch
        %1815 = sbr.rel (%p1813) target = $region84
      $region83: #{transformer_forward.5} parent=79 // pred_region
        %p1816 = scmp.lt.s32.totalorder %s32, 1
        %s1817 = scalar_select %p1816, %s32, 1
        %s1818 = smul.addr %s1817, 2
        %s1819 = smul.addr %s1818, 8
        %s1820 = scalar_lea.vmem %s14, %s1819
      $region84: #{transformer_forward.5} parent=79 // pred_fallthru
        _
    $region80: #{transformer_forward.5} parent=5 // pred_fallthru
      _
  $region6: #{transformer_forward.5} parent=0 // loop_footer
    %s30 = sadd.s32 1, %s26
  $region7: #{transformer_forward.5} parent=0 // loop_footer_branch
    %25 = sbr.rel target = $region3
  $region8: #{transformer_forward.5} parent=0 // loop_exit
    _

// kernel: transformer_forward.6
$region0: #{transformer_forward.6}
  #allocation0 [shape = 'u32[]', space=smem, size = 0x4, offset = 0x4, fixed_abs, tag = 'smem constant byte address 0x4 - core index']
  #allocation1 [shape = 'u32[144,128]{1,0:T(1,128)}', space=vmem, size = 0x12000, scoped, tag = 'internal scratch']
  #allocation2 [shape = 's32[1]{0}', space=sflag, size = 0x4, scoped, tag = 'scoped memory for transformer_forward.6']
  #allocation3 [shape = 'u8[512]{0}', space=smem, size = 0x200, scoped, tag = 'prefetched SMEM operand 0']
  %s0 = inlined_call_operand.vmem [shape: s32[2], index: 0, kind: input, shape index: {}]
  %s1 = inlined_call_operand.vmem [shape: f32[2,9,128], index: 1, kind: input, shape index: {}]
  %s2 = inlined_call_operand.vmem [shape: f32[2,16,128], index: 2, kind: input, shape index: {}]
  %s3 = inlined_call_operand.vmem [shape: f32[128,96], index: 3, kind: input, shape index: {}]
  %s4 = inlined_call_operand.vmem [shape: f32[1,96], index: 4, kind: input, shape index: {}]
  %s5 = inlined_call_operand.vmem [shape: f32[32,128], index: 5, kind: input, shape index: {}]
  %s6 = inlined_call_operand.vmem [shape: f32[1,128], index: 6, kind: input, shape index: {}]
  %s7 = inlined_call_operand.vmem [shape: f32[1,128], index: 7, kind: input, shape index: {}]
  %s8 = inlined_call_operand.vmem [shape: f32[1,128], index: 8, kind: input, shape index: {}]
  %s9 = inlined_call_operand.vmem [shape: f32[128,32], index: 9, kind: input, shape index: {}]
  %s10 = inlined_call_operand.vmem [shape: f32[1,32], index: 10, kind: input, shape index: {}]
  %s11 = inlined_call_operand.vmem [shape: f32[128,64], index: 11, kind: input, shape index: {}]
  %s12 = inlined_call_operand.vmem [shape: f32[1,64], index: 12, kind: input, shape index: {}]
  %s13 = inlined_call_operand.vmem [shape: f32[32,128], index: 13, kind: input, shape index: {}]
  %s14 = inlined_call_operand.vmem [shape: f32[1,128], index: 14, kind: input, shape index: {}]
  %s15 = inlined_call_operand.vmem [shape: f32[1,128], index: 15, kind: input, shape index: {}]
  %s16 = inlined_call_operand.vmem [shape: f32[1,128], index: 16, kind: input, shape index: {}]
  %s17 = inlined_call_operand.vmem [shape: f32[128,64], index: 17, kind: input, shape index: {}]
  %s18 = inlined_call_operand.vmem [shape: f32[1,64], index: 18, kind: input, shape index: {}]
  %s19 = inlined_call_operand.vmem [shape: f32[64,128], index: 19, kind: input, shape index: {}]
  %s20 = inlined_call_operand.vmem [shape: f32[1,128], index: 20, kind: input, shape index: {}]
  %s21 = inlined_call_operand.vmem [shape: f32[1,128], index: 21, kind: input, shape index: {}]
  %s22 = inlined_call_operand.vmem [shape: f32[1,128], index: 22, kind: input, shape index: {}]
  %s23 = inlined_call_operand.vmem [shape: f32[2,9,128], index: 23, kind: output, shape index: {}]
  %s24 = sld [smem:[#allocation0]]
  $region121: #{transformer_forward.6} parent=0
    _
  %s26 = ssub.s32 1, %s24
  %s27 = scalar_select 0, %s26, %s24
  %s28 = sshll.u32 %s0, 4
  %s29 = int_to_ptr.vmem [resolvable:$true] %s28
  %31 = dma.vmem_to_smem %s29, 16, [#allocation3], [#allocation2]
  %32 = dma.done [#allocation2], 16
  %33 = sfence
  loop: start=0, step=1, limit=4
  $region2: #{transformer_forward.6} parent=0 // loop_pre_header
    _
  $region3: #{transformer_forward.6} parent=0 // loop_header
    %s35 = sphi 0, %s39
    %p36 = scmp.ge.s32.totalorder %s35, 4
    %s45 = sphi 0, %s47
    %s48 = sphi 0, %s45
    %s49 = sphi 0, %s48
    %s65 = sphi 0, %s49
    %s71 = sphi 0, %s73
    %s74 = sphi 0, %s71
    %s75 = sphi 0, %s74
    %s91 = sphi 0, %s75
    %s95 = sphi 0, %s95
    %s97 = sphi 0, %s95
    %s98 = sphi 0, %s97
    %s112 = sphi 0, %s98
    %s116 = sphi 0, %s116
    %s118 = sphi 0, %s116
    %s119 = sphi 0, %s118
    %s133 = sphi 0, %s119
    %s137 = sphi 0, %s137
    %s139 = sphi 0, %s137
    %s140 = sphi 0, %s139
    %s154 = sphi 0, %s140
    %s158 = sphi 0, %s158
    %s160 = sphi 0, %s158
    %s161 = sphi 0, %s160
    %s175 = sphi 0, %s161
    %s179 = sphi 0, %s179
    %s181 = sphi 0, %s179
    %s182 = sphi 0, %s181
    %s196 = sphi 0, %s182
    %s200 = sphi 0, %s200
    %s202 = sphi 0, %s200
    %s203 = sphi 0, %s202
    %s217 = sphi 0, %s203
    %s221 = sphi 0, %s221
    %s223 = sphi 0, %s221
    %s224 = sphi 0, %s223
    %s238 = sphi 0, %s224
    %s242 = sphi 0, %s242
    %s244 = sphi 0, %s242
    %s245 = sphi 0, %s244
    %s259 = sphi 0, %s245
    %s263 = sphi 0, %s263
    %s265 = sphi 0, %s263
    %s266 = sphi 0, %s265
    %s280 = sphi 0, %s266
    %s284 = sphi 0, %s284
    %s286 = sphi 0, %s284
    %s287 = sphi 0, %s286
    %s301 = sphi 0, %s287
    %s305 = sphi 0, %s305
    %s307 = sphi 0, %s305
    %s308 = sphi 0, %s307
    %s322 = sphi 0, %s308
    %s326 = sphi 0, %s326
    %s328 = sphi 0, %s326
    %s329 = sphi 0, %s328
    %s343 = sphi 0, %s329
    %s347 = sphi 0, %s347
    %s349 = sphi 0, %s347
    %s350 = sphi 0, %s349
    %s364 = sphi 0, %s350
    %s368 = sphi 0, %s368
    %s370 = sphi 0, %s368
    %s371 = sphi 0, %s370
    %s385 = sphi 0, %s371
    %s389 = sphi 0, %s389
    %s391 = sphi 0, %s389
    %s392 = sphi 0, %s391
    %s406 = sphi 0, %s392
    %s410 = sphi 0, %s410
    %s412 = sphi 0, %s410
    %s413 = sphi 0, %s412
    %s427 = sphi 0, %s413
    %s431 = sphi 0, %s431
    %s433 = sphi 0, %s431
    %s434 = sphi 0, %s433
    %s448 = sphi 0, %s434
    %s452 = sphi 0, %s452
    %s454 = sphi 0, %s452
    %s455 = sphi 0, %s454
    %s469 = sphi 0, %s455
    %s473 = sphi 0, %s473
    %s475 = sphi 0, %s473
    %s476 = sphi 0, %s475
    %s490 = sphi 0, %s476
    %s494 = sphi 0, %s494
    %s496 = sphi 0, %s494
    %s497 = sphi 0, %s496
    %s511 = sphi 0, %s497
    %s517 = sphi 0, %s519
    %s520 = sphi 0, %s517
    %s521 = sphi 0, %s520
    %s537 = sphi 0, %s521
  $region4: #{transformer_forward.6} parent=0 // loop_header_branch
    %38 = sbr.rel (%p36) target = $region8
  $region5: #{transformer_forward.6} parent=0 // loop_body
    %s40 = ssub.s32 %s35, 1
    %s41 = ssub.s32 %s35, 2
    %s42 = sadd.s32 %s35, 1
    %s43 = ssub.s32 %s35, %s42
    %p44 = scmp.eq.s32.totalorder %s43, 0
    %s46 = sadd.s32 %s45, 1
    %s47 = scalar_select %p44, %s45, %s46
    %p50 = pneg %p44
    %p51 = scmp.eq.s32.totalorder %s35, 1
    %p52 = por %p50, %p51
    %p53 = scmp.ne.s32.totalorder %s45, %s48
    %p54 = scmp.eq.s32.totalorder %s35, 0
    %p55 = por %p53, %p54
    %p56 = scmp.ne.s32.totalorder %s45, %s48
    %p57 = scmp.eq.s32.totalorder %s40, 1
    %p58 = por %p56, %p57
    %p59 = scmp.ne.s32.totalorder %s48, %s49
    %p60 = scmp.eq.s32.totalorder %s40, 0
    %p61 = por %p59, %p60
    %p62 = scmp.ne.s32.totalorder %s48, %s49
    %p63 = scmp.eq.s32.totalorder %s41, 1
    %p64 = por %p62, %p63
    %p66 = scmp.ne.s32.totalorder %s49, %s65
    %p67 = scmp.eq.s32.totalorder %s41, 0
    %p68 = por %p66, %p67
    %s69 = ssub.s32 %s35, %s42
    %p70 = scmp.eq.s32.totalorder %s69, 0
    %s72 = sadd.s32 %s71, 1
    %s73 = scalar_select %p70, %s71, %s72
    %p76 = pneg %p70
    %p77 = scmp.eq.s32.totalorder %s35, 1
    %p78 = por %p76, %p77
    %p79 = scmp.ne.s32.totalorder %s71, %s74
    %p80 = scmp.eq.s32.totalorder %s35, 0
    %p81 = por %p79, %p80
    %p82 = scmp.ne.s32.totalorder %s71, %s74
    %p83 = scmp.eq.s32.totalorder %s40, 1
    %p84 = por %p82, %p83
    %p85 = scmp.ne.s32.totalorder %s74, %s75
    %p86 = scmp.eq.s32.totalorder %s40, 0
    %p87 = por %p85, %p86
    %p88 = scmp.ne.s32.totalorder %s74, %s75
    %p89 = scmp.eq.s32.totalorder %s41, 1
    %p90 = por %p88, %p89
    %p92 = scmp.ne.s32.totalorder %s75, %s91
    %p93 = scmp.eq.s32.totalorder %s41, 0
    %p94 = por %p92, %p93
    %s96 = sadd.s32 %s95, 1
    %p99 = scmp.eq.s32.totalorder %s35, 1
    %p100 = scmp.ne.s32.totalorder %s95, %s97
    %p101 = scmp.eq.s32.totalorder %s35, 0
    %p102 = por %p100, %p101
    %p103 = scmp.ne.s32.totalorder %s95, %s97
    %p104 = scmp.eq.s32.totalorder %s40, 1
    %p105 = por %p103, %p104
    %p106 = scmp.ne.s32.totalorder %s97, %s98
    %p107 = scmp.eq.s32.totalorder %s40, 0
    %p108 = por %p106, %p107
    %p109 = scmp.ne.s32.totalorder %s97, %s98
    %p110 = scmp.eq.s32.totalorder %s41, 1
    %p111 = por %p109, %p110
    %p113 = scmp.ne.s32.totalorder %s98, %s112
    %p114 = scmp.eq.s32.totalorder %s41, 0
    %p115 = por %p113, %p114
    %s117 = sadd.s32 %s116, 1
    %p120 = scmp.eq.s32.totalorder %s35, 1
    %p121 = scmp.ne.s32.totalorder %s116, %s118
    %p122 = scmp.eq.s32.totalorder %s35, 0
    %p123 = por %p121, %p122
    %p124 = scmp.ne.s32.totalorder %s116, %s118
    %p125 = scmp.eq.s32.totalorder %s40, 1
    %p126 = por %p124, %p125
    %p127 = scmp.ne.s32.totalorder %s118, %s119
    %p128 = scmp.eq.s32.totalorder %s40, 0
    %p129 = por %p127, %p128
    %p130 = scmp.ne.s32.totalorder %s118, %s119
    %p131 = scmp.eq.s32.totalorder %s41, 1
    %p132 = por %p130, %p131
    %p134 = scmp.ne.s32.totalorder %s119, %s133
    %p135 = scmp.eq.s32.totalorder %s41, 0
    %p136 = por %p134, %p135
    %s138 = sadd.s32 %s137, 1
    %p141 = scmp.eq.s32.totalorder %s35, 1
    %p142 = scmp.ne.s32.totalorder %s137, %s139
    %p143 = scmp.eq.s32.totalorder %s35, 0
    %p144 = por %p142, %p143
    %p145 = scmp.ne.s32.totalorder %s137, %s139
    %p146 = scmp.eq.s32.totalorder %s40, 1
    %p147 = por %p145, %p146
    %p148 = scmp.ne.s32.totalorder %s139, %s140
    %p149 = scmp.eq.s32.totalorder %s40, 0
    %p150 = por %p148, %p149
    %p151 = scmp.ne.s32.totalorder %s139, %s140
    %p152 = scmp.eq.s32.totalorder %s41, 1
    %p153 = por %p151, %p152
    %p155 = scmp.ne.s32.totalorder %s140, %s154
    %p156 = scmp.eq.s32.totalorder %s41, 0
    %p157 = por %p155, %p156
    %s159 = sadd.s32 %s158, 1
    %p162 = scmp.eq.s32.totalorder %s35, 1
    %p163 = scmp.ne.s32.totalorder %s158, %s160
    %p164 = scmp.eq.s32.totalorder %s35, 0
    %p165 = por %p163, %p164
    %p166 = scmp.ne.s32.totalorder %s158, %s160
    %p167 = scmp.eq.s32.totalorder %s40, 1
    %p168 = por %p166, %p167
    %p169 = scmp.ne.s32.totalorder %s160, %s161
    %p170 = scmp.eq.s32.totalorder %s40, 0
    %p171 = por %p169, %p170
    %p172 = scmp.ne.s32.totalorder %s160, %s161
    %p173 = scmp.eq.s32.totalorder %s41, 1
    %p174 = por %p172, %p173
    %p176 = scmp.ne.s32.totalorder %s161, %s175
    %p177 = scmp.eq.s32.totalorder %s41, 0
    %p178 = por %p176, %p177
    %s180 = sadd.s32 %s179, 1
    %p183 = scmp.eq.s32.totalorder %s35, 1
    %p184 = scmp.ne.s32.totalorder %s179, %s181
    %p185 = scmp.eq.s32.totalorder %s35, 0
    %p186 = por %p184, %p185
    %p187 = scmp.ne.s32.totalorder %s179, %s181
    %p188 = scmp.eq.s32.totalorder %s40, 1
    %p189 = por %p187, %p188
    %p190 = scmp.ne.s32.totalorder %s181, %s182
    %p191 = scmp.eq.s32.totalorder %s40, 0
    %p192 = por %p190, %p191
    %p193 = scmp.ne.s32.totalorder %s181, %s182
    %p194 = scmp.eq.s32.totalorder %s41, 1
    %p195 = por %p193, %p194
    %p197 = scmp.ne.s32.totalorder %s182, %s196
    %p198 = scmp.eq.s32.totalorder %s41, 0
    %p199 = por %p197, %p198
    %s201 = sadd.s32 %s200, 1
    %p204 = scmp.eq.s32.totalorder %s35, 1
    %p205 = scmp.ne.s32.totalorder %s200, %s202
    %p206 = scmp.eq.s32.totalorder %s35, 0
    %p207 = por %p205, %p206
    %p208 = scmp.ne.s32.totalorder %s200, %s202
    %p209 = scmp.eq.s32.totalorder %s40, 1
    %p210 = por %p208, %p209
    %p211 = scmp.ne.s32.totalorder %s202, %s203
    %p212 = scmp.eq.s32.totalorder %s40, 0
    %p213 = por %p211, %p212
    %p214 = scmp.ne.s32.totalorder %s202, %s203
    %p215 = scmp.eq.s32.totalorder %s41, 1
    %p216 = por %p214, %p215
    %p218 = scmp.ne.s32.totalorder %s203, %s217
    %p219 = scmp.eq.s32.totalorder %s41, 0
    %p220 = por %p218, %p219
    %s222 = sadd.s32 %s221, 1
    %p225 = scmp.eq.s32.totalorder %s35, 1
    %p226 = scmp.ne.s32.totalorder %s221, %s223
    %p227 = scmp.eq.s32.totalorder %s35, 0
    %p228 = por %p226, %p227
    %p229 = scmp.ne.s32.totalorder %s221, %s223
    %p230 = scmp.eq.s32.totalorder %s40, 1
    %p231 = por %p229, %p230
    %p232 = scmp.ne.s32.totalorder %s223, %s224
    %p233 = scmp.eq.s32.totalorder %s40, 0
    %p234 = por %p232, %p233
    %p235 = scmp.ne.s32.totalorder %s223, %s224
    %p236 = scmp.eq.s32.totalorder %s41, 1
    %p237 = por %p235, %p236
    %p239 = scmp.ne.s32.totalorder %s224, %s238
    %p240 = scmp.eq.s32.totalorder %s41, 0
    %p241 = por %p239, %p240
    %s243 = sadd.s32 %s242, 1
    %p246 = scmp.eq.s32.totalorder %s35, 1
    %p247 = scmp.ne.s32.totalorder %s242, %s244
    %p248 = scmp.eq.s32.totalorder %s35, 0
    %p249 = por %p247, %p248
    %p250 = scmp.ne.s32.totalorder %s242, %s244
    %p251 = scmp.eq.s32.totalorder %s40, 1
    %p252 = por %p250, %p251
    %p253 = scmp.ne.s32.totalorder %s244, %s245
    %p254 = scmp.eq.s32.totalorder %s40, 0
    %p255 = por %p253, %p254
    %p256 = scmp.ne.s32.totalorder %s244, %s245
    %p257 = scmp.eq.s32.totalorder %s41, 1
    %p258 = por %p256, %p257
    %p260 = scmp.ne.s32.totalorder %s245, %s259
    %p261 = scmp.eq.s32.totalorder %s41, 0
    %p262 = por %p260, %p261
    %s264 = sadd.s32 %s263, 1
    %p267 = scmp.eq.s32.totalorder %s35, 1
    %p268 = scmp.ne.s32.totalorder %s263, %s265
    %p269 = scmp.eq.s32.totalorder %s35, 0
    %p270 = por %p268, %p269
    %p271 = scmp.ne.s32.totalorder %s263, %s265
    %p272 = scmp.eq.s32.totalorder %s40, 1
    %p273 = por %p271, %p272
    %p274 = scmp.ne.s32.totalorder %s265, %s266
    %p275 = scmp.eq.s32.totalorder %s40, 0
    %p276 = por %p274, %p275
    %p277 = scmp.ne.s32.totalorder %s265, %s266
    %p278 = scmp.eq.s32.totalorder %s41, 1
    %p279 = por %p277, %p278
    %p281 = scmp.ne.s32.totalorder %s266, %s280
    %p282 = scmp.eq.s32.totalorder %s41, 0
    %p283 = por %p281, %p282
    %s285 = sadd.s32 %s284, 1
    %p288 = scmp.eq.s32.totalorder %s35, 1
    %p289 = scmp.ne.s32.totalorder %s284, %s286
    %p290 = scmp.eq.s32.totalorder %s35, 0
    %p291 = por %p289, %p290
    %p292 = scmp.ne.s32.totalorder %s284, %s286
    %p293 = scmp.eq.s32.totalorder %s40, 1
    %p294 = por %p292, %p293
    %p295 = scmp.ne.s32.totalorder %s286, %s287
    %p296 = scmp.eq.s32.totalorder %s40, 0
    %p297 = por %p295, %p296
    %p298 = scmp.ne.s32.totalorder %s286, %s287
    %p299 = scmp.eq.s32.totalorder %s41, 1
    %p300 = por %p298, %p299
    %p302 = scmp.ne.s32.totalorder %s287, %s301
    %p303 = scmp.eq.s32.totalorder %s41, 0
    %p304 = por %p302, %p303
    %s306 = sadd.s32 %s305, 1
    %p309 = scmp.eq.s32.totalorder %s35, 1
    %p310 = scmp.ne.s32.totalorder %s305, %s307
    %p311 = scmp.eq.s32.totalorder %s35, 0
    %p312 = por %p310, %p311
    %p313 = scmp.ne.s32.totalorder %s305, %s307
    %p314 = scmp.eq.s32.totalorder %s40, 1
    %p315 = por %p313, %p314
    %p316 = scmp.ne.s32.totalorder %s307, %s308
    %p317 = scmp.eq.s32.totalorder %s40, 0
    %p318 = por %p316, %p317
    %p319 = scmp.ne.s32.totalorder %s307, %s308
    %p320 = scmp.eq.s32.totalorder %s41, 1
    %p321 = por %p319, %p320
    %p323 = scmp.ne.s32.totalorder %s308, %s322
    %p324 = scmp.eq.s32.totalorder %s41, 0
    %p325 = por %p323, %p324
    %s327 = sadd.s32 %s326, 1
    %p330 = scmp.eq.s32.totalorder %s35, 1
    %p331 = scmp.ne.s32.totalorder %s326, %s328
    %p332 = scmp.eq.s32.totalorder %s35, 0
    %p333 = por %p331, %p332
    %p334 = scmp.ne.s32.totalorder %s326, %s328
    %p335 = scmp.eq.s32.totalorder %s40, 1
    %p336 = por %p334, %p335
    %p337 = scmp.ne.s32.totalorder %s328, %s329
    %p338 = scmp.eq.s32.totalorder %s40, 0
    %p339 = por %p337, %p338
    %p340 = scmp.ne.s32.totalorder %s328, %s329
    %p341 = scmp.eq.s32.totalorder %s41, 1
    %p342 = por %p340, %p341
    %p344 = scmp.ne.s32.totalorder %s329, %s343
    %p345 = scmp.eq.s32.totalorder %s41, 0
    %p346 = por %p344, %p345
    %s348 = sadd.s32 %s347, 1
    %p351 = scmp.eq.s32.totalorder %s35, 1
    %p352 = scmp.ne.s32.totalorder %s347, %s349
    %p353 = scmp.eq.s32.totalorder %s35, 0
    %p354 = por %p352, %p353
    %p355 = scmp.ne.s32.totalorder %s347, %s349
    %p356 = scmp.eq.s32.totalorder %s40, 1
    %p357 = por %p355, %p356
    %p358 = scmp.ne.s32.totalorder %s349, %s350
    %p359 = scmp.eq.s32.totalorder %s40, 0
    %p360 = por %p358, %p359
    %p361 = scmp.ne.s32.totalorder %s349, %s350
    %p362 = scmp.eq.s32.totalorder %s41, 1
    %p363 = por %p361, %p362
    %p365 = scmp.ne.s32.totalorder %s350, %s364
    %p366 = scmp.eq.s32.totalorder %s41, 0
    %p367 = por %p365, %p366
    %s369 = sadd.s32 %s368, 1
    %p372 = scmp.eq.s32.totalorder %s35, 1
    %p373 = scmp.ne.s32.totalorder %s368, %s370
    %p374 = scmp.eq.s32.totalorder %s35, 0
    %p375 = por %p373, %p374
    %p376 = scmp.ne.s32.totalorder %s368, %s370
    %p377 = scmp.eq.s32.totalorder %s40, 1
    %p378 = por %p376, %p377
    %p379 = scmp.ne.s32.totalorder %s370, %s371
    %p380 = scmp.eq.s32.totalorder %s40, 0
    %p381 = por %p379, %p380
    %p382 = scmp.ne.s32.totalorder %s370, %s371
    %p383 = scmp.eq.s32.totalorder %s41, 1
    %p384 = por %p382, %p383
    %p386 = scmp.ne.s32.totalorder %s371, %s385
    %p387 = scmp.eq.s32.totalorder %s41, 0
    %p388 = por %p386, %p387
    %s390 = sadd.s32 %s389, 1
    %p393 = scmp.eq.s32.totalorder %s35, 1
    %p394 = scmp.ne.s32.totalorder %s389, %s391
    %p395 = scmp.eq.s32.totalorder %s35, 0
    %p396 = por %p394, %p395
    %p397 = scmp.ne.s32.totalorder %s389, %s391
    %p398 = scmp.eq.s32.totalorder %s40, 1
    %p399 = por %p397, %p398
    %p400 = scmp.ne.s32.totalorder %s391, %s392
    %p401 = scmp.eq.s32.totalorder %s40, 0
    %p402 = por %p400, %p401
    %p403 = scmp.ne.s32.totalorder %s391, %s392
    %p404 = scmp.eq.s32.totalorder %s41, 1
    %p405 = por %p403, %p404
    %p407 = scmp.ne.s32.totalorder %s392, %s406
    %p408 = scmp.eq.s32.totalorder %s41, 0
    %p409 = por %p407, %p408
    %s411 = sadd.s32 %s410, 1
    %p414 = scmp.eq.s32.totalorder %s35, 1
    %p415 = scmp.ne.s32.totalorder %s410, %s412
    %p416 = scmp.eq.s32.totalorder %s35, 0
    %p417 = por %p415, %p416
    %p418 = scmp.ne.s32.totalorder %s410, %s412
    %p419 = scmp.eq.s32.totalorder %s40, 1
    %p420 = por %p418, %p419
    %p421 = scmp.ne.s32.totalorder %s412, %s413
    %p422 = scmp.eq.s32.totalorder %s40, 0
    %p423 = por %p421, %p422
    %p424 = scmp.ne.s32.totalorder %s412, %s413
    %p425 = scmp.eq.s32.totalorder %s41, 1
    %p426 = por %p424, %p425
    %p428 = scmp.ne.s32.totalorder %s413, %s427
    %p429 = scmp.eq.s32.totalorder %s41, 0
    %p430 = por %p428, %p429
    %s432 = sadd.s32 %s431, 1
    %p435 = scmp.eq.s32.totalorder %s35, 1
    %p436 = scmp.ne.s32.totalorder %s431, %s433
    %p437 = scmp.eq.s32.totalorder %s35, 0
    %p438 = por %p436, %p437
    %p439 = scmp.ne.s32.totalorder %s431, %s433
    %p440 = scmp.eq.s32.totalorder %s40, 1
    %p441 = por %p439, %p440
    %p442 = scmp.ne.s32.totalorder %s433, %s434
    %p443 = scmp.eq.s32.totalorder %s40, 0
    %p444 = por %p442, %p443
    %p445 = scmp.ne.s32.totalorder %s433, %s434
    %p446 = scmp.eq.s32.totalorder %s41, 1
    %p447 = por %p445, %p446
    %p449 = scmp.ne.s32.totalorder %s434, %s448
    %p450 = scmp.eq.s32.totalorder %s41, 0
    %p451 = por %p449, %p450
    %s453 = sadd.s32 %s452, 1
    %p456 = scmp.eq.s32.totalorder %s35, 1
    %p457 = scmp.ne.s32.totalorder %s452, %s454
    %p458 = scmp.eq.s32.totalorder %s35, 0
    %p459 = por %p457, %p458
    %p460 = scmp.ne.s32.totalorder %s452, %s454
    %p461 = scmp.eq.s32.totalorder %s40, 1
    %p462 = por %p460, %p461
    %p463 = scmp.ne.s32.totalorder %s454, %s455
    %p464 = scmp.eq.s32.totalorder %s40, 0
    %p465 = por %p463, %p464
    %p466 = scmp.ne.s32.totalorder %s454, %s455
    %p467 = scmp.eq.s32.totalorder %s41, 1
    %p468 = por %p466, %p467
    %p470 = scmp.ne.s32.totalorder %s455, %s469
    %p471 = scmp.eq.s32.totalorder %s41, 0
    %p472 = por %p470, %p471
    %s474 = sadd.s32 %s473, 1
    %p477 = scmp.eq.s32.totalorder %s35, 1
    %p478 = scmp.ne.s32.totalorder %s473, %s475
    %p479 = scmp.eq.s32.totalorder %s35, 0
    %p480 = por %p478, %p479
    %p481 = scmp.ne.s32.totalorder %s473, %s475
    %p482 = scmp.eq.s32.totalorder %s40, 1
    %p483 = por %p481, %p482
    %p484 = scmp.ne.s32.totalorder %s475, %s476
    %p485 = scmp.eq.s32.totalorder %s40, 0
    %p486 = por %p484, %p485
    %p487 = scmp.ne.s32.totalorder %s475, %s476
    %p488 = scmp.eq.s32.totalorder %s41, 1
    %p489 = por %p487, %p488
    %p491 = scmp.ne.s32.totalorder %s476, %s490
    %p492 = scmp.eq.s32.totalorder %s41, 0
    %p493 = por %p491, %p492
    %s495 = sadd.s32 %s494, 1
    %p498 = scmp.eq.s32.totalorder %s35, 1
    %p499 = scmp.ne.s32.totalorder %s494, %s496
    %p500 = scmp.eq.s32.totalorder %s35, 0
    %p501 = por %p499, %p500
    %p502 = scmp.ne.s32.totalorder %s494, %s496
    %p503 = scmp.eq.s32.totalorder %s40, 1
    %p504 = por %p502, %p503
    %p505 = scmp.ne.s32.totalorder %s496, %s497
    %p506 = scmp.eq.s32.totalorder %s40, 0
    %p507 = por %p505, %p506
    %p508 = scmp.ne.s32.totalorder %s496, %s497
    %p509 = scmp.eq.s32.totalorder %s41, 1
    %p510 = por %p508, %p509
    %p512 = scmp.ne.s32.totalorder %s497, %s511
    %p513 = scmp.eq.s32.totalorder %s41, 0
    %p514 = por %p512, %p513
    %s515 = ssub.s32 %s35, %s42
    %p516 = scmp.eq.s32.totalorder %s515, 0
    %s518 = sadd.s32 %s517, 1
    %s519 = scalar_select %p516, %s517, %s518
    %p522 = pneg %p516
    %p523 = scmp.eq.s32.totalorder %s35, 1
    %p524 = por %p522, %p523
    %p525 = scmp.ne.s32.totalorder %s517, %s520
    %p526 = scmp.eq.s32.totalorder %s35, 0
    %p527 = por %p525, %p526
    %p528 = scmp.ne.s32.totalorder %s517, %s520
    %p529 = scmp.eq.s32.totalorder %s40, 1
    %p530 = por %p528, %p529
    %p531 = scmp.ne.s32.totalorder %s520, %s521
    %p532 = scmp.eq.s32.totalorder %s40, 0
    %p533 = por %p531, %p532
    %p534 = scmp.ne.s32.totalorder %s520, %s521
    %p535 = scmp.eq.s32.totalorder %s41, 1
    %p536 = por %p534, %p535
    %p538 = scmp.ne.s32.totalorder %s521, %s537
    %p539 = scmp.eq.s32.totalorder %s41, 0
    %p540 = por %p538, %p539
    %p541 = scmp.le.s32.totalorder 1, %s35
    %p542 = scmp.lt.s32.totalorder %s35, 3
    %p543 = pnand %p541, %p542
    %p544 = pneg %p543
    // Predicated region
    $region9: #{transformer_forward.6} parent=5 // pred_check
      _
    $region10: #{transformer_forward.6} parent=5 // pred_check_branch
      %546 = sbr.rel (%p543) target = $region12
    $region11: #{transformer_forward.6} parent=5 // pred_region
      %s547 = ssub.s32 %s35, 1
      // Predicated region
      $region13: #{transformer_forward.6} parent=11 // pred_check
        %p548 = pneg %p108
      $region14: #{transformer_forward.6} parent=11 // pred_check_branch
        %550 = sbr.rel (%p548) target = $region16
      $region15: #{transformer_forward.6} parent=11 // pred_region
        _
      $region16: #{transformer_forward.6} parent=11 // pred_fallthru
        _
      // Predicated region
      $region17: #{transformer_forward.6} parent=11 // pred_check
        %p551 = pneg %p129
      $region18: #{transformer_forward.6} parent=11 // pred_check_branch
        %553 = sbr.rel (%p551) target = $region20
      $region19: #{transformer_forward.6} parent=11 // pred_region
        _
      $region20: #{transformer_forward.6} parent=11 // pred_fallthru
        _
      // Predicated region
      $region21: #{transformer_forward.6} parent=11 // pred_check
        %p554 = pneg %p150
      $region22: #{transformer_forward.6} parent=11 // pred_check_branch
        %556 = sbr.rel (%p554) target = $region24
      $region23: #{transformer_forward.6} parent=11 // pred_region
        _
      $region24: #{transformer_forward.6} parent=11 // pred_fallthru
        _
      // Predicated region
      $region25: #{transformer_forward.6} parent=11 // pred_check
        %p557 = pneg %p171
      $region26: #{transformer_forward.6} parent=11 // pred_check_branch
        %559 = sbr.rel (%p557) target = $region28
      $region27: #{transformer_forward.6} parent=11 // pred_region
        _
      $region28: #{transformer_forward.6} parent=11 // pred_fallthru
        _
      // Predicated region
      $region29: #{transformer_forward.6} parent=11 // pred_check
        %p560 = pneg %p192
      $region30: #{transformer_forward.6} parent=11 // pred_check_branch
        %562 = sbr.rel (%p560) target = $region32
      $region31: #{transformer_forward.6} parent=11 // pred_region
        _
      $region32: #{transformer_forward.6} parent=11 // pred_fallthru
        _
      // Predicated region
      $region33: #{transformer_forward.6} parent=11 // pred_check
        %p563 = pneg %p213
      $region34: #{transformer_forward.6} parent=11 // pred_check_branch
        %565 = sbr.rel (%p563) target = $region36
      $region35: #{transformer_forward.6} parent=11 // pred_region
        _
      $region36: #{transformer_forward.6} parent=11 // pred_fallthru
        _
      // Predicated region
      $region37: #{transformer_forward.6} parent=11 // pred_check
        %p566 = pneg %p234
      $region38: #{transformer_forward.6} parent=11 // pred_check_branch
        %568 = sbr.rel (%p566) target = $region40
      $region39: #{transformer_forward.6} parent=11 // pred_region
        _
      $region40: #{transformer_forward.6} parent=11 // pred_fallthru
        _
      // Predicated region
      $region41: #{transformer_forward.6} parent=11 // pred_check
        %p569 = pneg %p255
      $region42: #{transformer_forward.6} parent=11 // pred_check_branch
        %571 = sbr.rel (%p569) target = $region44
      $region43: #{transformer_forward.6} parent=11 // pred_region
        _
      $region44: #{transformer_forward.6} parent=11 // pred_fallthru
        _
      // Predicated region
      $region45: #{transformer_forward.6} parent=11 // pred_check
        %p572 = pneg %p276
      $region46: #{transformer_forward.6} parent=11 // pred_check_branch
        %574 = sbr.rel (%p572) target = $region48
      $region47: #{transformer_forward.6} parent=11 // pred_region
        _
      $region48: #{transformer_forward.6} parent=11 // pred_fallthru
        _
      // Predicated region
      $region49: #{transformer_forward.6} parent=11 // pred_check
        %p575 = pneg %p297
      $region50: #{transformer_forward.6} parent=11 // pred_check_branch
        %577 = sbr.rel (%p575) target = $region52
      $region51: #{transformer_forward.6} parent=11 // pred_region
        _
      $region52: #{transformer_forward.6} parent=11 // pred_fallthru
        _
      // Predicated region
      $region53: #{transformer_forward.6} parent=11 // pred_check
        %p578 = pneg %p318
      $region54: #{transformer_forward.6} parent=11 // pred_check_branch
        %580 = sbr.rel (%p578) target = $region56
      $region55: #{transformer_forward.6} parent=11 // pred_region
        _
      $region56: #{transformer_forward.6} parent=11 // pred_fallthru
        _
      // Predicated region
      $region57: #{transformer_forward.6} parent=11 // pred_check
        %p581 = pneg %p339
      $region58: #{transformer_forward.6} parent=11 // pred_check_branch
        %583 = sbr.rel (%p581) target = $region60
      $region59: #{transformer_forward.6} parent=11 // pred_region
        _
      $region60: #{transformer_forward.6} parent=11 // pred_fallthru
        _
      // Predicated region
      $region61: #{transformer_forward.6} parent=11 // pred_check
        %p584 = pneg %p360
      $region62: #{transformer_forward.6} parent=11 // pred_check_branch
        %586 = sbr.rel (%p584) target = $region64
      $region63: #{transformer_forward.6} parent=11 // pred_region
        _
      $region64: #{transformer_forward.6} parent=11 // pred_fallthru
        _
      // Predicated region
      $region65: #{transformer_forward.6} parent=11 // pred_check
        %p587 = pneg %p381
      $region66: #{transformer_forward.6} parent=11 // pred_check_branch
        %589 = sbr.rel (%p587) target = $region68
      $region67: #{transformer_forward.6} parent=11 // pred_region
        _
      $region68: #{transformer_forward.6} parent=11 // pred_fallthru
        _
      // Predicated region
      $region69: #{transformer_forward.6} parent=11 // pred_check
        %p590 = pneg %p402
      $region70: #{transformer_forward.6} parent=11 // pred_check_branch
        %592 = sbr.rel (%p590) target = $region72
      $region71: #{transformer_forward.6} parent=11 // pred_region
        _
      $region72: #{transformer_forward.6} parent=11 // pred_fallthru
        _
      // Predicated region
      $region73: #{transformer_forward.6} parent=11 // pred_check
        %p593 = pneg %p423
      $region74: #{transformer_forward.6} parent=11 // pred_check_branch
        %595 = sbr.rel (%p593) target = $region76
      $region75: #{transformer_forward.6} parent=11 // pred_region
        _
      $region76: #{transformer_forward.6} parent=11 // pred_fallthru
        _
      // Predicated region
      $region77: #{transformer_forward.6} parent=11 // pred_check
        %p596 = pneg %p444
      $region78: #{transformer_forward.6} parent=11 // pred_check_branch
        %598 = sbr.rel (%p596) target = $region80
      $region79: #{transformer_forward.6} parent=11 // pred_region
        _
      $region80: #{transformer_forward.6} parent=11 // pred_fallthru
        _
      // Predicated region
      $region81: #{transformer_forward.6} parent=11 // pred_check
        %p599 = pneg %p465
      $region82: #{transformer_forward.6} parent=11 // pred_check_branch
        %601 = sbr.rel (%p599) target = $region84
      $region83: #{transformer_forward.6} parent=11 // pred_region
        _
      $region84: #{transformer_forward.6} parent=11 // pred_fallthru
        _
      // Predicated region
      $region85: #{transformer_forward.6} parent=11 // pred_check
        %p602 = pneg %p486
      $region86: #{transformer_forward.6} parent=11 // pred_check_branch
        %604 = sbr.rel (%p602) target = $region88
      $region87: #{transformer_forward.6} parent=11 // pred_region
        _
      $region88: #{transformer_forward.6} parent=11 // pred_fallthru
        _
      // Predicated region
      $region89: #{transformer_forward.6} parent=11 // pred_check
        %p605 = pneg %p507
      $region90: #{transformer_forward.6} parent=11 // pred_check_branch
        %607 = sbr.rel (%p605) target = $region92
      $region91: #{transformer_forward.6} parent=11 // pred_region
        _
      $region92: #{transformer_forward.6} parent=11 // pred_fallthru
        _
    $region12: #{transformer_forward.6} parent=5 // pred_fallthru
      _
    %p608 = scmp.lt.s32.totalorder %s35, 2
    // Predicated region
    $region93: #{transformer_forward.6} parent=5 // pred_check
      %p609 = pneg %p608
    $region94: #{transformer_forward.6} parent=5 // pred_check_branch
      %611 = sbr.rel (%p609) target = $region96
    $region95: #{transformer_forward.6} parent=5 // pred_region
      // Predicated region
      $region97: #{transformer_forward.6} parent=95 // pred_check
        %p612 = pneg %p55
      $region98: #{transformer_forward.6} parent=95 // pred_check_branch
        %614 = sbr.rel (%p612) target = $region100
      $region99: #{transformer_forward.6} parent=95 // pred_region
        %p615 = scmp.lt.s32.totalorder %s35, 1
        %s616 = scalar_select %p615, %s35, 1
        %s617 = smul.addr %s616, 2
        %s618 = smul.addr %s617, 8
        %s619 = scalar_lea.vmem %s1, %s618
      $region100: #{transformer_forward.6} parent=95 // pred_fallthru
        _
      // Predicated region
      $region101: #{transformer_forward.6} parent=95 // pred_check
        %p620 = pneg %p81
      $region102: #{transformer_forward.6} parent=95 // pred_check_branch
        %622 = sbr.rel (%p620) target = $region104
      $region103: #{transformer_forward.6} parent=95 // pred_region
        %p623 = scmp.lt.s32.totalorder %s35, 1
        %s624 = scalar_select %p623, %s35, 1
        %s625 = smul.addr %s624, 2
        %s626 = smul.addr %s625, 8
        %s627 = scalar_lea.vmem %s2, %s626
      $region104: #{transformer_forward.6} parent=95 // pred_fallthru
        _
    $region96: #{transformer_forward.6} parent=5 // pred_fallthru
      _
    %p628 = scmp.le.s32.totalorder 1, %s35
    %p629 = scmp.lt.s32.totalorder %s35, 3
    %p630 = pnand %p628, %p629
    %p631 = pneg %p630
    // Predicated region
    $region105: #{transformer_forward.6} parent=5 // pred_check
      _
    $region106: #{transformer_forward.6} parent=5 // pred_check_branch
      %633 = sbr.rel (%p630) target = $region108
    $region107: #{transformer_forward.6} parent=5 // pred_region
      %s634 = ssub.s32 %s35, 1
      %p635 = scmp.lt.s32.totalorder %s40, 1
      %s636 = scalar_select %p635, %s40, 1
      %s637 = smul.addr %s636, 2
      %s638 = smul.addr %s637, 8
      %s639 = scalar_lea.vmem %s1, %s638
      %p640 = pneg %p61
      %p641 = pneg %p58
      %p642 = scmp.lt.s32.totalorder %s40, 1
      %s643 = scalar_select %p642, %s40, 1
      %s644 = smul.addr %s643, 2
      %s645 = smul.addr %s644, 8
      %s646 = scalar_lea.vmem %s2, %s645
      %p647 = pneg %p87
      %p648 = pneg %p84
      %p649 = pneg %p108
      %p650 = pneg %p105
      %p651 = pneg %p129
      %p652 = pneg %p126
      %p653 = pneg %p150
      %p654 = pneg %p147
      %p655 = pneg %p171
      %p656 = pneg %p168
      %p657 = pneg %p192
      %p658 = pneg %p189
      %p659 = pneg %p213
      %p660 = pneg %p210
      %p661 = pneg %p234
      %p662 = pneg %p231
      %p663 = pneg %p255
      %p664 = pneg %p252
      %p665 = pneg %p276
      %p666 = pneg %p273
      %p667 = pneg %p297
      %p668 = pneg %p294
      %p669 = pneg %p318
      %p670 = pneg %p315
      %p671 = pneg %p339
      %p672 = pneg %p336
      %p673 = pneg %p360
      %p674 = pneg %p357
      %p675 = pneg %p381
      %p676 = pneg %p378
      %p677 = pneg %p402
      %p678 = pneg %p399
      %p679 = pneg %p423
      %p680 = pneg %p420
      %p681 = pneg %p444
      %p682 = pneg %p441
      %p683 = pneg %p465
      %p684 = pneg %p462
      %p685 = pneg %p486
      %p686 = pneg %p483
      %p687 = pneg %p507
      %p688 = pneg %p504
      %p689 = pneg %p533
      %p690 = pneg %p530
      %p691 = scmp.lt.s32.totalorder %s40, 1
      %s692 = scalar_select %p691, %s40, 1
      %s693 = smul.addr %s692, 2
      %s694 = smul.addr %s693, 8
      %s695 = scalar_lea.vmem %s23, %s694
      %p696 = scmp.lt.s32.totalorder %s40, 1
      %s697 = scalar_select %p696, %s40, 1
      %s698 = smul.addr %s697, 2
      %s699 = smul.addr %s698, 8
      %s700 = scalar_lea.vmem %s1, %s699
      %p701 = scmp.lt.s32.totalorder %s40, 1
      %s702 = scalar_select %p701, %s40, 1
      %s703 = smul.addr %s702, 2
      %s704 = smul.addr %s703, 8
      %s705 = scalar_lea.vmem %s2, %s704
      %p706 = scmp.lt.s32.totalorder %s40, 1
      %s707 = scalar_select %p706, %s40, 1
      %s708 = smul.addr %s707, 2
      %s709 = smul.addr %s708, 8
      %s710 = scalar_lea.vmem %s23, %s709
      %s711 = sld [smem:[#allocation3 + %s40]]
      %v712 = vld [vmem:[%s700] sm:$0xff]
      %v713 = vld [vmem:[%s700 + $0x8] sm:$0x1]
      %v714 = vld [vmem:[%s705] sm:$0xff]
      %v715 = vld [vmem:[%s705 + $0x8] sm:$0xff]
      %v716 = vlaneseq
      %v717 = vshrl.u32 %v716, 7
      %v718 = vadd.s32 %v717, 8
      %v719 = vlaneseq
      %v720 = vand.u32 %v719, 127
      %vm721 = vcmp.gt.s32.totalorder %v720, %v717
      %vm722 = vcmp.gt.s32.totalorder %v720, %v718
      %v723 = vsel %vm721, -1e+09, 0.0
      %v724 = vsel %vm722, -1e+09, 0.0
      %v725 = vstv %s711
      %vm726 = vcmp.ge.s32.totalorder %v720, %v725
      %v727 = vsel %vm726, -1e+09, 0.0
      %v728 = vld [vmem:[%s3] sm:$0xff]
      %v729 = vld [vmem:[%s3 + $0x8] sm:$0xff]
      %v730 = vld [vmem:[%s3 + $0x10] sm:$0xff]
      %v731 = vld [vmem:[%s3 + $0x18] sm:$0xff]
      %v732 = vld [vmem:[%s3 + $0x20] sm:$0xff]
      %v733 = vld [vmem:[%s3 + $0x28] sm:$0xff]
      %v734 = vld [vmem:[%s3 + $0x30] sm:$0xff]
      %v735 = vld [vmem:[%s3 + $0x38] sm:$0xff]
      %v736 = vld [vmem:[%s3 + $0x40] sm:$0xff]
      %v737 = vld [vmem:[%s3 + $0x48] sm:$0xff]
      %v738 = vld [vmem:[%s3 + $0x50] sm:$0xff]
      %v739 = vld [vmem:[%s3 + $0x58] sm:$0xff]
      %v740 = vld [vmem:[%s3 + $0x60] sm:$0xff]
      %v741 = vld [vmem:[%s3 + $0x68] sm:$0xff]
      %v742 = vld [vmem:[%s3 + $0x70] sm:$0xff]
      %v743 = vld [vmem:[%s3 + $0x78] sm:$0xff]
      %v744 = vld [vmem:[%s4] sm:$0x1]
      %v746 = vlaneseq
      %v747 = vshrl.u32 %v746, 7
      %v748 = vsub.s32 0, %v747
      %v749 = vrot.slane %v744, %v748
      %751 = vmatprep.subr.mxu0 0.0
      %752 = vmatpush1.msra.mxu0 %v743
      %753 = vmatprep.subr.mxu0 0.0
      %754 = vmatpush1.msra.mxu0 %v742
      %755 = vmatprep.subr.mxu0 0.0
      %756 = vmatpush1.msra.mxu0 %v741
      %757 = vmatprep.subr.mxu0 0.0
      %758 = vmatpush1.msra.mxu0 %v740
      %759 = vmatprep.subr.mxu0 0.0
      %760 = vmatpush1.msra.mxu0 %v739
      %761 = vmatprep.subr.mxu0 0.0
      %762 = vmatpush1.msra.mxu0 %v738
      %763 = vmatprep.subr.mxu0 0.0
      %764 = vmatpush1.msra.mxu0 %v737
      %765 = vmatprep.subr.mxu0 0.0
      %766 = vmatpush1.msra.mxu0 %v736
      %767 = vmatprep.subr.mxu0 0.0
      %768 = vmatpush1.msra.mxu0 %v735
      %769 = vmatprep.subr.mxu0 0.0
      %770 = vmatpush1.msra.mxu0 %v734
      %771 = vmatprep.subr.mxu0 0.0
      %772 = vmatpush1.msra.mxu0 %v733
      %773 = vmatprep.subr.mxu0 0.0
      %774 = vmatpush1.msra.mxu0 %v732
      %775 = vmatprep.subr.mxu0 0.0
      %776 = vmatpush1.msra.mxu0 %v731
      %777 = vmatprep.subr.mxu0 0.0
      %778 = vmatpush1.msra.mxu0 %v730
      %779 = vmatprep.subr.mxu0 0.0
      %780 = vmatpush1.msra.mxu0 %v729
      %781 = vmatprep.subr.mxu0 0.0
      %782 = vmatpush1.msra.mxu0 %v728
      %783 = vmatprep.subr.mxu0 0.0
      %784 = vmatpush2.msra.mxu0 0.0
      %785 = vmatprep.subr.mxu0 0.0
      %786 = vmatpush2.msra.mxu0 0.0
      %787 = vmatprep.subr.mxu0 0.0
      %788 = vmatpush2.msra.mxu0 0.0
      %789 = vmatprep.subr.mxu0 0.0
      %790 = vmatpush2.msra.mxu0 0.0
      %791 = vmatprep.subr.mxu0 0.0
      %792 = vmatpush2.msra.mxu0 0.0
      %793 = vmatprep.subr.mxu0 0.0
      %794 = vmatpush2.msra.mxu0 0.0
      %795 = vmatprep.subr.mxu0 0.0
      %796 = vmatpush2.msra.mxu0 0.0
      %797 = vmatprep.subr.mxu0 0.0
      %798 = vmatpush2.msra.mxu0 0.0
      %799 = vmatprep.subr.mxu0 0.0
      %800 = vmatpush2.msra.mxu0 0.0
      %801 = vmatprep.subr.mxu0 0.0
      %802 = vmatpush2.msra.mxu0 0.0
      %803 = vmatprep.subr.mxu0 0.0
      %804 = vmatpush2.msra.mxu0 0.0
      %805 = vmatprep.subr.mxu0 0.0
      %806 = vmatpush2.msra.mxu0 0.0
      %807 = vmatprep.subr.mxu0 0.0
      %808 = vmatpush2.msra.mxu0 0.0
      %809 = vmatprep.subr.mxu0 0.0
      %810 = vmatpush2.msra.mxu0 0.0
      %811 = vmatprep.subr.mxu0 0.0
      %812 = vmatpush2.msra.mxu0 0.0
      %813 = vmatprep.subr.mxu0 0.0
      %814 = vmatpush2.msra.mxu0 0.0
      %815 = vmatprep.mubr.f32.mxu0 0.0
      %816 = vmatmul.mubr.f32.gmra.mxu0 %v712
      %v817 = vpop.f32.mrf.mxu0
      %v818 = vadd.f32 %v749, %v817
      %v819 = vpop.f32.mrf.mxu0
      %820 = vmatprep.mubr.f32.mxu0 0.0
      %821 = vmatmul.mubr.f32.gmra.mxu0 %v713
      %v822 = vpop.f32.mrf.mxu0
      %v823 = vadd.f32 %v749, %v822
      %v824 = vpop.f32.mrf.mxu0
      %825 = vdwg.mxu0
      %v826 = vld [vmem:[%s5] sm:$0xff]
      %v827 = vld [vmem:[%s5 + $0x8] sm:$0xff]
      %v828 = vld [vmem:[%s5 + $0x10] sm:$0xff]
      %v829 = vld [vmem:[%s5 + $0x18] sm:$0xff]
      %v830 = vld [vmem:[%s6] sm:$0x1]
      %v831 = vld [vmem:[%s7] sm:$0x1]
      %v832 = vld [vmem:[%s8] sm:$0x1]
      %835 = vrot.lane.b32.xlu0 %v818, 96
      %v836 = vpop.permute.xlu0 %835
      %837 = vrot.lane.b32.xlu0 %v823, 96
      %v838 = vpop.permute.xlu0 %837
      %vm839 = vcmask 64512
      %v840 = vsel %vm839, %v818, 0
      %v842 = vsel %vm839, %v823, 0
      %v844 = vsel %vm839, %v836, 0
      %v846 = vsel %vm839, %v838, 0
      %848 = vmatprep.subr.mxu0 0.0
      %849 = vmatpush1.xpose.msra.mxu0 0.0
      %850 = vmatprep.subr.mxu0 0.0
      %851 = vmatpush1.xpose.msra.mxu0 0.0
      %852 = vmatprep.subr.mxu0 0.0
      %853 = vmatpush1.xpose.msra.mxu0 0.0
      %854 = vmatprep.subr.mxu0 0.0
      %855 = vmatpush1.xpose.msra.mxu0 0.0
      %856 = vmatprep.subr.mxu0 0.0
      %857 = vmatpush1.xpose.msra.mxu0 0.0
      %858 = vmatprep.subr.mxu0 0.0
      %859 = vmatpush1.xpose.msra.mxu0 0.0
      %860 = vmatprep.subr.mxu0 0.0
      %861 = vmatpush1.xpose.msra.mxu0 0.0
      %862 = vmatprep.subr.mxu0 0.0
      %863 = vmatpush1.xpose.msra.mxu0 0.0
      %864 = vmatprep.subr.mxu0 0.0
      %865 = vmatpush1.xpose.msra.mxu0 0.0
      %866 = vmatprep.subr.mxu0 0.0
      %867 = vmatpush1.xpose.msra.mxu0 0.0
      %868 = vmatprep.subr.mxu0 0.0
      %869 = vmatpush1.xpose.msra.mxu0 0.0
      %870 = vmatprep.subr.mxu0 0.0
      %871 = vmatpush1.xpose.msra.mxu0 0.0
      %872 = vmatprep.subr.mxu0 0.0
      %873 = vmatpush1.xpose.msra.mxu0 0.0
      %874 = vmatprep.subr.mxu0 0.0
      %875 = vmatpush1.xpose.msra.mxu0 0.0
      %876 = vmatprep.subr.mxu0 0.0
      %877 = vmatpush1.xpose.msra.mxu0 %v846
      %878 = vmatprep.subr.mxu0 0.0
      %879 = vmatpush1.xpose.msra.mxu0 %v844
      %880 = vmatprep.subr.mxu0 0.0
      %881 = vmatpush2.xpose.msra.mxu0 0.0
      %882 = vmatprep.subr.mxu0 0.0
      %883 = vmatpush2.xpose.msra.mxu0 0.0
      %884 = vmatprep.subr.mxu0 0.0
      %885 = vmatpush2.xpose.msra.mxu0 0.0
      %886 = vmatprep.subr.mxu0 0.0
      %887 = vmatpush2.xpose.msra.mxu0 0.0
      %888 = vmatprep.subr.mxu0 0.0
      %889 = vmatpush2.xpose.msra.mxu0 0.0
      %890 = vmatprep.subr.mxu0 0.0
      %891 = vmatpush2.xpose.msra.mxu0 0.0
      %892 = vmatprep.subr.mxu0 0.0
      %893 = vmatpush2.xpose.msra.mxu0 0.0
      %894 = vmatprep.subr.mxu0 0.0
      %895 = vmatpush2.xpose.msra.mxu0 0.0
      %896 = vmatprep.subr.mxu0 0.0
      %897 = vmatpush2.xpose.msra.mxu0 0.0
      %898 = vmatprep.subr.mxu0 0.0
      %899 = vmatpush2.xpose.msra.mxu0 0.0
      %900 = vmatprep.subr.mxu0 0.0
      %901 = vmatpush2.xpose.msra.mxu0 0.0
      %902 = vmatprep.subr.mxu0 0.0
      %903 = vmatpush2.xpose.msra.mxu0 0.0
      %904 = vmatprep.subr.mxu0 0.0
      %905 = vmatpush2.xpose.msra.mxu0 0.0
      %906 = vmatprep.subr.mxu0 0.0
      %907 = vmatpush2.xpose.msra.mxu0 0.0
      %908 = vmatprep.subr.mxu0 0.0
      %909 = vmatpush2.xpose.msra.mxu0 0.0
      %910 = vmatprep.subr.mxu0 0.0
      %911 = vmatpush2.xpose.msra.mxu0 0.0
      %912 = vmatprep.mubr.f32.mxu0 0.0
      %913 = vmatmul.mubr.f32.gmra.mxu0 %v840
      %v914 = vpop.f32.mrf.mxu0
      %v915 = vadd.f32 0.0, %v914
      %v916 = vpop.f32.mrf.mxu0
      %917 = vmatprep.mubr.f32.mxu0 0.0
      %918 = vmatmul.mubr.f32.gmra.mxu0 %v842
      %v919 = vpop.f32.mrf.mxu0
      %v920 = vadd.f32 0.0, %v919
      %v921 = vpop.f32.mrf.mxu0
      %922 = vdwg.mxu0
      %v923 = vmul.f32 %v915, 0.35355338
      %v924 = vmul.f32 %v920, 0.35355338
      %v925 = vadd.f32 %v923, %v723
      %v926 = vadd.f32 %v924, %v724
      %vm927 = vcmask 72704
      %v928 = vsel %vm927, %v925, -inf
      %929 = vmax.xlane.f32.xlu0 %v928
      %v930 = vpop.xlane.xlu0 %929
      %vm931 = vcmask 65536
      %v932 = vsel %vm931, %v926, -inf
      %933 = vmax.xlane.f32.xlu0 %v932
      %v934 = vpop.xlane.xlu0 %933
      %v935 = vsub.f32 %v925, %v930
      %v936 = vsub.f32 %v926, %v934
      %v937 = vmul.f32 %v935, 1.442695
      %v938 = vpow.pop %v937
      %v939 = vmul.f32 %v936, 1.442695
      %v940 = vpow.pop %v939
      %v941 = vsel %vm927, %v938, 0.0
      %942 = vadd.xlane.f32.xlu0 %v941
      %v943 = vpop.xlane.xlu0 %942
      %v944 = vsel %vm931, %v940, 0.0
      %945 = vadd.xlane.f32.xlu0 %v944
      %v946 = vpop.xlane.xlu0 %945
      %v947 = vrcp.pop %v943
      %v948 = vrcp.pop %v946
      %v949 = vmul.f32 %v938, %v947
      %v950 = vmul.f32 %v940, %v948
      %951 = vrot.lane.b32.xlu0 %v818, 64
      %v952 = vpop.permute.xlu0 %951
      %953 = vrot.lane.b32.xlu0 %v823, 64
      %v954 = vpop.permute.xlu0 %953
      %v957 = vsel %vm927, %v949, 0
      %v960 = vsel %vm927, %v950, 0
      %vm962 = vcmask 1040384
      %v963 = vsel %vm962, %v954, 0
      %965 = vmatprep.subr.mxu0 0.0
      %966 = vmatpush1.msra.mxu0 0.0
      %967 = vmatprep.subr.mxu0 0.0
      %968 = vmatpush1.msra.mxu0 0.0
      %969 = vmatprep.subr.mxu0 0.0
      %970 = vmatpush1.msra.mxu0 0.0
      %971 = vmatprep.subr.mxu0 0.0
      %972 = vmatpush1.msra.mxu0 0.0
      %973 = vmatprep.subr.mxu0 0.0
      %974 = vmatpush1.msra.mxu0 0.0
      %975 = vmatprep.subr.mxu0 0.0
      %976 = vmatpush1.msra.mxu0 0.0
      %977 = vmatprep.subr.mxu0 0.0
      %978 = vmatpush1.msra.mxu0 0.0
      %979 = vmatprep.subr.mxu0 0.0
      %980 = vmatpush1.msra.mxu0 0.0
      %981 = vmatprep.subr.mxu0 0.0
      %982 = vmatpush1.msra.mxu0 0.0
      %983 = vmatprep.subr.mxu0 0.0
      %984 = vmatpush1.msra.mxu0 0.0
      %985 = vmatprep.subr.mxu0 0.0
      %986 = vmatpush1.msra.mxu0 0.0
      %987 = vmatprep.subr.mxu0 0.0
      %988 = vmatpush1.msra.mxu0 0.0
      %989 = vmatprep.subr.mxu0 0.0
      %990 = vmatpush1.msra.mxu0 0.0
      %991 = vmatprep.subr.mxu0 0.0
      %992 = vmatpush1.msra.mxu0 0.0
      %993 = vmatprep.subr.mxu0 0.0
      %994 = vmatpush1.msra.mxu0 %v963
      %995 = vmatprep.subr.mxu0 0.0
      %996 = vmatpush1.msra.mxu0 %v952
      %997 = vmatprep.subr.mxu0 0.0
      %998 = vmatpush2.msra.mxu0 0.0
      %999 = vmatprep.subr.mxu0 0.0
      %1000 = vmatpush2.msra.mxu0 0.0
      %1001 = vmatprep.subr.mxu0 0.0
      %1002 = vmatpush2.msra.mxu0 0.0
      %1003 = vmatprep.subr.mxu0 0.0
      %1004 = vmatpush2.msra.mxu0 0.0
      %1005 = vmatprep.subr.mxu0 0.0
      %1006 = vmatpush2.msra.mxu0 0.0
      %1007 = vmatprep.subr.mxu0 0.0
      %1008 = vmatpush2.msra.mxu0 0.0
      %1009 = vmatprep.subr.mxu0 0.0
      %1010 = vmatpush2.msra.mxu0 0.0
      %1011 = vmatprep.subr.mxu0 0.0
      %1012 = vmatpush2.msra.mxu0 0.0
      %1013 = vmatprep.subr.mxu0 0.0
      %1014 = vmatpush2.msra.mxu0 0.0
      %1015 = vmatprep.subr.mxu0 0.0
      %1016 = vmatpush2.msra.mxu0 0.0
      %1017 = vmatprep.subr.mxu0 0.0
      %1018 = vmatpush2.msra.mxu0 0.0
      %1019 = vmatprep.subr.mxu0 0.0
      %1020 = vmatpush2.msra.mxu0 0.0
      %1021 = vmatprep.subr.mxu0 0.0
      %1022 = vmatpush2.msra.mxu0 0.0
      %1023 = vmatprep.subr.mxu0 0.0
      %1024 = vmatpush2.msra.mxu0 0.0
      %1025 = vmatprep.subr.mxu0 0.0
      %1026 = vmatpush2.msra.mxu0 0.0
      %1027 = vmatprep.subr.mxu0 0.0
      %1028 = vmatpush2.msra.mxu0 0.0
      %1029 = vmatprep.mubr.f32.mxu0 0.0
      %1030 = vmatmul.mubr.f32.gmra.mxu0 %v957
      %v1031 = vpop.f32.mrf.mxu0
      %v1032 = vadd.f32 0.0, %v1031
      %v1033 = vpop.f32.mrf.mxu0
      %1034 = vmatprep.mubr.f32.mxu0 0.0
      %1035 = vmatmul.mubr.f32.gmra.mxu0 %v960
      %v1036 = vpop.f32.mrf.mxu0
      %v1037 = vadd.f32 0.0, %v1036
      %v1038 = vpop.f32.mrf.mxu0
      %1039 = vdwg.mxu0
      %1040 = vrot.lane.b32.xlu0 %v818, 120
      %v1041 = vpop.permute.xlu0 %1040
      %1042 = vrot.lane.b32.xlu0 %v823, 120
      %v1043 = vpop.permute.xlu0 %1042
      %1044 = vrot.lane.b32.xlu0 %v818, 88
      %v1045 = vpop.permute.xlu0 %1044
      %1046 = vrot.lane.b32.xlu0 %v823, 88
      %v1047 = vpop.permute.xlu0 %1046
      %v1048 = vsel %vm839, %v1041, 0
      %v1050 = vsel %vm839, %v1043, 0
      %v1052 = vsel %vm839, %v1045, 0
      %v1054 = vsel %vm839, %v1047, 0
      %1056 = vmatprep.subr.mxu0 0.0
      %1057 = vmatpush1.xpose.msra.mxu0 0.0
      %1058 = vmatprep.subr.mxu0 0.0
      %1059 = vmatpush1.xpose.msra.mxu0 0.0
      %1060 = vmatprep.subr.mxu0 0.0
      %1061 = vmatpush1.xpose.msra.mxu0 0.0
      %1062 = vmatprep.subr.mxu0 0.0
      %1063 = vmatpush1.xpose.msra.mxu0 0.0
      %1064 = vmatprep.subr.mxu0 0.0
      %1065 = vmatpush1.xpose.msra.mxu0 0.0
      %1066 = vmatprep.subr.mxu0 0.0
      %1067 = vmatpush1.xpose.msra.mxu0 0.0
      %1068 = vmatprep.subr.mxu0 0.0
      %1069 = vmatpush1.xpose.msra.mxu0 0.0
      %1070 = vmatprep.subr.mxu0 0.0
      %1071 = vmatpush1.xpose.msra.mxu0 0.0
      %1072 = vmatprep.subr.mxu0 0.0
      %1073 = vmatpush1.xpose.msra.mxu0 0.0
      %1074 = vmatprep.subr.mxu0 0.0
      %1075 = vmatpush1.xpose.msra.mxu0 0.0
      %1076 = vmatprep.subr.mxu0 0.0
      %1077 = vmatpush1.xpose.msra.mxu0 0.0
      %1078 = vmatprep.subr.mxu0 0.0
      %1079 = vmatpush1.xpose.msra.mxu0 0.0
      %1080 = vmatprep.subr.mxu0 0.0
      %1081 = vmatpush1.xpose.msra.mxu0 0.0
      %1082 = vmatprep.subr.mxu0 0.0
      %1083 = vmatpush1.xpose.msra.mxu0 0.0
      %1084 = vmatprep.subr.mxu0 0.0
      %1085 = vmatpush1.xpose.msra.mxu0 %v1054
      %1086 = vmatprep.subr.mxu0 0.0
      %1087 = vmatpush1.xpose.msra.mxu0 %v1052
      %1088 = vmatprep.subr.mxu0 0.0
      %1089 = vmatpush2.xpose.msra.mxu0 0.0
      %1090 = vmatprep.subr.mxu0 0.0
      %1091 = vmatpush2.xpose.msra.mxu0 0.0
      %1092 = vmatprep.subr.mxu0 0.0
      %1093 = vmatpush2.xpose.msra.mxu0 0.0
      %1094 = vmatprep.subr.mxu0 0.0
      %1095 = vmatpush2.xpose.msra.mxu0 0.0
      %1096 = vmatprep.subr.mxu0 0.0
      %1097 = vmatpush2.xpose.msra.mxu0 0.0
      %1098 = vmatprep.subr.mxu0 0.0
      %1099 = vmatpush2.xpose.msra.mxu0 0.0
      %1100 = vmatprep.subr.mxu0 0.0
      %1101 = vmatpush2.xpose.msra.mxu0 0.0
      %1102 = vmatprep.subr.mxu0 0.0
      %1103 = vmatpush2.xpose.msra.mxu0 0.0
      %1104 = vmatprep.subr.mxu0 0.0
      %1105 = vmatpush2.xpose.msra.mxu0 0.0
      %1106 = vmatprep.subr.mxu0 0.0
      %1107 = vmatpush2.xpose.msra.mxu0 0.0
      %1108 = vmatprep.subr.mxu0 0.0
      %1109 = vmatpush2.xpose.msra.mxu0 0.0
      %1110 = vmatprep.subr.mxu0 0.0
      %1111 = vmatpush2.xpose.msra.mxu0 0.0
      %1112 = vmatprep.subr.mxu0 0.0
      %1113 = vmatpush2.xpose.msra.mxu0 0.0
      %1114 = vmatprep.subr.mxu0 0.0
      %1115 = vmatpush2.xpose.msra.mxu0 0.0
      %1116 = vmatprep.subr.mxu0 0.0
      %1117 = vmatpush2.xpose.msra.mxu0 0.0
      %1118 = vmatprep.subr.mxu0 0.0
      %1119 = vmatpush2.xpose.msra.mxu0 0.0
      %1120 = vmatprep.mubr.f32.mxu0 0.0
      %1121 = vmatmul.mubr.f32.gmra.mxu0 %v1048
      %v1122 = vpop.f32.mrf.mxu0
      %v1123 = vadd.f32 0.0, %v1122
      %v1124 = vpop.f32.mrf.mxu0
      %1125 = vmatprep.mubr.f32.mxu0 0.0
      %1126 = vmatmul.mubr.f32.gmra.mxu0 %v1050
      %v1127 = vpop.f32.mrf.mxu0
      %v1128 = vadd.f32 0.0, %v1127
      %v1129 = vpop.f32.mrf.mxu0
      %1130 = vdwg.mxu0
      %v1131 = vmul.f32 %v1123, 0.35355338
      %v1132 = vmul.f32 %v1128, 0.35355338
      %v1133 = vadd.f32 %v1131, %v723
      %v1134 = vadd.f32 %v1132, %v724
      %v1135 = vsel %vm927, %v1133, -inf
      %1136 = vmax.xlane.f32.xlu0 %v1135
      %v1137 = vpop.xlane.xlu0 %1136
      %v1138 = vsel %vm931, %v1134, -inf
      %1139 = vmax.xlane.f32.xlu0 %v1138
      %v1140 = vpop.xlane.xlu0 %1139
      %v1141 = vsub.f32 %v1133, %v1137
      %v1142 = vsub.f32 %v1134, %v1140
      %v1143 = vmul.f32 %v1141, 1.442695
      %v1144 = vpow.pop %v1143
      %v1145 = vmul.f32 %v1142, 1.442695
      %v1146 = vpow.pop %v1145
      %v1147 = vsel %vm927, %v1144, 0.0
      %1148 = vadd.xlane.f32.xlu0 %v1147
      %v1149 = vpop.xlane.xlu0 %1148
      %v1150 = vsel %vm931, %v1146, 0.0
      %1151 = vadd.xlane.f32.xlu0 %v1150
      %v1152 = vpop.xlane.xlu0 %1151
      %v1153 = vrcp.pop %v1149
      %v1154 = vrcp.pop %v1152
      %v1155 = vmul.f32 %v1144, %v1153
      %v1156 = vmul.f32 %v1146, %v1154
      %1157 = vrot.lane.b32.xlu0 %v818, 56
      %v1158 = vpop.permute.xlu0 %1157
      %1159 = vrot.lane.b32.xlu0 %v823, 56
      %v1160 = vpop.permute.xlu0 %1159
      %v1163 = vsel %vm927, %v1155, 0
      %v1166 = vsel %vm927, %v1156, 0
      %v1168 = vsel %vm962, %v1160, 0
      %1170 = vmatprep.subr.mxu0 0.0
      %1171 = vmatpush1.msra.mxu0 0.0
      %1172 = vmatprep.subr.mxu0 0.0
      %1173 = vmatpush1.msra.mxu0 0.0
      %1174 = vmatprep.subr.mxu0 0.0
      %1175 = vmatpush1.msra.mxu0 0.0
      %1176 = vmatprep.subr.mxu0 0.0
      %1177 = vmatpush1.msra.mxu0 0.0
      %1178 = vmatprep.subr.mxu0 0.0
      %1179 = vmatpush1.msra.mxu0 0.0
      %1180 = vmatprep.subr.mxu0 0.0
      %1181 = vmatpush1.msra.mxu0 0.0
      %1182 = vmatprep.subr.mxu0 0.0
      %1183 = vmatpush1.msra.mxu0 0.0
      %1184 = vmatprep.subr.mxu0 0.0
      %1185 = vmatpush1.msra.mxu0 0.0
      %1186 = vmatprep.subr.mxu0 0.0
      %1187 = vmatpush1.msra.mxu0 0.0
      %1188 = vmatprep.subr.mxu0 0.0
      %1189 = vmatpush1.msra.mxu0 0.0
      %1190 = vmatprep.subr.mxu0 0.0
      %1191 = vmatpush1.msra.mxu0 0.0
      %1192 = vmatprep.subr.mxu0 0.0
      %1193 = vmatpush1.msra.mxu0 0.0
      %1194 = vmatprep.subr.mxu0 0.0
      %1195 = vmatpush1.msra.mxu0 0.0
      %1196 = vmatprep.subr.mxu0 0.0
      %1197 = vmatpush1.msra.mxu0 0.0
      %1198 = vmatprep.subr.mxu0 0.0
      %1199 = vmatpush1.msra.mxu0 %v1168
      %1200 = vmatprep.subr.mxu0 0.0
      %1201 = vmatpush1.msra.mxu0 %v1158
      %1202 = vmatprep.subr.mxu0 0.0
      %1203 = vmatpush2.msra.mxu0 0.0
      %1204 = vmatprep.subr.mxu0 0.0
      %1205 = vmatpush2.msra.mxu0 0.0
      %1206 = vmatprep.subr.mxu0 0.0
      %1207 = vmatpush2.msra.mxu0 0.0
      %1208 = vmatprep.subr.mxu0 0.0
      %1209 = vmatpush2.msra.mxu0 0.0
      %1210 = vmatprep.subr.mxu0 0.0
      %1211 = vmatpush2.msra.mxu0 0.0
      %1212 = vmatprep.subr.mxu0 0.0
      %1213 = vmatpush2.msra.mxu0 0.0
      %1214 = vmatprep.subr.mxu0 0.0
      %1215 = vmatpush2.msra.mxu0 0.0
      %1216 = vmatprep.subr.mxu0 0.0
      %1217 = vmatpush2.msra.mxu0 0.0
      %1218 = vmatprep.subr.mxu0 0.0
      %1219 = vmatpush2.msra.mxu0 0.0
      %1220 = vmatprep.subr.mxu0 0.0
      %1221 = vmatpush2.msra.mxu0 0.0
      %1222 = vmatprep.subr.mxu0 0.0
      %1223 = vmatpush2.msra.mxu0 0.0
      %1224 = vmatprep.subr.mxu0 0.0
      %1225 = vmatpush2.msra.mxu0 0.0
      %1226 = vmatprep.subr.mxu0 0.0
      %1227 = vmatpush2.msra.mxu0 0.0
      %1228 = vmatprep.subr.mxu0 0.0
      %1229 = vmatpush2.msra.mxu0 0.0
      %1230 = vmatprep.subr.mxu0 0.0
      %1231 = vmatpush2.msra.mxu0 0.0
      %1232 = vmatprep.subr.mxu0 0.0
      %1233 = vmatpush2.msra.mxu0 0.0
      %1234 = vmatprep.mubr.f32.mxu0 0.0
      %1235 = vmatmul.mubr.f32.gmra.mxu0 %v1163
      %v1236 = vpop.f32.mrf.mxu0
      %v1237 = vadd.f32 0.0, %v1236
      %v1238 = vpop.f32.mrf.mxu0
      %1239 = vmatprep.mubr.f32.mxu0 0.0
      %1240 = vmatmul.mubr.f32.gmra.mxu0 %v1166
      %v1241 = vpop.f32.mrf.mxu0
      %v1242 = vadd.f32 0.0, %v1241
      %v1243 = vpop.f32.mrf.mxu0
      %1244 = vdwg.mxu0
      %1245 = vrot.lane.b32.xlu0 %v818, 112
      %v1246 = vpop.permute.xlu0 %1245
      %1247 = vrot.lane.b32.xlu0 %v823, 112
      %v1248 = vpop.permute.xlu0 %1247
      %1249 = vrot.lane.b32.xlu0 %v818, 80
      %v1250 = vpop.permute.xlu0 %1249
      %1251 = vrot.lane.b32.xlu0 %v823, 80
      %v1252 = vpop.permute.xlu0 %1251
      %v1253 = vsel %vm839, %v1246, 0
      %v1255 = vsel %vm839, %v1248, 0
      %v1257 = vsel %vm839, %v1250, 0
      %v1259 = vsel %vm839, %v1252, 0
      %1261 = vmatprep.subr.mxu0 0.0
      %1262 = vmatpush1.xpose.msra.mxu0 0.0
      %1263 = vmatprep.subr.mxu0 0.0
      %1264 = vmatpush1.xpose.msra.mxu0 0.0
      %1265 = vmatprep.subr.mxu0 0.0
      %1266 = vmatpush1.xpose.msra.mxu0 0.0
      %1267 = vmatprep.subr.mxu0 0.0
      %1268 = vmatpush1.xpose.msra.mxu0 0.0
      %1269 = vmatprep.subr.mxu0 0.0
      %1270 = vmatpush1.xpose.msra.mxu0 0.0
      %1271 = vmatprep.subr.mxu0 0.0
      %1272 = vmatpush1.xpose.msra.mxu0 0.0
      %1273 = vmatprep.subr.mxu0 0.0
      %1274 = vmatpush1.xpose.msra.mxu0 0.0
      %1275 = vmatprep.subr.mxu0 0.0
      %1276 = vmatpush1.xpose.msra.mxu0 0.0
      %1277 = vmatprep.subr.mxu0 0.0
      %1278 = vmatpush1.xpose.msra.mxu0 0.0
      %1279 = vmatprep.subr.mxu0 0.0
      %1280 = vmatpush1.xpose.msra.mxu0 0.0
      %1281 = vmatprep.subr.mxu0 0.0
      %1282 = vmatpush1.xpose.msra.mxu0 0.0
      %1283 = vmatprep.subr.mxu0 0.0
      %1284 = vmatpush1.xpose.msra.mxu0 0.0
      %1285 = vmatprep.subr.mxu0 0.0
      %1286 = vmatpush1.xpose.msra.mxu0 0.0
      %1287 = vmatprep.subr.mxu0 0.0
      %1288 = vmatpush1.xpose.msra.mxu0 0.0
      %1289 = vmatprep.subr.mxu0 0.0
      %1290 = vmatpush1.xpose.msra.mxu0 %v1259
      %1291 = vmatprep.subr.mxu0 0.0
      %1292 = vmatpush1.xpose.msra.mxu0 %v1257
      %1293 = vmatprep.subr.mxu0 0.0
      %1294 = vmatpush2.xpose.msra.mxu0 0.0
      %1295 = vmatprep.subr.mxu0 0.0
      %1296 = vmatpush2.xpose.msra.mxu0 0.0
      %1297 = vmatprep.subr.mxu0 0.0
      %1298 = vmatpush2.xpose.msra.mxu0 0.0
      %1299 = vmatprep.subr.mxu0 0.0
      %1300 = vmatpush2.xpose.msra.mxu0 0.0
      %1301 = vmatprep.subr.mxu0 0.0
      %1302 = vmatpush2.xpose.msra.mxu0 0.0
      %1303 = vmatprep.subr.mxu0 0.0
      %1304 = vmatpush2.xpose.msra.mxu0 0.0
      %1305 = vmatprep.subr.mxu0 0.0
      %1306 = vmatpush2.xpose.msra.mxu0 0.0
      %1307 = vmatprep.subr.mxu0 0.0
      %1308 = vmatpush2.xpose.msra.mxu0 0.0
      %1309 = vmatprep.subr.mxu0 0.0
      %1310 = vmatpush2.xpose.msra.mxu0 0.0
      %1311 = vmatprep.subr.mxu0 0.0
      %1312 = vmatpush2.xpose.msra.mxu0 0.0
      %1313 = vmatprep.subr.mxu0 0.0
      %1314 = vmatpush2.xpose.msra.mxu0 0.0
      %1315 = vmatprep.subr.mxu0 0.0
      %1316 = vmatpush2.xpose.msra.mxu0 0.0
      %1317 = vmatprep.subr.mxu0 0.0
      %1318 = vmatpush2.xpose.msra.mxu0 0.0
      %1319 = vmatprep.subr.mxu0 0.0
      %1320 = vmatpush2.xpose.msra.mxu0 0.0
      %1321 = vmatprep.subr.mxu0 0.0
      %1322 = vmatpush2.xpose.msra.mxu0 0.0
      %1323 = vmatprep.subr.mxu0 0.0
      %1324 = vmatpush2.xpose.msra.mxu0 0.0
      %1325 = vmatprep.mubr.f32.mxu0 0.0
      %1326 = vmatmul.mubr.f32.gmra.mxu0 %v1253
      %v1327 = vpop.f32.mrf.mxu0
      %v1328 = vadd.f32 0.0, %v1327
      %v1329 = vpop.f32.mrf.mxu0
      %1330 = vmatprep.mubr.f32.mxu0 0.0
      %1331 = vmatmul.mubr.f32.gmra.mxu0 %v1255
      %v1332 = vpop.f32.mrf.mxu0
      %v1333 = vadd.f32 0.0, %v1332
      %v1334 = vpop.f32.mrf.mxu0
      %1335 = vdwg.mxu0
      %v1336 = vmul.f32 %v1328, 0.35355338
      %v1337 = vmul.f32 %v1333, 0.35355338
      %v1338 = vadd.f32 %v1336, %v723
      %v1339 = vadd.f32 %v1337, %v724
      %v1340 = vsel %vm927, %v1338, -inf
      %1341 = vmax.xlane.f32.xlu0 %v1340
      %v1342 = vpop.xlane.xlu0 %1341
      %v1343 = vsel %vm931, %v1339, -inf
      %1344 = vmax.xlane.f32.xlu0 %v1343
      %v1345 = vpop.xlane.xlu0 %1344
      %v1346 = vsub.f32 %v1338, %v1342
      %v1347 = vsub.f32 %v1339, %v1345
      %v1348 = vmul.f32 %v1346, 1.442695
      %v1349 = vpow.pop %v1348
      %v1350 = vmul.f32 %v1347, 1.442695
      %v1351 = vpow.pop %v1350
      %v1352 = vsel %vm927, %v1349, 0.0
      %1353 = vadd.xlane.f32.xlu0 %v1352
      %v1354 = vpop.xlane.xlu0 %1353
      %v1355 = vsel %vm931, %v1351, 0.0
      %1356 = vadd.xlane.f32.xlu0 %v1355
      %v1357 = vpop.xlane.xlu0 %1356
      %v1358 = vrcp.pop %v1354
      %v1359 = vrcp.pop %v1357
      %v1360 = vmul.f32 %v1349, %v1358
      %v1361 = vmul.f32 %v1351, %v1359
      %1362 = vrot.lane.b32.xlu0 %v818, 48
      %v1363 = vpop.permute.xlu0 %1362
      %1364 = vrot.lane.b32.xlu0 %v823, 48
      %v1365 = vpop.permute.xlu0 %1364
      %v1368 = vsel %vm927, %v1360, 0
      %v1371 = vsel %vm927, %v1361, 0
      %v1373 = vsel %vm962, %v1365, 0
      %1375 = vmatprep.subr.mxu0 0.0
      %1376 = vmatpush1.msra.mxu0 0.0
      %1377 = vmatprep.subr.mxu0 0.0
      %1378 = vmatpush1.msra.mxu0 0.0
      %1379 = vmatprep.subr.mxu0 0.0
      %1380 = vmatpush1.msra.mxu0 0.0
      %1381 = vmatprep.subr.mxu0 0.0
      %1382 = vmatpush1.msra.mxu0 0.0
      %1383 = vmatprep.subr.mxu0 0.0
      %1384 = vmatpush1.msra.mxu0 0.0
      %1385 = vmatprep.subr.mxu0 0.0
      %1386 = vmatpush1.msra.mxu0 0.0
      %1387 = vmatprep.subr.mxu0 0.0
      %1388 = vmatpush1.msra.mxu0 0.0
      %1389 = vmatprep.subr.mxu0 0.0
      %1390 = vmatpush1.msra.mxu0 0.0
      %1391 = vmatprep.subr.mxu0 0.0
      %1392 = vmatpush1.msra.mxu0 0.0
      %1393 = vmatprep.subr.mxu0 0.0
      %1394 = vmatpush1.msra.mxu0 0.0
      %1395 = vmatprep.subr.mxu0 0.0
      %1396 = vmatpush1.msra.mxu0 0.0
      %1397 = vmatprep.subr.mxu0 0.0
      %1398 = vmatpush1.msra.mxu0 0.0
      %1399 = vmatprep.subr.mxu0 0.0
      %1400 = vmatpush1.msra.mxu0 0.0
      %1401 = vmatprep.subr.mxu0 0.0
      %1402 = vmatpush1.msra.mxu0 0.0
      %1403 = vmatprep.subr.mxu0 0.0
      %1404 = vmatpush1.msra.mxu0 %v1373
      %1405 = vmatprep.subr.mxu0 0.0
      %1406 = vmatpush1.msra.mxu0 %v1363
      %1407 = vmatprep.subr.mxu0 0.0
      %1408 = vmatpush2.msra.mxu0 0.0
      %1409 = vmatprep.subr.mxu0 0.0
      %1410 = vmatpush2.msra.mxu0 0.0
      %1411 = vmatprep.subr.mxu0 0.0
      %1412 = vmatpush2.msra.mxu0 0.0
      %1413 = vmatprep.subr.mxu0 0.0
      %1414 = vmatpush2.msra.mxu0 0.0
      %1415 = vmatprep.subr.mxu0 0.0
      %1416 = vmatpush2.msra.mxu0 0.0
      %1417 = vmatprep.subr.mxu0 0.0
      %1418 = vmatpush2.msra.mxu0 0.0
      %1419 = vmatprep.subr.mxu0 0.0
      %1420 = vmatpush2.msra.mxu0 0.0
      %1421 = vmatprep.subr.mxu0 0.0
      %1422 = vmatpush2.msra.mxu0 0.0
      %1423 = vmatprep.subr.mxu0 0.0
      %1424 = vmatpush2.msra.mxu0 0.0
      %1425 = vmatprep.subr.mxu0 0.0
      %1426 = vmatpush2.msra.mxu0 0.0
      %1427 = vmatprep.subr.mxu0 0.0
      %1428 = vmatpush2.msra.mxu0 0.0
      %1429 = vmatprep.subr.mxu0 0.0
      %1430 = vmatpush2.msra.mxu0 0.0
      %1431 = vmatprep.subr.mxu0 0.0
      %1432 = vmatpush2.msra.mxu0 0.0
      %1433 = vmatprep.subr.mxu0 0.0
      %1434 = vmatpush2.msra.mxu0 0.0
      %1435 = vmatprep.subr.mxu0 0.0
      %1436 = vmatpush2.msra.mxu0 0.0
      %1437 = vmatprep.subr.mxu0 0.0
      %1438 = vmatpush2.msra.mxu0 0.0
      %1439 = vmatprep.mubr.f32.mxu0 0.0
      %1440 = vmatmul.mubr.f32.gmra.mxu0 %v1368
      %v1441 = vpop.f32.mrf.mxu0
      %v1442 = vadd.f32 0.0, %v1441
      %v1443 = vpop.f32.mrf.mxu0
      %1444 = vmatprep.mubr.f32.mxu0 0.0
      %1445 = vmatmul.mubr.f32.gmra.mxu0 %v1371
      %v1446 = vpop.f32.mrf.mxu0
      %v1447 = vadd.f32 0.0, %v1446
      %v1448 = vpop.f32.mrf.mxu0
      %1449 = vdwg.mxu0
      %1450 = vrot.lane.b32.xlu0 %v818, 104
      %v1451 = vpop.permute.xlu0 %1450
      %1452 = vrot.lane.b32.xlu0 %v823, 104
      %v1453 = vpop.permute.xlu0 %1452
      %1454 = vrot.lane.b32.xlu0 %v818, 72
      %v1455 = vpop.permute.xlu0 %1454
      %1456 = vrot.lane.b32.xlu0 %v823, 72
      %v1457 = vpop.permute.xlu0 %1456
      %v1458 = vsel %vm839, %v1451, 0
      %v1460 = vsel %vm839, %v1453, 0
      %v1462 = vsel %vm839, %v1455, 0
      %v1464 = vsel %vm839, %v1457, 0
      %1466 = vmatprep.subr.mxu0 0.0
      %1467 = vmatpush1.xpose.msra.mxu0 0.0
      %1468 = vmatprep.subr.mxu0 0.0
      %1469 = vmatpush1.xpose.msra.mxu0 0.0
      %1470 = vmatprep.subr.mxu0 0.0
      %1471 = vmatpush1.xpose.msra.mxu0 0.0
      %1472 = vmatprep.subr.mxu0 0.0
      %1473 = vmatpush1.xpose.msra.mxu0 0.0
      %1474 = vmatprep.subr.mxu0 0.0
      %1475 = vmatpush1.xpose.msra.mxu0 0.0
      %1476 = vmatprep.subr.mxu0 0.0
      %1477 = vmatpush1.xpose.msra.mxu0 0.0
      %1478 = vmatprep.subr.mxu0 0.0
      %1479 = vmatpush1.xpose.msra.mxu0 0.0
      %1480 = vmatprep.subr.mxu0 0.0
      %1481 = vmatpush1.xpose.msra.mxu0 0.0
      %1482 = vmatprep.subr.mxu0 0.0
      %1483 = vmatpush1.xpose.msra.mxu0 0.0
      %1484 = vmatprep.subr.mxu0 0.0
      %1485 = vmatpush1.xpose.msra.mxu0 0.0
      %1486 = vmatprep.subr.mxu0 0.0
      %1487 = vmatpush1.xpose.msra.mxu0 0.0
      %1488 = vmatprep.subr.mxu0 0.0
      %1489 = vmatpush1.xpose.msra.mxu0 0.0
      %1490 = vmatprep.subr.mxu0 0.0
      %1491 = vmatpush1.xpose.msra.mxu0 0.0
      %1492 = vmatprep.subr.mxu0 0.0
      %1493 = vmatpush1.xpose.msra.mxu0 0.0
      %1494 = vmatprep.subr.mxu0 0.0
      %1495 = vmatpush1.xpose.msra.mxu0 %v1464
      %1496 = vmatprep.subr.mxu0 0.0
      %1497 = vmatpush1.xpose.msra.mxu0 %v1462
      %1498 = vmatprep.subr.mxu0 0.0
      %1499 = vmatpush2.xpose.msra.mxu0 0.0
      %1500 = vmatprep.subr.mxu0 0.0
      %1501 = vmatpush2.xpose.msra.mxu0 0.0
      %1502 = vmatprep.subr.mxu0 0.0
      %1503 = vmatpush2.xpose.msra.mxu0 0.0
      %1504 = vmatprep.subr.mxu0 0.0
      %1505 = vmatpush2.xpose.msra.mxu0 0.0
      %1506 = vmatprep.subr.mxu0 0.0
      %1507 = vmatpush2.xpose.msra.mxu0 0.0
      %1508 = vmatprep.subr.mxu0 0.0
      %1509 = vmatpush2.xpose.msra.mxu0 0.0
      %1510 = vmatprep.subr.mxu0 0.0
      %1511 = vmatpush2.xpose.msra.mxu0 0.0
      %1512 = vmatprep.subr.mxu0 0.0
      %1513 = vmatpush2.xpose.msra.mxu0 0.0
      %1514 = vmatprep.subr.mxu0 0.0
      %1515 = vmatpush2.xpose.msra.mxu0 0.0
      %1516 = vmatprep.subr.mxu0 0.0
      %1517 = vmatpush2.xpose.msra.mxu0 0.0
      %1518 = vmatprep.subr.mxu0 0.0
      %1519 = vmatpush2.xpose.msra.mxu0 0.0
      %1520 = vmatprep.subr.mxu0 0.0
      %1521 = vmatpush2.xpose.msra.mxu0 0.0
      %1522 = vmatprep.subr.mxu0 0.0
      %1523 = vmatpush2.xpose.msra.mxu0 0.0
      %1524 = vmatprep.subr.mxu0 0.0
      %1525 = vmatpush2.xpose.msra.mxu0 0.0
      %1526 = vmatprep.subr.mxu0 0.0
      %1527 = vmatpush2.xpose.msra.mxu0 0.0
      %1528 = vmatprep.subr.mxu0 0.0
      %1529 = vmatpush2.xpose.msra.mxu0 0.0
      %1530 = vmatprep.mubr.f32.mxu0 0.0
      %1531 = vmatmul.mubr.f32.gmra.mxu0 %v1458
      %v1532 = vpop.f32.mrf.mxu0
      %v1533 = vadd.f32 0.0, %v1532
      %v1534 = vpop.f32.mrf.mxu0
      %1535 = vmatprep.mubr.f32.mxu0 0.0
      %1536 = vmatmul.mubr.f32.gmra.mxu0 %v1460
      %v1537 = vpop.f32.mrf.mxu0
      %v1538 = vadd.f32 0.0, %v1537
      %v1539 = vpop.f32.mrf.mxu0
      %1540 = vdwg.mxu0
      %v1541 = vmul.f32 %v1533, 0.35355338
      %v1542 = vmul.f32 %v1538, 0.35355338
      %v1543 = vadd.f32 %v1541, %v723
      %v1544 = vadd.f32 %v1542, %v724
      %v1545 = vsel %vm927, %v1543, -inf
      %1546 = vmax.xlane.f32.xlu0 %v1545
      %v1547 = vpop.xlane.xlu0 %1546
      %v1548 = vsel %vm931, %v1544, -inf
      %1549 = vmax.xlane.f32.xlu0 %v1548
      %v1550 = vpop.xlane.xlu0 %1549
      %v1551 = vsub.f32 %v1543, %v1547
      %v1552 = vsub.f32 %v1544, %v1550
      %v1553 = vmul.f32 %v1551, 1.442695
      %v1554 = vpow.pop %v1553
      %v1555 = vmul.f32 %v1552, 1.442695
      %v1556 = vpow.pop %v1555
      %v1557 = vsel %vm927, %v1554, 0.0
      %1558 = vadd.xlane.f32.xlu0 %v1557
      %v1559 = vpop.xlane.xlu0 %1558
      %v1560 = vsel %vm931, %v1556, 0.0
      %1561 = vadd.xlane.f32.xlu0 %v1560
      %v1562 = vpop.xlane.xlu0 %1561
      %v1563 = vrcp.pop %v1559
      %v1564 = vrcp.pop %v1562
      %v1565 = vmul.f32 %v1554, %v1563
      %v1566 = vmul.f32 %v1556, %v1564
      %1567 = vrot.lane.b32.xlu0 %v818, 40
      %v1568 = vpop.permute.xlu0 %1567
      %1569 = vrot.lane.b32.xlu0 %v823, 40
      %v1570 = vpop.permute.xlu0 %1569
      %v1573 = vsel %vm927, %v1565, 0
      %v1576 = vsel %vm927, %v1566, 0
      %v1578 = vsel %vm962, %v1570, 0
      %1580 = vmatprep.subr.mxu0 0.0
      %1581 = vmatpush1.msra.mxu0 0.0
      %1582 = vmatprep.subr.mxu0 0.0
      %1583 = vmatpush1.msra.mxu0 0.0
      %1584 = vmatprep.subr.mxu0 0.0
      %1585 = vmatpush1.msra.mxu0 0.0
      %1586 = vmatprep.subr.mxu0 0.0
      %1587 = vmatpush1.msra.mxu0 0.0
      %1588 = vmatprep.subr.mxu0 0.0
      %1589 = vmatpush1.msra.mxu0 0.0
      %1590 = vmatprep.subr.mxu0 0.0
      %1591 = vmatpush1.msra.mxu0 0.0
      %1592 = vmatprep.subr.mxu0 0.0
      %1593 = vmatpush1.msra.mxu0 0.0
      %1594 = vmatprep.subr.mxu0 0.0
      %1595 = vmatpush1.msra.mxu0 0.0
      %1596 = vmatprep.subr.mxu0 0.0
      %1597 = vmatpush1.msra.mxu0 0.0
      %1598 = vmatprep.subr.mxu0 0.0
      %1599 = vmatpush1.msra.mxu0 0.0
      %1600 = vmatprep.subr.mxu0 0.0
      %1601 = vmatpush1.msra.mxu0 0.0
      %1602 = vmatprep.subr.mxu0 0.0
      %1603 = vmatpush1.msra.mxu0 0.0
      %1604 = vmatprep.subr.mxu0 0.0
      %1605 = vmatpush1.msra.mxu0 0.0
      %1606 = vmatprep.subr.mxu0 0.0
      %1607 = vmatpush1.msra.mxu0 0.0
      %1608 = vmatprep.subr.mxu0 0.0
      %1609 = vmatpush1.msra.mxu0 %v1578
      %1610 = vmatprep.subr.mxu0 0.0
      %1611 = vmatpush1.msra.mxu0 %v1568
      %1612 = vmatprep.subr.mxu0 0.0
      %1613 = vmatpush2.msra.mxu0 0.0
      %1614 = vmatprep.subr.mxu0 0.0
      %1615 = vmatpush2.msra.mxu0 0.0
      %1616 = vmatprep.subr.mxu0 0.0
      %1617 = vmatpush2.msra.mxu0 0.0
      %1618 = vmatprep.subr.mxu0 0.0
      %1619 = vmatpush2.msra.mxu0 0.0
      %1620 = vmatprep.subr.mxu0 0.0
      %1621 = vmatpush2.msra.mxu0 0.0
      %1622 = vmatprep.subr.mxu0 0.0
      %1623 = vmatpush2.msra.mxu0 0.0
      %1624 = vmatprep.subr.mxu0 0.0
      %1625 = vmatpush2.msra.mxu0 0.0
      %1626 = vmatprep.subr.mxu0 0.0
      %1627 = vmatpush2.msra.mxu0 0.0
      %1628 = vmatprep.subr.mxu0 0.0
      %1629 = vmatpush2.msra.mxu0 0.0
      %1630 = vmatprep.subr.mxu0 0.0
      %1631 = vmatpush2.msra.mxu0 0.0
      %1632 = vmatprep.subr.mxu0 0.0
      %1633 = vmatpush2.msra.mxu0 0.0
      %1634 = vmatprep.subr.mxu0 0.0
      %1635 = vmatpush2.msra.mxu0 0.0
      %1636 = vmatprep.subr.mxu0 0.0
      %1637 = vmatpush2.msra.mxu0 0.0
      %1638 = vmatprep.subr.mxu0 0.0
      %1639 = vmatpush2.msra.mxu0 0.0
      %1640 = vmatprep.subr.mxu0 0.0
      %1641 = vmatpush2.msra.mxu0 0.0
      %1642 = vmatprep.subr.mxu0 0.0
      %1643 = vmatpush2.msra.mxu0 0.0
      %1644 = vmatprep.mubr.f32.mxu0 0.0
      %1645 = vmatmul.mubr.f32.gmra.mxu0 %v1573
      %v1646 = vpop.f32.mrf.mxu0
      %v1647 = vadd.f32 0.0, %v1646
      %v1648 = vpop.f32.mrf.mxu0
      %1649 = vmatprep.mubr.f32.mxu0 0.0
      %1650 = vmatmul.mubr.f32.gmra.mxu0 %v1576
      %v1651 = vpop.f32.mrf.mxu0
      %v1652 = vadd.f32 0.0, %v1651
      %v1653 = vpop.f32.mrf.mxu0
      %1654 = vdwg.mxu0
      %1657 = vrot.lane.b32.xlu0 %v1237, 8
      %v1658 = vpop.permute.xlu0 %1657
      %1659 = vrot.lane.b32.xlu0 %v1242, 8
      %v1660 = vpop.permute.xlu0 %1659
      %1665 = vrot.lane.b32.xlu0 %v1442, 16
      %v1666 = vpop.permute.xlu0 %1665
      %1667 = vrot.lane.b32.xlu0 %v1447, 16
      %v1668 = vpop.permute.xlu0 %1667
      %1673 = vrot.lane.b32.xlu0 %v1647, 24
      %v1674 = vpop.permute.xlu0 %1673
      %1675 = vrot.lane.b32.xlu0 %v1652, 24
      %v1676 = vpop.permute.xlu0 %1675
      %v1679 = vsel %vm839, %v1032, %v1658
      %v1680 = vsel %vm839, %v1037, %v1660
      %vm1681 = vcmask 130048
      %v1682 = vsel %vm1681, %v1679, %v1666
      %v1683 = vsel %vm1681, %v1680, %v1668
      %vm1684 = vcmask 195584
      %v1685 = vsel %vm1684, %v1682, %v1674
      %v1686 = vsel %vm1684, %v1683, %v1676
      %v1688 = vlaneseq
      %v1689 = vshrl.u32 %v1688, 7
      %v1690 = vsub.s32 0, %v1689
      %v1691 = vrot.slane %v830, %v1690
      %vm1693 = vcmask 261120
      %v1695 = vsel %vm1693, %v1685, 0
      %v1698 = vsel %vm1693, %v1686, 0
      %1700 = vmatprep.subr.mxu0 0.0
      %1701 = vmatpush1.msra.mxu0 0.0
      %1702 = vmatprep.subr.mxu0 0.0
      %1703 = vmatpush1.msra.mxu0 0.0
      %1704 = vmatprep.subr.mxu0 0.0
      %1705 = vmatpush1.msra.mxu0 0.0
      %1706 = vmatprep.subr.mxu0 0.0
      %1707 = vmatpush1.msra.mxu0 0.0
      %1708 = vmatprep.subr.mxu0 0.0
      %1709 = vmatpush1.msra.mxu0 0.0
      %1710 = vmatprep.subr.mxu0 0.0
      %1711 = vmatpush1.msra.mxu0 0.0
      %1712 = vmatprep.subr.mxu0 0.0
      %1713 = vmatpush1.msra.mxu0 0.0
      %1714 = vmatprep.subr.mxu0 0.0
      %1715 = vmatpush1.msra.mxu0 0.0
      %1716 = vmatprep.subr.mxu0 0.0
      %1717 = vmatpush1.msra.mxu0 0.0
      %1718 = vmatprep.subr.mxu0 0.0
      %1719 = vmatpush1.msra.mxu0 0.0
      %1720 = vmatprep.subr.mxu0 0.0
      %1721 = vmatpush1.msra.mxu0 0.0
      %1722 = vmatprep.subr.mxu0 0.0
      %1723 = vmatpush1.msra.mxu0 0.0
      %1724 = vmatprep.subr.mxu0 0.0
      %1725 = vmatpush1.msra.mxu0 %v829
      %1726 = vmatprep.subr.mxu0 0.0
      %1727 = vmatpush1.msra.mxu0 %v828
      %1728 = vmatprep.subr.mxu0 0.0
      %1729 = vmatpush1.msra.mxu0 %v827
      %1730 = vmatprep.subr.mxu0 0.0
      %1731 = vmatpush1.msra.mxu0 %v826
      %1732 = vmatprep.subr.mxu0 0.0
      %1733 = vmatpush2.msra.mxu0 0.0
      %1734 = vmatprep.subr.mxu0 0.0
      %1735 = vmatpush2.msra.mxu0 0.0
      %1736 = vmatprep.subr.mxu0 0.0
      %1737 = vmatpush2.msra.mxu0 0.0
      %1738 = vmatprep.subr.mxu0 0.0
      %1739 = vmatpush2.msra.mxu0 0.0
      %1740 = vmatprep.subr.mxu0 0.0
      %1741 = vmatpush2.msra.mxu0 0.0
      %1742 = vmatprep.subr.mxu0 0.0
      %1743 = vmatpush2.msra.mxu0 0.0
      %1744 = vmatprep.subr.mxu0 0.0
      %1745 = vmatpush2.msra.mxu0 0.0
      %1746 = vmatprep.subr.mxu0 0.0
      %1747 = vmatpush2.msra.mxu0 0.0
      %1748 = vmatprep.subr.mxu0 0.0
      %1749 = vmatpush2.msra.mxu0 0.0
      %1750 = vmatprep.subr.mxu0 0.0
      %1751 = vmatpush2.msra.mxu0 0.0
      %1752 = vmatprep.subr.mxu0 0.0
      %1753 = vmatpush2.msra.mxu0 0.0
      %1754 = vmatprep.subr.mxu0 0.0
      %1755 = vmatpush2.msra.mxu0 0.0
      %1756 = vmatprep.subr.mxu0 0.0
      %1757 = vmatpush2.msra.mxu0 0.0
      %1758 = vmatprep.subr.mxu0 0.0
      %1759 = vmatpush2.msra.mxu0 0.0
      %1760 = vmatprep.subr.mxu0 0.0
      %1761 = vmatpush2.msra.mxu0 0.0
      %1762 = vmatprep.subr.mxu0 0.0
      %1763 = vmatpush2.msra.mxu0 0.0
      %1764 = vmatprep.mubr.f32.mxu0 0.0
      %1765 = vmatmul.mubr.f32.gmra.mxu0 %v1695
      %v1766 = vpop.f32.mrf.mxu0
      %v1767 = vadd.f32 %v1691, %v1766
      %v1768 = vpop.f32.mrf.mxu0
      %1769 = vmatprep.mubr.f32.mxu0 0.0
      %1770 = vmatmul.mubr.f32.gmra.mxu0 %v1698
      %v1771 = vpop.f32.mrf.mxu0
      %v1772 = vadd.f32 %v1691, %v1771
      %v1773 = vpop.f32.mrf.mxu0
      %1774 = vdwg.mxu0
      %v1775 = vadd.f32 %v1767, %v712
      %v1776 = vadd.f32 %v1772, %v713
      %1777 = vadd.xlane.f32.xlu0 %v1775
      %v1778 = vpop.xlane.xlu0 %1777
      %v1779 = vsel %vm962, %v1776, 0.0
      %1780 = vadd.xlane.f32.xlu0 %v1779
      %v1781 = vpop.xlane.xlu0 %1780
      %v1782 = vmul.f32 %v1778, 0.03125
      %v1783 = vmul.f32 %v1781, 0.03125
      %v1784 = vmul.f32 %v1775, %v1775
      %v1785 = vmul.f32 %v1776, %v1776
      %1786 = vadd.xlane.f32.xlu0 %v1784
      %v1787 = vpop.xlane.xlu0 %1786
      %v1788 = vsel %vm962, %v1785, 0.0
      %1789 = vadd.xlane.f32.xlu0 %v1788
      %v1790 = vpop.xlane.xlu0 %1789
      %v1791 = vmul.f32 %v1787, 0.03125
      %v1792 = vmul.f32 %v1790, 0.03125
      %v1793 = vmul.f32 %v1782, %v1782
      %v1794 = vmul.f32 %v1783, %v1783
      %v1795 = vsub.f32 %v1791, %v1793
      %v1796 = vsub.f32 %v1792, %v1794
      %v1797 = vmax.f32 %v1795, 0.0
      %v1798 = vmax.f32 %v1796, 0.0
      %v1799 = vsub.f32 %v1775, %v1782
      %v1800 = vsub.f32 %v1776, %v1783
      %v1801 = vadd.f32 %v1797, 1e-05
      %v1802 = vadd.f32 %v1798, 1e-05
      %v1803 = vrsqrt.pop %v1801
      %v1804 = vrsqrt.pop %v1802
      %v1805 = vmul.f32 %v1799, %v1803
      %v1806 = vmul.f32 %v1800, %v1804
      %v1808 = vlaneseq
      %v1809 = vshrl.u32 %v1808, 7
      %v1810 = vsub.s32 0, %v1809
      %v1811 = vrot.slane %v831, %v1810
      %v1813 = vmul.f32 %v1805, %v1811
      %v1814 = vmul.f32 %v1806, %v1811
      %v1816 = vlaneseq
      %v1817 = vshrl.u32 %v1816, 7
      %v1818 = vsub.s32 0, %v1817
      %v1819 = vrot.slane %v832, %v1818
      %v1821 = vadd.f32 %v1813, %v1819
      %v1822 = vadd.f32 %v1814, %v1819
      %v1823 = vld [vmem:[%s9] sm:$0xff]
      %v1824 = vld [vmem:[%s9 + $0x8] sm:$0xff]
      %v1825 = vld [vmem:[%s9 + $0x10] sm:$0xff]
      %v1826 = vld [vmem:[%s9 + $0x18] sm:$0xff]
      %v1827 = vld [vmem:[%s9 + $0x20] sm:$0xff]
      %v1828 = vld [vmem:[%s9 + $0x28] sm:$0xff]
      %v1829 = vld [vmem:[%s9 + $0x30] sm:$0xff]
      %v1830 = vld [vmem:[%s9 + $0x38] sm:$0xff]
      %v1831 = vld [vmem:[%s9 + $0x40] sm:$0xff]
      %v1832 = vld [vmem:[%s9 + $0x48] sm:$0xff]
      %v1833 = vld [vmem:[%s9 + $0x50] sm:$0xff]
      %v1834 = vld [vmem:[%s9 + $0x58] sm:$0xff]
      %v1835 = vld [vmem:[%s9 + $0x60] sm:$0xff]
      %v1836 = vld [vmem:[%s9 + $0x68] sm:$0xff]
      %v1837 = vld [vmem:[%s9 + $0x70] sm:$0xff]
      %v1838 = vld [vmem:[%s9 + $0x78] sm:$0xff]
      %v1839 = vld [vmem:[%s10] sm:$0x1]
      %v1841 = vlaneseq
      %v1842 = vshrl.u32 %v1841, 7
      %v1843 = vsub.s32 0, %v1842
      %v1844 = vrot.slane %v1839, %v1843
      %1846 = vmatprep.subr.mxu0 0.0
      %1847 = vmatpush1.msra.mxu0 %v1838
      %1848 = vmatprep.subr.mxu0 0.0
      %1849 = vmatpush1.msra.mxu0 %v1837
      %1850 = vmatprep.subr.mxu0 0.0
      %1851 = vmatpush1.msra.mxu0 %v1836
      %1852 = vmatprep.subr.mxu0 0.0
      %1853 = vmatpush1.msra.mxu0 %v1835
      %1854 = vmatprep.subr.mxu0 0.0
      %1855 = vmatpush1.msra.mxu0 %v1834
      %1856 = vmatprep.subr.mxu0 0.0
      %1857 = vmatpush1.msra.mxu0 %v1833
      %1858 = vmatprep.subr.mxu0 0.0
      %1859 = vmatpush1.msra.mxu0 %v1832
      %1860 = vmatprep.subr.mxu0 0.0
      %1861 = vmatpush1.msra.mxu0 %v1831
      %1862 = vmatprep.subr.mxu0 0.0
      %1863 = vmatpush1.msra.mxu0 %v1830
      %1864 = vmatprep.subr.mxu0 0.0
      %1865 = vmatpush1.msra.mxu0 %v1829
      %1866 = vmatprep.subr.mxu0 0.0
      %1867 = vmatpush1.msra.mxu0 %v1828
      %1868 = vmatprep.subr.mxu0 0.0
      %1869 = vmatpush1.msra.mxu0 %v1827
      %1870 = vmatprep.subr.mxu0 0.0
      %1871 = vmatpush1.msra.mxu0 %v1826
      %1872 = vmatprep.subr.mxu0 0.0
      %1873 = vmatpush1.msra.mxu0 %v1825
      %1874 = vmatprep.subr.mxu0 0.0
      %1875 = vmatpush1.msra.mxu0 %v1824
      %1876 = vmatprep.subr.mxu0 0.0
      %1877 = vmatpush1.msra.mxu0 %v1823
      %1878 = vmatprep.subr.mxu0 0.0
      %1879 = vmatpush2.msra.mxu0 0.0
      %1880 = vmatprep.subr.mxu0 0.0
      %1881 = vmatpush2.msra.mxu0 0.0
      %1882 = vmatprep.subr.mxu0 0.0
      %1883 = vmatpush2.msra.mxu0 0.0
      %1884 = vmatprep.subr.mxu0 0.0
      %1885 = vmatpush2.msra.mxu0 0.0
      %1886 = vmatprep.subr.mxu0 0.0
      %1887 = vmatpush2.msra.mxu0 0.0
      %1888 = vmatprep.subr.mxu0 0.0
      %1889 = vmatpush2.msra.mxu0 0.0
      %1890 = vmatprep.subr.mxu0 0.0
      %1891 = vmatpush2.msra.mxu0 0.0
      %1892 = vmatprep.subr.mxu0 0.0
      %1893 = vmatpush2.msra.mxu0 0.0
      %1894 = vmatprep.subr.mxu0 0.0
      %1895 = vmatpush2.msra.mxu0 0.0
      %1896 = vmatprep.subr.mxu0 0.0
      %1897 = vmatpush2.msra.mxu0 0.0
      %1898 = vmatprep.subr.mxu0 0.0
      %1899 = vmatpush2.msra.mxu0 0.0
      %1900 = vmatprep.subr.mxu0 0.0
      %1901 = vmatpush2.msra.mxu0 0.0
      %1902 = vmatprep.subr.mxu0 0.0
      %1903 = vmatpush2.msra.mxu0 0.0
      %1904 = vmatprep.subr.mxu0 0.0
      %1905 = vmatpush2.msra.mxu0 0.0
      %1906 = vmatprep.subr.mxu0 0.0
      %1907 = vmatpush2.msra.mxu0 0.0
      %1908 = vmatprep.subr.mxu0 0.0
      %1909 = vmatpush2.msra.mxu0 0.0
      %1910 = vmatprep.mubr.f32.mxu0 0.0
      %1911 = vmatmul.mubr.f32.gmra.mxu0 %v1821
      %v1912 = vpop.f32.mrf.mxu0
      %v1913 = vadd.f32 %v1844, %v1912
      %v1914 = vpop.f32.mrf.mxu0
      %1915 = vmatprep.mubr.f32.mxu0 0.0
      %1916 = vmatmul.mubr.f32.gmra.mxu0 %v1822
      %v1917 = vpop.f32.mrf.mxu0
      %v1918 = vadd.f32 %v1844, %v1917
      %v1919 = vpop.f32.mrf.mxu0
      %1920 = vdwg.mxu0
      %v1921 = vld [vmem:[%s11] sm:$0xff]
      %v1922 = vld [vmem:[%s11 + $0x8] sm:$0xff]
      %v1923 = vld [vmem:[%s11 + $0x10] sm:$0xff]
      %v1924 = vld [vmem:[%s11 + $0x18] sm:$0xff]
      %v1925 = vld [vmem:[%s11 + $0x20] sm:$0xff]
      %v1926 = vld [vmem:[%s11 + $0x28] sm:$0xff]
      %v1927 = vld [vmem:[%s11 + $0x30] sm:$0xff]
      %v1928 = vld [vmem:[%s11 + $0x38] sm:$0xff]
      %v1929 = vld [vmem:[%s11 + $0x40] sm:$0xff]
      %v1930 = vld [vmem:[%s11 + $0x48] sm:$0xff]
      %v1931 = vld [vmem:[%s11 + $0x50] sm:$0xff]
      %v1932 = vld [vmem:[%s11 + $0x58] sm:$0xff]
      %v1933 = vld [vmem:[%s11 + $0x60] sm:$0xff]
      %v1934 = vld [vmem:[%s11 + $0x68] sm:$0xff]
      %v1935 = vld [vmem:[%s11 + $0x70] sm:$0xff]
      %v1936 = vld [vmem:[%s11 + $0x78] sm:$0xff]
      %v1937 = vld [vmem:[%s12] sm:$0x1]
      %v1939 = vlaneseq
      %v1940 = vshrl.u32 %v1939, 7
      %v1941 = vsub.s32 0, %v1940
      %v1942 = vrot.slane %v1937, %v1941
      %1944 = vmatprep.subr.mxu0 0.0
      %1945 = vmatpush1.msra.mxu0 %v1936
      %1946 = vmatprep.subr.mxu0 0.0
      %1947 = vmatpush1.msra.mxu0 %v1935
      %1948 = vmatprep.subr.mxu0 0.0
      %1949 = vmatpush1.msra.mxu0 %v1934
      %1950 = vmatprep.subr.mxu0 0.0
      %1951 = vmatpush1.msra.mxu0 %v1933
      %1952 = vmatprep.subr.mxu0 0.0
      %1953 = vmatpush1.msra.mxu0 %v1932
      %1954 = vmatprep.subr.mxu0 0.0
      %1955 = vmatpush1.msra.mxu0 %v1931
      %1956 = vmatprep.subr.mxu0 0.0
      %1957 = vmatpush1.msra.mxu0 %v1930
      %1958 = vmatprep.subr.mxu0 0.0
      %1959 = vmatpush1.msra.mxu0 %v1929
      %1960 = vmatprep.subr.mxu0 0.0
      %1961 = vmatpush1.msra.mxu0 %v1928
      %1962 = vmatprep.subr.mxu0 0.0
      %1963 = vmatpush1.msra.mxu0 %v1927
      %1964 = vmatprep.subr.mxu0 0.0
      %1965 = vmatpush1.msra.mxu0 %v1926
      %1966 = vmatprep.subr.mxu0 0.0
      %1967 = vmatpush1.msra.mxu0 %v1925
      %1968 = vmatprep.subr.mxu0 0.0
      %1969 = vmatpush1.msra.mxu0 %v1924
      %1970 = vmatprep.subr.mxu0 0.0
      %1971 = vmatpush1.msra.mxu0 %v1923
      %1972 = vmatprep.subr.mxu0 0.0
      %1973 = vmatpush1.msra.mxu0 %v1922
      %1974 = vmatprep.subr.mxu0 0.0
      %1975 = vmatpush1.msra.mxu0 %v1921
      %1976 = vmatprep.subr.mxu0 0.0
      %1977 = vmatpush2.msra.mxu0 0.0
      %1978 = vmatprep.subr.mxu0 0.0
      %1979 = vmatpush2.msra.mxu0 0.0
      %1980 = vmatprep.subr.mxu0 0.0
      %1981 = vmatpush2.msra.mxu0 0.0
      %1982 = vmatprep.subr.mxu0 0.0
      %1983 = vmatpush2.msra.mxu0 0.0
      %1984 = vmatprep.subr.mxu0 0.0
      %1985 = vmatpush2.msra.mxu0 0.0
      %1986 = vmatprep.subr.mxu0 0.0
      %1987 = vmatpush2.msra.mxu0 0.0
      %1988 = vmatprep.subr.mxu0 0.0
      %1989 = vmatpush2.msra.mxu0 0.0
      %1990 = vmatprep.subr.mxu0 0.0
      %1991 = vmatpush2.msra.mxu0 0.0
      %1992 = vmatprep.subr.mxu0 0.0
      %1993 = vmatpush2.msra.mxu0 0.0
      %1994 = vmatprep.subr.mxu0 0.0
      %1995 = vmatpush2.msra.mxu0 0.0
      %1996 = vmatprep.subr.mxu0 0.0
      %1997 = vmatpush2.msra.mxu0 0.0
      %1998 = vmatprep.subr.mxu0 0.0
      %1999 = vmatpush2.msra.mxu0 0.0
      %2000 = vmatprep.subr.mxu0 0.0
      %2001 = vmatpush2.msra.mxu0 0.0
      %2002 = vmatprep.subr.mxu0 0.0
      %2003 = vmatpush2.msra.mxu0 0.0
      %2004 = vmatprep.subr.mxu0 0.0
      %2005 = vmatpush2.msra.mxu0 0.0
      %2006 = vmatprep.subr.mxu0 0.0
      %2007 = vmatpush2.msra.mxu0 0.0
      %2008 = vmatprep.mubr.f32.mxu0 0.0
      %2009 = vmatmul.mubr.f32.gmra.mxu0 %v714
      %v2010 = vpop.f32.mrf.mxu0
      %v2011 = vadd.f32 %v1942, %v2010
      %v2012 = vpop.f32.mrf.mxu0
      %2013 = vmatprep.mubr.f32.mxu0 0.0
      %2014 = vmatmul.mubr.f32.gmra.mxu0 %v715
      %v2015 = vpop.f32.mrf.mxu0
      %v2016 = vadd.f32 %v1942, %v2015
      %v2017 = vpop.f32.mrf.mxu0
      %2018 = vdwg.mxu0
      %v2019 = vld [vmem:[%s13] sm:$0xff]
      %v2020 = vld [vmem:[%s13 + $0x8] sm:$0xff]
      %v2021 = vld [vmem:[%s13 + $0x10] sm:$0xff]
      %v2022 = vld [vmem:[%s13 + $0x18] sm:$0xff]
      %v2023 = vld [vmem:[%s14] sm:$0x1]
      %v2024 = vld [vmem:[%s15] sm:$0x1]
      %v2025 = vld [vmem:[%s16] sm:$0x1]
      %v2027 = vsel %vm839, %v1913, 0
      %v2030 = vsel %vm839, %v1918, 0
      %v2033 = vsel %vm839, %v2011, 0
      %v2036 = vsel %vm839, %v2016, 0
      %2038 = vmatprep.subr.mxu0 0.0
      %2039 = vmatpush1.xpose.msra.mxu0 0.0
      %2040 = vmatprep.subr.mxu0 0.0
      %2041 = vmatpush1.xpose.msra.mxu0 0.0
      %2042 = vmatprep.subr.mxu0 0.0
      %2043 = vmatpush1.xpose.msra.mxu0 0.0
      %2044 = vmatprep.subr.mxu0 0.0
      %2045 = vmatpush1.xpose.msra.mxu0 0.0
      %2046 = vmatprep.subr.mxu0 0.0
      %2047 = vmatpush1.xpose.msra.mxu0 0.0
      %2048 = vmatprep.subr.mxu0 0.0
      %2049 = vmatpush1.xpose.msra.mxu0 0.0
      %2050 = vmatprep.subr.mxu0 0.0
      %2051 = vmatpush1.xpose.msra.mxu0 0.0
      %2052 = vmatprep.subr.mxu0 0.0
      %2053 = vmatpush1.xpose.msra.mxu0 0.0
      %2054 = vmatprep.subr.mxu0 0.0
      %2055 = vmatpush1.xpose.msra.mxu0 0.0
      %2056 = vmatprep.subr.mxu0 0.0
      %2057 = vmatpush1.xpose.msra.mxu0 0.0
      %2058 = vmatprep.subr.mxu0 0.0
      %2059 = vmatpush1.xpose.msra.mxu0 0.0
      %2060 = vmatprep.subr.mxu0 0.0
      %2061 = vmatpush1.xpose.msra.mxu0 0.0
      %2062 = vmatprep.subr.mxu0 0.0
      %2063 = vmatpush1.xpose.msra.mxu0 0.0
      %2064 = vmatprep.subr.mxu0 0.0
      %2065 = vmatpush1.xpose.msra.mxu0 0.0
      %2066 = vmatprep.subr.mxu0 0.0
      %2067 = vmatpush1.xpose.msra.mxu0 %v2036
      %2068 = vmatprep.subr.mxu0 0.0
      %2069 = vmatpush1.xpose.msra.mxu0 %v2033
      %2070 = vmatprep.subr.mxu0 0.0
      %2071 = vmatpush2.xpose.msra.mxu0 0.0
      %2072 = vmatprep.subr.mxu0 0.0
      %2073 = vmatpush2.xpose.msra.mxu0 0.0
      %2074 = vmatprep.subr.mxu0 0.0
      %2075 = vmatpush2.xpose.msra.mxu0 0.0
      %2076 = vmatprep.subr.mxu0 0.0
      %2077 = vmatpush2.xpose.msra.mxu0 0.0
      %2078 = vmatprep.subr.mxu0 0.0
      %2079 = vmatpush2.xpose.msra.mxu0 0.0
      %2080 = vmatprep.subr.mxu0 0.0
      %2081 = vmatpush2.xpose.msra.mxu0 0.0
      %2082 = vmatprep.subr.mxu0 0.0
      %2083 = vmatpush2.xpose.msra.mxu0 0.0
      %2084 = vmatprep.subr.mxu0 0.0
      %2085 = vmatpush2.xpose.msra.mxu0 0.0
      %2086 = vmatprep.subr.mxu0 0.0
      %2087 = vmatpush2.xpose.msra.mxu0 0.0
      %2088 = vmatprep.subr.mxu0 0.0
      %2089 = vmatpush2.xpose.msra.mxu0 0.0
      %2090 = vmatprep.subr.mxu0 0.0
      %2091 = vmatpush2.xpose.msra.mxu0 0.0
      %2092 = vmatprep.subr.mxu0 0.0
      %2093 = vmatpush2.xpose.msra.mxu0 0.0
      %2094 = vmatprep.subr.mxu0 0.0
      %2095 = vmatpush2.xpose.msra.mxu0 0.0
      %2096 = vmatprep.subr.mxu0 0.0
      %2097 = vmatpush2.xpose.msra.mxu0 0.0
      %2098 = vmatprep.subr.mxu0 0.0
      %2099 = vmatpush2.xpose.msra.mxu0 0.0
      %2100 = vmatprep.subr.mxu0 0.0
      %2101 = vmatpush2.xpose.msra.mxu0 0.0
      %2102 = vmatprep.mubr.f32.mxu0 0.0
      %2103 = vmatmul.mubr.f32.gmra.mxu0 %v2027
      %v2104 = vpop.f32.mrf.mxu0
      %v2105 = vadd.f32 0.0, %v2104
      %v2106 = vpop.f32.mrf.mxu0
      %2107 = vmatprep.mubr.f32.mxu0 0.0
      %2108 = vmatmul.mubr.f32.gmra.mxu0 %v2030
      %v2109 = vpop.f32.mrf.mxu0
      %v2110 = vadd.f32 0.0, %v2109
      %v2111 = vpop.f32.mrf.mxu0
      %2112 = vdwg.mxu0
      %v2113 = vmul.f32 %v2105, 0.35355338
      %v2114 = vmul.f32 %v2110, 0.35355338
      %v2115 = vadd.f32 %v2113, %v727
      %v2116 = vadd.f32 %v2114, %v727
      %v2117 = vsel %vm1681, %v2115, -inf
      %2118 = vmax.xlane.f32.xlu0 %v2117
      %v2119 = vpop.xlane.xlu0 %2118
      %vm2120 = vcmask 122880
      %v2121 = vsel %vm2120, %v2116, -inf
      %2122 = vmax.xlane.f32.xlu0 %v2121
      %v2123 = vpop.xlane.xlu0 %2122
      %v2124 = vsub.f32 %v2115, %v2119
      %v2125 = vsub.f32 %v2116, %v2123
      %v2126 = vmul.f32 %v2124, 1.442695
      %v2127 = vpow.pop %v2126
      %v2128 = vmul.f32 %v2125, 1.442695
      %v2129 = vpow.pop %v2128
      %v2130 = vsel %vm1681, %v2127, 0.0
      %2131 = vadd.xlane.f32.xlu0 %v2130
      %v2132 = vpop.xlane.xlu0 %2131
      %v2133 = vsel %vm2120, %v2129, 0.0
      %2134 = vadd.xlane.f32.xlu0 %v2133
      %v2135 = vpop.xlane.xlu0 %2134
      %v2136 = vrcp.pop %v2132
      %v2137 = vrcp.pop %v2135
      %v2138 = vmul.f32 %v2127, %v2136
      %v2139 = vmul.f32 %v2129, %v2137
      %2140 = vrot.lane.b32.xlu0 %v2011, 96
      %v2141 = vpop.permute.xlu0 %2140
      %2142 = vrot.lane.b32.xlu0 %v2016, 96
      %v2143 = vpop.permute.xlu0 %2142
      %v2147 = vsel %vm1681, %v2138, 0
      %v2150 = vsel %vm1681, %v2139, 0
      %2152 = vmatprep.subr.mxu0 0.0
      %2153 = vmatpush1.msra.mxu0 0.0
      %2154 = vmatprep.subr.mxu0 0.0
      %2155 = vmatpush1.msra.mxu0 0.0
      %2156 = vmatprep.subr.mxu0 0.0
      %2157 = vmatpush1.msra.mxu0 0.0
      %2158 = vmatprep.subr.mxu0 0.0
      %2159 = vmatpush1.msra.mxu0 0.0
      %2160 = vmatprep.subr.mxu0 0.0
      %2161 = vmatpush1.msra.mxu0 0.0
      %2162 = vmatprep.subr.mxu0 0.0
      %2163 = vmatpush1.msra.mxu0 0.0
      %2164 = vmatprep.subr.mxu0 0.0
      %2165 = vmatpush1.msra.mxu0 0.0
      %2166 = vmatprep.subr.mxu0 0.0
      %2167 = vmatpush1.msra.mxu0 0.0
      %2168 = vmatprep.subr.mxu0 0.0
      %2169 = vmatpush1.msra.mxu0 0.0
      %2170 = vmatprep.subr.mxu0 0.0
      %2171 = vmatpush1.msra.mxu0 0.0
      %2172 = vmatprep.subr.mxu0 0.0
      %2173 = vmatpush1.msra.mxu0 0.0
      %2174 = vmatprep.subr.mxu0 0.0
      %2175 = vmatpush1.msra.mxu0 0.0
      %2176 = vmatprep.subr.mxu0 0.0
      %2177 = vmatpush1.msra.mxu0 0.0
      %2178 = vmatprep.subr.mxu0 0.0
      %2179 = vmatpush1.msra.mxu0 0.0
      %2180 = vmatprep.subr.mxu0 0.0
      %2181 = vmatpush1.msra.mxu0 %v2143
      %2182 = vmatprep.subr.mxu0 0.0
      %2183 = vmatpush1.msra.mxu0 %v2141
      %2184 = vmatprep.subr.mxu0 0.0
      %2185 = vmatpush2.msra.mxu0 0.0
      %2186 = vmatprep.subr.mxu0 0.0
      %2187 = vmatpush2.msra.mxu0 0.0
      %2188 = vmatprep.subr.mxu0 0.0
      %2189 = vmatpush2.msra.mxu0 0.0
      %2190 = vmatprep.subr.mxu0 0.0
      %2191 = vmatpush2.msra.mxu0 0.0
      %2192 = vmatprep.subr.mxu0 0.0
      %2193 = vmatpush2.msra.mxu0 0.0
      %2194 = vmatprep.subr.mxu0 0.0
      %2195 = vmatpush2.msra.mxu0 0.0
      %2196 = vmatprep.subr.mxu0 0.0
      %2197 = vmatpush2.msra.mxu0 0.0
      %2198 = vmatprep.subr.mxu0 0.0
      %2199 = vmatpush2.msra.mxu0 0.0
      %2200 = vmatprep.subr.mxu0 0.0
      %2201 = vmatpush2.msra.mxu0 0.0
      %2202 = vmatprep.subr.mxu0 0.0
      %2203 = vmatpush2.msra.mxu0 0.0
      %2204 = vmatprep.subr.mxu0 0.0
      %2205 = vmatpush2.msra.mxu0 0.0
      %2206 = vmatprep.subr.mxu0 0.0
      %2207 = vmatpush2.msra.mxu0 0.0
      %2208 = vmatprep.subr.mxu0 0.0
      %2209 = vmatpush2.msra.mxu0 0.0
      %2210 = vmatprep.subr.mxu0 0.0
      %2211 = vmatpush2.msra.mxu0 0.0
      %2212 = vmatprep.subr.mxu0 0.0
      %2213 = vmatpush2.msra.mxu0 0.0
      %2214 = vmatprep.subr.mxu0 0.0
      %2215 = vmatpush2.msra.mxu0 0.0
      %2216 = vmatprep.mubr.f32.mxu0 0.0
      %2217 = vmatmul.mubr.f32.gmra.mxu0 %v2147
      %v2218 = vpop.f32.mrf.mxu0
      %v2219 = vadd.f32 0.0, %v2218
      %v2220 = vpop.f32.mrf.mxu0
      %2221 = vmatprep.mubr.f32.mxu0 0.0
      %2222 = vmatmul.mubr.f32.gmra.mxu0 %v2150
      %v2223 = vpop.f32.mrf.mxu0
      %v2224 = vadd.f32 0.0, %v2223
      %v2225 = vpop.f32.mrf.mxu0
      %2226 = vdwg.mxu0
      %2227 = vrot.lane.b32.xlu0 %v1913, 120
      %v2228 = vpop.permute.xlu0 %2227
      %2229 = vrot.lane.b32.xlu0 %v1918, 120
      %v2230 = vpop.permute.xlu0 %2229
      %2231 = vrot.lane.b32.xlu0 %v2011, 120
      %v2232 = vpop.permute.xlu0 %2231
      %2233 = vrot.lane.b32.xlu0 %v2016, 120
      %v2234 = vpop.permute.xlu0 %2233
      %v2235 = vsel %vm839, %v2228, 0
      %v2237 = vsel %vm839, %v2230, 0
      %v2239 = vsel %vm839, %v2232, 0
      %v2241 = vsel %vm839, %v2234, 0
      %2243 = vmatprep.subr.mxu0 0.0
      %2244 = vmatpush1.xpose.msra.mxu0 0.0
      %2245 = vmatprep.subr.mxu0 0.0
      %2246 = vmatpush1.xpose.msra.mxu0 0.0
      %2247 = vmatprep.subr.mxu0 0.0
      %2248 = vmatpush1.xpose.msra.mxu0 0.0
      %2249 = vmatprep.subr.mxu0 0.0
      %2250 = vmatpush1.xpose.msra.mxu0 0.0
      %2251 = vmatprep.subr.mxu0 0.0
      %2252 = vmatpush1.xpose.msra.mxu0 0.0
      %2253 = vmatprep.subr.mxu0 0.0
      %2254 = vmatpush1.xpose.msra.mxu0 0.0
      %2255 = vmatprep.subr.mxu0 0.0
      %2256 = vmatpush1.xpose.msra.mxu0 0.0
      %2257 = vmatprep.subr.mxu0 0.0
      %2258 = vmatpush1.xpose.msra.mxu0 0.0
      %2259 = vmatprep.subr.mxu0 0.0
      %2260 = vmatpush1.xpose.msra.mxu0 0.0
      %2261 = vmatprep.subr.mxu0 0.0
      %2262 = vmatpush1.xpose.msra.mxu0 0.0
      %2263 = vmatprep.subr.mxu0 0.0
      %2264 = vmatpush1.xpose.msra.mxu0 0.0
      %2265 = vmatprep.subr.mxu0 0.0
      %2266 = vmatpush1.xpose.msra.mxu0 0.0
      %2267 = vmatprep.subr.mxu0 0.0
      %2268 = vmatpush1.xpose.msra.mxu0 0.0
      %2269 = vmatprep.subr.mxu0 0.0
      %2270 = vmatpush1.xpose.msra.mxu0 0.0
      %2271 = vmatprep.subr.mxu0 0.0
      %2272 = vmatpush1.xpose.msra.mxu0 %v2241
      %2273 = vmatprep.subr.mxu0 0.0
      %2274 = vmatpush1.xpose.msra.mxu0 %v2239
      %2275 = vmatprep.subr.mxu0 0.0
      %2276 = vmatpush2.xpose.msra.mxu0 0.0
      %2277 = vmatprep.subr.mxu0 0.0
      %2278 = vmatpush2.xpose.msra.mxu0 0.0
      %2279 = vmatprep.subr.mxu0 0.0
      %2280 = vmatpush2.xpose.msra.mxu0 0.0
      %2281 = vmatprep.subr.mxu0 0.0
      %2282 = vmatpush2.xpose.msra.mxu0 0.0
      %2283 = vmatprep.subr.mxu0 0.0
      %2284 = vmatpush2.xpose.msra.mxu0 0.0
      %2285 = vmatprep.subr.mxu0 0.0
      %2286 = vmatpush2.xpose.msra.mxu0 0.0
      %2287 = vmatprep.subr.mxu0 0.0
      %2288 = vmatpush2.xpose.msra.mxu0 0.0
      %2289 = vmatprep.subr.mxu0 0.0
      %2290 = vmatpush2.xpose.msra.mxu0 0.0
      %2291 = vmatprep.subr.mxu0 0.0
      %2292 = vmatpush2.xpose.msra.mxu0 0.0
      %2293 = vmatprep.subr.mxu0 0.0
      %2294 = vmatpush2.xpose.msra.mxu0 0.0
      %2295 = vmatprep.subr.mxu0 0.0
      %2296 = vmatpush2.xpose.msra.mxu0 0.0
      %2297 = vmatprep.subr.mxu0 0.0
      %2298 = vmatpush2.xpose.msra.mxu0 0.0
      %2299 = vmatprep.subr.mxu0 0.0
      %2300 = vmatpush2.xpose.msra.mxu0 0.0
      %2301 = vmatprep.subr.mxu0 0.0
      %2302 = vmatpush2.xpose.msra.mxu0 0.0
      %2303 = vmatprep.subr.mxu0 0.0
      %2304 = vmatpush2.xpose.msra.mxu0 0.0
      %2305 = vmatprep.subr.mxu0 0.0
      %2306 = vmatpush2.xpose.msra.mxu0 0.0
      %2307 = vmatprep.mubr.f32.mxu0 0.0
      %2308 = vmatmul.mubr.f32.gmra.mxu0 %v2235
      %v2309 = vpop.f32.mrf.mxu0
      %v2310 = vadd.f32 0.0, %v2309
      %v2311 = vpop.f32.mrf.mxu0
      %2312 = vmatprep.mubr.f32.mxu0 0.0
      %2313 = vmatmul.mubr.f32.gmra.mxu0 %v2237
      %v2314 = vpop.f32.mrf.mxu0
      %v2315 = vadd.f32 0.0, %v2314
      %v2316 = vpop.f32.mrf.mxu0
      %2317 = vdwg.mxu0
      %v2318 = vmul.f32 %v2310, 0.35355338
      %v2319 = vmul.f32 %v2315, 0.35355338
      %v2320 = vadd.f32 %v2318, %v727
      %v2321 = vadd.f32 %v2319, %v727
      %v2322 = vsel %vm1681, %v2320, -inf
      %2323 = vmax.xlane.f32.xlu0 %v2322
      %v2324 = vpop.xlane.xlu0 %2323
      %v2325 = vsel %vm2120, %v2321, -inf
      %2326 = vmax.xlane.f32.xlu0 %v2325
      %v2327 = vpop.xlane.xlu0 %2326
      %v2328 = vsub.f32 %v2320, %v2324
      %v2329 = vsub.f32 %v2321, %v2327
      %v2330 = vmul.f32 %v2328, 1.442695
      %v2331 = vpow.pop %v2330
      %v2332 = vmul.f32 %v2329, 1.442695
      %v2333 = vpow.pop %v2332
      %v2334 = vsel %vm1681, %v2331, 0.0
      %2335 = vadd.xlane.f32.xlu0 %v2334
      %v2336 = vpop.xlane.xlu0 %2335
      %v2337 = vsel %vm2120, %v2333, 0.0
      %2338 = vadd.xlane.f32.xlu0 %v2337
      %v2339 = vpop.xlane.xlu0 %2338
      %v2340 = vrcp.pop %v2336
      %v2341 = vrcp.pop %v2339
      %v2342 = vmul.f32 %v2331, %v2340
      %v2343 = vmul.f32 %v2333, %v2341
      %2344 = vrot.lane.b32.xlu0 %v2011, 88
      %v2345 = vpop.permute.xlu0 %2344
      %2346 = vrot.lane.b32.xlu0 %v2016, 88
      %v2347 = vpop.permute.xlu0 %2346
      %v2351 = vsel %vm1681, %v2342, 0
      %v2354 = vsel %vm1681, %v2343, 0
      %2356 = vmatprep.subr.mxu0 0.0
      %2357 = vmatpush1.msra.mxu0 0.0
      %2358 = vmatprep.subr.mxu0 0.0
      %2359 = vmatpush1.msra.mxu0 0.0
      %2360 = vmatprep.subr.mxu0 0.0
      %2361 = vmatpush1.msra.mxu0 0.0
      %2362 = vmatprep.subr.mxu0 0.0
      %2363 = vmatpush1.msra.mxu0 0.0
      %2364 = vmatprep.subr.mxu0 0.0
      %2365 = vmatpush1.msra.mxu0 0.0
      %2366 = vmatprep.subr.mxu0 0.0
      %2367 = vmatpush1.msra.mxu0 0.0
      %2368 = vmatprep.subr.mxu0 0.0
      %2369 = vmatpush1.msra.mxu0 0.0
      %2370 = vmatprep.subr.mxu0 0.0
      %2371 = vmatpush1.msra.mxu0 0.0
      %2372 = vmatprep.subr.mxu0 0.0
      %2373 = vmatpush1.msra.mxu0 0.0
      %2374 = vmatprep.subr.mxu0 0.0
      %2375 = vmatpush1.msra.mxu0 0.0
      %2376 = vmatprep.subr.mxu0 0.0
      %2377 = vmatpush1.msra.mxu0 0.0
      %2378 = vmatprep.subr.mxu0 0.0
      %2379 = vmatpush1.msra.mxu0 0.0
      %2380 = vmatprep.subr.mxu0 0.0
      %2381 = vmatpush1.msra.mxu0 0.0
      %2382 = vmatprep.subr.mxu0 0.0
      %2383 = vmatpush1.msra.mxu0 0.0
      %2384 = vmatprep.subr.mxu0 0.0
      %2385 = vmatpush1.msra.mxu0 %v2347
      %2386 = vmatprep.subr.mxu0 0.0
      %2387 = vmatpush1.msra.mxu0 %v2345
      %2388 = vmatprep.subr.mxu0 0.0
      %2389 = vmatpush2.msra.mxu0 0.0
      %2390 = vmatprep.subr.mxu0 0.0
      %2391 = vmatpush2.msra.mxu0 0.0
      %2392 = vmatprep.subr.mxu0 0.0
      %2393 = vmatpush2.msra.mxu0 0.0
      %2394 = vmatprep.subr.mxu0 0.0
      %2395 = vmatpush2.msra.mxu0 0.0
      %2396 = vmatprep.subr.mxu0 0.0
      %2397 = vmatpush2.msra.mxu0 0.0
      %2398 = vmatprep.subr.mxu0 0.0
      %2399 = vmatpush2.msra.mxu0 0.0
      %2400 = vmatprep.subr.mxu0 0.0
      %2401 = vmatpush2.msra.mxu0 0.0
      %2402 = vmatprep.subr.mxu0 0.0
      %2403 = vmatpush2.msra.mxu0 0.0
      %2404 = vmatprep.subr.mxu0 0.0
      %2405 = vmatpush2.msra.mxu0 0.0
      %2406 = vmatprep.subr.mxu0 0.0
      %2407 = vmatpush2.msra.mxu0 0.0
      %2408 = vmatprep.subr.mxu0 0.0
      %2409 = vmatpush2.msra.mxu0 0.0
      %2410 = vmatprep.subr.mxu0 0.0
      %2411 = vmatpush2.msra.mxu0 0.0
      %2412 = vmatprep.subr.mxu0 0.0
      %2413 = vmatpush2.msra.mxu0 0.0
      %2414 = vmatprep.subr.mxu0 0.0
      %2415 = vmatpush2.msra.mxu0 0.0
      %2416 = vmatprep.subr.mxu0 0.0
      %2417 = vmatpush2.msra.mxu0 0.0
      %2418 = vmatprep.subr.mxu0 0.0
      %2419 = vmatpush2.msra.mxu0 0.0
      %2420 = vmatprep.mubr.f32.mxu0 0.0
      %2421 = vmatmul.mubr.f32.gmra.mxu0 %v2351
      %v2422 = vpop.f32.mrf.mxu0
      %v2423 = vadd.f32 0.0, %v2422
      %v2424 = vpop.f32.mrf.mxu0
      %2425 = vmatprep.mubr.f32.mxu0 0.0
      %2426 = vmatmul.mubr.f32.gmra.mxu0 %v2354
      %v2427 = vpop.f32.mrf.mxu0
      %v2428 = vadd.f32 0.0, %v2427
      %v2429 = vpop.f32.mrf.mxu0
      %2430 = vdwg.mxu0
      %2431 = vrot.lane.b32.xlu0 %v1913, 112
      %v2432 = vpop.permute.xlu0 %2431
      %2433 = vrot.lane.b32.xlu0 %v1918, 112
      %v2434 = vpop.permute.xlu0 %2433
      %2435 = vrot.lane.b32.xlu0 %v2011, 112
      %v2436 = vpop.permute.xlu0 %2435
      %2437 = vrot.lane.b32.xlu0 %v2016, 112
      %v2438 = vpop.permute.xlu0 %2437
      %v2439 = vsel %vm839, %v2432, 0
      %v2441 = vsel %vm839, %v2434, 0
      %v2443 = vsel %vm839, %v2436, 0
      %v2445 = vsel %vm839, %v2438, 0
      %2447 = vmatprep.subr.mxu0 0.0
      %2448 = vmatpush1.xpose.msra.mxu0 0.0
      %2449 = vmatprep.subr.mxu0 0.0
      %2450 = vmatpush1.xpose.msra.mxu0 0.0
      %2451 = vmatprep.subr.mxu0 0.0
      %2452 = vmatpush1.xpose.msra.mxu0 0.0
      %2453 = vmatprep.subr.mxu0 0.0
      %2454 = vmatpush1.xpose.msra.mxu0 0.0
      %2455 = vmatprep.subr.mxu0 0.0
      %2456 = vmatpush1.xpose.msra.mxu0 0.0
      %2457 = vmatprep.subr.mxu0 0.0
      %2458 = vmatpush1.xpose.msra.mxu0 0.0
      %2459 = vmatprep.subr.mxu0 0.0
      %2460 = vmatpush1.xpose.msra.mxu0 0.0
      %2461 = vmatprep.subr.mxu0 0.0
      %2462 = vmatpush1.xpose.msra.mxu0 0.0
      %2463 = vmatprep.subr.mxu0 0.0
      %2464 = vmatpush1.xpose.msra.mxu0 0.0
      %2465 = vmatprep.subr.mxu0 0.0
      %2466 = vmatpush1.xpose.msra.mxu0 0.0
      %2467 = vmatprep.subr.mxu0 0.0
      %2468 = vmatpush1.xpose.msra.mxu0 0.0
      %2469 = vmatprep.subr.mxu0 0.0
      %2470 = vmatpush1.xpose.msra.mxu0 0.0
      %2471 = vmatprep.subr.mxu0 0.0
      %2472 = vmatpush1.xpose.msra.mxu0 0.0
      %2473 = vmatprep.subr.mxu0 0.0
      %2474 = vmatpush1.xpose.msra.mxu0 0.0
      %2475 = vmatprep.subr.mxu0 0.0
      %2476 = vmatpush1.xpose.msra.mxu0 %v2445
      %2477 = vmatprep.subr.mxu0 0.0
      %2478 = vmatpush1.xpose.msra.mxu0 %v2443
      %2479 = vmatprep.subr.mxu0 0.0
      %2480 = vmatpush2.xpose.msra.mxu0 0.0
      %2481 = vmatprep.subr.mxu0 0.0
      %2482 = vmatpush2.xpose.msra.mxu0 0.0
      %2483 = vmatprep.subr.mxu0 0.0
      %2484 = vmatpush2.xpose.msra.mxu0 0.0
      %2485 = vmatprep.subr.mxu0 0.0
      %2486 = vmatpush2.xpose.msra.mxu0 0.0
      %2487 = vmatprep.subr.mxu0 0.0
      %2488 = vmatpush2.xpose.msra.mxu0 0.0
      %2489 = vmatprep.subr.mxu0 0.0
      %2490 = vmatpush2.xpose.msra.mxu0 0.0
      %2491 = vmatprep.subr.mxu0 0.0
      %2492 = vmatpush2.xpose.msra.mxu0 0.0
      %2493 = vmatprep.subr.mxu0 0.0
      %2494 = vmatpush2.xpose.msra.mxu0 0.0
      %2495 = vmatprep.subr.mxu0 0.0
      %2496 = vmatpush2.xpose.msra.mxu0 0.0
      %2497 = vmatprep.subr.mxu0 0.0
      %2498 = vmatpush2.xpose.msra.mxu0 0.0
      %2499 = vmatprep.subr.mxu0 0.0
      %2500 = vmatpush2.xpose.msra.mxu0 0.0
      %2501 = vmatprep.subr.mxu0 0.0
      %2502 = vmatpush2.xpose.msra.mxu0 0.0
      %2503 = vmatprep.subr.mxu0 0.0
      %2504 = vmatpush2.xpose.msra.mxu0 0.0
      %2505 = vmatprep.subr.mxu0 0.0
      %2506 = vmatpush2.xpose.msra.mxu0 0.0
      %2507 = vmatprep.subr.mxu0 0.0
      %2508 = vmatpush2.xpose.msra.mxu0 0.0
      %2509 = vmatprep.subr.mxu0 0.0
      %2510 = vmatpush2.xpose.msra.mxu0 0.0
      %2511 = vmatprep.mubr.f32.mxu0 0.0
      %2512 = vmatmul.mubr.f32.gmra.mxu0 %v2439
      %v2513 = vpop.f32.mrf.mxu0
      %v2514 = vadd.f32 0.0, %v2513
      %v2515 = vpop.f32.mrf.mxu0
      %2516 = vmatprep.mubr.f32.mxu0 0.0
      %2517 = vmatmul.mubr.f32.gmra.mxu0 %v2441
      %v2518 = vpop.f32.mrf.mxu0
      %v2519 = vadd.f32 0.0, %v2518
      %v2520 = vpop.f32.mrf.mxu0
      %2521 = vdwg.mxu0
      %v2522 = vmul.f32 %v2514, 0.35355338
      %v2523 = vmul.f32 %v2519, 0.35355338
      %v2524 = vadd.f32 %v2522, %v727
      %v2525 = vadd.f32 %v2523, %v727
      %v2526 = vsel %vm1681, %v2524, -inf
      %2527 = vmax.xlane.f32.xlu0 %v2526
      %v2528 = vpop.xlane.xlu0 %2527
      %v2529 = vsel %vm2120, %v2525, -inf
      %2530 = vmax.xlane.f32.xlu0 %v2529
      %v2531 = vpop.xlane.xlu0 %2530
      %v2532 = vsub.f32 %v2524, %v2528
      %v2533 = vsub.f32 %v2525, %v2531
      %v2534 = vmul.f32 %v2532, 1.442695
      %v2535 = vpow.pop %v2534
      %v2536 = vmul.f32 %v2533, 1.442695
      %v2537 = vpow.pop %v2536
      %v2538 = vsel %vm1681, %v2535, 0.0
      %2539 = vadd.xlane.f32.xlu0 %v2538
      %v2540 = vpop.xlane.xlu0 %2539
      %v2541 = vsel %vm2120, %v2537, 0.0
      %2542 = vadd.xlane.f32.xlu0 %v2541
      %v2543 = vpop.xlane.xlu0 %2542
      %v2544 = vrcp.pop %v2540
      %v2545 = vrcp.pop %v2543
      %v2546 = vmul.f32 %v2535, %v2544
      %v2547 = vmul.f32 %v2537, %v2545
      %2548 = vrot.lane.b32.xlu0 %v2011, 80
      %v2549 = vpop.permute.xlu0 %2548
      %2550 = vrot.lane.b32.xlu0 %v2016, 80
      %v2551 = vpop.permute.xlu0 %2550
      %v2555 = vsel %vm1681, %v2546, 0
      %v2558 = vsel %vm1681, %v2547, 0
      %2560 = vmatprep.subr.mxu0 0.0
      %2561 = vmatpush1.msra.mxu0 0.0
      %2562 = vmatprep.subr.mxu0 0.0
      %2563 = vmatpush1.msra.mxu0 0.0
      %2564 = vmatprep.subr.mxu0 0.0
      %2565 = vmatpush1.msra.mxu0 0.0
      %2566 = vmatprep.subr.mxu0 0.0
      %2567 = vmatpush1.msra.mxu0 0.0
      %2568 = vmatprep.subr.mxu0 0.0
      %2569 = vmatpush1.msra.mxu0 0.0
      %2570 = vmatprep.subr.mxu0 0.0
      %2571 = vmatpush1.msra.mxu0 0.0
      %2572 = vmatprep.subr.mxu0 0.0
      %2573 = vmatpush1.msra.mxu0 0.0
      %2574 = vmatprep.subr.mxu0 0.0
      %2575 = vmatpush1.msra.mxu0 0.0
      %2576 = vmatprep.subr.mxu0 0.0
      %2577 = vmatpush1.msra.mxu0 0.0
      %2578 = vmatprep.subr.mxu0 0.0
      %2579 = vmatpush1.msra.mxu0 0.0
      %2580 = vmatprep.subr.mxu0 0.0
      %2581 = vmatpush1.msra.mxu0 0.0
      %2582 = vmatprep.subr.mxu0 0.0
      %2583 = vmatpush1.msra.mxu0 0.0
      %2584 = vmatprep.subr.mxu0 0.0
      %2585 = vmatpush1.msra.mxu0 0.0
      %2586 = vmatprep.subr.mxu0 0.0
      %2587 = vmatpush1.msra.mxu0 0.0
      %2588 = vmatprep.subr.mxu0 0.0
      %2589 = vmatpush1.msra.mxu0 %v2551
      %2590 = vmatprep.subr.mxu0 0.0
      %2591 = vmatpush1.msra.mxu0 %v2549
      %2592 = vmatprep.subr.mxu0 0.0
      %2593 = vmatpush2.msra.mxu0 0.0
      %2594 = vmatprep.subr.mxu0 0.0
      %2595 = vmatpush2.msra.mxu0 0.0
      %2596 = vmatprep.subr.mxu0 0.0
      %2597 = vmatpush2.msra.mxu0 0.0
      %2598 = vmatprep.subr.mxu0 0.0
      %2599 = vmatpush2.msra.mxu0 0.0
      %2600 = vmatprep.subr.mxu0 0.0
      %2601 = vmatpush2.msra.mxu0 0.0
      %2602 = vmatprep.subr.mxu0 0.0
      %2603 = vmatpush2.msra.mxu0 0.0
      %2604 = vmatprep.subr.mxu0 0.0
      %2605 = vmatpush2.msra.mxu0 0.0
      %2606 = vmatprep.subr.mxu0 0.0
      %2607 = vmatpush2.msra.mxu0 0.0
      %2608 = vmatprep.subr.mxu0 0.0
      %2609 = vmatpush2.msra.mxu0 0.0
      %2610 = vmatprep.subr.mxu0 0.0
      %2611 = vmatpush2.msra.mxu0 0.0
      %2612 = vmatprep.subr.mxu0 0.0
      %2613 = vmatpush2.msra.mxu0 0.0
      %2614 = vmatprep.subr.mxu0 0.0
      %2615 = vmatpush2.msra.mxu0 0.0
      %2616 = vmatprep.subr.mxu0 0.0
      %2617 = vmatpush2.msra.mxu0 0.0
      %2618 = vmatprep.subr.mxu0 0.0
      %2619 = vmatpush2.msra.mxu0 0.0
      %2620 = vmatprep.subr.mxu0 0.0
      %2621 = vmatpush2.msra.mxu0 0.0
      %2622 = vmatprep.subr.mxu0 0.0
      %2623 = vmatpush2.msra.mxu0 0.0
      %2624 = vmatprep.mubr.f32.mxu0 0.0
      %2625 = vmatmul.mubr.f32.gmra.mxu0 %v2555
      %v2626 = vpop.f32.mrf.mxu0
      %v2627 = vadd.f32 0.0, %v2626
      %v2628 = vpop.f32.mrf.mxu0
      %2629 = vmatprep.mubr.f32.mxu0 0.0
      %2630 = vmatmul.mubr.f32.gmra.mxu0 %v2558
      %v2631 = vpop.f32.mrf.mxu0
      %v2632 = vadd.f32 0.0, %v2631
      %v2633 = vpop.f32.mrf.mxu0
      %2634 = vdwg.mxu0
      %2635 = vrot.lane.b32.xlu0 %v1913, 104
      %v2636 = vpop.permute.xlu0 %2635
      %2637 = vrot.lane.b32.xlu0 %v1918, 104
      %v2638 = vpop.permute.xlu0 %2637
      %2639 = vrot.lane.b32.xlu0 %v2011, 104
      %v2640 = vpop.permute.xlu0 %2639
      %2641 = vrot.lane.b32.xlu0 %v2016, 104
      %v2642 = vpop.permute.xlu0 %2641
      %v2643 = vsel %vm839, %v2636, 0
      %v2645 = vsel %vm839, %v2638, 0
      %v2647 = vsel %vm839, %v2640, 0
      %v2649 = vsel %vm839, %v2642, 0
      %2651 = vmatprep.subr.mxu0 0.0
      %2652 = vmatpush1.xpose.msra.mxu0 0.0
      %2653 = vmatprep.subr.mxu0 0.0
      %2654 = vmatpush1.xpose.msra.mxu0 0.0
      %2655 = vmatprep.subr.mxu0 0.0
      %2656 = vmatpush1.xpose.msra.mxu0 0.0
      %2657 = vmatprep.subr.mxu0 0.0
      %2658 = vmatpush1.xpose.msra.mxu0 0.0
      %2659 = vmatprep.subr.mxu0 0.0
      %2660 = vmatpush1.xpose.msra.mxu0 0.0
      %2661 = vmatprep.subr.mxu0 0.0
      %2662 = vmatpush1.xpose.msra.mxu0 0.0
      %2663 = vmatprep.subr.mxu0 0.0
      %2664 = vmatpush1.xpose.msra.mxu0 0.0
      %2665 = vmatprep.subr.mxu0 0.0
      %2666 = vmatpush1.xpose.msra.mxu0 0.0
      %2667 = vmatprep.subr.mxu0 0.0
      %2668 = vmatpush1.xpose.msra.mxu0 0.0
      %2669 = vmatprep.subr.mxu0 0.0
      %2670 = vmatpush1.xpose.msra.mxu0 0.0
      %2671 = vmatprep.subr.mxu0 0.0
      %2672 = vmatpush1.xpose.msra.mxu0 0.0
      %2673 = vmatprep.subr.mxu0 0.0
      %2674 = vmatpush1.xpose.msra.mxu0 0.0
      %2675 = vmatprep.subr.mxu0 0.0
      %2676 = vmatpush1.xpose.msra.mxu0 0.0
      %2677 = vmatprep.subr.mxu0 0.0
      %2678 = vmatpush1.xpose.msra.mxu0 0.0
      %2679 = vmatprep.subr.mxu0 0.0
      %2680 = vmatpush1.xpose.msra.mxu0 %v2649
      %2681 = vmatprep.subr.mxu0 0.0
      %2682 = vmatpush1.xpose.msra.mxu0 %v2647
      %2683 = vmatprep.subr.mxu0 0.0
      %2684 = vmatpush2.xpose.msra.mxu0 0.0
      %2685 = vmatprep.subr.mxu0 0.0
      %2686 = vmatpush2.xpose.msra.mxu0 0.0
      %2687 = vmatprep.subr.mxu0 0.0
      %2688 = vmatpush2.xpose.msra.mxu0 0.0
      %2689 = vmatprep.subr.mxu0 0.0
      %2690 = vmatpush2.xpose.msra.mxu0 0.0
      %2691 = vmatprep.subr.mxu0 0.0
      %2692 = vmatpush2.xpose.msra.mxu0 0.0
      %2693 = vmatprep.subr.mxu0 0.0
      %2694 = vmatpush2.xpose.msra.mxu0 0.0
      %2695 = vmatprep.subr.mxu0 0.0
      %2696 = vmatpush2.xpose.msra.mxu0 0.0
      %2697 = vmatprep.subr.mxu0 0.0
      %2698 = vmatpush2.xpose.msra.mxu0 0.0
      %2699 = vmatprep.subr.mxu0 0.0
      %2700 = vmatpush2.xpose.msra.mxu0 0.0
      %2701 = vmatprep.subr.mxu0 0.0
      %2702 = vmatpush2.xpose.msra.mxu0 0.0
      %2703 = vmatprep.subr.mxu0 0.0
      %2704 = vmatpush2.xpose.msra.mxu0 0.0
      %2705 = vmatprep.subr.mxu0 0.0
      %2706 = vmatpush2.xpose.msra.mxu0 0.0
      %2707 = vmatprep.subr.mxu0 0.0
      %2708 = vmatpush2.xpose.msra.mxu0 0.0
      %2709 = vmatprep.subr.mxu0 0.0
      %2710 = vmatpush2.xpose.msra.mxu0 0.0
      %2711 = vmatprep.subr.mxu0 0.0
      %2712 = vmatpush2.xpose.msra.mxu0 0.0
      %2713 = vmatprep.subr.mxu0 0.0
      %2714 = vmatpush2.xpose.msra.mxu0 0.0
      %2715 = vmatprep.mubr.f32.mxu0 0.0
      %2716 = vmatmul.mubr.f32.gmra.mxu0 %v2643
      %v2717 = vpop.f32.mrf.mxu0
      %v2718 = vadd.f32 0.0, %v2717
      %v2719 = vpop.f32.mrf.mxu0
      %2720 = vmatprep.mubr.f32.mxu0 0.0
      %2721 = vmatmul.mubr.f32.gmra.mxu0 %v2645
      %v2722 = vpop.f32.mrf.mxu0
      %v2723 = vadd.f32 0.0, %v2722
      %v2724 = vpop.f32.mrf.mxu0
      %2725 = vdwg.mxu0
      %v2726 = vmul.f32 %v2718, 0.35355338
      %v2727 = vmul.f32 %v2723, 0.35355338
      %v2728 = vadd.f32 %v2726, %v727
      %v2729 = vadd.f32 %v2727, %v727
      %v2730 = vsel %vm1681, %v2728, -inf
      %2731 = vmax.xlane.f32.xlu0 %v2730
      %v2732 = vpop.xlane.xlu0 %2731
      %v2733 = vsel %vm2120, %v2729, -inf
      %2734 = vmax.xlane.f32.xlu0 %v2733
      %v2735 = vpop.xlane.xlu0 %2734
      %v2736 = vsub.f32 %v2728, %v2732
      %v2737 = vsub.f32 %v2729, %v2735
      %v2738 = vmul.f32 %v2736, 1.442695
      %v2739 = vpow.pop %v2738
      %v2740 = vmul.f32 %v2737, 1.442695
      %v2741 = vpow.pop %v2740
      %v2742 = vsel %vm1681, %v2739, 0.0
      %2743 = vadd.xlane.f32.xlu0 %v2742
      %v2744 = vpop.xlane.xlu0 %2743
      %v2745 = vsel %vm2120, %v2741, 0.0
      %2746 = vadd.xlane.f32.xlu0 %v2745
      %v2747 = vpop.xlane.xlu0 %2746
      %v2748 = vrcp.pop %v2744
      %v2749 = vrcp.pop %v2747
      %v2750 = vmul.f32 %v2739, %v2748
      %v2751 = vmul.f32 %v2741, %v2749
      %2752 = vrot.lane.b32.xlu0 %v2011, 72
      %v2753 = vpop.permute.xlu0 %2752
      %2754 = vrot.lane.b32.xlu0 %v2016, 72
      %v2755 = vpop.permute.xlu0 %2754
      %v2759 = vsel %vm1681, %v2750, 0
      %v2762 = vsel %vm1681, %v2751, 0
      %2764 = vmatprep.subr.mxu0 0.0
      %2765 = vmatpush1.msra.mxu0 0.0
      %2766 = vmatprep.subr.mxu0 0.0
      %2767 = vmatpush1.msra.mxu0 0.0
      %2768 = vmatprep.subr.mxu0 0.0
      %2769 = vmatpush1.msra.mxu0 0.0
      %2770 = vmatprep.subr.mxu0 0.0
      %2771 = vmatpush1.msra.mxu0 0.0
      %2772 = vmatprep.subr.mxu0 0.0
      %2773 = vmatpush1.msra.mxu0 0.0
      %2774 = vmatprep.subr.mxu0 0.0
      %2775 = vmatpush1.msra.mxu0 0.0
      %2776 = vmatprep.subr.mxu0 0.0
      %2777 = vmatpush1.msra.mxu0 0.0
      %2778 = vmatprep.subr.mxu0 0.0
      %2779 = vmatpush1.msra.mxu0 0.0
      %2780 = vmatprep.subr.mxu0 0.0
      %2781 = vmatpush1.msra.mxu0 0.0
      %2782 = vmatprep.subr.mxu0 0.0
      %2783 = vmatpush1.msra.mxu0 0.0
      %2784 = vmatprep.subr.mxu0 0.0
      %2785 = vmatpush1.msra.mxu0 0.0
      %2786 = vmatprep.subr.mxu0 0.0
      %2787 = vmatpush1.msra.mxu0 0.0
      %2788 = vmatprep.subr.mxu0 0.0
      %2789 = vmatpush1.msra.mxu0 0.0
      %2790 = vmatprep.subr.mxu0 0.0
      %2791 = vmatpush1.msra.mxu0 0.0
      %2792 = vmatprep.subr.mxu0 0.0
      %2793 = vmatpush1.msra.mxu0 %v2755
      %2794 = vmatprep.subr.mxu0 0.0
      %2795 = vmatpush1.msra.mxu0 %v2753
      %2796 = vmatprep.subr.mxu0 0.0
      %2797 = vmatpush2.msra.mxu0 0.0
      %2798 = vmatprep.subr.mxu0 0.0
      %2799 = vmatpush2.msra.mxu0 0.0
      %2800 = vmatprep.subr.mxu0 0.0
      %2801 = vmatpush2.msra.mxu0 0.0
      %2802 = vmatprep.subr.mxu0 0.0
      %2803 = vmatpush2.msra.mxu0 0.0
      %2804 = vmatprep.subr.mxu0 0.0
      %2805 = vmatpush2.msra.mxu0 0.0
      %2806 = vmatprep.subr.mxu0 0.0
      %2807 = vmatpush2.msra.mxu0 0.0
      %2808 = vmatprep.subr.mxu0 0.0
      %2809 = vmatpush2.msra.mxu0 0.0
      %2810 = vmatprep.subr.mxu0 0.0
      %2811 = vmatpush2.msra.mxu0 0.0
      %2812 = vmatprep.subr.mxu0 0.0
      %2813 = vmatpush2.msra.mxu0 0.0
      %2814 = vmatprep.subr.mxu0 0.0
      %2815 = vmatpush2.msra.mxu0 0.0
      %2816 = vmatprep.subr.mxu0 0.0
      %2817 = vmatpush2.msra.mxu0 0.0
      %2818 = vmatprep.subr.mxu0 0.0
      %2819 = vmatpush2.msra.mxu0 0.0
      %2820 = vmatprep.subr.mxu0 0.0
      %2821 = vmatpush2.msra.mxu0 0.0
      %2822 = vmatprep.subr.mxu0 0.0
      %2823 = vmatpush2.msra.mxu0 0.0
      %2824 = vmatprep.subr.mxu0 0.0
      %2825 = vmatpush2.msra.mxu0 0.0
      %2826 = vmatprep.subr.mxu0 0.0
      %2827 = vmatpush2.msra.mxu0 0.0
      %2828 = vmatprep.mubr.f32.mxu0 0.0
      %2829 = vmatmul.mubr.f32.gmra.mxu0 %v2759
      %v2830 = vpop.f32.mrf.mxu0
      %v2831 = vadd.f32 0.0, %v2830
      %v2832 = vpop.f32.mrf.mxu0
      %2833 = vmatprep.mubr.f32.mxu0 0.0
      %2834 = vmatmul.mubr.f32.gmra.mxu0 %v2762
      %v2835 = vpop.f32.mrf.mxu0
      %v2836 = vadd.f32 0.0, %v2835
      %v2837 = vpop.f32.mrf.mxu0
      %2838 = vdwg.mxu0
      %2841 = vrot.lane.b32.xlu0 %v2423, 8
      %v2842 = vpop.permute.xlu0 %2841
      %2843 = vrot.lane.b32.xlu0 %v2428, 8
      %v2844 = vpop.permute.xlu0 %2843
      %2849 = vrot.lane.b32.xlu0 %v2627, 16
      %v2850 = vpop.permute.xlu0 %2849
      %2851 = vrot.lane.b32.xlu0 %v2632, 16
      %v2852 = vpop.permute.xlu0 %2851
      %2857 = vrot.lane.b32.xlu0 %v2831, 24
      %v2858 = vpop.permute.xlu0 %2857
      %2859 = vrot.lane.b32.xlu0 %v2836, 24
      %v2860 = vpop.permute.xlu0 %2859
      %v2863 = vsel %vm839, %v2219, %v2842
      %v2864 = vsel %vm839, %v2224, %v2844
      %v2865 = vsel %vm1681, %v2863, %v2850
      %v2866 = vsel %vm1681, %v2864, %v2852
      %v2867 = vsel %vm1684, %v2865, %v2858
      %v2868 = vsel %vm1684, %v2866, %v2860
      %v2870 = vlaneseq
      %v2871 = vshrl.u32 %v2870, 7
      %v2872 = vsub.s32 0, %v2871
      %v2873 = vrot.slane %v2023, %v2872
      %v2876 = vsel %vm1693, %v2867, 0
      %v2879 = vsel %vm1693, %v2868, 0
      %2881 = vmatprep.subr.mxu0 0.0
      %2882 = vmatpush1.msra.mxu0 0.0
      %2883 = vmatprep.subr.mxu0 0.0
      %2884 = vmatpush1.msra.mxu0 0.0
      %2885 = vmatprep.subr.mxu0 0.0
      %2886 = vmatpush1.msra.mxu0 0.0
      %2887 = vmatprep.subr.mxu0 0.0
      %2888 = vmatpush1.msra.mxu0 0.0
      %2889 = vmatprep.subr.mxu0 0.0
      %2890 = vmatpush1.msra.mxu0 0.0
      %2891 = vmatprep.subr.mxu0 0.0
      %2892 = vmatpush1.msra.mxu0 0.0
      %2893 = vmatprep.subr.mxu0 0.0
      %2894 = vmatpush1.msra.mxu0 0.0
      %2895 = vmatprep.subr.mxu0 0.0
      %2896 = vmatpush1.msra.mxu0 0.0
      %2897 = vmatprep.subr.mxu0 0.0
      %2898 = vmatpush1.msra.mxu0 0.0
      %2899 = vmatprep.subr.mxu0 0.0
      %2900 = vmatpush1.msra.mxu0 0.0
      %2901 = vmatprep.subr.mxu0 0.0
      %2902 = vmatpush1.msra.mxu0 0.0
      %2903 = vmatprep.subr.mxu0 0.0
      %2904 = vmatpush1.msra.mxu0 0.0
      %2905 = vmatprep.subr.mxu0 0.0
      %2906 = vmatpush1.msra.mxu0 %v2022
      %2907 = vmatprep.subr.mxu0 0.0
      %2908 = vmatpush1.msra.mxu0 %v2021
      %2909 = vmatprep.subr.mxu0 0.0
      %2910 = vmatpush1.msra.mxu0 %v2020
      %2911 = vmatprep.subr.mxu0 0.0
      %2912 = vmatpush1.msra.mxu0 %v2019
      %2913 = vmatprep.subr.mxu0 0.0
      %2914 = vmatpush2.msra.mxu0 0.0
      %2915 = vmatprep.subr.mxu0 0.0
      %2916 = vmatpush2.msra.mxu0 0.0
      %2917 = vmatprep.subr.mxu0 0.0
      %2918 = vmatpush2.msra.mxu0 0.0
      %2919 = vmatprep.subr.mxu0 0.0
      %2920 = vmatpush2.msra.mxu0 0.0
      %2921 = vmatprep.subr.mxu0 0.0
      %2922 = vmatpush2.msra.mxu0 0.0
      %2923 = vmatprep.subr.mxu0 0.0
      %2924 = vmatpush2.msra.mxu0 0.0
      %2925 = vmatprep.subr.mxu0 0.0
      %2926 = vmatpush2.msra.mxu0 0.0
      %2927 = vmatprep.subr.mxu0 0.0
      %2928 = vmatpush2.msra.mxu0 0.0
      %2929 = vmatprep.subr.mxu0 0.0
      %2930 = vmatpush2.msra.mxu0 0.0
      %2931 = vmatprep.subr.mxu0 0.0
      %2932 = vmatpush2.msra.mxu0 0.0
      %2933 = vmatprep.subr.mxu0 0.0
      %2934 = vmatpush2.msra.mxu0 0.0
      %2935 = vmatprep.subr.mxu0 0.0
      %2936 = vmatpush2.msra.mxu0 0.0
      %2937 = vmatprep.subr.mxu0 0.0
      %2938 = vmatpush2.msra.mxu0 0.0
      %2939 = vmatprep.subr.mxu0 0.0
      %2940 = vmatpush2.msra.mxu0 0.0
      %2941 = vmatprep.subr.mxu0 0.0
      %2942 = vmatpush2.msra.mxu0 0.0
      %2943 = vmatprep.subr.mxu0 0.0
      %2944 = vmatpush2.msra.mxu0 0.0
      %2945 = vmatprep.mubr.f32.mxu0 0.0
      %2946 = vmatmul.mubr.f32.gmra.mxu0 %v2876
      %v2947 = vpop.f32.mrf.mxu0
      %v2948 = vadd.f32 %v2873, %v2947
      %v2949 = vpop.f32.mrf.mxu0
      %2950 = vmatprep.mubr.f32.mxu0 0.0
      %2951 = vmatmul.mubr.f32.gmra.mxu0 %v2879
      %v2952 = vpop.f32.mrf.mxu0
      %v2953 = vadd.f32 %v2873, %v2952
      %v2954 = vpop.f32.mrf.mxu0
      %2955 = vdwg.mxu0
      %v2956 = vadd.f32 %v2948, %v1821
      %v2957 = vadd.f32 %v2953, %v1822
      %2958 = vadd.xlane.f32.xlu0 %v2956
      %v2959 = vpop.xlane.xlu0 %2958
      %v2960 = vsel %vm962, %v2957, 0.0
      %2961 = vadd.xlane.f32.xlu0 %v2960
      %v2962 = vpop.xlane.xlu0 %2961
      %v2963 = vmul.f32 %v2959, 0.03125
      %v2964 = vmul.f32 %v2962, 0.03125
      %v2965 = vmul.f32 %v2956, %v2956
      %v2966 = vmul.f32 %v2957, %v2957
      %2967 = vadd.xlane.f32.xlu0 %v2965
      %v2968 = vpop.xlane.xlu0 %2967
      %v2969 = vsel %vm962, %v2966, 0.0
      %2970 = vadd.xlane.f32.xlu0 %v2969
      %v2971 = vpop.xlane.xlu0 %2970
      %v2972 = vmul.f32 %v2968, 0.03125
      %v2973 = vmul.f32 %v2971, 0.03125
      %v2974 = vmul.f32 %v2963, %v2963
      %v2975 = vmul.f32 %v2964, %v2964
      %v2976 = vsub.f32 %v2972, %v2974
      %v2977 = vsub.f32 %v2973, %v2975
      %v2978 = vmax.f32 %v2976, 0.0
      %v2979 = vmax.f32 %v2977, 0.0
      %v2980 = vsub.f32 %v2956, %v2963
      %v2981 = vsub.f32 %v2957, %v2964
      %v2982 = vadd.f32 %v2978, 1e-05
      %v2983 = vadd.f32 %v2979, 1e-05
      %v2984 = vrsqrt.pop %v2982
      %v2985 = vrsqrt.pop %v2983
      %v2986 = vmul.f32 %v2980, %v2984
      %v2987 = vmul.f32 %v2981, %v2985
      %v2989 = vlaneseq
      %v2990 = vshrl.u32 %v2989, 7
      %v2991 = vsub.s32 0, %v2990
      %v2992 = vrot.slane %v2024, %v2991
      %v2994 = vmul.f32 %v2986, %v2992
      %v2995 = vmul.f32 %v2987, %v2992
      %v2997 = vlaneseq
      %v2998 = vshrl.u32 %v2997, 7
      %v2999 = vsub.s32 0, %v2998
      %v3000 = vrot.slane %v2025, %v2999
      %v3002 = vadd.f32 %v2994, %v3000
      %v3003 = vadd.f32 %v2995, %v3000
      %v3004 = vld [vmem:[%s17] sm:$0xff]
      %v3005 = vld [vmem:[%s17 + $0x8] sm:$0xff]
      %v3006 = vld [vmem:[%s17 + $0x10] sm:$0xff]
      %v3007 = vld [vmem:[%s17 + $0x18] sm:$0xff]
      %v3008 = vld [vmem:[%s17 + $0x20] sm:$0xff]
      %v3009 = vld [vmem:[%s17 + $0x28] sm:$0xff]
      %v3010 = vld [vmem:[%s17 + $0x30] sm:$0xff]
      %v3011 = vld [vmem:[%s17 + $0x38] sm:$0xff]
      %v3012 = vld [vmem:[%s17 + $0x40] sm:$0xff]
      %v3013 = vld [vmem:[%s17 + $0x48] sm:$0xff]
      %v3014 = vld [vmem:[%s17 + $0x50] sm:$0xff]
      %v3015 = vld [vmem:[%s17 + $0x58] sm:$0xff]
      %v3016 = vld [vmem:[%s17 + $0x60] sm:$0xff]
      %v3017 = vld [vmem:[%s17 + $0x68] sm:$0xff]
      %v3018 = vld [vmem:[%s17 + $0x70] sm:$0xff]
      %v3019 = vld [vmem:[%s17 + $0x78] sm:$0xff]
      %v3020 = vld [vmem:[%s18] sm:$0x1]
      %v3021 = vld [vmem:[%s19] sm:$0xff]
      %v3022 = vld [vmem:[%s19 + $0x8] sm:$0xff]
      %v3023 = vld [vmem:[%s19 + $0x10] sm:$0xff]
      %v3024 = vld [vmem:[%s19 + $0x18] sm:$0xff]
      %v3025 = vld [vmem:[%s19 + $0x20] sm:$0xff]
      %v3026 = vld [vmem:[%s19 + $0x28] sm:$0xff]
      %v3027 = vld [vmem:[%s19 + $0x30] sm:$0xff]
      %v3028 = vld [vmem:[%s19 + $0x38] sm:$0xff]
      %v3029 = vld [vmem:[%s20] sm:$0x1]
      %v3030 = vld [vmem:[%s21] sm:$0x1]
      %v3031 = vld [vmem:[%s22] sm:$0x1]
      %v3033 = vlaneseq
      %v3034 = vshrl.u32 %v3033, 7
      %v3035 = vsub.s32 0, %v3034
      %v3036 = vrot.slane %v3020, %v3035
      %3038 = vmatprep.subr.mxu0 0.0
      %3039 = vmatpush1.msra.mxu0 %v3019
      %3040 = vmatprep.subr.mxu0 0.0
      %3041 = vmatpush1.msra.mxu0 %v3018
      %3042 = vmatprep.subr.mxu0 0.0
      %3043 = vmatpush1.msra.mxu0 %v3017
      %3044 = vmatprep.subr.mxu0 0.0
      %3045 = vmatpush1.msra.mxu0 %v3016
      %3046 = vmatprep.subr.mxu0 0.0
      %3047 = vmatpush1.msra.mxu0 %v3015
      %3048 = vmatprep.subr.mxu0 0.0
      %3049 = vmatpush1.msra.mxu0 %v3014
      %3050 = vmatprep.subr.mxu0 0.0
      %3051 = vmatpush1.msra.mxu0 %v3013
      %3052 = vmatprep.subr.mxu0 0.0
      %3053 = vmatpush1.msra.mxu0 %v3012
      %3054 = vmatprep.subr.mxu0 0.0
      %3055 = vmatpush1.msra.mxu0 %v3011
      %3056 = vmatprep.subr.mxu0 0.0
      %3057 = vmatpush1.msra.mxu0 %v3010
      %3058 = vmatprep.subr.mxu0 0.0
      %3059 = vmatpush1.msra.mxu0 %v3009
      %3060 = vmatprep.subr.mxu0 0.0
      %3061 = vmatpush1.msra.mxu0 %v3008
      %3062 = vmatprep.subr.mxu0 0.0
      %3063 = vmatpush1.msra.mxu0 %v3007
      %3064 = vmatprep.subr.mxu0 0.0
      %3065 = vmatpush1.msra.mxu0 %v3006
      %3066 = vmatprep.subr.mxu0 0.0
      %3067 = vmatpush1.msra.mxu0 %v3005
      %3068 = vmatprep.subr.mxu0 0.0
      %3069 = vmatpush1.msra.mxu0 %v3004
      %3070 = vmatprep.subr.mxu0 0.0
      %3071 = vmatpush2.msra.mxu0 0.0
      %3072 = vmatprep.subr.mxu0 0.0
      %3073 = vmatpush2.msra.mxu0 0.0
      %3074 = vmatprep.subr.mxu0 0.0
      %3075 = vmatpush2.msra.mxu0 0.0
      %3076 = vmatprep.subr.mxu0 0.0
      %3077 = vmatpush2.msra.mxu0 0.0
      %3078 = vmatprep.subr.mxu0 0.0
      %3079 = vmatpush2.msra.mxu0 0.0
      %3080 = vmatprep.subr.mxu0 0.0
      %3081 = vmatpush2.msra.mxu0 0.0
      %3082 = vmatprep.subr.mxu0 0.0
      %3083 = vmatpush2.msra.mxu0 0.0
      %3084 = vmatprep.subr.mxu0 0.0
      %3085 = vmatpush2.msra.mxu0 0.0
      %3086 = vmatprep.subr.mxu0 0.0
      %3087 = vmatpush2.msra.mxu0 0.0
      %3088 = vmatprep.subr.mxu0 0.0
      %3089 = vmatpush2.msra.mxu0 0.0
      %3090 = vmatprep.subr.mxu0 0.0
      %3091 = vmatpush2.msra.mxu0 0.0
      %3092 = vmatprep.subr.mxu0 0.0
      %3093 = vmatpush2.msra.mxu0 0.0
      %3094 = vmatprep.subr.mxu0 0.0
      %3095 = vmatpush2.msra.mxu0 0.0
      %3096 = vmatprep.subr.mxu0 0.0
      %3097 = vmatpush2.msra.mxu0 0.0
      %3098 = vmatprep.subr.mxu0 0.0
      %3099 = vmatpush2.msra.mxu0 0.0
      %3100 = vmatprep.subr.mxu0 0.0
      %3101 = vmatpush2.msra.mxu0 0.0
      %3102 = vmatprep.mubr.f32.mxu0 0.0
      %3103 = vmatmul.mubr.f32.gmra.mxu0 %v3002
      %v3104 = vpop.f32.mrf.mxu0
      %v3105 = vadd.f32 %v3036, %v3104
      %v3106 = vpop.f32.mrf.mxu0
      %3107 = vmatprep.mubr.f32.mxu0 0.0
      %3108 = vmatmul.mubr.f32.gmra.mxu0 %v3003
      %v3109 = vpop.f32.mrf.mxu0
      %v3110 = vadd.f32 %v3036, %v3109
      %v3111 = vpop.f32.mrf.mxu0
      %3112 = vdwg.mxu0
      %v3113 = vmax.f32 %v3105, 0.0
      %v3114 = vmax.f32 %v3110, 0.0
      %v3116 = vlaneseq
      %v3117 = vshrl.u32 %v3116, 7
      %v3118 = vsub.s32 0, %v3117
      %v3119 = vrot.slane %v3029, %v3118
      %vm3121 = vcmask 523264
      %v3123 = vsel %vm3121, %v3113, 0
      %v3126 = vsel %vm3121, %v3114, 0
      %3128 = vmatprep.subr.mxu0 0.0
      %3129 = vmatpush1.msra.mxu0 0.0
      %3130 = vmatprep.subr.mxu0 0.0
      %3131 = vmatpush1.msra.mxu0 0.0
      %3132 = vmatprep.subr.mxu0 0.0
      %3133 = vmatpush1.msra.mxu0 0.0
      %3134 = vmatprep.subr.mxu0 0.0
      %3135 = vmatpush1.msra.mxu0 0.0
      %3136 = vmatprep.subr.mxu0 0.0
      %3137 = vmatpush1.msra.mxu0 0.0
      %3138 = vmatprep.subr.mxu0 0.0
      %3139 = vmatpush1.msra.mxu0 0.0
      %3140 = vmatprep.subr.mxu0 0.0
      %3141 = vmatpush1.msra.mxu0 0.0
      %3142 = vmatprep.subr.mxu0 0.0
      %3143 = vmatpush1.msra.mxu0 0.0
      %3144 = vmatprep.subr.mxu0 0.0
      %3145 = vmatpush1.msra.mxu0 %v3028
      %3146 = vmatprep.subr.mxu0 0.0
      %3147 = vmatpush1.msra.mxu0 %v3027
      %3148 = vmatprep.subr.mxu0 0.0
      %3149 = vmatpush1.msra.mxu0 %v3026
      %3150 = vmatprep.subr.mxu0 0.0
      %3151 = vmatpush1.msra.mxu0 %v3025
      %3152 = vmatprep.subr.mxu0 0.0
      %3153 = vmatpush1.msra.mxu0 %v3024
      %3154 = vmatprep.subr.mxu0 0.0
      %3155 = vmatpush1.msra.mxu0 %v3023
      %3156 = vmatprep.subr.mxu0 0.0
      %3157 = vmatpush1.msra.mxu0 %v3022
      %3158 = vmatprep.subr.mxu0 0.0
      %3159 = vmatpush1.msra.mxu0 %v3021
      %3160 = vmatprep.subr.mxu0 0.0
      %3161 = vmatpush2.msra.mxu0 0.0
      %3162 = vmatprep.subr.mxu0 0.0
      %3163 = vmatpush2.msra.mxu0 0.0
      %3164 = vmatprep.subr.mxu0 0.0
      %3165 = vmatpush2.msra.mxu0 0.0
      %3166 = vmatprep.subr.mxu0 0.0
      %3167 = vmatpush2.msra.mxu0 0.0
      %3168 = vmatprep.subr.mxu0 0.0
      %3169 = vmatpush2.msra.mxu0 0.0
      %3170 = vmatprep.subr.mxu0 0.0
      %3171 = vmatpush2.msra.mxu0 0.0
      %3172 = vmatprep.subr.mxu0 0.0
      %3173 = vmatpush2.msra.mxu0 0.0
      %3174 = vmatprep.subr.mxu0 0.0
      %3175 = vmatpush2.msra.mxu0 0.0
      %3176 = vmatprep.subr.mxu0 0.0
      %3177 = vmatpush2.msra.mxu0 0.0
      %3178 = vmatprep.subr.mxu0 0.0
      %3179 = vmatpush2.msra.mxu0 0.0
      %3180 = vmatprep.subr.mxu0 0.0
      %3181 = vmatpush2.msra.mxu0 0.0
      %3182 = vmatprep.subr.mxu0 0.0
      %3183 = vmatpush2.msra.mxu0 0.0
      %3184 = vmatprep.subr.mxu0 0.0
      %3185 = vmatpush2.msra.mxu0 0.0
      %3186 = vmatprep.subr.mxu0 0.0
      %3187 = vmatpush2.msra.mxu0 0.0
      %3188 = vmatprep.subr.mxu0 0.0
      %3189 = vmatpush2.msra.mxu0 0.0
      %3190 = vmatprep.subr.mxu0 0.0
      %3191 = vmatpush2.msra.mxu0 0.0
      %3192 = vmatprep.mubr.f32.mxu0 0.0
      %3193 = vmatmul.mubr.f32.gmra.mxu0 %v3123
      %v3194 = vpop.f32.mrf.mxu0
      %v3195 = vadd.f32 %v3119, %v3194
      %v3196 = vpop.f32.mrf.mxu0
      %3197 = vmatprep.mubr.f32.mxu0 0.0
      %3198 = vmatmul.mubr.f32.gmra.mxu0 %v3126
      %v3199 = vpop.f32.mrf.mxu0
      %v3200 = vadd.f32 %v3119, %v3199
      %v3201 = vpop.f32.mrf.mxu0
      %3202 = vdwg.mxu0
      %v3203 = vadd.f32 %v3195, %v3002
      %v3204 = vadd.f32 %v3200, %v3003
      %3205 = vadd.xlane.f32.xlu0 %v3203
      %v3206 = vpop.xlane.xlu0 %3205
      %v3207 = vsel %vm962, %v3204, 0.0
      %3208 = vadd.xlane.f32.xlu0 %v3207
      %v3209 = vpop.xlane.xlu0 %3208
      %v3210 = vmul.f32 %v3206, 0.03125
      %v3211 = vmul.f32 %v3209, 0.03125
      %v3212 = vmul.f32 %v3203, %v3203
      %v3213 = vmul.f32 %v3204, %v3204
      %3214 = vadd.xlane.f32.xlu0 %v3212
      %v3215 = vpop.xlane.xlu0 %3214
      %v3216 = vsel %vm962, %v3213, 0.0
      %3217 = vadd.xlane.f32.xlu0 %v3216
      %v3218 = vpop.xlane.xlu0 %3217
      %v3219 = vmul.f32 %v3215, 0.03125
      %v3220 = vmul.f32 %v3218, 0.03125
      %v3221 = vmul.f32 %v3210, %v3210
      %v3222 = vmul.f32 %v3211, %v3211
      %v3223 = vsub.f32 %v3219, %v3221
      %v3224 = vsub.f32 %v3220, %v3222
      %v3225 = vmax.f32 %v3223, 0.0
      %v3226 = vmax.f32 %v3224, 0.0
      %v3227 = vsub.f32 %v3203, %v3210
      %v3228 = vsub.f32 %v3204, %v3211
      %v3229 = vadd.f32 %v3225, 1e-05
      %v3230 = vadd.f32 %v3226, 1e-05
      %v3231 = vrsqrt.pop %v3229
      %v3232 = vrsqrt.pop %v3230
      %v3233 = vmul.f32 %v3227, %v3231
      %v3234 = vmul.f32 %v3228, %v3232
      %v3236 = vlaneseq
      %v3237 = vshrl.u32 %v3236, 7
      %v3238 = vsub.s32 0, %v3237
      %v3239 = vrot.slane %v3030, %v3238
      %v3241 = vmul.f32 %v3233, %v3239
      %v3242 = vmul.f32 %v3234, %v3239
      %v3244 = vlaneseq
      %v3245 = vshrl.u32 %v3244, 7
      %v3246 = vsub.s32 0, %v3245
      %v3247 = vrot.slane %v3031, %v3246
      %v3249 = vadd.f32 %v3241, %v3247
      %v3250 = vadd.f32 %v3242, %v3247
      %3251 = vst [vmem:[%s710] sm:$0xff] %v3249
      %3252 = vst [vmem:[%s710 + $0x8] sm:$0x1] %v3250
      %p3253 = scmp.lt.s32.totalorder %s40, 1
      %s3254 = scalar_select %p3253, %s40, 1
      %s3255 = smul.addr %s3254, 2
      %s3256 = smul.addr %s3255, 8
      %s3257 = scalar_lea.vmem %s23, %s3256
      // Predicated region
      $region109: #{transformer_forward.6} parent=107 // pred_check
        %p3258 = pneg %p530
      $region110: #{transformer_forward.6} parent=107 // pred_check_branch
        %3260 = sbr.rel (%p3258) target = $region112
      $region111: #{transformer_forward.6} parent=107 // pred_region
        _
      $region112: #{transformer_forward.6} parent=107 // pred_fallthru
        _
    $region108: #{transformer_forward.6} parent=5 // pred_fallthru
      _
    %p3261 = scmp.le.s32.totalorder 2, %s35
    // Predicated region
    $region113: #{transformer_forward.6} parent=5 // pred_check
      %p3262 = pneg %p3261
    $region114: #{transformer_forward.6} parent=5 // pred_check_branch
      %3264 = sbr.rel (%p3262) target = $region116
    $region115: #{transformer_forward.6} parent=5 // pred_region
      %s3265 = ssub.s32 %s35, 2
      // Predicated region
      $region117: #{transformer_forward.6} parent=115 // pred_check
        %p3266 = pneg %p536
      $region118: #{transformer_forward.6} parent=115 // pred_check_branch
        %3268 = sbr.rel (%p3266) target = $region120
      $region119: #{transformer_forward.6} parent=115 // pred_region
        %p3269 = scmp.lt.s32.totalorder %s41, 1
        %s3270 = scalar_select %p3269, %s41, 1
        %s3271 = smul.addr %s3270, 2
        %s3272 = smul.addr %s3271, 8
        %s3273 = scalar_lea.vmem %s23, %s3272
      $region120: #{transformer_forward.6} parent=115 // pred_fallthru
        _
    $region116: #{transformer_forward.6} parent=5 // pred_fallthru
      _
  $region6: #{transformer_forward.6} parent=0 // loop_footer
    %s39 = sadd.s32 1, %s35
  $region7: #{transformer_forward.6} parent=0 // loop_footer_branch
    %34 = sbr.rel target = $region3
  $region8: #{transformer_forward.6} parent=0 // loop_exit
    _

</llo_original>
